<compile_context>
chip_gen: v7x
topology: tpu7x:2x2x1
jax: 0.10.0
libtpu: 0.0.40
codegen_flags: <defaults>
</compile_context>

<pallas_src>
import math
from functools import partial

import numpy as np
import jax
import jax.numpy as jnp
from jax.experimental import pallas as pl
from jax.experimental.pallas import tpu as pltpu

_VMEM_SPEC = partial(pl.BlockSpec, memory_space=pltpu.MemorySpace.VMEM)
_LN_EPS = 1e-6
_INV_SQRT2 = 0.7071067811865476


def _align8(n):
    return (n + 7) // 8 * 8


# --------------------------------------------------------------- in-kernel --

def _ln(x, g, b):
    """LayerNorm over the last (channel / lane) axis.  x:(N,C)  g,b:(1,C)."""
    mu = jnp.mean(x, axis=-1, keepdims=True)
    d = x - mu
    var = jnp.mean(d * d, axis=-1, keepdims=True)
    return d * jax.lax.rsqrt(var + _LN_EPS) * g + b


def _gelu_exact(x):
    """PyTorch-exact GELU via Abramowitz-Stegun 7.1.26 (|err| ~ 1e-7).
    The reciprocal uses the EUP (vrcp) + one Newton step so it stays off the
    VALU while keeping ~f32 accuracy (review item)."""
    z = x * _INV_SQRT2
    az = jnp.abs(z)
    den = 1.0 + 0.3275911 * az
    r = pl.reciprocal(den, approx=True)
    r = r * (2.0 - den * r)                      # Newton refinement -> err ~ eps^2
    poly = ((((1.061405429 * r - 1.453152027) * r + 1.421413741) * r
             - 0.284496736) * r + 0.254829592) * r
    erf_abs = 1.0 - poly * jnp.exp(-az * az)
    erf = jnp.where(z >= 0.0, erf_abs, -erf_abs)
    return 0.5 * x * (1.0 + erf)


# ----------------------------------------------------- host-side static meta --

def _derive_static(B, in_chans, H, W, strds, dims):
    """Per-stage static geometry + packed-slab row offsets.  Pure host ints -
    the old O((B*H*W)^2) S-matrix / mask construction is gone."""
    stages = []
    h, w, cprev = H, W, in_chans
    nst = len(strds)
    for i, (s, c) in enumerate(zip(strds, dims)):
        ho, wo = h // s, w // s
        st = {'i': i, 's': s, 'c': c, 'cprev': cprev,
              'h_in': h, 'w_in': w, 'h': ho, 'w': wo,
              'n_in': B * h * w, 'n': B * ho * wo}

        # 7x7 dwconv zero-halo padded buffer geometry (flat layout).
        #   padded row stride wp (multiple of 8, >= wo+6); 3 halo padded-rows
        #   above/below each image; data at column 0 of each padded row (the
        #   3 "left halo" columns are the zeroed tail of the previous row).
        wp = _align8(wo + 6)
        hp = ho + 6
        nd = B * hp * wp
        front = _align8(3 * wp + 3)              # every tap window start >= 0
        total = _align8(front + nd + 3 * wp + 3)
        st.update(wp=wp, hp=hp, nd=nd, front=front, total=total)

        # A-slab (lane width = c) section offsets, matmul sections 8-aligned.
        dsw_rows = s * s * (in_chans if i == 0 else cprev)
        off = {}
        r = 0
        off['dsw'] = r; r = _align8(r + dsw_rows)
        off['w2'] = r; r = _align8(r + 4 * c)
        off['dww'] = r; r = _align8(r + 49)
        vec_names = (['b_ds', 'stem_g', 'stem_b'] if i == 0 else ['b_ds'])
        vec_names += ['dw_b', 'ln_g', 'ln_b', 'b2', 'gamma']
        if i + 1 < nst:
            vec_names += ['nxt_g', 'nxt_b']      # NEXT stage's pre-LN (width c)
        for nm in vec_names:
            off[nm] = r
            r += 1
        st['off'] = off
        st['dsw_rows'] = dsw_rows
        st['a_rows'] = _align8(r)
        stages.append(st)
        h, w, cprev = ho, wo, c
    return stages


# ---------------------------------------------------------------- parameters --

def init_params(key, in_chans, strds, dims):
    """Random params.  Weight layouts (documented, internally consistent):
      down 'w'   : (s*s*Cin, Cout)  row = (dy*s+dx)*Cin + cin   (im2col)
      block dw_w : (49, C)          row = dy*7 + dx             (depthwise 7x7)
      w1:(C,4C) b1:(1,4C) w2:(4C,C) b2:(1,C) gamma:(1,C)."""
    params = {'down': [], 'block': []}
    prev = in_chans
    for i, (s, d) in enumerate(zip(strds, dims)):
        key, k_conv, k_dw, k_w1, k_w2 = jax.random.split(key, 5)
        ln_c = d if i == 0 else prev             # stem: post-LN; others: pre-LN
        params['down'].append({
            'w': 0.02 * jax.random.normal(k_conv, (s * s * prev, d), jnp.float32),
            'b': jnp.zeros((1, d), jnp.float32),
            'ln_g': jnp.ones((1, ln_c), jnp.float32),
            'ln_b': jnp.zeros((1, ln_c), jnp.float32)})
        params['block'].append({
            'dw_w': 0.02 * jax.random.normal(k_dw, (49, d), jnp.float32),
            'dw_b': jnp.zeros((1, d), jnp.float32),
            'ln_g': jnp.ones((1, d), jnp.float32),
            'ln_b': jnp.zeros((1, d), jnp.float32),
            'w1': 0.02 * jax.random.normal(k_w1, (d, 4 * d), jnp.float32),
            'b1': jnp.zeros((1, 4 * d), jnp.float32),
            'w2': 0.02 * jax.random.normal(k_w2, (4 * d, d), jnp.float32),
            'b2': jnp.zeros((1, d), jnp.float32),
            'gamma': 1e-6 * jnp.ones((1, d), jnp.float32)})
        prev = d
    return params


def _pack_rows(sections, total_rows, width):
    """Assemble one (total_rows, width) slab from (row_offset, array) sections,
    zero-filling alignment gaps."""
    rows, cur = [], 0
    for off, arr in sorted(sections, key=lambda p: p[0]):
        if off > cur:
            rows.append(jnp.zeros((off - cur, width), jnp.float32))
        rows.append(arr.astype(jnp.float32))
        cur = off + arr.shape[0]
    if total_rows > cur:
        rows.append(jnp.zeros((total_rows - cur, width), jnp.float32))
    return jnp.concatenate(rows, axis=0)


def _pack_stage_slabs(params, stages):
    """Two operands per stage:  A (width C): [ds W | w2 | dw7x7 | (1,C) vecs
    incl. next stage's pre-LN];  B: [w1 ; b1] (width 4C)."""
    a_slabs, b_slabs = [], []
    nst = len(stages)
    for i, st in enumerate(stages):
        d, blk = params['down'][i], params['block'][i]
        off, c = st['off'], st['c']
        secs = [(off['dsw'], d['w']), (off['w2'], blk['w2']),
                (off['dww'], blk['dw_w']),
                (off['b_ds'], d['b']), (off['dw_b'], blk['dw_b']),
                (off['ln_g'], blk['ln_g']), (off['ln_b'], blk['ln_b']),
                (off['b2'], blk['b2']), (off['gamma'], blk['gamma'])]
        if i == 0:
            secs += [(off['stem_g'], d['ln_g']), (off['stem_b'], d['ln_b'])]
        if i + 1 < nst:
            dn = params['down'][i + 1]
            secs += [(off['nxt_g'], dn['ln_g']), (off['nxt_b'], dn['ln_b'])]
        a_slabs.append(_pack_rows(secs, st['a_rows'], c))
        b_slabs.append(jnp.concatenate([blk['w1'], blk['b1']], axis=0))
    return a_slabs, b_slabs


# --------------------------------------------------------------- the kernel --

def _convnext_block(x, st, bsz, a_ref, b_ref, pad_ref):
    """dw7x7 (zero-halo, no masks) -> LN -> Linear -> GELU -> Linear ->
    layer-scale -> residual.  x: (N, C) compact value."""
    c, H, W = st['c'], st['h'], st['w']
    Wp, HP, F, T, Nd = st['wp'], st['hp'], st['front'], st['total'], st['nd']
    off = st['off']

    # ---- scatter into the zero-halo padded buffer.  Data rows stored exactly
    #      once; only halo/margin gaps are zero-filled (review item).  All data
    #      stores start on 8-row boundaries (Wp % 8 == 0, data at column 0).
    cur = 0
    for b in range(bsz):
        for h in range(H):
            row = F + (b * HP + 3 + h) * Wp
            if row > cur:
                pad_ref[cur:row, :] = jnp.zeros((row - cur, c), jnp.float32)
            pad_ref[row:row + W, :] = x[(b * H + h) * W:(b * H + h + 1) * W, :]
            cur = row + W
    if T > cur:
        pad_ref[cur:T, :] = jnp.zeros((T - cur, c), jnp.float32)

    # ---- 7x7 depthwise conv: 49 shifted full-window reads; out-of-range taps
    #      read only zeroed halo rows/columns (no mask multiplies).
    acc = None
    for dy in range(7):
        for dx in range(7):
            k = dy * 7 + dx
            lo = F + (dy - 3) * Wp + (dx - 3)
            wk = a_ref[off['dww'] + k:off['dww'] + k + 1, :]
            term = pad_ref[lo:lo + Nd, :] * wk
            acc = term if acc is None else acc + term

    # ---- gather valid rows back to the compact (N, C) layout (8-aligned).
    parts = []
    for b in range(bsz):
        for h in range(H):
            q = (b * HP + 3 + h) * Wp
            parts.append(acc[q:q + W, :])
    y = parts[0] if len(parts) == 1 else jnp.concatenate(parts, axis=0)
    y = y + a_ref[off['dw_b']:off['dw_b'] + 1, :]

    # ---- LN -> MLP -> layer-scale -> residual
    y = _ln(y, a_ref[off['ln_g']:off['ln_g'] + 1, :],
            a_ref[off['ln_b']:off['ln_b'] + 1, :])
    w1 = b_ref[0:c, :]
    b1 = b_ref[c:c + 1, :]
    hdn = _gelu_exact(jnp.dot(y, w1, preferred_element_type=jnp.float32) + b1)
    w2 = a_ref[off['w2']:off['w2'] + 4 * c, :]
    y = jnp.dot(hdn, w2, preferred_element_type=jnp.float32)
    y = y + a_ref[off['b2']:off['b2'] + 1, :]
    return x + a_ref[off['gamma']:off['gamma'] + 1, :] * y


def _build_fused_kernel(stages, bsz, l_xy, l_m, m_xy, l_slab):
    nst = len(stages)
    n_in = 1 + 2 * nst + 2

    def kernel(*refs):
        in_refs = refs[:n_in]
        out_ref = refs[n_in]
        pad_refs = refs[n_in + 1:n_in + 1 + nst]
        patches_ref = in_refs[0]
        a_refs = [in_refs[1 + 2 * i] for i in range(nst)]
        b_refs = [in_refs[2 + 2 * i] for i in range(nst)]
        pe_ref = in_refs[1 + 2 * nst]
        t_ref = in_refs[2 + 2 * nst]

        # ------------------------------ ConvNeXt encoder ------------------------------
        preln = None
        x = patches_ref[...]
        for i, st in enumerate(stages):
            a_ref, b_ref, pad_ref = a_refs[i], b_refs[i], pad_refs[i]
            off, c, s = st['off'], st['c'], st['s']

            if i == 0:
                # Stem patch conv (input im2col'd outside) + channels_first LN.
                w_ds = a_ref[off['dsw']:off['dsw'] + st['dsw_rows'], :]
                y = jnp.dot(x, w_ds, preferred_element_type=jnp.float32)
                y = y + a_ref[off['b_ds']:off['b_ds'] + 1, :]
                y = _ln(y, a_ref[off['stem_g']:off['stem_g'] + 1, :],
                        a_ref[off['stem_b']:off['stem_b'] + 1, :])
            else:
                # Pre-downsample LN, then strided-row im2col gather (review:
                # replaces the dense O(N^2) S matrices) + one matmul.
                prev_st, prev_pad = stages[i - 1], pad_refs[i - 1]
                g = _ln(x, preln[0], preln[1])
                prev_pad[0:prev_st['n'], :] = g          # reuse dead pad buffer
                h_in, w_in, wo = st['h_in'], st['w_in'], st['w']
                chunks = []
                for b in range(bsz):
                    for oh in range(st['h']):
                        pieces = []
                        for dy in range(s):
                            for dx in range(s):
                                start = (b * h_in + oh * s + dy) * w_in + dx
                                pieces.append(
                                    prev_pad[pl.ds(start, wo, stride=s), :])
                        chunks.append(jnp.concatenate(pieces, axis=-1))
                patches = (chunks[0] if len(chunks) == 1
                           else jnp.concatenate(chunks, axis=0))
                w_ds = a_ref[off['dsw']:off['dsw'] + st['dsw_rows'], :]
                y = jnp.dot(patches, w_ds, preferred_element_type=jnp.float32)
                y = y + a_ref[off['b_ds']:off['b_ds'] + 1, :]

            x = _convnext_block(y, st, bsz, a_ref, b_ref, pad_ref)

            if i + 1 < nst:
                preln = (a_ref[off['nxt_g']:off['nxt_g'] + 1, :],
                         a_ref[off['nxt_b']:off['nxt_b'] + 1, :])

        feat = x                                         # (n_last, c_last)

        # ------------------------- positional embeddings -------------------------
        pe = pe_ref[...]
        vx = pe[0:m_xy, 0:l_xy]
        vy = pe[0:m_xy, l_xy:2 * l_xy]
        xy = jnp.concatenate([jnp.sin(vx), jnp.cos(vx),
                              jnp.sin(vy), jnp.cos(vy)], axis=-1)
        vt = t_ref[...] * pe[m_xy:m_xy + 1, 0:l_m]
        tman = jnp.concatenate([jnp.sin(vt), jnp.cos(vt)], axis=-1)

        # ---------------- single packed output slab (one output DMA) -------------
        def padw(v):
            if v.shape[1] < l_slab:
                return jnp.concatenate(
                    [v, jnp.zeros((v.shape[0], l_slab - v.shape[1]), jnp.float32)],
                    axis=-1)
            return v

        out_ref[...] = jnp.concatenate([padw(feat), padw(xy), padw(tman)], axis=0)

    return kernel


# ------------------------------------------------------------------ forward --

def pos_encoding_henerv_forward(params, image_nchw, t, *, enc_strds,
                                xy_bases, manip_bases, fc_h, fc_w, qbit=None):
    assert t.ndim == 1
    B, in_chans, H, W = image_nchw.shape
    dims = [int(p['b2'].shape[1]) for p in params['block']]
    strds = tuple(int(s) for s in enc_strds)
    stages = _derive_static(B, in_chans, H, W, strds, dims)
    nst = len(stages)

    # Stem im2col: a couple of cheap XLA ops on the raw image; everything
    # downstream runs inside the single fused Pallas kernel (f32 kept end to
    # end to match the PyTorch reference exactly).
    s0 = strds[0]
    ho0, wo0 = H // s0, W // s0
    x_nhwc = jnp.transpose(image_nchw, (0, 2, 3, 1)).astype(jnp.float32)
    patches0 = x_nhwc.reshape(B, ho0, s0, wo0, s0, in_chans)
    patches0 = patches0.transpose(0, 1, 3, 2, 4, 5).reshape(
        B * ho0 * wo0, s0 * s0 * in_chans)

    a_slabs, b_slabs = _pack_stage_slabs(params, stages)

    # Positional-encoding constants folded host-side (numpy) into ONE operand:
    # rows [0, m_xy): [x*bases | y*bases]; last row: manip_bases.
    l_xy = int(xy_bases.shape[0])
    l_m = int(manip_bases.shape[0])
    m_xy = fc_h * fc_w
    pe_w = max(2 * l_xy, l_m)
    idx = np.arange(m_xy)
    cx = (idx // fc_w).astype(np.float32) / fc_h
    cy = (idx % fc_w).astype(np.float32) / fc_w
    xyb = np.asarray(xy_bases, np.float32)
    pe = np.zeros((m_xy + 1, pe_w), np.float32)
    pe[:m_xy, :l_xy] = cx[:, None] * xyb[None, :]
    pe[:m_xy, l_xy:2 * l_xy] = cy[:, None] * xyb[None, :]
    pe[m_xy, :l_m] = np.asarray(manip_bases, np.float32)

    last = stages[-1]
    n_last, c_last = last['n'], last['c']
    l_slab = max(c_last, 4 * l_xy, 2 * l_m)
    r_slab = n_last + m_xy + B

    inputs = [patches0]
    for a, bw in zip(a_slabs, b_slabs):
        inputs += [a, bw]
    inputs += [jnp.asarray(pe), t.astype(jnp.float32).reshape(B, 1)]

    kernel = _build_fused_kernel(stages, B, l_xy, l_m, m_xy, l_slab)
    scratch = [pltpu.VMEM((st['total'], st['c']), jnp.float32) for st in stages]

    slab = pl.pallas_call(
        kernel,
        out_shape=jax.ShapeDtypeStruct((r_slab, l_slab), jnp.float32),
        in_specs=[_VMEM_SPEC()] * len(inputs),
        out_specs=_VMEM_SPEC(),
        scratch_shapes=scratch,
        compiler_params=pltpu.CompilerParams(vmem_limit_bytes=32 * 1024 * 1024),
    )(*inputs)

    feat = slab[:n_last, :c_last]
    xy_embed = slab[n_last:n_last + m_xy, :4 * l_xy]
    tman = slab[n_last + m_xy:n_last + m_xy + B, :2 * l_m]

    # NHWC-row order -> NCHW flatten so .view(B,-1,1,1) matches PyTorch.
    hf, wf = last['h'], last['w']
    encoded = feat.reshape(B, hf, wf, c_last).transpose(0, 3, 1, 2).reshape(B, -1, 1, 1)

    if qbit is not None:
        # TODO(synk): compute_best_quant_axis / _quantize_ste were not provided;
        # the qbit quantization path is not implemented.
        raise NotImplementedError("qbit quantization path not available")

    return {'t_embed': encoded,
            'xy_embed': xy_embed,
            't_manipulate_embed': tman}


# --------------------------------------------------------------------- main --

if __name__ == "__main__":
    key = jax.random.PRNGKey(0)
    key, k_img = jax.random.split(key)

    # Small config consistent with the module's __init__.
    enc_strds = (4, 2, 2)                 # 16 -> 4 -> 2 -> 1 spatial
    enc_dims = "16_8"
    xy_lbase, xy_levels = 1.25, 4
    manip_lbase, manip_levels = 1.25, 4
    fc_h, fc_w = 8, 8

    enc_dim1, enc_dim2 = [int(v) for v in enc_dims.split('_')]
    dims = [enc_dim1] * len(enc_strds)
    dims[-1] = enc_dim2

    xy_bases = (xy_lbase ** jnp.arange(xy_levels, dtype=jnp.float32)) * math.pi
    manip_bases = (manip_lbase ** jnp.arange(manip_levels, dtype=jnp.float32)) * math.pi

    params = init_params(key, 3, enc_strds, dims)

    image = jax.random.normal(k_img, (2, 3, 16, 16), jnp.float32)   # NCHW like PyTorch
    t = jnp.arange(2, dtype=jnp.float32)

    fwd = jax.jit(partial(pos_encoding_henerv_forward,
                          enc_strds=enc_strds, xy_bases=xy_bases,
                          manip_bases=manip_bases, fc_h=fc_h, fc_w=fc_w))
    out = fwd(params, image, t)
    out = jax.block_until_ready(out)

    assert out['t_embed'].shape == (2, dims[-1] * 1 * 1, 1, 1)
    assert out['xy_embed'].shape == (fc_h * fc_w, 4 * xy_levels)
    assert out['t_manipulate_embed'].shape == (2, 2 * manip_levels)
    assert bool(jnp.all(jnp.isfinite(out['t_embed'])))
    print("KERNEL_OK")
</pallas_src>

<mosaic_0001>
module attributes {stable_mosaic.version = 11 : i64} {
  func.func @kernel(%arg0: memref<32x48xf32, #tpu.memory_space<vmem>>, %arg1: memref<184x16xf32, #tpu.memory_space<vmem>>, %arg2: memref<17x64xf32, #tpu.memory_space<vmem>>, %arg3: memref<192x16xf32, #tpu.memory_space<vmem>>, %arg4: memref<17x64xf32, #tpu.memory_space<vmem>>, %arg5: memref<160x8xf32, #tpu.memory_space<vmem>>, %arg6: memref<9x32xf32, #tpu.memory_space<vmem>>, %arg7: memref<65x8xf32, #tpu.memory_space<vmem>>, %arg8: memref<2x1xf32, #tpu.memory_space<vmem>>, %arg9: memref<68x16xf32, #tpu.memory_space<vmem>>, %arg10: memref<432x16xf32, #tpu.memory_space<vmem>>, %arg11: memref<192x16xf32, #tpu.memory_space<vmem>>, %arg12: memref<176x8xf32, #tpu.memory_space<vmem>>) attributes {dimension_semantics = [], scalar_prefetch = 0 : i64, scratch_operands = 3 : i64, tpu.core_type = #tpu.core_type<tc>} {
    %c0 = arith.constant 0 : index
    %c0_0 = arith.constant 0 : index
    %0 = vector.load %arg0[%c0, %c0_0] : memref<32x48xf32, #tpu.memory_space<vmem>>, vector<32x48xf32>
    %c0_1 = arith.constant 0 : index
    %c0_2 = arith.constant 0 : index
    %1 = vector.load %arg1[%c0_1, %c0_2] : memref<184x16xf32, #tpu.memory_space<vmem>>, vector<48x16xf32>
    %cst = arith.constant dense<0.000000e+00> : vector<32x16xf32>
    %2 = tpu.matmul %0, %1, %cst {dimension_numbers = #tpu.dot_dimension_numbers<[1], [0], [0], [1], [0, 0, 1, 1], [], []>} : vector<32x48xf32>, vector<48x16xf32>, vector<32x16xf32> -> vector<32x16xf32>
    %c168 = arith.constant 168 : index
    %c0_3 = arith.constant 0 : index
    %3 = vector.load %arg1[%c168, %c0_3] : memref<184x16xf32, #tpu.memory_space<vmem>>, vector<1x16xf32>
    %4 = vector.broadcast %3 : vector<1x16xf32> to vector<32x16xf32>
    %5 = arith.addf %2, %4 : vector<32x16xf32>
    %c169 = arith.constant 169 : index
    %c0_4 = arith.constant 0 : index
    %6 = vector.load %arg1[%c169, %c0_4] : memref<184x16xf32, #tpu.memory_space<vmem>>, vector<1x16xf32>
    %c170 = arith.constant 170 : index
    %c0_5 = arith.constant 0 : index
    %7 = vector.load %arg1[%c170, %c0_5] : memref<184x16xf32, #tpu.memory_space<vmem>>, vector<1x16xf32>
    %cst_6 = arith.constant dense<0.000000e+00> : vector<32xf32>
    %8 = vector.multi_reduction <add>, %5, %cst_6 [1] : vector<32x16xf32> to vector<32xf32>
    %9 = vector.shape_cast %8 : vector<32xf32> to vector<32x1xf32>
    %cst_7 = arith.constant 1.600000e+01 : f32
    %10 = vector.broadcast %cst_7 : f32 to vector<32x1xf32>
    %11 = arith.divf %9, %10 : vector<32x1xf32>
    %12 = vector.broadcast %11 : vector<32x1xf32> to vector<32x16xf32>
    %13 = arith.subf %5, %12 : vector<32x16xf32>
    %14 = arith.mulf %13, %13 : vector<32x16xf32>
    %cst_8 = arith.constant dense<0.000000e+00> : vector<32xf32>
    %15 = vector.multi_reduction <add>, %14, %cst_8 [1] : vector<32x16xf32> to vector<32xf32>
    %16 = vector.shape_cast %15 : vector<32xf32> to vector<32x1xf32>
    %cst_9 = arith.constant 1.600000e+01 : f32
    %17 = vector.broadcast %cst_9 : f32 to vector<32x1xf32>
    %18 = arith.divf %16, %17 : vector<32x1xf32>
    %cst_10 = arith.constant 9.99999997E-7 : f32
    %19 = vector.broadcast %cst_10 : f32 to vector<32x1xf32>
    %20 = arith.addf %18, %19 : vector<32x1xf32>
    %21 = math.rsqrt %20 : vector<32x1xf32>
    %22 = vector.broadcast %21 : vector<32x1xf32> to vector<32x16xf32>
    %23 = arith.mulf %13, %22 : vector<32x16xf32>
    %24 = vector.broadcast %6 : vector<1x16xf32> to vector<32x16xf32>
    %25 = arith.mulf %23, %24 : vector<32x16xf32>
    %26 = vector.broadcast %7 : vector<1x16xf32> to vector<32x16xf32>
    %27 = arith.addf %25, %26 : vector<32x16xf32>
    %cst_11 = arith.constant 0.000000e+00 : f32
    %28 = vector.broadcast %cst_11 : f32 to vector<104x16xf32>
    %c0_12 = arith.constant 0 : index
    %c0_13 = arith.constant 0 : index
    %29 = vector.load %arg10[%c0_12, %c0_13] : memref<432x16xf32, #tpu.memory_space<vmem>>, vector<104x16xf32>
    tpu.vector_store %arg10[%c0_12, %c0_13], %28 {strides = array<i32>} : memref<432x16xf32, #tpu.memory_space<vmem>>, vector<104x16xf32>,
    %30 = vector.extract_strided_slice %27 {offsets = [0, 0], sizes = [4, 16], strides = [1, 1]} : vector<32x16xf32> to vector<4x16xf32>
    %c104 = arith.constant 104 : index
    %c0_14 = arith.constant 0 : index
    %31 = vector.load %arg10[%c104, %c0_14] : memref<432x16xf32, #tpu.memory_space<vmem>>, vector<4x16xf32>
    tpu.vector_store %arg10[%c104, %c0_14], %30 {strides = array<i32>} : memref<432x16xf32, #tpu.memory_space<vmem>>, vector<4x16xf32>,
    %cst_15 = arith.constant 0.000000e+00 : f32
    %32 = vector.broadcast %cst_15 : f32 to vector<12x16xf32>
    %c108 = arith.constant 108 : index
    %c0_16 = arith.constant 0 : index
    %33 = vector.load %arg10[%c108, %c0_16] : memref<432x16xf32, #tpu.memory_space<vmem>>, vector<12x16xf32>
    tpu.vector_store %arg10[%c108, %c0_16], %32 {strides = array<i32>} : memref<432x16xf32, #tpu.memory_space<vmem>>, vector<12x16xf32>,
    %34 = vector.extract_strided_slice %27 {offsets = [4, 0], sizes = [4, 16], strides = [1, 1]} : vector<32x16xf32> to vector<4x16xf32>
    %c120 = arith.constant 120 : index
    %c0_17 = arith.constant 0 : index
    %35 = vector.load %arg10[%c120, %c0_17] : memref<432x16xf32, #tpu.memory_space<vmem>>, vector<4x16xf32>
    tpu.vector_store %arg10[%c120, %c0_17], %34 {strides = array<i32>} : memref<432x16xf32, #tpu.memory_space<vmem>>, vector<4x16xf32>,
    %cst_18 = arith.constant 0.000000e+00 : f32
    %36 = vector.broadcast %cst_18 : f32 to vector<12x16xf32>
    %c124 = arith.constant 124 : index
    %c0_19 = arith.constant 0 : index
    %37 = vector.load %arg10[%c124, %c0_19] : memref<432x16xf32, #tpu.memory_space<vmem>>, vector<12x16xf32>
    tpu.vector_store %arg10[%c124, %c0_19], %36 {strides = array<i32>} : memref<432x16xf32, #tpu.memory_space<vmem>>, vector<12x16xf32>,
    %38 = vector.extract_strided_slice %27 {offsets = [8, 0], sizes = [4, 16], strides = [1, 1]} : vector<32x16xf32> to vector<4x16xf32>
    %c136 = arith.constant 136 : index
    %c0_20 = arith.constant 0 : index
    %39 = vector.load %arg10[%c136, %c0_20] : memref<432x16xf32, #tpu.memory_space<vmem>>, vector<4x16xf32>
    tpu.vector_store %arg10[%c136, %c0_20], %38 {strides = array<i32>} : memref<432x16xf32, #tpu.memory_space<vmem>>, vector<4x16xf32>,
    %cst_21 = arith.constant 0.000000e+00 : f32
    %40 = vector.broadcast %cst_21 : f32 to vector<12x16xf32>
    %c140 = arith.constant 140 : index
    %c0_22 = arith.constant 0 : index
    %41 = vector.load %arg10[%c140, %c0_22] : memref<432x16xf32, #tpu.memory_space<vmem>>, vector<12x16xf32>
    tpu.vector_store %arg10[%c140, %c0_22], %40 {strides = array<i32>} : memref<432x16xf32, #tpu.memory_space<vmem>>, vector<12x16xf32>,
    %42 = vector.extract_strided_slice %27 {offsets = [12, 0], sizes = [4, 16], strides = [1, 1]} : vector<32x16xf32> to vector<4x16xf32>
    %c152 = arith.constant 152 : index
    %c0_23 = arith.constant 0 : index
    %43 = vector.load %arg10[%c152, %c0_23] : memref<432x16xf32, #tpu.memory_space<vmem>>, vector<4x16xf32>
    tpu.vector_store %arg10[%c152, %c0_23], %42 {strides = array<i32>} : memref<432x16xf32, #tpu.memory_space<vmem>>, vector<4x16xf32>,
    %cst_24 = arith.constant 0.000000e+00 : f32
    %44 = vector.broadcast %cst_24 : f32 to vector<108x16xf32>
    %c156 = arith.constant 156 : index
    %c0_25 = arith.constant 0 : index
    %45 = vector.load %arg10[%c156, %c0_25] : memref<432x16xf32, #tpu.memory_space<vmem>>, vector<108x16xf32>
    tpu.vector_store %arg10[%c156, %c0_25], %44 {strides = array<i32>} : memref<432x16xf32, #tpu.memory_space<vmem>>, vector<108x16xf32>,
    %46 = vector.extract_strided_slice %27 {offsets = [16, 0], sizes = [4, 16], strides = [1, 1]} : vector<32x16xf32> to vector<4x16xf32>
    %c264 = arith.constant 264 : index
    %c0_26 = arith.constant 0 : index
    %47 = vector.load %arg10[%c264, %c0_26] : memref<432x16xf32, #tpu.memory_space<vmem>>, vector<4x16xf32>
    tpu.vector_store %arg10[%c264, %c0_26], %46 {strides = array<i32>} : memref<432x16xf32, #tpu.memory_space<vmem>>, vector<4x16xf32>,
    %cst_27 = arith.constant 0.000000e+00 : f32
    %48 = vector.broadcast %cst_27 : f32 to vector<12x16xf32>
    %c268 = arith.constant 268 : index
    %c0_28 = arith.constant 0 : index
    %49 = vector.load %arg10[%c268, %c0_28] : memref<432x16xf32, #tpu.memory_space<vmem>>, vector<12x16xf32>
    tpu.vector_store %arg10[%c268, %c0_28], %48 {strides = array<i32>} : memref<432x16xf32, #tpu.memory_space<vmem>>, vector<12x16xf32>,
    %50 = vector.extract_strided_slice %27 {offsets = [20, 0], sizes = [4, 16], strides = [1, 1]} : vector<32x16xf32> to vector<4x16xf32>
    %c280 = arith.constant 280 : index
    %c0_29 = arith.constant 0 : index
    %51 = vector.load %arg10[%c280, %c0_29] : memref<432x16xf32, #tpu.memory_space<vmem>>, vector<4x16xf32>
    tpu.vector_store %arg10[%c280, %c0_29], %50 {strides = array<i32>} : memref<432x16xf32, #tpu.memory_space<vmem>>, vector<4x16xf32>,
    %cst_30 = arith.constant 0.000000e+00 : f32
    %52 = vector.broadcast %cst_30 : f32 to vector<12x16xf32>
    %c284 = arith.constant 284 : index
    %c0_31 = arith.constant 0 : index
    %53 = vector.load %arg10[%c284, %c0_31] : memref<432x16xf32, #tpu.memory_space<vmem>>, vector<12x16xf32>
    tpu.vector_store %arg10[%c284, %c0_31], %52 {strides = array<i32>} : memref<432x16xf32, #tpu.memory_space<vmem>>, vector<12x16xf32>,
    %54 = vector.extract_strided_slice %27 {offsets = [24, 0], sizes = [4, 16], strides = [1, 1]} : vector<32x16xf32> to vector<4x16xf32>
    %c296 = arith.constant 296 : index
    %c0_32 = arith.constant 0 : index
    %55 = vector.load %arg10[%c296, %c0_32] : memref<432x16xf32, #tpu.memory_space<vmem>>, vector<4x16xf32>
    tpu.vector_store %arg10[%c296, %c0_32], %54 {strides = array<i32>} : memref<432x16xf32, #tpu.memory_space<vmem>>, vector<4x16xf32>,
    %cst_33 = arith.constant 0.000000e+00 : f32
    %56 = vector.broadcast %cst_33 : f32 to vector<12x16xf32>
    %c300 = arith.constant 300 : index
    %c0_34 = arith.constant 0 : index
    %57 = vector.load %arg10[%c300, %c0_34] : memref<432x16xf32, #tpu.memory_space<vmem>>, vector<12x16xf32>
    tpu.vector_store %arg10[%c300, %c0_34], %56 {strides = array<i32>} : memref<432x16xf32, #tpu.memory_space<vmem>>, vector<12x16xf32>,
    %58 = vector.extract_strided_slice %27 {offsets = [28, 0], sizes = [4, 16], strides = [1, 1]} : vector<32x16xf32> to vector<4x16xf32>
    %c312 = arith.constant 312 : index
    %c0_35 = arith.constant 0 : index
    %59 = vector.load %arg10[%c312, %c0_35] : memref<432x16xf32, #tpu.memory_space<vmem>>, vector<4x16xf32>
    tpu.vector_store %arg10[%c312, %c0_35], %58 {strides = array<i32>} : memref<432x16xf32, #tpu.memory_space<vmem>>, vector<4x16xf32>,
    %cst_36 = arith.constant 0.000000e+00 : f32
    %60 = vector.broadcast %cst_36 : f32 to vector<116x16xf32>
    %c316 = arith.constant 316 : index
    %c0_37 = arith.constant 0 : index
    %61 = vector.load %arg10[%c316, %c0_37] : memref<432x16xf32, #tpu.memory_space<vmem>>, vector<116x16xf32>
    tpu.vector_store %arg10[%c316, %c0_37], %60 {strides = array<i32>} : memref<432x16xf32, #tpu.memory_space<vmem>>, vector<116x16xf32>,
    %c112 = arith.constant 112 : index
    %c0_38 = arith.constant 0 : index
    %62 = vector.load %arg1[%c112, %c0_38] : memref<184x16xf32, #tpu.memory_space<vmem>>, vector<1x16xf32>
    %c5 = arith.constant 5 : index
    %c0_39 = arith.constant 0 : index
    %63 = vector.load %arg10[%c5, %c0_39] : memref<432x16xf32, #tpu.memory_space<vmem>>, vector<320x16xf32>
    %64 = vector.broadcast %62 : vector<1x16xf32> to vector<320x16xf32>
    %65 = arith.mulf %63, %64 : vector<320x16xf32>
    %c113 = arith.constant 113 : index
    %c0_40 = arith.constant 0 : index
    %66 = vector.load %arg1[%c113, %c0_40] : memref<184x16xf32, #tpu.memory_space<vmem>>, vector<1x16xf32>
    %c6 = arith.constant 6 : index
    %c0_41 = arith.constant 0 : index
    %67 = vector.load %arg10[%c6, %c0_41] : memref<432x16xf32, #tpu.memory_space<vmem>>, vector<320x16xf32>
    %68 = vector.broadcast %66 : vector<1x16xf32> to vector<320x16xf32>
    %69 = arith.mulf %67, %68 : vector<320x16xf32>
    %70 = arith.addf %65, %69 : vector<320x16xf32>
    %c114 = arith.constant 114 : index
    %c0_42 = arith.constant 0 : index
    %71 = vector.load %arg1[%c114, %c0_42] : memref<184x16xf32, #tpu.memory_space<vmem>>, vector<1x16xf32>
    %c7 = arith.constant 7 : index
    %c0_43 = arith.constant 0 : index
    %72 = vector.load %arg10[%c7, %c0_43] : memref<432x16xf32, #tpu.memory_space<vmem>>, vector<320x16xf32>
    %73 = vector.broadcast %71 : vector<1x16xf32> to vector<320x16xf32>
    %74 = arith.mulf %72, %73 : vector<320x16xf32>
    %75 = arith.addf %70, %74 : vector<320x16xf32>
    %c115 = arith.constant 115 : index
    %c0_44 = arith.constant 0 : index
    %76 = vector.load %arg1[%c115, %c0_44] : memref<184x16xf32, #tpu.memory_space<vmem>>, vector<1x16xf32>
    %c8 = arith.constant 8 : index
    %c0_45 = arith.constant 0 : index
    %77 = vector.load %arg10[%c8, %c0_45] : memref<432x16xf32, #tpu.memory_space<vmem>>, vector<320x16xf32>
    %78 = vector.broadcast %76 : vector<1x16xf32> to vector<320x16xf32>
    %79 = arith.mulf %77, %78 : vector<320x16xf32>
    %80 = arith.addf %75, %79 : vector<320x16xf32>
    %c116 = arith.constant 116 : index
    %c0_46 = arith.constant 0 : index
    %81 = vector.load %arg1[%c116, %c0_46] : memref<184x16xf32, #tpu.memory_space<vmem>>, vector<1x16xf32>
    %c9 = arith.constant 9 : index
    %c0_47 = arith.constant 0 : index
    %82 = vector.load %arg10[%c9, %c0_47] : memref<432x16xf32, #tpu.memory_space<vmem>>, vector<320x16xf32>
    %83 = vector.broadcast %81 : vector<1x16xf32> to vector<320x16xf32>
    %84 = arith.mulf %82, %83 : vector<320x16xf32>
    %85 = arith.addf %80, %84 : vector<320x16xf32>
    %c117 = arith.constant 117 : index
    %c0_48 = arith.constant 0 : index
    %86 = vector.load %arg1[%c117, %c0_48] : memref<184x16xf32, #tpu.memory_space<vmem>>, vector<1x16xf32>
    %c10 = arith.constant 10 : index
    %c0_49 = arith.constant 0 : index
    %87 = vector.load %arg10[%c10, %c0_49] : memref<432x16xf32, #tpu.memory_space<vmem>>, vector<320x16xf32>
    %88 = vector.broadcast %86 : vector<1x16xf32> to vector<320x16xf32>
    %89 = arith.mulf %87, %88 : vector<320x16xf32>
    %90 = arith.addf %85, %89 : vector<320x16xf32>
    %c118 = arith.constant 118 : index
    %c0_50 = arith.constant 0 : index
    %91 = vector.load %arg1[%c118, %c0_50] : memref<184x16xf32, #tpu.memory_space<vmem>>, vector<1x16xf32>
    %c11 = arith.constant 11 : index
    %c0_51 = arith.constant 0 : index
    %92 = vector.load %arg10[%c11, %c0_51] : memref<432x16xf32, #tpu.memory_space<vmem>>, vector<320x16xf32>
    %93 = vector.broadcast %91 : vector<1x16xf32> to vector<320x16xf32>
    %94 = arith.mulf %92, %93 : vector<320x16xf32>
    %95 = arith.addf %90, %94 : vector<320x16xf32>
    %c119 = arith.constant 119 : index
    %c0_52 = arith.constant 0 : index
    %96 = vector.load %arg1[%c119, %c0_52] : memref<184x16xf32, #tpu.memory_space<vmem>>, vector<1x16xf32>
    %c21 = arith.constant 21 : index
    %c0_53 = arith.constant 0 : index
    %97 = vector.load %arg10[%c21, %c0_53] : memref<432x16xf32, #tpu.memory_space<vmem>>, vector<320x16xf32>
    %98 = vector.broadcast %96 : vector<1x16xf32> to vector<320x16xf32>
    %99 = arith.mulf %97, %98 : vector<320x16xf32>
    %100 = arith.addf %95, %99 : vector<320x16xf32>
    %c120_54 = arith.constant 120 : index
    %c0_55 = arith.constant 0 : index
    %101 = vector.load %arg1[%c120_54, %c0_55] : memref<184x16xf32, #tpu.memory_space<vmem>>, vector<1x16xf32>
    %c22 = arith.constant 22 : index
    %c0_56 = arith.constant 0 : index
    %102 = vector.load %arg10[%c22, %c0_56] : memref<432x16xf32, #tpu.memory_space<vmem>>, vector<320x16xf32>
    %103 = vector.broadcast %101 : vector<1x16xf32> to vector<320x16xf32>
    %104 = arith.mulf %102, %103 : vector<320x16xf32>
    %105 = arith.addf %100, %104 : vector<320x16xf32>
    %c121 = arith.constant 121 : index
    %c0_57 = arith.constant 0 : index
    %106 = vector.load %arg1[%c121, %c0_57] : memref<184x16xf32, #tpu.memory_space<vmem>>, vector<1x16xf32>
    %c23 = arith.constant 23 : index
    %c0_58 = arith.constant 0 : index
    %107 = vector.load %arg10[%c23, %c0_58] : memref<432x16xf32, #tpu.memory_space<vmem>>, vector<320x16xf32>
    %108 = vector.broadcast %106 : vector<1x16xf32> to vector<320x16xf32>
    %109 = arith.mulf %107, %108 : vector<320x16xf32>
    %110 = arith.addf %105, %109 : vector<320x16xf32>
    %c122 = arith.constant 122 : index
    %c0_59 = arith.constant 0 : index
    %111 = vector.load %arg1[%c122, %c0_59] : memref<184x16xf32, #tpu.memory_space<vmem>>, vector<1x16xf32>
    %c24 = arith.constant 24 : index
    %c0_60 = arith.constant 0 : index
    %112 = vector.load %arg10[%c24, %c0_60] : memref<432x16xf32, #tpu.memory_space<vmem>>, vector<320x16xf32>
    %113 = vector.broadcast %111 : vector<1x16xf32> to vector<320x16xf32>
    %114 = arith.mulf %112, %113 : vector<320x16xf32>
    %115 = arith.addf %110, %114 : vector<320x16xf32>
    %c123 = arith.constant 123 : index
    %c0_61 = arith.constant 0 : index
    %116 = vector.load %arg1[%c123, %c0_61] : memref<184x16xf32, #tpu.memory_space<vmem>>, vector<1x16xf32>
    %c25 = arith.constant 25 : index
    %c0_62 = arith.constant 0 : index
    %117 = vector.load %arg10[%c25, %c0_62] : memref<432x16xf32, #tpu.memory_space<vmem>>, vector<320x16xf32>
    %118 = vector.broadcast %116 : vector<1x16xf32> to vector<320x16xf32>
    %119 = arith.mulf %117, %118 : vector<320x16xf32>
    %120 = arith.addf %115, %119 : vector<320x16xf32>
    %c124_63 = arith.constant 124 : index
    %c0_64 = arith.constant 0 : index
    %121 = vector.load %arg1[%c124_63, %c0_64] : memref<184x16xf32, #tpu.memory_space<vmem>>, vector<1x16xf32>
    %c26 = arith.constant 26 : index
    %c0_65 = arith.constant 0 : index
    %122 = vector.load %arg10[%c26, %c0_65] : memref<432x16xf32, #tpu.memory_space<vmem>>, vector<320x16xf32>
    %123 = vector.broadcast %121 : vector<1x16xf32> to vector<320x16xf32>
    %124 = arith.mulf %122, %123 : vector<320x16xf32>
    %125 = arith.addf %120, %124 : vector<320x16xf32>
    %c125 = arith.constant 125 : index
    %c0_66 = arith.constant 0 : index
    %126 = vector.load %arg1[%c125, %c0_66] : memref<184x16xf32, #tpu.memory_space<vmem>>, vector<1x16xf32>
    %c27 = arith.constant 27 : index
    %c0_67 = arith.constant 0 : index
    %127 = vector.load %arg10[%c27, %c0_67] : memref<432x16xf32, #tpu.memory_space<vmem>>, vector<320x16xf32>
    %128 = vector.broadcast %126 : vector<1x16xf32> to vector<320x16xf32>
    %129 = arith.mulf %127, %128 : vector<320x16xf32>
    %130 = arith.addf %125, %129 : vector<320x16xf32>
    %c126 = arith.constant 126 : index
    %c0_68 = arith.constant 0 : index
    %131 = vector.load %arg1[%c126, %c0_68] : memref<184x16xf32, #tpu.memory_space<vmem>>, vector<1x16xf32>
    %c37 = arith.constant 37 : index
    %c0_69 = arith.constant 0 : index
    %132 = vector.load %arg10[%c37, %c0_69] : memref<432x16xf32, #tpu.memory_space<vmem>>, vector<320x16xf32>
    %133 = vector.broadcast %131 : vector<1x16xf32> to vector<320x16xf32>
    %134 = arith.mulf %132, %133 : vector<320x16xf32>
    %135 = arith.addf %130, %134 : vector<320x16xf32>
    %c127 = arith.constant 127 : index
    %c0_70 = arith.constant 0 : index
    %136 = vector.load %arg1[%c127, %c0_70] : memref<184x16xf32, #tpu.memory_space<vmem>>, vector<1x16xf32>
    %c38 = arith.constant 38 : index
    %c0_71 = arith.constant 0 : index
    %137 = vector.load %arg10[%c38, %c0_71] : memref<432x16xf32, #tpu.memory_space<vmem>>, vector<320x16xf32>
    %138 = vector.broadcast %136 : vector<1x16xf32> to vector<320x16xf32>
    %139 = arith.mulf %137, %138 : vector<320x16xf32>
    %140 = arith.addf %135, %139 : vector<320x16xf32>
    %c128 = arith.constant 128 : index
    %c0_72 = arith.constant 0 : index
    %141 = vector.load %arg1[%c128, %c0_72] : memref<184x16xf32, #tpu.memory_space<vmem>>, vector<1x16xf32>
    %c39 = arith.constant 39 : index
    %c0_73 = arith.constant 0 : index
    %142 = vector.load %arg10[%c39, %c0_73] : memref<432x16xf32, #tpu.memory_space<vmem>>, vector<320x16xf32>
    %143 = vector.broadcast %141 : vector<1x16xf32> to vector<320x16xf32>
    %144 = arith.mulf %142, %143 : vector<320x16xf32>
    %145 = arith.addf %140, %144 : vector<320x16xf32>
    %c129 = arith.constant 129 : index
    %c0_74 = arith.constant 0 : index
    %146 = vector.load %arg1[%c129, %c0_74] : memref<184x16xf32, #tpu.memory_space<vmem>>, vector<1x16xf32>
    %c40 = arith.constant 40 : index
    %c0_75 = arith.constant 0 : index
    %147 = vector.load %arg10[%c40, %c0_75] : memref<432x16xf32, #tpu.memory_space<vmem>>, vector<320x16xf32>
    %148 = vector.broadcast %146 : vector<1x16xf32> to vector<320x16xf32>
    %149 = arith.mulf %147, %148 : vector<320x16xf32>
    %150 = arith.addf %145, %149 : vector<320x16xf32>
    %c130 = arith.constant 130 : index
    %c0_76 = arith.constant 0 : index
    %151 = vector.load %arg1[%c130, %c0_76] : memref<184x16xf32, #tpu.memory_space<vmem>>, vector<1x16xf32>
    %c41 = arith.constant 41 : index
    %c0_77 = arith.constant 0 : index
    %152 = vector.load %arg10[%c41, %c0_77] : memref<432x16xf32, #tpu.memory_space<vmem>>, vector<320x16xf32>
    %153 = vector.broadcast %151 : vector<1x16xf32> to vector<320x16xf32>
    %154 = arith.mulf %152, %153 : vector<320x16xf32>
    %155 = arith.addf %150, %154 : vector<320x16xf32>
    %c131 = arith.constant 131 : index
    %c0_78 = arith.constant 0 : index
    %156 = vector.load %arg1[%c131, %c0_78] : memref<184x16xf32, #tpu.memory_space<vmem>>, vector<1x16xf32>
    %c42 = arith.constant 42 : index
    %c0_79 = arith.constant 0 : index
    %157 = vector.load %arg10[%c42, %c0_79] : memref<432x16xf32, #tpu.memory_space<vmem>>, vector<320x16xf32>
    %158 = vector.broadcast %156 : vector<1x16xf32> to vector<320x16xf32>
    %159 = arith.mulf %157, %158 : vector<320x16xf32>
    %160 = arith.addf %155, %159 : vector<320x16xf32>
    %c132 = arith.constant 132 : index
    %c0_80 = arith.constant 0 : index
    %161 = vector.load %arg1[%c132, %c0_80] : memref<184x16xf32, #tpu.memory_space<vmem>>, vector<1x16xf32>
    %c43 = arith.constant 43 : index
    %c0_81 = arith.constant 0 : index
    %162 = vector.load %arg10[%c43, %c0_81] : memref<432x16xf32, #tpu.memory_space<vmem>>, vector<320x16xf32>
    %163 = vector.broadcast %161 : vector<1x16xf32> to vector<320x16xf32>
    %164 = arith.mulf %162, %163 : vector<320x16xf32>
    %165 = arith.addf %160, %164 : vector<320x16xf32>
    %c133 = arith.constant 133 : index
    %c0_82 = arith.constant 0 : index
    %166 = vector.load %arg1[%c133, %c0_82] : memref<184x16xf32, #tpu.memory_space<vmem>>, vector<1x16xf32>
    %c53 = arith.constant 53 : index
    %c0_83 = arith.constant 0 : index
    %167 = vector.load %arg10[%c53, %c0_83] : memref<432x16xf32, #tpu.memory_space<vmem>>, vector<320x16xf32>
    %168 = vector.broadcast %166 : vector<1x16xf32> to vector<320x16xf32>
    %169 = arith.mulf %167, %168 : vector<320x16xf32>
    %170 = arith.addf %165, %169 : vector<320x16xf32>
    %c134 = arith.constant 134 : index
    %c0_84 = arith.constant 0 : index
    %171 = vector.load %arg1[%c134, %c0_84] : memref<184x16xf32, #tpu.memory_space<vmem>>, vector<1x16xf32>
    %c54 = arith.constant 54 : index
    %c0_85 = arith.constant 0 : index
    %172 = vector.load %arg10[%c54, %c0_85] : memref<432x16xf32, #tpu.memory_space<vmem>>, vector<320x16xf32>
    %173 = vector.broadcast %171 : vector<1x16xf32> to vector<320x16xf32>
    %174 = arith.mulf %172, %173 : vector<320x16xf32>
    %175 = arith.addf %170, %174 : vector<320x16xf32>
    %c135 = arith.constant 135 : index
    %c0_86 = arith.constant 0 : index
    %176 = vector.load %arg1[%c135, %c0_86] : memref<184x16xf32, #tpu.memory_space<vmem>>, vector<1x16xf32>
    %c55 = arith.constant 55 : index
    %c0_87 = arith.constant 0 : index
    %177 = vector.load %arg10[%c55, %c0_87] : memref<432x16xf32, #tpu.memory_space<vmem>>, vector<320x16xf32>
    %178 = vector.broadcast %176 : vector<1x16xf32> to vector<320x16xf32>
    %179 = arith.mulf %177, %178 : vector<320x16xf32>
    %180 = arith.addf %175, %179 : vector<320x16xf32>
    %c136_88 = arith.constant 136 : index
    %c0_89 = arith.constant 0 : index
    %181 = vector.load %arg1[%c136_88, %c0_89] : memref<184x16xf32, #tpu.memory_space<vmem>>, vector<1x16xf32>
    %c56 = arith.constant 56 : index
    %c0_90 = arith.constant 0 : index
    %182 = vector.load %arg10[%c56, %c0_90] : memref<432x16xf32, #tpu.memory_space<vmem>>, vector<320x16xf32>
    %183 = vector.broadcast %181 : vector<1x16xf32> to vector<320x16xf32>
    %184 = arith.mulf %182, %183 : vector<320x16xf32>
    %185 = arith.addf %180, %184 : vector<320x16xf32>
    %c137 = arith.constant 137 : index
    %c0_91 = arith.constant 0 : index
    %186 = vector.load %arg1[%c137, %c0_91] : memref<184x16xf32, #tpu.memory_space<vmem>>, vector<1x16xf32>
    %c57 = arith.constant 57 : index
    %c0_92 = arith.constant 0 : index
    %187 = vector.load %arg10[%c57, %c0_92] : memref<432x16xf32, #tpu.memory_space<vmem>>, vector<320x16xf32>
    %188 = vector.broadcast %186 : vector<1x16xf32> to vector<320x16xf32>
    %189 = arith.mulf %187, %188 : vector<320x16xf32>
    %190 = arith.addf %185, %189 : vector<320x16xf32>
    %c138 = arith.constant 138 : index
    %c0_93 = arith.constant 0 : index
    %191 = vector.load %arg1[%c138, %c0_93] : memref<184x16xf32, #tpu.memory_space<vmem>>, vector<1x16xf32>
    %c58 = arith.constant 58 : index
    %c0_94 = arith.constant 0 : index
    %192 = vector.load %arg10[%c58, %c0_94] : memref<432x16xf32, #tpu.memory_space<vmem>>, vector<320x16xf32>
    %193 = vector.broadcast %191 : vector<1x16xf32> to vector<320x16xf32>
    %194 = arith.mulf %192, %193 : vector<320x16xf32>
    %195 = arith.addf %190, %194 : vector<320x16xf32>
    %c139 = arith.constant 139 : index
    %c0_95 = arith.constant 0 : index
    %196 = vector.load %arg1[%c139, %c0_95] : memref<184x16xf32, #tpu.memory_space<vmem>>, vector<1x16xf32>
    %c59 = arith.constant 59 : index
    %c0_96 = arith.constant 0 : index
    %197 = vector.load %arg10[%c59, %c0_96] : memref<432x16xf32, #tpu.memory_space<vmem>>, vector<320x16xf32>
    %198 = vector.broadcast %196 : vector<1x16xf32> to vector<320x16xf32>
    %199 = arith.mulf %197, %198 : vector<320x16xf32>
    %200 = arith.addf %195, %199 : vector<320x16xf32>
    %c140_97 = arith.constant 140 : index
    %c0_98 = arith.constant 0 : index
    %201 = vector.load %arg1[%c140_97, %c0_98] : memref<184x16xf32, #tpu.memory_space<vmem>>, vector<1x16xf32>
    %c69 = arith.constant 69 : index
    %c0_99 = arith.constant 0 : index
    %202 = vector.load %arg10[%c69, %c0_99] : memref<432x16xf32, #tpu.memory_space<vmem>>, vector<320x16xf32>
    %203 = vector.broadcast %201 : vector<1x16xf32> to vector<320x16xf32>
    %204 = arith.mulf %202, %203 : vector<320x16xf32>
    %205 = arith.addf %200, %204 : vector<320x16xf32>
    %c141 = arith.constant 141 : index
    %c0_100 = arith.constant 0 : index
    %206 = vector.load %arg1[%c141, %c0_100] : memref<184x16xf32, #tpu.memory_space<vmem>>, vector<1x16xf32>
    %c70 = arith.constant 70 : index
    %c0_101 = arith.constant 0 : index
    %207 = vector.load %arg10[%c70, %c0_101] : memref<432x16xf32, #tpu.memory_space<vmem>>, vector<320x16xf32>
    %208 = vector.broadcast %206 : vector<1x16xf32> to vector<320x16xf32>
    %209 = arith.mulf %207, %208 : vector<320x16xf32>
    %210 = arith.addf %205, %209 : vector<320x16xf32>
    %c142 = arith.constant 142 : index
    %c0_102 = arith.constant 0 : index
    %211 = vector.load %arg1[%c142, %c0_102] : memref<184x16xf32, #tpu.memory_space<vmem>>, vector<1x16xf32>
    %c71 = arith.constant 71 : index
    %c0_103 = arith.constant 0 : index
    %212 = vector.load %arg10[%c71, %c0_103] : memref<432x16xf32, #tpu.memory_space<vmem>>, vector<320x16xf32>
    %213 = vector.broadcast %211 : vector<1x16xf32> to vector<320x16xf32>
    %214 = arith.mulf %212, %213 : vector<320x16xf32>
    %215 = arith.addf %210, %214 : vector<320x16xf32>
    %c143 = arith.constant 143 : index
    %c0_104 = arith.constant 0 : index
    %216 = vector.load %arg1[%c143, %c0_104] : memref<184x16xf32, #tpu.memory_space<vmem>>, vector<1x16xf32>
    %c72 = arith.constant 72 : index
    %c0_105 = arith.constant 0 : index
    %217 = vector.load %arg10[%c72, %c0_105] : memref<432x16xf32, #tpu.memory_space<vmem>>, vector<320x16xf32>
    %218 = vector.broadcast %216 : vector<1x16xf32> to vector<320x16xf32>
    %219 = arith.mulf %217, %218 : vector<320x16xf32>
    %220 = arith.addf %215, %219 : vector<320x16xf32>
    %c144 = arith.constant 144 : index
    %c0_106 = arith.constant 0 : index
    %221 = vector.load %arg1[%c144, %c0_106] : memref<184x16xf32, #tpu.memory_space<vmem>>, vector<1x16xf32>
    %c73 = arith.constant 73 : index
    %c0_107 = arith.constant 0 : index
    %222 = vector.load %arg10[%c73, %c0_107] : memref<432x16xf32, #tpu.memory_space<vmem>>, vector<320x16xf32>
    %223 = vector.broadcast %221 : vector<1x16xf32> to vector<320x16xf32>
    %224 = arith.mulf %222, %223 : vector<320x16xf32>
    %225 = arith.addf %220, %224 : vector<320x16xf32>
    %c145 = arith.constant 145 : index
    %c0_108 = arith.constant 0 : index
    %226 = vector.load %arg1[%c145, %c0_108] : memref<184x16xf32, #tpu.memory_space<vmem>>, vector<1x16xf32>
    %c74 = arith.constant 74 : index
    %c0_109 = arith.constant 0 : index
    %227 = vector.load %arg10[%c74, %c0_109] : memref<432x16xf32, #tpu.memory_space<vmem>>, vector<320x16xf32>
    %228 = vector.broadcast %226 : vector<1x16xf32> to vector<320x16xf32>
    %229 = arith.mulf %227, %228 : vector<320x16xf32>
    %230 = arith.addf %225, %229 : vector<320x16xf32>
    %c146 = arith.constant 146 : index
    %c0_110 = arith.constant 0 : index
    %231 = vector.load %arg1[%c146, %c0_110] : memref<184x16xf32, #tpu.memory_space<vmem>>, vector<1x16xf32>
    %c75 = arith.constant 75 : index
    %c0_111 = arith.constant 0 : index
    %232 = vector.load %arg10[%c75, %c0_111] : memref<432x16xf32, #tpu.memory_space<vmem>>, vector<320x16xf32>
    %233 = vector.broadcast %231 : vector<1x16xf32> to vector<320x16xf32>
    %234 = arith.mulf %232, %233 : vector<320x16xf32>
    %235 = arith.addf %230, %234 : vector<320x16xf32>
    %c147 = arith.constant 147 : index
    %c0_112 = arith.constant 0 : index
    %236 = vector.load %arg1[%c147, %c0_112] : memref<184x16xf32, #tpu.memory_space<vmem>>, vector<1x16xf32>
    %c85 = arith.constant 85 : index
    %c0_113 = arith.constant 0 : index
    %237 = vector.load %arg10[%c85, %c0_113] : memref<432x16xf32, #tpu.memory_space<vmem>>, vector<320x16xf32>
    %238 = vector.broadcast %236 : vector<1x16xf32> to vector<320x16xf32>
    %239 = arith.mulf %237, %238 : vector<320x16xf32>
    %240 = arith.addf %235, %239 : vector<320x16xf32>
    %c148 = arith.constant 148 : index
    %c0_114 = arith.constant 0 : index
    %241 = vector.load %arg1[%c148, %c0_114] : memref<184x16xf32, #tpu.memory_space<vmem>>, vector<1x16xf32>
    %c86 = arith.constant 86 : index
    %c0_115 = arith.constant 0 : index
    %242 = vector.load %arg10[%c86, %c0_115] : memref<432x16xf32, #tpu.memory_space<vmem>>, vector<320x16xf32>
    %243 = vector.broadcast %241 : vector<1x16xf32> to vector<320x16xf32>
    %244 = arith.mulf %242, %243 : vector<320x16xf32>
    %245 = arith.addf %240, %244 : vector<320x16xf32>
    %c149 = arith.constant 149 : index
    %c0_116 = arith.constant 0 : index
    %246 = vector.load %arg1[%c149, %c0_116] : memref<184x16xf32, #tpu.memory_space<vmem>>, vector<1x16xf32>
    %c87 = arith.constant 87 : index
    %c0_117 = arith.constant 0 : index
    %247 = vector.load %arg10[%c87, %c0_117] : memref<432x16xf32, #tpu.memory_space<vmem>>, vector<320x16xf32>
    %248 = vector.broadcast %246 : vector<1x16xf32> to vector<320x16xf32>
    %249 = arith.mulf %247, %248 : vector<320x16xf32>
    %250 = arith.addf %245, %249 : vector<320x16xf32>
    %c150 = arith.constant 150 : index
    %c0_118 = arith.constant 0 : index
    %251 = vector.load %arg1[%c150, %c0_118] : memref<184x16xf32, #tpu.memory_space<vmem>>, vector<1x16xf32>
    %c88 = arith.constant 88 : index
    %c0_119 = arith.constant 0 : index
    %252 = vector.load %arg10[%c88, %c0_119] : memref<432x16xf32, #tpu.memory_space<vmem>>, vector<320x16xf32>
    %253 = vector.broadcast %251 : vector<1x16xf32> to vector<320x16xf32>
    %254 = arith.mulf %252, %253 : vector<320x16xf32>
    %255 = arith.addf %250, %254 : vector<320x16xf32>
    %c151 = arith.constant 151 : index
    %c0_120 = arith.constant 0 : index
    %256 = vector.load %arg1[%c151, %c0_120] : memref<184x16xf32, #tpu.memory_space<vmem>>, vector<1x16xf32>
    %c89 = arith.constant 89 : index
    %c0_121 = arith.constant 0 : index
    %257 = vector.load %arg10[%c89, %c0_121] : memref<432x16xf32, #tpu.memory_space<vmem>>, vector<320x16xf32>
    %258 = vector.broadcast %256 : vector<1x16xf32> to vector<320x16xf32>
    %259 = arith.mulf %257, %258 : vector<320x16xf32>
    %260 = arith.addf %255, %259 : vector<320x16xf32>
    %c152_122 = arith.constant 152 : index
    %c0_123 = arith.constant 0 : index
    %261 = vector.load %arg1[%c152_122, %c0_123] : memref<184x16xf32, #tpu.memory_space<vmem>>, vector<1x16xf32>
    %c90 = arith.constant 90 : index
    %c0_124 = arith.constant 0 : index
    %262 = vector.load %arg10[%c90, %c0_124] : memref<432x16xf32, #tpu.memory_space<vmem>>, vector<320x16xf32>
    %263 = vector.broadcast %261 : vector<1x16xf32> to vector<320x16xf32>
    %264 = arith.mulf %262, %263 : vector<320x16xf32>
    %265 = arith.addf %260, %264 : vector<320x16xf32>
    %c153 = arith.constant 153 : index
    %c0_125 = arith.constant 0 : index
    %266 = vector.load %arg1[%c153, %c0_125] : memref<184x16xf32, #tpu.memory_space<vmem>>, vector<1x16xf32>
    %c91 = arith.constant 91 : index
    %c0_126 = arith.constant 0 : index
    %267 = vector.load %arg10[%c91, %c0_126] : memref<432x16xf32, #tpu.memory_space<vmem>>, vector<320x16xf32>
    %268 = vector.broadcast %266 : vector<1x16xf32> to vector<320x16xf32>
    %269 = arith.mulf %267, %268 : vector<320x16xf32>
    %270 = arith.addf %265, %269 : vector<320x16xf32>
    %c154 = arith.constant 154 : index
    %c0_127 = arith.constant 0 : index
    %271 = vector.load %arg1[%c154, %c0_127] : memref<184x16xf32, #tpu.memory_space<vmem>>, vector<1x16xf32>
    %c101 = arith.constant 101 : index
    %c0_128 = arith.constant 0 : index
    %272 = vector.load %arg10[%c101, %c0_128] : memref<432x16xf32, #tpu.memory_space<vmem>>, vector<320x16xf32>
    %273 = vector.broadcast %271 : vector<1x16xf32> to vector<320x16xf32>
    %274 = arith.mulf %272, %273 : vector<320x16xf32>
    %275 = arith.addf %270, %274 : vector<320x16xf32>
    %c155 = arith.constant 155 : index
    %c0_129 = arith.constant 0 : index
    %276 = vector.load %arg1[%c155, %c0_129] : memref<184x16xf32, #tpu.memory_space<vmem>>, vector<1x16xf32>
    %c102 = arith.constant 102 : index
    %c0_130 = arith.constant 0 : index
    %277 = vector.load %arg10[%c102, %c0_130] : memref<432x16xf32, #tpu.memory_space<vmem>>, vector<320x16xf32>
    %278 = vector.broadcast %276 : vector<1x16xf32> to vector<320x16xf32>
    %279 = arith.mulf %277, %278 : vector<320x16xf32>
    %280 = arith.addf %275, %279 : vector<320x16xf32>
    %c156_131 = arith.constant 156 : index
    %c0_132 = arith.constant 0 : index
    %281 = vector.load %arg1[%c156_131, %c0_132] : memref<184x16xf32, #tpu.memory_space<vmem>>, vector<1x16xf32>
    %c103 = arith.constant 103 : index
    %c0_133 = arith.constant 0 : index
    %282 = vector.load %arg10[%c103, %c0_133] : memref<432x16xf32, #tpu.memory_space<vmem>>, vector<320x16xf32>
    %283 = vector.broadcast %281 : vector<1x16xf32> to vector<320x16xf32>
    %284 = arith.mulf %282, %283 : vector<320x16xf32>
    %285 = arith.addf %280, %284 : vector<320x16xf32>
    %c157 = arith.constant 157 : index
    %c0_134 = arith.constant 0 : index
    %286 = vector.load %arg1[%c157, %c0_134] : memref<184x16xf32, #tpu.memory_space<vmem>>, vector<1x16xf32>
    %c104_135 = arith.constant 104 : index
    %c0_136 = arith.constant 0 : index
    %287 = vector.load %arg10[%c104_135, %c0_136] : memref<432x16xf32, #tpu.memory_space<vmem>>, vector<320x16xf32>
    %288 = vector.broadcast %286 : vector<1x16xf32> to vector<320x16xf32>
    %289 = arith.mulf %287, %288 : vector<320x16xf32>
    %290 = arith.addf %285, %289 : vector<320x16xf32>
    %c158 = arith.constant 158 : index
    %c0_137 = arith.constant 0 : index
    %291 = vector.load %arg1[%c158, %c0_137] : memref<184x16xf32, #tpu.memory_space<vmem>>, vector<1x16xf32>
    %c105 = arith.constant 105 : index
    %c0_138 = arith.constant 0 : index
    %292 = vector.load %arg10[%c105, %c0_138] : memref<432x16xf32, #tpu.memory_space<vmem>>, vector<320x16xf32>
    %293 = vector.broadcast %291 : vector<1x16xf32> to vector<320x16xf32>
    %294 = arith.mulf %292, %293 : vector<320x16xf32>
    %295 = arith.addf %290, %294 : vector<320x16xf32>
    %c159 = arith.constant 159 : index
    %c0_139 = arith.constant 0 : index
    %296 = vector.load %arg1[%c159, %c0_139] : memref<184x16xf32, #tpu.memory_space<vmem>>, vector<1x16xf32>
    %c106 = arith.constant 106 : index
    %c0_140 = arith.constant 0 : index
    %297 = vector.load %arg10[%c106, %c0_140] : memref<432x16xf32, #tpu.memory_space<vmem>>, vector<320x16xf32>
    %298 = vector.broadcast %296 : vector<1x16xf32> to vector<320x16xf32>
    %299 = arith.mulf %297, %298 : vector<320x16xf32>
    %300 = arith.addf %295, %299 : vector<320x16xf32>
    %c160 = arith.constant 160 : index
    %c0_141 = arith.constant 0 : index
    %301 = vector.load %arg1[%c160, %c0_141] : memref<184x16xf32, #tpu.memory_space<vmem>>, vector<1x16xf32>
    %c107 = arith.constant 107 : index
    %c0_142 = arith.constant 0 : index
    %302 = vector.load %arg10[%c107, %c0_142] : memref<432x16xf32, #tpu.memory_space<vmem>>, vector<320x16xf32>
    %303 = vector.broadcast %301 : vector<1x16xf32> to vector<320x16xf32>
    %304 = arith.mulf %302, %303 : vector<320x16xf32>
    %305 = arith.addf %300, %304 : vector<320x16xf32>
    %306 = vector.extract_strided_slice %305 {offsets = [48, 0], sizes = [4, 16], strides = [1, 1]} : vector<320x16xf32> to vector<4x16xf32>
    %307 = vector.extract_strided_slice %305 {offsets = [64, 0], sizes = [4, 16], strides = [1, 1]} : vector<320x16xf32> to vector<4x16xf32>
    %308 = vector.extract_strided_slice %305 {offsets = [80, 0], sizes = [4, 16], strides = [1, 1]} : vector<320x16xf32> to vector<4x16xf32>
    %309 = vector.extract_strided_slice %305 {offsets = [96, 0], sizes = [4, 16], strides = [1, 1]} : vector<320x16xf32> to vector<4x16xf32>
    %310 = vector.extract_strided_slice %305 {offsets = [208, 0], sizes = [4, 16], strides = [1, 1]} : vector<320x16xf32> to vector<4x16xf32>
    %311 = vector.extract_strided_slice %305 {offsets = [224, 0], sizes = [4, 16], strides = [1, 1]} : vector<320x16xf32> to vector<4x16xf32>
    %312 = vector.extract_strided_slice %305 {offsets = [240, 0], sizes = [4, 16], strides = [1, 1]} : vector<320x16xf32> to vector<4x16xf32>
    %313 = vector.extract_strided_slice %305 {offsets = [256, 0], sizes = [4, 16], strides = [1, 1]} : vector<320x16xf32> to vector<4x16xf32>
    %314 = tpu.concatenate %306, %307, %308, %309, %310, %311, %312, %313 in 0 : vector<4x16xf32>, vector<4x16xf32>, vector<4x16xf32>, vector<4x16xf32>, vector<4x16xf32>, vector<4x16xf32>, vector<4x16xf32>, vector<4x16xf32> -> vector<32x16xf32>
    %c171 = arith.constant 171 : index
    %c0_143 = arith.constant 0 : index
    %315 = vector.load %arg1[%c171, %c0_143] : memref<184x16xf32, #tpu.memory_space<vmem>>, vector<1x16xf32>
    %316 = vector.broadcast %315 : vector<1x16xf32> to vector<32x16xf32>
    %317 = arith.addf %314, %316 : vector<32x16xf32>
    %c172 = arith.constant 172 : index
    %c0_144 = arith.constant 0 : index
    %318 = vector.load %arg1[%c172, %c0_144] : memref<184x16xf32, #tpu.memory_space<vmem>>, vector<1x16xf32>
    %c173 = arith.constant 173 : index
    %c0_145 = arith.constant 0 : index
    %319 = vector.load %arg1[%c173, %c0_145] : memref<184x16xf32, #tpu.memory_space<vmem>>, vector<1x16xf32>
    %cst_146 = arith.constant dense<0.000000e+00> : vector<32xf32>
    %320 = vector.multi_reduction <add>, %317, %cst_146 [1] : vector<32x16xf32> to vector<32xf32>
    %321 = vector.shape_cast %320 : vector<32xf32> to vector<32x1xf32>
    %cst_147 = arith.constant 1.600000e+01 : f32
    %322 = vector.broadcast %cst_147 : f32 to vector<32x1xf32>
    %323 = arith.divf %321, %322 : vector<32x1xf32>
    %324 = vector.broadcast %323 : vector<32x1xf32> to vector<32x16xf32>
    %325 = arith.subf %317, %324 : vector<32x16xf32>
    %326 = arith.mulf %325, %325 : vector<32x16xf32>
    %cst_148 = arith.constant dense<0.000000e+00> : vector<32xf32>
    %327 = vector.multi_reduction <add>, %326, %cst_148 [1] : vector<32x16xf32> to vector<32xf32>
    %328 = vector.shape_cast %327 : vector<32xf32> to vector<32x1xf32>
    %cst_149 = arith.constant 1.600000e+01 : f32
    %329 = vector.broadcast %cst_149 : f32 to vector<32x1xf32>
    %330 = arith.divf %328, %329 : vector<32x1xf32>
    %cst_150 = arith.constant 9.99999997E-7 : f32
    %331 = vector.broadcast %cst_150 : f32 to vector<32x1xf32>
    %332 = arith.addf %330, %331 : vector<32x1xf32>
    %333 = math.rsqrt %332 : vector<32x1xf32>
    %334 = vector.broadcast %333 : vector<32x1xf32> to vector<32x16xf32>
    %335 = arith.mulf %325, %334 : vector<32x16xf32>
    %336 = vector.broadcast %318 : vector<1x16xf32> to vector<32x16xf32>
    %337 = arith.mulf %335, %336 : vector<32x16xf32>
    %338 = vector.broadcast %319 : vector<1x16xf32> to vector<32x16xf32>
    %339 = arith.addf %337, %338 : vector<32x16xf32>
    %c0_151 = arith.constant 0 : index
    %c0_152 = arith.constant 0 : index
    %340 = vector.load %arg2[%c0_151, %c0_152] : memref<17x64xf32, #tpu.memory_space<vmem>>, vector<16x64xf32>
    %c16 = arith.constant 16 : index
    %c0_153 = arith.constant 0 : index
    %341 = vector.load %arg2[%c16, %c0_153] : memref<17x64xf32, #tpu.memory_space<vmem>>, vector<1x64xf32>
    %cst_154 = arith.constant dense<0.000000e+00> : vector<32x64xf32>
    %342 = tpu.matmul %339, %340, %cst_154 {dimension_numbers = #tpu.dot_dimension_numbers<[1], [0], [0], [1], [0, 0, 1, 1], [], []>} : vector<32x16xf32>, vector<16x64xf32>, vector<32x64xf32> -> vector<32x64xf32>
    %343 = vector.broadcast %341 : vector<1x64xf32> to vector<32x64xf32>
    %344 = arith.addf %342, %343 : vector<32x64xf32>
    %cst_155 = arith.constant 0.707106769 : f32
    %345 = vector.broadcast %cst_155 : f32 to vector<32x64xf32>
    %346 = arith.mulf %344, %345 : vector<32x64xf32>
    %347 = math.absf %346 : vector<32x64xf32>
    %cst_156 = arith.constant 0.327591091 : f32
    %348 = vector.broadcast %cst_156 : f32 to vector<32x64xf32>
    %349 = arith.mulf %348, %347 : vector<32x64xf32>
    %cst_157 = arith.constant 1.000000e+00 : f32
    %350 = vector.broadcast %cst_157 : f32 to vector<32x64xf32>
    %351 = arith.addf %350, %349 : vector<32x64xf32>
    %352 = tpu.reciprocal %351 {approx = true} : vector<32x64xf32> -> vector<32x64xf32>
    %353 = arith.mulf %351, %352 : vector<32x64xf32>
    %cst_158 = arith.constant 2.000000e+00 : f32
    %354 = vector.broadcast %cst_158 : f32 to vector<32x64xf32>
    %355 = arith.subf %354, %353 : vector<32x64xf32>
    %356 = arith.mulf %352, %355 : vector<32x64xf32>
    %cst_159 = arith.constant 1.06140542 : f32
    %357 = vector.broadcast %cst_159 : f32 to vector<32x64xf32>
    %358 = arith.mulf %357, %356 : vector<32x64xf32>
    %cst_160 = arith.constant 1.45315206 : f32
    %359 = vector.broadcast %cst_160 : f32 to vector<32x64xf32>
    %360 = arith.subf %358, %359 : vector<32x64xf32>
    %361 = arith.mulf %360, %356 : vector<32x64xf32>
    %cst_161 = arith.constant 1.42141378 : f32
    %362 = vector.broadcast %cst_161 : f32 to vector<32x64xf32>
    %363 = arith.addf %361, %362 : vector<32x64xf32>
    %364 = arith.mulf %363, %356 : vector<32x64xf32>
    %cst_162 = arith.constant 0.284496725 : f32
    %365 = vector.broadcast %cst_162 : f32 to vector<32x64xf32>
    %366 = arith.subf %364, %365 : vector<32x64xf32>
    %367 = arith.mulf %366, %356 : vector<32x64xf32>
    %cst_163 = arith.constant 0.254829586 : f32
    %368 = vector.broadcast %cst_163 : f32 to vector<32x64xf32>
    %369 = arith.addf %367, %368 : vector<32x64xf32>
    %370 = arith.mulf %369, %356 : vector<32x64xf32>
    %cst_164 = arith.constant 0.000000e+00 : f32
    %371 = vector.broadcast %cst_164 : f32 to vector<32x64xf32>
    %372 = arith.subf %371, %347 : vector<32x64xf32>
    %373 = arith.mulf %372, %347 : vector<32x64xf32>
    %374 = math.exp %373 : vector<32x64xf32>
    %375 = arith.mulf %370, %374 : vector<32x64xf32>
    %cst_165 = arith.constant 1.000000e+00 : f32
    %376 = vector.broadcast %cst_165 : f32 to vector<32x64xf32>
    %377 = arith.subf %376, %375 : vector<32x64xf32>
    %cst_166 = arith.constant 0.000000e+00 : f32
    %378 = vector.broadcast %cst_166 : f32 to vector<32x64xf32>
    %379 = arith.cmpf oge, %346, %378 : vector<32x64xf32>
    %cst_167 = arith.constant 0.000000e+00 : f32
    %380 = vector.broadcast %cst_167 : f32 to vector<32x64xf32>
    %381 = arith.subf %380, %377 : vector<32x64xf32>
    %382 = arith.select %379, %377, %381 : vector<32x64xi1>, vector<32x64xf32>
    %cst_168 = arith.constant 5.000000e-01 : f32
    %383 = vector.broadcast %cst_168 : f32 to vector<32x64xf32>
    %384 = arith.mulf %383, %344 : vector<32x64xf32>
    %cst_169 = arith.constant 1.000000e+00 : f32
    %385 = vector.broadcast %cst_169 : f32 to vector<32x64xf32>
    %386 = arith.addf %385, %382 : vector<32x64xf32>
    %387 = arith.mulf %384, %386 : vector<32x64xf32>
    %c48 = arith.constant 48 : index
    %c0_170 = arith.constant 0 : index
    %388 = vector.load %arg1[%c48, %c0_170] : memref<184x16xf32, #tpu.memory_space<vmem>>, vector<64x16xf32>
    %cst_171 = arith.constant dense<0.000000e+00> : vector<32x16xf32>
    %389 = tpu.matmul %387, %388, %cst_171 {dimension_numbers = #tpu.dot_dimension_numbers<[1], [0], [0], [1], [0, 0, 1, 1], [], []>} : vector<32x64xf32>, vector<64x16xf32>, vector<32x16xf32> -> vector<32x16xf32>
    %c174 = arith.constant 174 : index
    %c0_172 = arith.constant 0 : index
    %390 = vector.load %arg1[%c174, %c0_172] : memref<184x16xf32, #tpu.memory_space<vmem>>, vector<1x16xf32>
    %391 = vector.broadcast %390 : vector<1x16xf32> to vector<32x16xf32>
    %392 = arith.addf %389, %391 : vector<32x16xf32>
    %c175 = arith.constant 175 : index
    %c0_173 = arith.constant 0 : index
    %393 = vector.load %arg1[%c175, %c0_173] : memref<184x16xf32, #tpu.memory_space<vmem>>, vector<1x16xf32>
    %394 = vector.broadcast %393 : vector<1x16xf32> to vector<32x16xf32>
    %395 = arith.mulf %394, %392 : vector<32x16xf32>
    %396 = arith.addf %27, %395 : vector<32x16xf32>
    %c176 = arith.constant 176 : index
    %c0_174 = arith.constant 0 : index
    %397 = vector.load %arg1[%c176, %c0_174] : memref<184x16xf32, #tpu.memory_space<vmem>>, vector<1x16xf32>
    %c177 = arith.constant 177 : index
    %c0_175 = arith.constant 0 : index
    %398 = vector.load %arg1[%c177, %c0_175] : memref<184x16xf32, #tpu.memory_space<vmem>>, vector<1x16xf32>
    %cst_176 = arith.constant dense<0.000000e+00> : vector<32xf32>
    %399 = vector.multi_reduction <add>, %396, %cst_176 [1] : vector<32x16xf32> to vector<32xf32>
    %400 = vector.shape_cast %399 : vector<32xf32> to vector<32x1xf32>
    %cst_177 = arith.constant 1.600000e+01 : f32
    %401 = vector.broadcast %cst_177 : f32 to vector<32x1xf32>
    %402 = arith.divf %400, %401 : vector<32x1xf32>
    %403 = vector.broadcast %402 : vector<32x1xf32> to vector<32x16xf32>
    %404 = arith.subf %396, %403 : vector<32x16xf32>
    %405 = arith.mulf %404, %404 : vector<32x16xf32>
    %cst_178 = arith.constant dense<0.000000e+00> : vector<32xf32>
    %406 = vector.multi_reduction <add>, %405, %cst_178 [1] : vector<32x16xf32> to vector<32xf32>
    %407 = vector.shape_cast %406 : vector<32xf32> to vector<32x1xf32>
    %cst_179 = arith.constant 1.600000e+01 : f32
    %408 = vector.broadcast %cst_179 : f32 to vector<32x1xf32>
    %409 = arith.divf %407, %408 : vector<32x1xf32>
    %cst_180 = arith.constant 9.99999997E-7 : f32
    %410 = vector.broadcast %cst_180 : f32 to vector<32x1xf32>
    %411 = arith.addf %409, %410 : vector<32x1xf32>
    %412 = math.rsqrt %411 : vector<32x1xf32>
    %413 = vector.broadcast %412 : vector<32x1xf32> to vector<32x16xf32>
    %414 = arith.mulf %404, %413 : vector<32x16xf32>
    %415 = vector.broadcast %397 : vector<1x16xf32> to vector<32x16xf32>
    %416 = arith.mulf %414, %415 : vector<32x16xf32>
    %417 = vector.broadcast %398 : vector<1x16xf32> to vector<32x16xf32>
    %418 = arith.addf %416, %417 : vector<32x16xf32>
    %c0_181 = arith.constant 0 : index
    %c0_182 = arith.constant 0 : index
    %419 = vector.load %arg10[%c0_181, %c0_182] : memref<432x16xf32, #tpu.memory_space<vmem>>, vector<32x16xf32>
    tpu.vector_store %arg10[%c0_181, %c0_182], %418 {strides = array<i32>} : memref<432x16xf32, #tpu.memory_space<vmem>>, vector<32x16xf32>,
    %c0_183 = arith.constant 0 : index
    %c0_184 = arith.constant 0 : index
    %420 = tpu.strided_load %arg10[%c0_183, %c0_184] {strides = array<i32: 2, 1>} : memref<432x16xf32, #tpu.memory_space<vmem>>, vector<2x16xf32>
    %c1 = arith.constant 1 : index
    %c0_185 = arith.constant 0 : index
    %421 = tpu.strided_load %arg10[%c1, %c0_185] {strides = array<i32: 2, 1>} : memref<432x16xf32, #tpu.memory_space<vmem>>, vector<2x16xf32>
    %c4 = arith.constant 4 : index
    %c0_186 = arith.constant 0 : index
    %422 = tpu.strided_load %arg10[%c4, %c0_186] {strides = array<i32: 2, 1>} : memref<432x16xf32, #tpu.memory_space<vmem>>, vector<2x16xf32>
    %c5_187 = arith.constant 5 : index
    %c0_188 = arith.constant 0 : index
    %423 = tpu.strided_load %arg10[%c5_187, %c0_188] {strides = array<i32: 2, 1>} : memref<432x16xf32, #tpu.memory_space<vmem>>, vector<2x16xf32>
    %424 = tpu.concatenate %420, %421, %422, %423 in 1 : vector<2x16xf32>, vector<2x16xf32>, vector<2x16xf32>, vector<2x16xf32> -> vector<2x64xf32>
    %c8_189 = arith.constant 8 : index
    %c0_190 = arith.constant 0 : index
    %425 = tpu.strided_load %arg10[%c8_189, %c0_190] {strides = array<i32: 2, 1>} : memref<432x16xf32, #tpu.memory_space<vmem>>, vector<2x16xf32>
    %c9_191 = arith.constant 9 : index
    %c0_192 = arith.constant 0 : index
    %426 = tpu.strided_load %arg10[%c9_191, %c0_192] {strides = array<i32: 2, 1>} : memref<432x16xf32, #tpu.memory_space<vmem>>, vector<2x16xf32>
    %c12 = arith.constant 12 : index
    %c0_193 = arith.constant 0 : index
    %427 = tpu.strided_load %arg10[%c12, %c0_193] {strides = array<i32: 2, 1>} : memref<432x16xf32, #tpu.memory_space<vmem>>, vector<2x16xf32>
    %c13 = arith.constant 13 : index
    %c0_194 = arith.constant 0 : index
    %428 = tpu.strided_load %arg10[%c13, %c0_194] {strides = array<i32: 2, 1>} : memref<432x16xf32, #tpu.memory_space<vmem>>, vector<2x16xf32>
    %429 = tpu.concatenate %425, %426, %427, %428 in 1 : vector<2x16xf32>, vector<2x16xf32>, vector<2x16xf32>, vector<2x16xf32> -> vector<2x64xf32>
    %c16_195 = arith.constant 16 : index
    %c0_196 = arith.constant 0 : index
    %430 = tpu.strided_load %arg10[%c16_195, %c0_196] {strides = array<i32: 2, 1>} : memref<432x16xf32, #tpu.memory_space<vmem>>, vector<2x16xf32>
    %c17 = arith.constant 17 : index
    %c0_197 = arith.constant 0 : index
    %431 = tpu.strided_load %arg10[%c17, %c0_197] {strides = array<i32: 2, 1>} : memref<432x16xf32, #tpu.memory_space<vmem>>, vector<2x16xf32>
    %c20 = arith.constant 20 : index
    %c0_198 = arith.constant 0 : index
    %432 = tpu.strided_load %arg10[%c20, %c0_198] {strides = array<i32: 2, 1>} : memref<432x16xf32, #tpu.memory_space<vmem>>, vector<2x16xf32>
    %c21_199 = arith.constant 21 : index
    %c0_200 = arith.constant 0 : index
    %433 = tpu.strided_load %arg10[%c21_199, %c0_200] {strides = array<i32: 2, 1>} : memref<432x16xf32, #tpu.memory_space<vmem>>, vector<2x16xf32>
    %434 = tpu.concatenate %430, %431, %432, %433 in 1 : vector<2x16xf32>, vector<2x16xf32>, vector<2x16xf32>, vector<2x16xf32> -> vector<2x64xf32>
    %c24_201 = arith.constant 24 : index
    %c0_202 = arith.constant 0 : index
    %435 = tpu.strided_load %arg10[%c24_201, %c0_202] {strides = array<i32: 2, 1>} : memref<432x16xf32, #tpu.memory_space<vmem>>, vector<2x16xf32>
    %c25_203 = arith.constant 25 : index
    %c0_204 = arith.constant 0 : index
    %436 = tpu.strided_load %arg10[%c25_203, %c0_204] {strides = array<i32: 2, 1>} : memref<432x16xf32, #tpu.memory_space<vmem>>, vector<2x16xf32>
    %c28 = arith.constant 28 : index
    %c0_205 = arith.constant 0 : index
    %437 = tpu.strided_load %arg10[%c28, %c0_205] {strides = array<i32: 2, 1>} : memref<432x16xf32, #tpu.memory_space<vmem>>, vector<2x16xf32>
    %c29 = arith.constant 29 : index
    %c0_206 = arith.constant 0 : index
    %438 = tpu.strided_load %arg10[%c29, %c0_206] {strides = array<i32: 2, 1>} : memref<432x16xf32, #tpu.memory_space<vmem>>, vector<2x16xf32>
    %439 = tpu.concatenate %435, %436, %437, %438 in 1 : vector<2x16xf32>, vector<2x16xf32>, vector<2x16xf32>, vector<2x16xf32> -> vector<2x64xf32>
    %440 = tpu.concatenate %424, %429, %434, %439 in 0 : vector<2x64xf32>, vector<2x64xf32>, vector<2x64xf32>, vector<2x64xf32> -> vector<8x64xf32>
    %c0_207 = arith.constant 0 : index
    %c0_208 = arith.constant 0 : index
    %441 = vector.load %arg3[%c0_207, %c0_208] : memref<192x16xf32, #tpu.memory_space<vmem>>, vector<64x16xf32>
    %cst_209 = arith.constant dense<0.000000e+00> : vector<8x16xf32>
    %442 = tpu.matmul %440, %441, %cst_209 {dimension_numbers = #tpu.dot_dimension_numbers<[1], [0], [0], [1], [0, 0, 1, 1], [], []>} : vector<8x64xf32>, vector<64x16xf32>, vector<8x16xf32> -> vector<8x16xf32>
    %c184 = arith.constant 184 : index
    %c0_210 = arith.constant 0 : index
    %443 = vector.load %arg3[%c184, %c0_210] : memref<192x16xf32, #tpu.memory_space<vmem>>, vector<1x16xf32>
    %444 = vector.broadcast %443 : vector<1x16xf32> to vector<8x16xf32>
    %445 = arith.addf %442, %444 : vector<8x16xf32>
    %cst_211 = arith.constant 0.000000e+00 : f32
    %446 = vector.broadcast %cst_211 : f32 to vector<56x16xf32>
    %c0_212 = arith.constant 0 : index
    %c0_213 = arith.constant 0 : index
    %447 = vector.load %arg11[%c0_212, %c0_213] : memref<192x16xf32, #tpu.memory_space<vmem>>, vector<56x16xf32>
    tpu.vector_store %arg11[%c0_212, %c0_213], %446 {strides = array<i32>} : memref<192x16xf32, #tpu.memory_space<vmem>>, vector<56x16xf32>,
    %448 = vector.extract_strided_slice %445 {offsets = [0, 0], sizes = [2, 16], strides = [1, 1]} : vector<8x16xf32> to vector<2x16xf32>
    %c56_214 = arith.constant 56 : index
    %c0_215 = arith.constant 0 : index
    %449 = vector.load %arg11[%c56_214, %c0_215] : memref<192x16xf32, #tpu.memory_space<vmem>>, vector<2x16xf32>
    tpu.vector_store %arg11[%c56_214, %c0_215], %448 {strides = array<i32>} : memref<192x16xf32, #tpu.memory_space<vmem>>, vector<2x16xf32>,
    %cst_216 = arith.constant 0.000000e+00 : f32
    %450 = vector.broadcast %cst_216 : f32 to vector<6x16xf32>
    %c58_217 = arith.constant 58 : index
    %c0_218 = arith.constant 0 : index
    %451 = vector.load %arg11[%c58_217, %c0_218] : memref<192x16xf32, #tpu.memory_space<vmem>>, vector<6x16xf32>
    tpu.vector_store %arg11[%c58_217, %c0_218], %450 {strides = array<i32>} : memref<192x16xf32, #tpu.memory_space<vmem>>, vector<6x16xf32>,
    %452 = vector.extract_strided_slice %445 {offsets = [2, 0], sizes = [2, 16], strides = [1, 1]} : vector<8x16xf32> to vector<2x16xf32>
    %c64 = arith.constant 64 : index
    %c0_219 = arith.constant 0 : index
    %453 = vector.load %arg11[%c64, %c0_219] : memref<192x16xf32, #tpu.memory_space<vmem>>, vector<2x16xf32>
    tpu.vector_store %arg11[%c64, %c0_219], %452 {strides = array<i32>} : memref<192x16xf32, #tpu.memory_space<vmem>>, vector<2x16xf32>,
    %cst_220 = arith.constant 0.000000e+00 : f32
    %454 = vector.broadcast %cst_220 : f32 to vector<54x16xf32>
    %c66 = arith.constant 66 : index
    %c0_221 = arith.constant 0 : index
    %455 = vector.load %arg11[%c66, %c0_221] : memref<192x16xf32, #tpu.memory_space<vmem>>, vector<54x16xf32>
    tpu.vector_store %arg11[%c66, %c0_221], %454 {strides = array<i32>} : memref<192x16xf32, #tpu.memory_space<vmem>>, vector<54x16xf32>,
    %456 = vector.extract_strided_slice %445 {offsets = [4, 0], sizes = [2, 16], strides = [1, 1]} : vector<8x16xf32> to vector<2x16xf32>
    %c120_222 = arith.constant 120 : index
    %c0_223 = arith.constant 0 : index
    %457 = vector.load %arg11[%c120_222, %c0_223] : memref<192x16xf32, #tpu.memory_space<vmem>>, vector<2x16xf32>
    tpu.vector_store %arg11[%c120_222, %c0_223], %456 {strides = array<i32>} : memref<192x16xf32, #tpu.memory_space<vmem>>, vector<2x16xf32>,
    %cst_224 = arith.constant 0.000000e+00 : f32
    %458 = vector.broadcast %cst_224 : f32 to vector<6x16xf32>
    %c122_225 = arith.constant 122 : index
    %c0_226 = arith.constant 0 : index
    %459 = vector.load %arg11[%c122_225, %c0_226] : memref<192x16xf32, #tpu.memory_space<vmem>>, vector<6x16xf32>
    tpu.vector_store %arg11[%c122_225, %c0_226], %458 {strides = array<i32>} : memref<192x16xf32, #tpu.memory_space<vmem>>, vector<6x16xf32>,
    %460 = vector.extract_strided_slice %445 {offsets = [6, 0], sizes = [2, 16], strides = [1, 1]} : vector<8x16xf32> to vector<2x16xf32>
    %c128_227 = arith.constant 128 : index
    %c0_228 = arith.constant 0 : index
    %461 = vector.load %arg11[%c128_227, %c0_228] : memref<192x16xf32, #tpu.memory_space<vmem>>, vector<2x16xf32>
    tpu.vector_store %arg11[%c128_227, %c0_228], %460 {strides = array<i32>} : memref<192x16xf32, #tpu.memory_space<vmem>>, vector<2x16xf32>,
    %cst_229 = arith.constant 0.000000e+00 : f32
    %462 = vector.broadcast %cst_229 : f32 to vector<62x16xf32>
    %c130_230 = arith.constant 130 : index
    %c0_231 = arith.constant 0 : index
    %463 = vector.load %arg11[%c130_230, %c0_231] : memref<192x16xf32, #tpu.memory_space<vmem>>, vector<62x16xf32>
    tpu.vector_store %arg11[%c130_230, %c0_231], %462 {strides = array<i32>} : memref<192x16xf32, #tpu.memory_space<vmem>>, vector<62x16xf32>,
    %c128_232 = arith.constant 128 : index
    %c0_233 = arith.constant 0 : index
    %464 = vector.load %arg3[%c128_232, %c0_233] : memref<192x16xf32, #tpu.memory_space<vmem>>, vector<1x16xf32>
    %c5_234 = arith.constant 5 : index
    %c0_235 = arith.constant 0 : index
    %465 = vector.load %arg11[%c5_234, %c0_235] : memref<192x16xf32, #tpu.memory_space<vmem>>, vector<128x16xf32>
    %466 = vector.broadcast %464 : vector<1x16xf32> to vector<128x16xf32>
    %467 = arith.mulf %465, %466 : vector<128x16xf32>
    %c129_236 = arith.constant 129 : index
    %c0_237 = arith.constant 0 : index
    %468 = vector.load %arg3[%c129_236, %c0_237] : memref<192x16xf32, #tpu.memory_space<vmem>>, vector<1x16xf32>
    %c6_238 = arith.constant 6 : index
    %c0_239 = arith.constant 0 : index
    %469 = vector.load %arg11[%c6_238, %c0_239] : memref<192x16xf32, #tpu.memory_space<vmem>>, vector<128x16xf32>
    %470 = vector.broadcast %468 : vector<1x16xf32> to vector<128x16xf32>
    %471 = arith.mulf %469, %470 : vector<128x16xf32>
    %472 = arith.addf %467, %471 : vector<128x16xf32>
    %c130_240 = arith.constant 130 : index
    %c0_241 = arith.constant 0 : index
    %473 = vector.load %arg3[%c130_240, %c0_241] : memref<192x16xf32, #tpu.memory_space<vmem>>, vector<1x16xf32>
    %c7_242 = arith.constant 7 : index
    %c0_243 = arith.constant 0 : index
    %474 = vector.load %arg11[%c7_242, %c0_243] : memref<192x16xf32, #tpu.memory_space<vmem>>, vector<128x16xf32>
    %475 = vector.broadcast %473 : vector<1x16xf32> to vector<128x16xf32>
    %476 = arith.mulf %474, %475 : vector<128x16xf32>
    %477 = arith.addf %472, %476 : vector<128x16xf32>
    %c131_244 = arith.constant 131 : index
    %c0_245 = arith.constant 0 : index
    %478 = vector.load %arg3[%c131_244, %c0_245] : memref<192x16xf32, #tpu.memory_space<vmem>>, vector<1x16xf32>
    %c8_246 = arith.constant 8 : index
    %c0_247 = arith.constant 0 : index
    %479 = vector.load %arg11[%c8_246, %c0_247] : memref<192x16xf32, #tpu.memory_space<vmem>>, vector<128x16xf32>
    %480 = vector.broadcast %478 : vector<1x16xf32> to vector<128x16xf32>
    %481 = arith.mulf %479, %480 : vector<128x16xf32>
    %482 = arith.addf %477, %481 : vector<128x16xf32>
    %c132_248 = arith.constant 132 : index
    %c0_249 = arith.constant 0 : index
    %483 = vector.load %arg3[%c132_248, %c0_249] : memref<192x16xf32, #tpu.memory_space<vmem>>, vector<1x16xf32>
    %c9_250 = arith.constant 9 : index
    %c0_251 = arith.constant 0 : index
    %484 = vector.load %arg11[%c9_250, %c0_251] : memref<192x16xf32, #tpu.memory_space<vmem>>, vector<128x16xf32>
    %485 = vector.broadcast %483 : vector<1x16xf32> to vector<128x16xf32>
    %486 = arith.mulf %484, %485 : vector<128x16xf32>
    %487 = arith.addf %482, %486 : vector<128x16xf32>
    %c133_252 = arith.constant 133 : index
    %c0_253 = arith.constant 0 : index
    %488 = vector.load %arg3[%c133_252, %c0_253] : memref<192x16xf32, #tpu.memory_space<vmem>>, vector<1x16xf32>
    %c10_254 = arith.constant 10 : index
    %c0_255 = arith.constant 0 : index
    %489 = vector.load %arg11[%c10_254, %c0_255] : memref<192x16xf32, #tpu.memory_space<vmem>>, vector<128x16xf32>
    %490 = vector.broadcast %488 : vector<1x16xf32> to vector<128x16xf32>
    %491 = arith.mulf %489, %490 : vector<128x16xf32>
    %492 = arith.addf %487, %491 : vector<128x16xf32>
    %c134_256 = arith.constant 134 : index
    %c0_257 = arith.constant 0 : index
    %493 = vector.load %arg3[%c134_256, %c0_257] : memref<192x16xf32, #tpu.memory_space<vmem>>, vector<1x16xf32>
    %c11_258 = arith.constant 11 : index
    %c0_259 = arith.constant 0 : index
    %494 = vector.load %arg11[%c11_258, %c0_259] : memref<192x16xf32, #tpu.memory_space<vmem>>, vector<128x16xf32>
    %495 = vector.broadcast %493 : vector<1x16xf32> to vector<128x16xf32>
    %496 = arith.mulf %494, %495 : vector<128x16xf32>
    %497 = arith.addf %492, %496 : vector<128x16xf32>
    %c135_260 = arith.constant 135 : index
    %c0_261 = arith.constant 0 : index
    %498 = vector.load %arg3[%c135_260, %c0_261] : memref<192x16xf32, #tpu.memory_space<vmem>>, vector<1x16xf32>
    %c13_262 = arith.constant 13 : index
    %c0_263 = arith.constant 0 : index
    %499 = vector.load %arg11[%c13_262, %c0_263] : memref<192x16xf32, #tpu.memory_space<vmem>>, vector<128x16xf32>
    %500 = vector.broadcast %498 : vector<1x16xf32> to vector<128x16xf32>
    %501 = arith.mulf %499, %500 : vector<128x16xf32>
    %502 = arith.addf %497, %501 : vector<128x16xf32>
    %c136_264 = arith.constant 136 : index
    %c0_265 = arith.constant 0 : index
    %503 = vector.load %arg3[%c136_264, %c0_265] : memref<192x16xf32, #tpu.memory_space<vmem>>, vector<1x16xf32>
    %c14 = arith.constant 14 : index
    %c0_266 = arith.constant 0 : index
    %504 = vector.load %arg11[%c14, %c0_266] : memref<192x16xf32, #tpu.memory_space<vmem>>, vector<128x16xf32>
    %505 = vector.broadcast %503 : vector<1x16xf32> to vector<128x16xf32>
    %506 = arith.mulf %504, %505 : vector<128x16xf32>
    %507 = arith.addf %502, %506 : vector<128x16xf32>
    %c137_267 = arith.constant 137 : index
    %c0_268 = arith.constant 0 : index
    %508 = vector.load %arg3[%c137_267, %c0_268] : memref<192x16xf32, #tpu.memory_space<vmem>>, vector<1x16xf32>
    %c15 = arith.constant 15 : index
    %c0_269 = arith.constant 0 : index
    %509 = vector.load %arg11[%c15, %c0_269] : memref<192x16xf32, #tpu.memory_space<vmem>>, vector<128x16xf32>
    %510 = vector.broadcast %508 : vector<1x16xf32> to vector<128x16xf32>
    %511 = arith.mulf %509, %510 : vector<128x16xf32>
    %512 = arith.addf %507, %511 : vector<128x16xf32>
    %c138_270 = arith.constant 138 : index
    %c0_271 = arith.constant 0 : index
    %513 = vector.load %arg3[%c138_270, %c0_271] : memref<192x16xf32, #tpu.memory_space<vmem>>, vector<1x16xf32>
    %c16_272 = arith.constant 16 : index
    %c0_273 = arith.constant 0 : index
    %514 = vector.load %arg11[%c16_272, %c0_273] : memref<192x16xf32, #tpu.memory_space<vmem>>, vector<128x16xf32>
    %515 = vector.broadcast %513 : vector<1x16xf32> to vector<128x16xf32>
    %516 = arith.mulf %514, %515 : vector<128x16xf32>
    %517 = arith.addf %512, %516 : vector<128x16xf32>
    %c139_274 = arith.constant 139 : index
    %c0_275 = arith.constant 0 : index
    %518 = vector.load %arg3[%c139_274, %c0_275] : memref<192x16xf32, #tpu.memory_space<vmem>>, vector<1x16xf32>
    %c17_276 = arith.constant 17 : index
    %c0_277 = arith.constant 0 : index
    %519 = vector.load %arg11[%c17_276, %c0_277] : memref<192x16xf32, #tpu.memory_space<vmem>>, vector<128x16xf32>
    %520 = vector.broadcast %518 : vector<1x16xf32> to vector<128x16xf32>
    %521 = arith.mulf %519, %520 : vector<128x16xf32>
    %522 = arith.addf %517, %521 : vector<128x16xf32>
    %c140_278 = arith.constant 140 : index
    %c0_279 = arith.constant 0 : index
    %523 = vector.load %arg3[%c140_278, %c0_279] : memref<192x16xf32, #tpu.memory_space<vmem>>, vector<1x16xf32>
    %c18 = arith.constant 18 : index
    %c0_280 = arith.constant 0 : index
    %524 = vector.load %arg11[%c18, %c0_280] : memref<192x16xf32, #tpu.memory_space<vmem>>, vector<128x16xf32>
    %525 = vector.broadcast %523 : vector<1x16xf32> to vector<128x16xf32>
    %526 = arith.mulf %524, %525 : vector<128x16xf32>
    %527 = arith.addf %522, %526 : vector<128x16xf32>
    %c141_281 = arith.constant 141 : index
    %c0_282 = arith.constant 0 : index
    %528 = vector.load %arg3[%c141_281, %c0_282] : memref<192x16xf32, #tpu.memory_space<vmem>>, vector<1x16xf32>
    %c19 = arith.constant 19 : index
    %c0_283 = arith.constant 0 : index
    %529 = vector.load %arg11[%c19, %c0_283] : memref<192x16xf32, #tpu.memory_space<vmem>>, vector<128x16xf32>
    %530 = vector.broadcast %528 : vector<1x16xf32> to vector<128x16xf32>
    %531 = arith.mulf %529, %530 : vector<128x16xf32>
    %532 = arith.addf %527, %531 : vector<128x16xf32>
    %c142_284 = arith.constant 142 : index
    %c0_285 = arith.constant 0 : index
    %533 = vector.load %arg3[%c142_284, %c0_285] : memref<192x16xf32, #tpu.memory_space<vmem>>, vector<1x16xf32>
    %c21_286 = arith.constant 21 : index
    %c0_287 = arith.constant 0 : index
    %534 = vector.load %arg11[%c21_286, %c0_287] : memref<192x16xf32, #tpu.memory_space<vmem>>, vector<128x16xf32>
    %535 = vector.broadcast %533 : vector<1x16xf32> to vector<128x16xf32>
    %536 = arith.mulf %534, %535 : vector<128x16xf32>
    %537 = arith.addf %532, %536 : vector<128x16xf32>
    %c143_288 = arith.constant 143 : index
    %c0_289 = arith.constant 0 : index
    %538 = vector.load %arg3[%c143_288, %c0_289] : memref<192x16xf32, #tpu.memory_space<vmem>>, vector<1x16xf32>
    %c22_290 = arith.constant 22 : index
    %c0_291 = arith.constant 0 : index
    %539 = vector.load %arg11[%c22_290, %c0_291] : memref<192x16xf32, #tpu.memory_space<vmem>>, vector<128x16xf32>
    %540 = vector.broadcast %538 : vector<1x16xf32> to vector<128x16xf32>
    %541 = arith.mulf %539, %540 : vector<128x16xf32>
    %542 = arith.addf %537, %541 : vector<128x16xf32>
    %c144_292 = arith.constant 144 : index
    %c0_293 = arith.constant 0 : index
    %543 = vector.load %arg3[%c144_292, %c0_293] : memref<192x16xf32, #tpu.memory_space<vmem>>, vector<1x16xf32>
    %c23_294 = arith.constant 23 : index
    %c0_295 = arith.constant 0 : index
    %544 = vector.load %arg11[%c23_294, %c0_295] : memref<192x16xf32, #tpu.memory_space<vmem>>, vector<128x16xf32>
    %545 = vector.broadcast %543 : vector<1x16xf32> to vector<128x16xf32>
    %546 = arith.mulf %544, %545 : vector<128x16xf32>
    %547 = arith.addf %542, %546 : vector<128x16xf32>
    %c145_296 = arith.constant 145 : index
    %c0_297 = arith.constant 0 : index
    %548 = vector.load %arg3[%c145_296, %c0_297] : memref<192x16xf32, #tpu.memory_space<vmem>>, vector<1x16xf32>
    %c24_298 = arith.constant 24 : index
    %c0_299 = arith.constant 0 : index
    %549 = vector.load %arg11[%c24_298, %c0_299] : memref<192x16xf32, #tpu.memory_space<vmem>>, vector<128x16xf32>
    %550 = vector.broadcast %548 : vector<1x16xf32> to vector<128x16xf32>
    %551 = arith.mulf %549, %550 : vector<128x16xf32>
    %552 = arith.addf %547, %551 : vector<128x16xf32>
    %c146_300 = arith.constant 146 : index
    %c0_301 = arith.constant 0 : index
    %553 = vector.load %arg3[%c146_300, %c0_301] : memref<192x16xf32, #tpu.memory_space<vmem>>, vector<1x16xf32>
    %c25_302 = arith.constant 25 : index
    %c0_303 = arith.constant 0 : index
    %554 = vector.load %arg11[%c25_302, %c0_303] : memref<192x16xf32, #tpu.memory_space<vmem>>, vector<128x16xf32>
    %555 = vector.broadcast %553 : vector<1x16xf32> to vector<128x16xf32>
    %556 = arith.mulf %554, %555 : vector<128x16xf32>
    %557 = arith.addf %552, %556 : vector<128x16xf32>
    %c147_304 = arith.constant 147 : index
    %c0_305 = arith.constant 0 : index
    %558 = vector.load %arg3[%c147_304, %c0_305] : memref<192x16xf32, #tpu.memory_space<vmem>>, vector<1x16xf32>
    %c26_306 = arith.constant 26 : index
    %c0_307 = arith.constant 0 : index
    %559 = vector.load %arg11[%c26_306, %c0_307] : memref<192x16xf32, #tpu.memory_space<vmem>>, vector<128x16xf32>
    %560 = vector.broadcast %558 : vector<1x16xf32> to vector<128x16xf32>
    %561 = arith.mulf %559, %560 : vector<128x16xf32>
    %562 = arith.addf %557, %561 : vector<128x16xf32>
    %c148_308 = arith.constant 148 : index
    %c0_309 = arith.constant 0 : index
    %563 = vector.load %arg3[%c148_308, %c0_309] : memref<192x16xf32, #tpu.memory_space<vmem>>, vector<1x16xf32>
    %c27_310 = arith.constant 27 : index
    %c0_311 = arith.constant 0 : index
    %564 = vector.load %arg11[%c27_310, %c0_311] : memref<192x16xf32, #tpu.memory_space<vmem>>, vector<128x16xf32>
    %565 = vector.broadcast %563 : vector<1x16xf32> to vector<128x16xf32>
    %566 = arith.mulf %564, %565 : vector<128x16xf32>
    %567 = arith.addf %562, %566 : vector<128x16xf32>
    %c149_312 = arith.constant 149 : index
    %c0_313 = arith.constant 0 : index
    %568 = vector.load %arg3[%c149_312, %c0_313] : memref<192x16xf32, #tpu.memory_space<vmem>>, vector<1x16xf32>
    %c29_314 = arith.constant 29 : index
    %c0_315 = arith.constant 0 : index
    %569 = vector.load %arg11[%c29_314, %c0_315] : memref<192x16xf32, #tpu.memory_space<vmem>>, vector<128x16xf32>
    %570 = vector.broadcast %568 : vector<1x16xf32> to vector<128x16xf32>
    %571 = arith.mulf %569, %570 : vector<128x16xf32>
    %572 = arith.addf %567, %571 : vector<128x16xf32>
    %c150_316 = arith.constant 150 : index
    %c0_317 = arith.constant 0 : index
    %573 = vector.load %arg3[%c150_316, %c0_317] : memref<192x16xf32, #tpu.memory_space<vmem>>, vector<1x16xf32>
    %c30 = arith.constant 30 : index
    %c0_318 = arith.constant 0 : index
    %574 = vector.load %arg11[%c30, %c0_318] : memref<192x16xf32, #tpu.memory_space<vmem>>, vector<128x16xf32>
    %575 = vector.broadcast %573 : vector<1x16xf32> to vector<128x16xf32>
    %576 = arith.mulf %574, %575 : vector<128x16xf32>
    %577 = arith.addf %572, %576 : vector<128x16xf32>
    %c151_319 = arith.constant 151 : index
    %c0_320 = arith.constant 0 : index
    %578 = vector.load %arg3[%c151_319, %c0_320] : memref<192x16xf32, #tpu.memory_space<vmem>>, vector<1x16xf32>
    %c31 = arith.constant 31 : index
    %c0_321 = arith.constant 0 : index
    %579 = vector.load %arg11[%c31, %c0_321] : memref<192x16xf32, #tpu.memory_space<vmem>>, vector<128x16xf32>
    %580 = vector.broadcast %578 : vector<1x16xf32> to vector<128x16xf32>
    %581 = arith.mulf %579, %580 : vector<128x16xf32>
    %582 = arith.addf %577, %581 : vector<128x16xf32>
    %c152_322 = arith.constant 152 : index
    %c0_323 = arith.constant 0 : index
    %583 = vector.load %arg3[%c152_322, %c0_323] : memref<192x16xf32, #tpu.memory_space<vmem>>, vector<1x16xf32>
    %c32 = arith.constant 32 : index
    %c0_324 = arith.constant 0 : index
    %584 = vector.load %arg11[%c32, %c0_324] : memref<192x16xf32, #tpu.memory_space<vmem>>, vector<128x16xf32>
    %585 = vector.broadcast %583 : vector<1x16xf32> to vector<128x16xf32>
    %586 = arith.mulf %584, %585 : vector<128x16xf32>
    %587 = arith.addf %582, %586 : vector<128x16xf32>
    %c153_325 = arith.constant 153 : index
    %c0_326 = arith.constant 0 : index
    %588 = vector.load %arg3[%c153_325, %c0_326] : memref<192x16xf32, #tpu.memory_space<vmem>>, vector<1x16xf32>
    %c33 = arith.constant 33 : index
    %c0_327 = arith.constant 0 : index
    %589 = vector.load %arg11[%c33, %c0_327] : memref<192x16xf32, #tpu.memory_space<vmem>>, vector<128x16xf32>
    %590 = vector.broadcast %588 : vector<1x16xf32> to vector<128x16xf32>
    %591 = arith.mulf %589, %590 : vector<128x16xf32>
    %592 = arith.addf %587, %591 : vector<128x16xf32>
    %c154_328 = arith.constant 154 : index
    %c0_329 = arith.constant 0 : index
    %593 = vector.load %arg3[%c154_328, %c0_329] : memref<192x16xf32, #tpu.memory_space<vmem>>, vector<1x16xf32>
    %c34 = arith.constant 34 : index
    %c0_330 = arith.constant 0 : index
    %594 = vector.load %arg11[%c34, %c0_330] : memref<192x16xf32, #tpu.memory_space<vmem>>, vector<128x16xf32>
    %595 = vector.broadcast %593 : vector<1x16xf32> to vector<128x16xf32>
    %596 = arith.mulf %594, %595 : vector<128x16xf32>
    %597 = arith.addf %592, %596 : vector<128x16xf32>
    %c155_331 = arith.constant 155 : index
    %c0_332 = arith.constant 0 : index
    %598 = vector.load %arg3[%c155_331, %c0_332] : memref<192x16xf32, #tpu.memory_space<vmem>>, vector<1x16xf32>
    %c35 = arith.constant 35 : index
    %c0_333 = arith.constant 0 : index
    %599 = vector.load %arg11[%c35, %c0_333] : memref<192x16xf32, #tpu.memory_space<vmem>>, vector<128x16xf32>
    %600 = vector.broadcast %598 : vector<1x16xf32> to vector<128x16xf32>
    %601 = arith.mulf %599, %600 : vector<128x16xf32>
    %602 = arith.addf %597, %601 : vector<128x16xf32>
    %c156_334 = arith.constant 156 : index
    %c0_335 = arith.constant 0 : index
    %603 = vector.load %arg3[%c156_334, %c0_335] : memref<192x16xf32, #tpu.memory_space<vmem>>, vector<1x16xf32>
    %c37_336 = arith.constant 37 : index
    %c0_337 = arith.constant 0 : index
    %604 = vector.load %arg11[%c37_336, %c0_337] : memref<192x16xf32, #tpu.memory_space<vmem>>, vector<128x16xf32>
    %605 = vector.broadcast %603 : vector<1x16xf32> to vector<128x16xf32>
    %606 = arith.mulf %604, %605 : vector<128x16xf32>
    %607 = arith.addf %602, %606 : vector<128x16xf32>
    %c157_338 = arith.constant 157 : index
    %c0_339 = arith.constant 0 : index
    %608 = vector.load %arg3[%c157_338, %c0_339] : memref<192x16xf32, #tpu.memory_space<vmem>>, vector<1x16xf32>
    %c38_340 = arith.constant 38 : index
    %c0_341 = arith.constant 0 : index
    %609 = vector.load %arg11[%c38_340, %c0_341] : memref<192x16xf32, #tpu.memory_space<vmem>>, vector<128x16xf32>
    %610 = vector.broadcast %608 : vector<1x16xf32> to vector<128x16xf32>
    %611 = arith.mulf %609, %610 : vector<128x16xf32>
    %612 = arith.addf %607, %611 : vector<128x16xf32>
    %c158_342 = arith.constant 158 : index
    %c0_343 = arith.constant 0 : index
    %613 = vector.load %arg3[%c158_342, %c0_343] : memref<192x16xf32, #tpu.memory_space<vmem>>, vector<1x16xf32>
    %c39_344 = arith.constant 39 : index
    %c0_345 = arith.constant 0 : index
    %614 = vector.load %arg11[%c39_344, %c0_345] : memref<192x16xf32, #tpu.memory_space<vmem>>, vector<128x16xf32>
    %615 = vector.broadcast %613 : vector<1x16xf32> to vector<128x16xf32>
    %616 = arith.mulf %614, %615 : vector<128x16xf32>
    %617 = arith.addf %612, %616 : vector<128x16xf32>
    %c159_346 = arith.constant 159 : index
    %c0_347 = arith.constant 0 : index
    %618 = vector.load %arg3[%c159_346, %c0_347] : memref<192x16xf32, #tpu.memory_space<vmem>>, vector<1x16xf32>
    %c40_348 = arith.constant 40 : index
    %c0_349 = arith.constant 0 : index
    %619 = vector.load %arg11[%c40_348, %c0_349] : memref<192x16xf32, #tpu.memory_space<vmem>>, vector<128x16xf32>
    %620 = vector.broadcast %618 : vector<1x16xf32> to vector<128x16xf32>
    %621 = arith.mulf %619, %620 : vector<128x16xf32>
    %622 = arith.addf %617, %621 : vector<128x16xf32>
    %c160_350 = arith.constant 160 : index
    %c0_351 = arith.constant 0 : index
    %623 = vector.load %arg3[%c160_350, %c0_351] : memref<192x16xf32, #tpu.memory_space<vmem>>, vector<1x16xf32>
    %c41_352 = arith.constant 41 : index
    %c0_353 = arith.constant 0 : index
    %624 = vector.load %arg11[%c41_352, %c0_353] : memref<192x16xf32, #tpu.memory_space<vmem>>, vector<128x16xf32>
    %625 = vector.broadcast %623 : vector<1x16xf32> to vector<128x16xf32>
    %626 = arith.mulf %624, %625 : vector<128x16xf32>
    %627 = arith.addf %622, %626 : vector<128x16xf32>
    %c161 = arith.constant 161 : index
    %c0_354 = arith.constant 0 : index
    %628 = vector.load %arg3[%c161, %c0_354] : memref<192x16xf32, #tpu.memory_space<vmem>>, vector<1x16xf32>
    %c42_355 = arith.constant 42 : index
    %c0_356 = arith.constant 0 : index
    %629 = vector.load %arg11[%c42_355, %c0_356] : memref<192x16xf32, #tpu.memory_space<vmem>>, vector<128x16xf32>
    %630 = vector.broadcast %628 : vector<1x16xf32> to vector<128x16xf32>
    %631 = arith.mulf %629, %630 : vector<128x16xf32>
    %632 = arith.addf %627, %631 : vector<128x16xf32>
    %c162 = arith.constant 162 : index
    %c0_357 = arith.constant 0 : index
    %633 = vector.load %arg3[%c162, %c0_357] : memref<192x16xf32, #tpu.memory_space<vmem>>, vector<1x16xf32>
    %c43_358 = arith.constant 43 : index
    %c0_359 = arith.constant 0 : index
    %634 = vector.load %arg11[%c43_358, %c0_359] : memref<192x16xf32, #tpu.memory_space<vmem>>, vector<128x16xf32>
    %635 = vector.broadcast %633 : vector<1x16xf32> to vector<128x16xf32>
    %636 = arith.mulf %634, %635 : vector<128x16xf32>
    %637 = arith.addf %632, %636 : vector<128x16xf32>
    %c163 = arith.constant 163 : index
    %c0_360 = arith.constant 0 : index
    %638 = vector.load %arg3[%c163, %c0_360] : memref<192x16xf32, #tpu.memory_space<vmem>>, vector<1x16xf32>
    %c45 = arith.constant 45 : index
    %c0_361 = arith.constant 0 : index
    %639 = vector.load %arg11[%c45, %c0_361] : memref<192x16xf32, #tpu.memory_space<vmem>>, vector<128x16xf32>
    %640 = vector.broadcast %638 : vector<1x16xf32> to vector<128x16xf32>
    %641 = arith.mulf %639, %640 : vector<128x16xf32>
    %642 = arith.addf %637, %641 : vector<128x16xf32>
    %c164 = arith.constant 164 : index
    %c0_362 = arith.constant 0 : index
    %643 = vector.load %arg3[%c164, %c0_362] : memref<192x16xf32, #tpu.memory_space<vmem>>, vector<1x16xf32>
    %c46 = arith.constant 46 : index
    %c0_363 = arith.constant 0 : index
    %644 = vector.load %arg11[%c46, %c0_363] : memref<192x16xf32, #tpu.memory_space<vmem>>, vector<128x16xf32>
    %645 = vector.broadcast %643 : vector<1x16xf32> to vector<128x16xf32>
    %646 = arith.mulf %644, %645 : vector<128x16xf32>
    %647 = arith.addf %642, %646 : vector<128x16xf32>
    %c165 = arith.constant 165 : index
    %c0_364 = arith.constant 0 : index
    %648 = vector.load %arg3[%c165, %c0_364] : memref<192x16xf32, #tpu.memory_space<vmem>>, vector<1x16xf32>
    %c47 = arith.constant 47 : index
    %c0_365 = arith.constant 0 : index
    %649 = vector.load %arg11[%c47, %c0_365] : memref<192x16xf32, #tpu.memory_space<vmem>>, vector<128x16xf32>
    %650 = vector.broadcast %648 : vector<1x16xf32> to vector<128x16xf32>
    %651 = arith.mulf %649, %650 : vector<128x16xf32>
    %652 = arith.addf %647, %651 : vector<128x16xf32>
    %c166 = arith.constant 166 : index
    %c0_366 = arith.constant 0 : index
    %653 = vector.load %arg3[%c166, %c0_366] : memref<192x16xf32, #tpu.memory_space<vmem>>, vector<1x16xf32>
    %c48_367 = arith.constant 48 : index
    %c0_368 = arith.constant 0 : index
    %654 = vector.load %arg11[%c48_367, %c0_368] : memref<192x16xf32, #tpu.memory_space<vmem>>, vector<128x16xf32>
    %655 = vector.broadcast %653 : vector<1x16xf32> to vector<128x16xf32>
    %656 = arith.mulf %654, %655 : vector<128x16xf32>
    %657 = arith.addf %652, %656 : vector<128x16xf32>
    %c167 = arith.constant 167 : index
    %c0_369 = arith.constant 0 : index
    %658 = vector.load %arg3[%c167, %c0_369] : memref<192x16xf32, #tpu.memory_space<vmem>>, vector<1x16xf32>
    %c49 = arith.constant 49 : index
    %c0_370 = arith.constant 0 : index
    %659 = vector.load %arg11[%c49, %c0_370] : memref<192x16xf32, #tpu.memory_space<vmem>>, vector<128x16xf32>
    %660 = vector.broadcast %658 : vector<1x16xf32> to vector<128x16xf32>
    %661 = arith.mulf %659, %660 : vector<128x16xf32>
    %662 = arith.addf %657, %661 : vector<128x16xf32>
    %c168_371 = arith.constant 168 : index
    %c0_372 = arith.constant 0 : index
    %663 = vector.load %arg3[%c168_371, %c0_372] : memref<192x16xf32, #tpu.memory_space<vmem>>, vector<1x16xf32>
    %c50 = arith.constant 50 : index
    %c0_373 = arith.constant 0 : index
    %664 = vector.load %arg11[%c50, %c0_373] : memref<192x16xf32, #tpu.memory_space<vmem>>, vector<128x16xf32>
    %665 = vector.broadcast %663 : vector<1x16xf32> to vector<128x16xf32>
    %666 = arith.mulf %664, %665 : vector<128x16xf32>
    %667 = arith.addf %662, %666 : vector<128x16xf32>
    %c169_374 = arith.constant 169 : index
    %c0_375 = arith.constant 0 : index
    %668 = vector.load %arg3[%c169_374, %c0_375] : memref<192x16xf32, #tpu.memory_space<vmem>>, vector<1x16xf32>
    %c51 = arith.constant 51 : index
    %c0_376 = arith.constant 0 : index
    %669 = vector.load %arg11[%c51, %c0_376] : memref<192x16xf32, #tpu.memory_space<vmem>>, vector<128x16xf32>
    %670 = vector.broadcast %668 : vector<1x16xf32> to vector<128x16xf32>
    %671 = arith.mulf %669, %670 : vector<128x16xf32>
    %672 = arith.addf %667, %671 : vector<128x16xf32>
    %c170_377 = arith.constant 170 : index
    %c0_378 = arith.constant 0 : index
    %673 = vector.load %arg3[%c170_377, %c0_378] : memref<192x16xf32, #tpu.memory_space<vmem>>, vector<1x16xf32>
    %c53_379 = arith.constant 53 : index
    %c0_380 = arith.constant 0 : index
    %674 = vector.load %arg11[%c53_379, %c0_380] : memref<192x16xf32, #tpu.memory_space<vmem>>, vector<128x16xf32>
    %675 = vector.broadcast %673 : vector<1x16xf32> to vector<128x16xf32>
    %676 = arith.mulf %674, %675 : vector<128x16xf32>
    %677 = arith.addf %672, %676 : vector<128x16xf32>
    %c171_381 = arith.constant 171 : index
    %c0_382 = arith.constant 0 : index
    %678 = vector.load %arg3[%c171_381, %c0_382] : memref<192x16xf32, #tpu.memory_space<vmem>>, vector<1x16xf32>
    %c54_383 = arith.constant 54 : index
    %c0_384 = arith.constant 0 : index
    %679 = vector.load %arg11[%c54_383, %c0_384] : memref<192x16xf32, #tpu.memory_space<vmem>>, vector<128x16xf32>
    %680 = vector.broadcast %678 : vector<1x16xf32> to vector<128x16xf32>
    %681 = arith.mulf %679, %680 : vector<128x16xf32>
    %682 = arith.addf %677, %681 : vector<128x16xf32>
    %c172_385 = arith.constant 172 : index
    %c0_386 = arith.constant 0 : index
    %683 = vector.load %arg3[%c172_385, %c0_386] : memref<192x16xf32, #tpu.memory_space<vmem>>, vector<1x16xf32>
    %c55_387 = arith.constant 55 : index
    %c0_388 = arith.constant 0 : index
    %684 = vector.load %arg11[%c55_387, %c0_388] : memref<192x16xf32, #tpu.memory_space<vmem>>, vector<128x16xf32>
    %685 = vector.broadcast %683 : vector<1x16xf32> to vector<128x16xf32>
    %686 = arith.mulf %684, %685 : vector<128x16xf32>
    %687 = arith.addf %682, %686 : vector<128x16xf32>
    %c173_389 = arith.constant 173 : index
    %c0_390 = arith.constant 0 : index
    %688 = vector.load %arg3[%c173_389, %c0_390] : memref<192x16xf32, #tpu.memory_space<vmem>>, vector<1x16xf32>
    %c56_391 = arith.constant 56 : index
    %c0_392 = arith.constant 0 : index
    %689 = vector.load %arg11[%c56_391, %c0_392] : memref<192x16xf32, #tpu.memory_space<vmem>>, vector<128x16xf32>
    %690 = vector.broadcast %688 : vector<1x16xf32> to vector<128x16xf32>
    %691 = arith.mulf %689, %690 : vector<128x16xf32>
    %692 = arith.addf %687, %691 : vector<128x16xf32>
    %c174_393 = arith.constant 174 : index
    %c0_394 = arith.constant 0 : index
    %693 = vector.load %arg3[%c174_393, %c0_394] : memref<192x16xf32, #tpu.memory_space<vmem>>, vector<1x16xf32>
    %c57_395 = arith.constant 57 : index
    %c0_396 = arith.constant 0 : index
    %694 = vector.load %arg11[%c57_395, %c0_396] : memref<192x16xf32, #tpu.memory_space<vmem>>, vector<128x16xf32>
    %695 = vector.broadcast %693 : vector<1x16xf32> to vector<128x16xf32>
    %696 = arith.mulf %694, %695 : vector<128x16xf32>
    %697 = arith.addf %692, %696 : vector<128x16xf32>
    %c175_397 = arith.constant 175 : index
    %c0_398 = arith.constant 0 : index
    %698 = vector.load %arg3[%c175_397, %c0_398] : memref<192x16xf32, #tpu.memory_space<vmem>>, vector<1x16xf32>
    %c58_399 = arith.constant 58 : index
    %c0_400 = arith.constant 0 : index
    %699 = vector.load %arg11[%c58_399, %c0_400] : memref<192x16xf32, #tpu.memory_space<vmem>>, vector<128x16xf32>
    %700 = vector.broadcast %698 : vector<1x16xf32> to vector<128x16xf32>
    %701 = arith.mulf %699, %700 : vector<128x16xf32>
    %702 = arith.addf %697, %701 : vector<128x16xf32>
    %c176_401 = arith.constant 176 : index
    %c0_402 = arith.constant 0 : index
    %703 = vector.load %arg3[%c176_401, %c0_402] : memref<192x16xf32, #tpu.memory_space<vmem>>, vector<1x16xf32>
    %c59_403 = arith.constant 59 : index
    %c0_404 = arith.constant 0 : index
    %704 = vector.load %arg11[%c59_403, %c0_404] : memref<192x16xf32, #tpu.memory_space<vmem>>, vector<128x16xf32>
    %705 = vector.broadcast %703 : vector<1x16xf32> to vector<128x16xf32>
    %706 = arith.mulf %704, %705 : vector<128x16xf32>
    %707 = arith.addf %702, %706 : vector<128x16xf32>
    %708 = vector.extract_strided_slice %707 {offsets = [24, 0], sizes = [2, 16], strides = [1, 1]} : vector<128x16xf32> to vector<2x16xf32>
    %709 = vector.extract_strided_slice %707 {offsets = [32, 0], sizes = [2, 16], strides = [1, 1]} : vector<128x16xf32> to vector<2x16xf32>
    %710 = vector.extract_strided_slice %707 {offsets = [88, 0], sizes = [2, 16], strides = [1, 1]} : vector<128x16xf32> to vector<2x16xf32>
    %711 = vector.extract_strided_slice %707 {offsets = [96, 0], sizes = [2, 16], strides = [1, 1]} : vector<128x16xf32> to vector<2x16xf32>
    %712 = tpu.concatenate %708, %709, %710, %711 in 0 : vector<2x16xf32>, vector<2x16xf32>, vector<2x16xf32>, vector<2x16xf32> -> vector<8x16xf32>
    %c185 = arith.constant 185 : index
    %c0_405 = arith.constant 0 : index
    %713 = vector.load %arg3[%c185, %c0_405] : memref<192x16xf32, #tpu.memory_space<vmem>>, vector<1x16xf32>
    %714 = vector.broadcast %713 : vector<1x16xf32> to vector<8x16xf32>
    %715 = arith.addf %712, %714 : vector<8x16xf32>
    %c186 = arith.constant 186 : index
    %c0_406 = arith.constant 0 : index
    %716 = vector.load %arg3[%c186, %c0_406] : memref<192x16xf32, #tpu.memory_space<vmem>>, vector<1x16xf32>
    %c187 = arith.constant 187 : index
    %c0_407 = arith.constant 0 : index
    %717 = vector.load %arg3[%c187, %c0_407] : memref<192x16xf32, #tpu.memory_space<vmem>>, vector<1x16xf32>
    %cst_408 = arith.constant dense<0.000000e+00> : vector<8xf32>
    %718 = vector.multi_reduction <add>, %715, %cst_408 [1] : vector<8x16xf32> to vector<8xf32>
    %719 = vector.shape_cast %718 : vector<8xf32> to vector<8x1xf32>
    %cst_409 = arith.constant 1.600000e+01 : f32
    %720 = vector.broadcast %cst_409 : f32 to vector<8x1xf32>
    %721 = arith.divf %719, %720 : vector<8x1xf32>
    %722 = vector.broadcast %721 : vector<8x1xf32> to vector<8x16xf32>
    %723 = arith.subf %715, %722 : vector<8x16xf32>
    %724 = arith.mulf %723, %723 : vector<8x16xf32>
    %cst_410 = arith.constant dense<0.000000e+00> : vector<8xf32>
    %725 = vector.multi_reduction <add>, %724, %cst_410 [1] : vector<8x16xf32> to vector<8xf32>
    %726 = vector.shape_cast %725 : vector<8xf32> to vector<8x1xf32>
    %cst_411 = arith.constant 1.600000e+01 : f32
    %727 = vector.broadcast %cst_411 : f32 to vector<8x1xf32>
    %728 = arith.divf %726, %727 : vector<8x1xf32>
    %cst_412 = arith.constant 9.99999997E-7 : f32
    %729 = vector.broadcast %cst_412 : f32 to vector<8x1xf32>
    %730 = arith.addf %728, %729 : vector<8x1xf32>
    %731 = math.rsqrt %730 : vector<8x1xf32>
    %732 = vector.broadcast %731 : vector<8x1xf32> to vector<8x16xf32>
    %733 = arith.mulf %723, %732 : vector<8x16xf32>
    %734 = vector.broadcast %716 : vector<1x16xf32> to vector<8x16xf32>
    %735 = arith.mulf %733, %734 : vector<8x16xf32>
    %736 = vector.broadcast %717 : vector<1x16xf32> to vector<8x16xf32>
    %737 = arith.addf %735, %736 : vector<8x16xf32>
    %c0_413 = arith.constant 0 : index
    %c0_414 = arith.constant 0 : index
    %738 = vector.load %arg4[%c0_413, %c0_414] : memref<17x64xf32, #tpu.memory_space<vmem>>, vector<16x64xf32>
    %c16_415 = arith.constant 16 : index
    %c0_416 = arith.constant 0 : index
    %739 = vector.load %arg4[%c16_415, %c0_416] : memref<17x64xf32, #tpu.memory_space<vmem>>, vector<1x64xf32>
    %cst_417 = arith.constant dense<0.000000e+00> : vector<8x64xf32>
    %740 = tpu.matmul %737, %738, %cst_417 {dimension_numbers = #tpu.dot_dimension_numbers<[1], [0], [0], [1], [0, 0, 1, 1], [], []>} : vector<8x16xf32>, vector<16x64xf32>, vector<8x64xf32> -> vector<8x64xf32>
    %741 = vector.broadcast %739 : vector<1x64xf32> to vector<8x64xf32>
    %742 = arith.addf %740, %741 : vector<8x64xf32>
    %cst_418 = arith.constant 0.707106769 : f32
    %743 = vector.broadcast %cst_418 : f32 to vector<8x64xf32>
    %744 = arith.mulf %742, %743 : vector<8x64xf32>
    %745 = math.absf %744 : vector<8x64xf32>
    %cst_419 = arith.constant 0.327591091 : f32
    %746 = vector.broadcast %cst_419 : f32 to vector<8x64xf32>
    %747 = arith.mulf %746, %745 : vector<8x64xf32>
    %cst_420 = arith.constant 1.000000e+00 : f32
    %748 = vector.broadcast %cst_420 : f32 to vector<8x64xf32>
    %749 = arith.addf %748, %747 : vector<8x64xf32>
    %750 = tpu.reciprocal %749 {approx = true} : vector<8x64xf32> -> vector<8x64xf32>
    %751 = arith.mulf %749, %750 : vector<8x64xf32>
    %cst_421 = arith.constant 2.000000e+00 : f32
    %752 = vector.broadcast %cst_421 : f32 to vector<8x64xf32>
    %753 = arith.subf %752, %751 : vector<8x64xf32>
    %754 = arith.mulf %750, %753 : vector<8x64xf32>
    %cst_422 = arith.constant 1.06140542 : f32
    %755 = vector.broadcast %cst_422 : f32 to vector<8x64xf32>
    %756 = arith.mulf %755, %754 : vector<8x64xf32>
    %cst_423 = arith.constant 1.45315206 : f32
    %757 = vector.broadcast %cst_423 : f32 to vector<8x64xf32>
    %758 = arith.subf %756, %757 : vector<8x64xf32>
    %759 = arith.mulf %758, %754 : vector<8x64xf32>
    %cst_424 = arith.constant 1.42141378 : f32
    %760 = vector.broadcast %cst_424 : f32 to vector<8x64xf32>
    %761 = arith.addf %759, %760 : vector<8x64xf32>
    %762 = arith.mulf %761, %754 : vector<8x64xf32>
    %cst_425 = arith.constant 0.284496725 : f32
    %763 = vector.broadcast %cst_425 : f32 to vector<8x64xf32>
    %764 = arith.subf %762, %763 : vector<8x64xf32>
    %765 = arith.mulf %764, %754 : vector<8x64xf32>
    %cst_426 = arith.constant 0.254829586 : f32
    %766 = vector.broadcast %cst_426 : f32 to vector<8x64xf32>
    %767 = arith.addf %765, %766 : vector<8x64xf32>
    %768 = arith.mulf %767, %754 : vector<8x64xf32>
    %cst_427 = arith.constant 0.000000e+00 : f32
    %769 = vector.broadcast %cst_427 : f32 to vector<8x64xf32>
    %770 = arith.subf %769, %745 : vector<8x64xf32>
    %771 = arith.mulf %770, %745 : vector<8x64xf32>
    %772 = math.exp %771 : vector<8x64xf32>
    %773 = arith.mulf %768, %772 : vector<8x64xf32>
    %cst_428 = arith.constant 1.000000e+00 : f32
    %774 = vector.broadcast %cst_428 : f32 to vector<8x64xf32>
    %775 = arith.subf %774, %773 : vector<8x64xf32>
    %cst_429 = arith.constant 0.000000e+00 : f32
    %776 = vector.broadcast %cst_429 : f32 to vector<8x64xf32>
    %777 = arith.cmpf oge, %744, %776 : vector<8x64xf32>
    %cst_430 = arith.constant 0.000000e+00 : f32
    %778 = vector.broadcast %cst_430 : f32 to vector<8x64xf32>
    %779 = arith.subf %778, %775 : vector<8x64xf32>
    %780 = arith.select %777, %775, %779 : vector<8x64xi1>, vector<8x64xf32>
    %cst_431 = arith.constant 5.000000e-01 : f32
    %781 = vector.broadcast %cst_431 : f32 to vector<8x64xf32>
    %782 = arith.mulf %781, %742 : vector<8x64xf32>
    %cst_432 = arith.constant 1.000000e+00 : f32
    %783 = vector.broadcast %cst_432 : f32 to vector<8x64xf32>
    %784 = arith.addf %783, %780 : vector<8x64xf32>
    %785 = arith.mulf %782, %784 : vector<8x64xf32>
    %c64_433 = arith.constant 64 : index
    %c0_434 = arith.constant 0 : index
    %786 = vector.load %arg3[%c64_433, %c0_434] : memref<192x16xf32, #tpu.memory_space<vmem>>, vector<64x16xf32>
    %cst_435 = arith.constant dense<0.000000e+00> : vector<8x16xf32>
    %787 = tpu.matmul %785, %786, %cst_435 {dimension_numbers = #tpu.dot_dimension_numbers<[1], [0], [0], [1], [0, 0, 1, 1], [], []>} : vector<8x64xf32>, vector<64x16xf32>, vector<8x16xf32> -> vector<8x16xf32>
    %c188 = arith.constant 188 : index
    %c0_436 = arith.constant 0 : index
    %788 = vector.load %arg3[%c188, %c0_436] : memref<192x16xf32, #tpu.memory_space<vmem>>, vector<1x16xf32>
    %789 = vector.broadcast %788 : vector<1x16xf32> to vector<8x16xf32>
    %790 = arith.addf %787, %789 : vector<8x16xf32>
    %c189 = arith.constant 189 : index
    %c0_437 = arith.constant 0 : index
    %791 = vector.load %arg3[%c189, %c0_437] : memref<192x16xf32, #tpu.memory_space<vmem>>, vector<1x16xf32>
    %792 = vector.broadcast %791 : vector<1x16xf32> to vector<8x16xf32>
    %793 = arith.mulf %792, %790 : vector<8x16xf32>
    %794 = arith.addf %445, %793 : vector<8x16xf32>
    %c190 = arith.constant 190 : index
    %c0_438 = arith.constant 0 : index
    %795 = vector.load %arg3[%c190, %c0_438] : memref<192x16xf32, #tpu.memory_space<vmem>>, vector<1x16xf32>
    %c191 = arith.constant 191 : index
    %c0_439 = arith.constant 0 : index
    %796 = vector.load %arg3[%c191, %c0_439] : memref<192x16xf32, #tpu.memory_space<vmem>>, vector<1x16xf32>
    %cst_440 = arith.constant dense<0.000000e+00> : vector<8xf32>
    %797 = vector.multi_reduction <add>, %794, %cst_440 [1] : vector<8x16xf32> to vector<8xf32>
    %798 = vector.shape_cast %797 : vector<8xf32> to vector<8x1xf32>
    %cst_441 = arith.constant 1.600000e+01 : f32
    %799 = vector.broadcast %cst_441 : f32 to vector<8x1xf32>
    %800 = arith.divf %798, %799 : vector<8x1xf32>
    %801 = vector.broadcast %800 : vector<8x1xf32> to vector<8x16xf32>
    %802 = arith.subf %794, %801 : vector<8x16xf32>
    %803 = arith.mulf %802, %802 : vector<8x16xf32>
    %cst_442 = arith.constant dense<0.000000e+00> : vector<8xf32>
    %804 = vector.multi_reduction <add>, %803, %cst_442 [1] : vector<8x16xf32> to vector<8xf32>
    %805 = vector.shape_cast %804 : vector<8xf32> to vector<8x1xf32>
    %cst_443 = arith.constant 1.600000e+01 : f32
    %806 = vector.broadcast %cst_443 : f32 to vector<8x1xf32>
    %807 = arith.divf %805, %806 : vector<8x1xf32>
    %cst_444 = arith.constant 9.99999997E-7 : f32
    %808 = vector.broadcast %cst_444 : f32 to vector<8x1xf32>
    %809 = arith.addf %807, %808 : vector<8x1xf32>
    %810 = math.rsqrt %809 : vector<8x1xf32>
    %811 = vector.broadcast %810 : vector<8x1xf32> to vector<8x16xf32>
    %812 = arith.mulf %802, %811 : vector<8x16xf32>
    %813 = vector.broadcast %795 : vector<1x16xf32> to vector<8x16xf32>
    %814 = arith.mulf %812, %813 : vector<8x16xf32>
    %815 = vector.broadcast %796 : vector<1x16xf32> to vector<8x16xf32>
    %816 = arith.addf %814, %815 : vector<8x16xf32>
    %c0_445 = arith.constant 0 : index
    %c0_446 = arith.constant 0 : index
    %817 = vector.load %arg11[%c0_445, %c0_446] : memref<192x16xf32, #tpu.memory_space<vmem>>, vector<8x16xf32>
    tpu.vector_store %arg11[%c0_445, %c0_446], %816 {strides = array<i32>} : memref<192x16xf32, #tpu.memory_space<vmem>>, vector<8x16xf32>,
    %c0_447 = arith.constant 0 : index
    %c0_448 = arith.constant 0 : index
    %818 = tpu.strided_load %arg11[%c0_447, %c0_448] {strides = array<i32: 2, 1>} : memref<192x16xf32, #tpu.memory_space<vmem>>, vector<1x16xf32>
    %c1_449 = arith.constant 1 : index
    %c0_450 = arith.constant 0 : index
    %819 = tpu.strided_load %arg11[%c1_449, %c0_450] {strides = array<i32: 2, 1>} : memref<192x16xf32, #tpu.memory_space<vmem>>, vector<1x16xf32>
    %c2 = arith.constant 2 : index
    %c0_451 = arith.constant 0 : index
    %820 = tpu.strided_load %arg11[%c2, %c0_451] {strides = array<i32: 2, 1>} : memref<192x16xf32, #tpu.memory_space<vmem>>, vector<1x16xf32>
    %c3 = arith.constant 3 : index
    %c0_452 = arith.constant 0 : index
    %821 = tpu.strided_load %arg11[%c3, %c0_452] {strides = array<i32: 2, 1>} : memref<192x16xf32, #tpu.memory_space<vmem>>, vector<1x16xf32>
    %822 = tpu.concatenate %818, %819, %820, %821 in 1 : vector<1x16xf32>, vector<1x16xf32>, vector<1x16xf32>, vector<1x16xf32> -> vector<1x64xf32>
    %c4_453 = arith.constant 4 : index
    %c0_454 = arith.constant 0 : index
    %823 = tpu.strided_load %arg11[%c4_453, %c0_454] {strides = array<i32: 2, 1>} : memref<192x16xf32, #tpu.memory_space<vmem>>, vector<1x16xf32>
    %c5_455 = arith.constant 5 : index
    %c0_456 = arith.constant 0 : index
    %824 = tpu.strided_load %arg11[%c5_455, %c0_456] {strides = array<i32: 2, 1>} : memref<192x16xf32, #tpu.memory_space<vmem>>, vector<1x16xf32>
    %c6_457 = arith.constant 6 : index
    %c0_458 = arith.constant 0 : index
    %825 = tpu.strided_load %arg11[%c6_457, %c0_458] {strides = array<i32: 2, 1>} : memref<192x16xf32, #tpu.memory_space<vmem>>, vector<1x16xf32>
    %c7_459 = arith.constant 7 : index
    %c0_460 = arith.constant 0 : index
    %826 = tpu.strided_load %arg11[%c7_459, %c0_460] {strides = array<i32: 2, 1>} : memref<192x16xf32, #tpu.memory_space<vmem>>, vector<1x16xf32>
    %827 = tpu.concatenate %823, %824, %825, %826 in 1 : vector<1x16xf32>, vector<1x16xf32>, vector<1x16xf32>, vector<1x16xf32> -> vector<1x64xf32>
    %828 = tpu.concatenate %822, %827 in 0 : vector<1x64xf32>, vector<1x64xf32> -> vector<2x64xf32>
    %c0_461 = arith.constant 0 : index
    %c0_462 = arith.constant 0 : index
    %829 = vector.load %arg5[%c0_461, %c0_462] : memref<160x8xf32, #tpu.memory_space<vmem>>, vector<64x8xf32>
    %cst_463 = arith.constant dense<0.000000e+00> : vector<2x8xf32>
    %830 = tpu.matmul %828, %829, %cst_463 {dimension_numbers = #tpu.dot_dimension_numbers<[1], [0], [0], [1], [0, 0, 1, 1], [], []>} : vector<2x64xf32>, vector<64x8xf32>, vector<2x8xf32> -> vector<2x8xf32>
    %c152_464 = arith.constant 152 : index
    %c0_465 = arith.constant 0 : index
    %831 = vector.load %arg5[%c152_464, %c0_465] : memref<160x8xf32, #tpu.memory_space<vmem>>, vector<1x8xf32>
    %832 = vector.broadcast %831 : vector<1x8xf32> to vector<2x8xf32>
    %833 = arith.addf %830, %832 : vector<2x8xf32>
    %cst_466 = arith.constant 0.000000e+00 : f32
    %834 = vector.broadcast %cst_466 : f32 to vector<56x8xf32>
    %c0_467 = arith.constant 0 : index
    %c0_468 = arith.constant 0 : index
    %835 = vector.load %arg12[%c0_467, %c0_468] : memref<176x8xf32, #tpu.memory_space<vmem>>, vector<56x8xf32>
    tpu.vector_store %arg12[%c0_467, %c0_468], %834 {strides = array<i32>} : memref<176x8xf32, #tpu.memory_space<vmem>>, vector<56x8xf32>,
    %836 = vector.extract_strided_slice %833 {offsets = [0, 0], sizes = [1, 8], strides = [1, 1]} : vector<2x8xf32> to vector<1x8xf32>
    %c56_469 = arith.constant 56 : index
    %c0_470 = arith.constant 0 : index
    %837 = vector.load %arg12[%c56_469, %c0_470] : memref<176x8xf32, #tpu.memory_space<vmem>>, vector<1x8xf32>
    tpu.vector_store %arg12[%c56_469, %c0_470], %836 {strides = array<i32>} : memref<176x8xf32, #tpu.memory_space<vmem>>, vector<1x8xf32>,
    %cst_471 = arith.constant 0.000000e+00 : f32
    %838 = vector.broadcast %cst_471 : f32 to vector<55x8xf32>
    %c57_472 = arith.constant 57 : index
    %c0_473 = arith.constant 0 : index
    %839 = vector.load %arg12[%c57_472, %c0_473] : memref<176x8xf32, #tpu.memory_space<vmem>>, vector<55x8xf32>
    tpu.vector_store %arg12[%c57_472, %c0_473], %838 {strides = array<i32>} : memref<176x8xf32, #tpu.memory_space<vmem>>, vector<55x8xf32>,
    %840 = vector.extract_strided_slice %833 {offsets = [1, 0], sizes = [1, 8], strides = [1, 1]} : vector<2x8xf32> to vector<1x8xf32>
    %c112_474 = arith.constant 112 : index
    %c0_475 = arith.constant 0 : index
    %841 = vector.load %arg12[%c112_474, %c0_475] : memref<176x8xf32, #tpu.memory_space<vmem>>, vector<1x8xf32>
    tpu.vector_store %arg12[%c112_474, %c0_475], %840 {strides = array<i32>} : memref<176x8xf32, #tpu.memory_space<vmem>>, vector<1x8xf32>,
    %cst_476 = arith.constant 0.000000e+00 : f32
    %842 = vector.broadcast %cst_476 : f32 to vector<63x8xf32>
    %c113_477 = arith.constant 113 : index
    %c0_478 = arith.constant 0 : index
    %843 = vector.load %arg12[%c113_477, %c0_478] : memref<176x8xf32, #tpu.memory_space<vmem>>, vector<63x8xf32>
    tpu.vector_store %arg12[%c113_477, %c0_478], %842 {strides = array<i32>} : memref<176x8xf32, #tpu.memory_space<vmem>>, vector<63x8xf32>,
    %c96 = arith.constant 96 : index
    %c0_479 = arith.constant 0 : index
    %844 = vector.load %arg5[%c96, %c0_479] : memref<160x8xf32, #tpu.memory_space<vmem>>, vector<1x8xf32>
    %c5_480 = arith.constant 5 : index
    %c0_481 = arith.constant 0 : index
    %845 = vector.load %arg12[%c5_480, %c0_481] : memref<176x8xf32, #tpu.memory_space<vmem>>, vector<112x8xf32>
    %846 = vector.broadcast %844 : vector<1x8xf32> to vector<112x8xf32>
    %847 = arith.mulf %845, %846 : vector<112x8xf32>
    %c97 = arith.constant 97 : index
    %c0_482 = arith.constant 0 : index
    %848 = vector.load %arg5[%c97, %c0_482] : memref<160x8xf32, #tpu.memory_space<vmem>>, vector<1x8xf32>
    %c6_483 = arith.constant 6 : index
    %c0_484 = arith.constant 0 : index
    %849 = vector.load %arg12[%c6_483, %c0_484] : memref<176x8xf32, #tpu.memory_space<vmem>>, vector<112x8xf32>
    %850 = vector.broadcast %848 : vector<1x8xf32> to vector<112x8xf32>
    %851 = arith.mulf %849, %850 : vector<112x8xf32>
    %852 = arith.addf %847, %851 : vector<112x8xf32>
    %c98 = arith.constant 98 : index
    %c0_485 = arith.constant 0 : index
    %853 = vector.load %arg5[%c98, %c0_485] : memref<160x8xf32, #tpu.memory_space<vmem>>, vector<1x8xf32>
    %c7_486 = arith.constant 7 : index
    %c0_487 = arith.constant 0 : index
    %854 = vector.load %arg12[%c7_486, %c0_487] : memref<176x8xf32, #tpu.memory_space<vmem>>, vector<112x8xf32>
    %855 = vector.broadcast %853 : vector<1x8xf32> to vector<112x8xf32>
    %856 = arith.mulf %854, %855 : vector<112x8xf32>
    %857 = arith.addf %852, %856 : vector<112x8xf32>
    %c99 = arith.constant 99 : index
    %c0_488 = arith.constant 0 : index
    %858 = vector.load %arg5[%c99, %c0_488] : memref<160x8xf32, #tpu.memory_space<vmem>>, vector<1x8xf32>
    %c8_489 = arith.constant 8 : index
    %c0_490 = arith.constant 0 : index
    %859 = vector.load %arg12[%c8_489, %c0_490] : memref<176x8xf32, #tpu.memory_space<vmem>>, vector<112x8xf32>
    %860 = vector.broadcast %858 : vector<1x8xf32> to vector<112x8xf32>
    %861 = arith.mulf %859, %860 : vector<112x8xf32>
    %862 = arith.addf %857, %861 : vector<112x8xf32>
    %c100 = arith.constant 100 : index
    %c0_491 = arith.constant 0 : index
    %863 = vector.load %arg5[%c100, %c0_491] : memref<160x8xf32, #tpu.memory_space<vmem>>, vector<1x8xf32>
    %c9_492 = arith.constant 9 : index
    %c0_493 = arith.constant 0 : index
    %864 = vector.load %arg12[%c9_492, %c0_493] : memref<176x8xf32, #tpu.memory_space<vmem>>, vector<112x8xf32>
    %865 = vector.broadcast %863 : vector<1x8xf32> to vector<112x8xf32>
    %866 = arith.mulf %864, %865 : vector<112x8xf32>
    %867 = arith.addf %862, %866 : vector<112x8xf32>
    %c101_494 = arith.constant 101 : index
    %c0_495 = arith.constant 0 : index
    %868 = vector.load %arg5[%c101_494, %c0_495] : memref<160x8xf32, #tpu.memory_space<vmem>>, vector<1x8xf32>
    %c10_496 = arith.constant 10 : index
    %c0_497 = arith.constant 0 : index
    %869 = vector.load %arg12[%c10_496, %c0_497] : memref<176x8xf32, #tpu.memory_space<vmem>>, vector<112x8xf32>
    %870 = vector.broadcast %868 : vector<1x8xf32> to vector<112x8xf32>
    %871 = arith.mulf %869, %870 : vector<112x8xf32>
    %872 = arith.addf %867, %871 : vector<112x8xf32>
    %c102_498 = arith.constant 102 : index
    %c0_499 = arith.constant 0 : index
    %873 = vector.load %arg5[%c102_498, %c0_499] : memref<160x8xf32, #tpu.memory_space<vmem>>, vector<1x8xf32>
    %c11_500 = arith.constant 11 : index
    %c0_501 = arith.constant 0 : index
    %874 = vector.load %arg12[%c11_500, %c0_501] : memref<176x8xf32, #tpu.memory_space<vmem>>, vector<112x8xf32>
    %875 = vector.broadcast %873 : vector<1x8xf32> to vector<112x8xf32>
    %876 = arith.mulf %874, %875 : vector<112x8xf32>
    %877 = arith.addf %872, %876 : vector<112x8xf32>
    %c103_502 = arith.constant 103 : index
    %c0_503 = arith.constant 0 : index
    %878 = vector.load %arg5[%c103_502, %c0_503] : memref<160x8xf32, #tpu.memory_space<vmem>>, vector<1x8xf32>
    %c13_504 = arith.constant 13 : index
    %c0_505 = arith.constant 0 : index
    %879 = vector.load %arg12[%c13_504, %c0_505] : memref<176x8xf32, #tpu.memory_space<vmem>>, vector<112x8xf32>
    %880 = vector.broadcast %878 : vector<1x8xf32> to vector<112x8xf32>
    %881 = arith.mulf %879, %880 : vector<112x8xf32>
    %882 = arith.addf %877, %881 : vector<112x8xf32>
    %c104_506 = arith.constant 104 : index
    %c0_507 = arith.constant 0 : index
    %883 = vector.load %arg5[%c104_506, %c0_507] : memref<160x8xf32, #tpu.memory_space<vmem>>, vector<1x8xf32>
    %c14_508 = arith.constant 14 : index
    %c0_509 = arith.constant 0 : index
    %884 = vector.load %arg12[%c14_508, %c0_509] : memref<176x8xf32, #tpu.memory_space<vmem>>, vector<112x8xf32>
    %885 = vector.broadcast %883 : vector<1x8xf32> to vector<112x8xf32>
    %886 = arith.mulf %884, %885 : vector<112x8xf32>
    %887 = arith.addf %882, %886 : vector<112x8xf32>
    %c105_510 = arith.constant 105 : index
    %c0_511 = arith.constant 0 : index
    %888 = vector.load %arg5[%c105_510, %c0_511] : memref<160x8xf32, #tpu.memory_space<vmem>>, vector<1x8xf32>
    %c15_512 = arith.constant 15 : index
    %c0_513 = arith.constant 0 : index
    %889 = vector.load %arg12[%c15_512, %c0_513] : memref<176x8xf32, #tpu.memory_space<vmem>>, vector<112x8xf32>
    %890 = vector.broadcast %888 : vector<1x8xf32> to vector<112x8xf32>
    %891 = arith.mulf %889, %890 : vector<112x8xf32>
    %892 = arith.addf %887, %891 : vector<112x8xf32>
    %c106_514 = arith.constant 106 : index
    %c0_515 = arith.constant 0 : index
    %893 = vector.load %arg5[%c106_514, %c0_515] : memref<160x8xf32, #tpu.memory_space<vmem>>, vector<1x8xf32>
    %c16_516 = arith.constant 16 : index
    %c0_517 = arith.constant 0 : index
    %894 = vector.load %arg12[%c16_516, %c0_517] : memref<176x8xf32, #tpu.memory_space<vmem>>, vector<112x8xf32>
    %895 = vector.broadcast %893 : vector<1x8xf32> to vector<112x8xf32>
    %896 = arith.mulf %894, %895 : vector<112x8xf32>
    %897 = arith.addf %892, %896 : vector<112x8xf32>
    %c107_518 = arith.constant 107 : index
    %c0_519 = arith.constant 0 : index
    %898 = vector.load %arg5[%c107_518, %c0_519] : memref<160x8xf32, #tpu.memory_space<vmem>>, vector<1x8xf32>
    %c17_520 = arith.constant 17 : index
    %c0_521 = arith.constant 0 : index
    %899 = vector.load %arg12[%c17_520, %c0_521] : memref<176x8xf32, #tpu.memory_space<vmem>>, vector<112x8xf32>
    %900 = vector.broadcast %898 : vector<1x8xf32> to vector<112x8xf32>
    %901 = arith.mulf %899, %900 : vector<112x8xf32>
    %902 = arith.addf %897, %901 : vector<112x8xf32>
    %c108_522 = arith.constant 108 : index
    %c0_523 = arith.constant 0 : index
    %903 = vector.load %arg5[%c108_522, %c0_523] : memref<160x8xf32, #tpu.memory_space<vmem>>, vector<1x8xf32>
    %c18_524 = arith.constant 18 : index
    %c0_525 = arith.constant 0 : index
    %904 = vector.load %arg12[%c18_524, %c0_525] : memref<176x8xf32, #tpu.memory_space<vmem>>, vector<112x8xf32>
    %905 = vector.broadcast %903 : vector<1x8xf32> to vector<112x8xf32>
    %906 = arith.mulf %904, %905 : vector<112x8xf32>
    %907 = arith.addf %902, %906 : vector<112x8xf32>
    %c109 = arith.constant 109 : index
    %c0_526 = arith.constant 0 : index
    %908 = vector.load %arg5[%c109, %c0_526] : memref<160x8xf32, #tpu.memory_space<vmem>>, vector<1x8xf32>
    %c19_527 = arith.constant 19 : index
    %c0_528 = arith.constant 0 : index
    %909 = vector.load %arg12[%c19_527, %c0_528] : memref<176x8xf32, #tpu.memory_space<vmem>>, vector<112x8xf32>
    %910 = vector.broadcast %908 : vector<1x8xf32> to vector<112x8xf32>
    %911 = arith.mulf %909, %910 : vector<112x8xf32>
    %912 = arith.addf %907, %911 : vector<112x8xf32>
    %c110 = arith.constant 110 : index
    %c0_529 = arith.constant 0 : index
    %913 = vector.load %arg5[%c110, %c0_529] : memref<160x8xf32, #tpu.memory_space<vmem>>, vector<1x8xf32>
    %c21_530 = arith.constant 21 : index
    %c0_531 = arith.constant 0 : index
    %914 = vector.load %arg12[%c21_530, %c0_531] : memref<176x8xf32, #tpu.memory_space<vmem>>, vector<112x8xf32>
    %915 = vector.broadcast %913 : vector<1x8xf32> to vector<112x8xf32>
    %916 = arith.mulf %914, %915 : vector<112x8xf32>
    %917 = arith.addf %912, %916 : vector<112x8xf32>
    %c111 = arith.constant 111 : index
    %c0_532 = arith.constant 0 : index
    %918 = vector.load %arg5[%c111, %c0_532] : memref<160x8xf32, #tpu.memory_space<vmem>>, vector<1x8xf32>
    %c22_533 = arith.constant 22 : index
    %c0_534 = arith.constant 0 : index
    %919 = vector.load %arg12[%c22_533, %c0_534] : memref<176x8xf32, #tpu.memory_space<vmem>>, vector<112x8xf32>
    %920 = vector.broadcast %918 : vector<1x8xf32> to vector<112x8xf32>
    %921 = arith.mulf %919, %920 : vector<112x8xf32>
    %922 = arith.addf %917, %921 : vector<112x8xf32>
    %c112_535 = arith.constant 112 : index
    %c0_536 = arith.constant 0 : index
    %923 = vector.load %arg5[%c112_535, %c0_536] : memref<160x8xf32, #tpu.memory_space<vmem>>, vector<1x8xf32>
    %c23_537 = arith.constant 23 : index
    %c0_538 = arith.constant 0 : index
    %924 = vector.load %arg12[%c23_537, %c0_538] : memref<176x8xf32, #tpu.memory_space<vmem>>, vector<112x8xf32>
    %925 = vector.broadcast %923 : vector<1x8xf32> to vector<112x8xf32>
    %926 = arith.mulf %924, %925 : vector<112x8xf32>
    %927 = arith.addf %922, %926 : vector<112x8xf32>
    %c113_539 = arith.constant 113 : index
    %c0_540 = arith.constant 0 : index
    %928 = vector.load %arg5[%c113_539, %c0_540] : memref<160x8xf32, #tpu.memory_space<vmem>>, vector<1x8xf32>
    %c24_541 = arith.constant 24 : index
    %c0_542 = arith.constant 0 : index
    %929 = vector.load %arg12[%c24_541, %c0_542] : memref<176x8xf32, #tpu.memory_space<vmem>>, vector<112x8xf32>
    %930 = vector.broadcast %928 : vector<1x8xf32> to vector<112x8xf32>
    %931 = arith.mulf %929, %930 : vector<112x8xf32>
    %932 = arith.addf %927, %931 : vector<112x8xf32>
    %c114_543 = arith.constant 114 : index
    %c0_544 = arith.constant 0 : index
    %933 = vector.load %arg5[%c114_543, %c0_544] : memref<160x8xf32, #tpu.memory_space<vmem>>, vector<1x8xf32>
    %c25_545 = arith.constant 25 : index
    %c0_546 = arith.constant 0 : index
    %934 = vector.load %arg12[%c25_545, %c0_546] : memref<176x8xf32, #tpu.memory_space<vmem>>, vector<112x8xf32>
    %935 = vector.broadcast %933 : vector<1x8xf32> to vector<112x8xf32>
    %936 = arith.mulf %934, %935 : vector<112x8xf32>
    %937 = arith.addf %932, %936 : vector<112x8xf32>
    %c115_547 = arith.constant 115 : index
    %c0_548 = arith.constant 0 : index
    %938 = vector.load %arg5[%c115_547, %c0_548] : memref<160x8xf32, #tpu.memory_space<vmem>>, vector<1x8xf32>
    %c26_549 = arith.constant 26 : index
    %c0_550 = arith.constant 0 : index
    %939 = vector.load %arg12[%c26_549, %c0_550] : memref<176x8xf32, #tpu.memory_space<vmem>>, vector<112x8xf32>
    %940 = vector.broadcast %938 : vector<1x8xf32> to vector<112x8xf32>
    %941 = arith.mulf %939, %940 : vector<112x8xf32>
    %942 = arith.addf %937, %941 : vector<112x8xf32>
    %c116_551 = arith.constant 116 : index
    %c0_552 = arith.constant 0 : index
    %943 = vector.load %arg5[%c116_551, %c0_552] : memref<160x8xf32, #tpu.memory_space<vmem>>, vector<1x8xf32>
    %c27_553 = arith.constant 27 : index
    %c0_554 = arith.constant 0 : index
    %944 = vector.load %arg12[%c27_553, %c0_554] : memref<176x8xf32, #tpu.memory_space<vmem>>, vector<112x8xf32>
    %945 = vector.broadcast %943 : vector<1x8xf32> to vector<112x8xf32>
    %946 = arith.mulf %944, %945 : vector<112x8xf32>
    %947 = arith.addf %942, %946 : vector<112x8xf32>
    %c117_555 = arith.constant 117 : index
    %c0_556 = arith.constant 0 : index
    %948 = vector.load %arg5[%c117_555, %c0_556] : memref<160x8xf32, #tpu.memory_space<vmem>>, vector<1x8xf32>
    %c29_557 = arith.constant 29 : index
    %c0_558 = arith.constant 0 : index
    %949 = vector.load %arg12[%c29_557, %c0_558] : memref<176x8xf32, #tpu.memory_space<vmem>>, vector<112x8xf32>
    %950 = vector.broadcast %948 : vector<1x8xf32> to vector<112x8xf32>
    %951 = arith.mulf %949, %950 : vector<112x8xf32>
    %952 = arith.addf %947, %951 : vector<112x8xf32>
    %c118_559 = arith.constant 118 : index
    %c0_560 = arith.constant 0 : index
    %953 = vector.load %arg5[%c118_559, %c0_560] : memref<160x8xf32, #tpu.memory_space<vmem>>, vector<1x8xf32>
    %c30_561 = arith.constant 30 : index
    %c0_562 = arith.constant 0 : index
    %954 = vector.load %arg12[%c30_561, %c0_562] : memref<176x8xf32, #tpu.memory_space<vmem>>, vector<112x8xf32>
    %955 = vector.broadcast %953 : vector<1x8xf32> to vector<112x8xf32>
    %956 = arith.mulf %954, %955 : vector<112x8xf32>
    %957 = arith.addf %952, %956 : vector<112x8xf32>
    %c119_563 = arith.constant 119 : index
    %c0_564 = arith.constant 0 : index
    %958 = vector.load %arg5[%c119_563, %c0_564] : memref<160x8xf32, #tpu.memory_space<vmem>>, vector<1x8xf32>
    %c31_565 = arith.constant 31 : index
    %c0_566 = arith.constant 0 : index
    %959 = vector.load %arg12[%c31_565, %c0_566] : memref<176x8xf32, #tpu.memory_space<vmem>>, vector<112x8xf32>
    %960 = vector.broadcast %958 : vector<1x8xf32> to vector<112x8xf32>
    %961 = arith.mulf %959, %960 : vector<112x8xf32>
    %962 = arith.addf %957, %961 : vector<112x8xf32>
    %c120_567 = arith.constant 120 : index
    %c0_568 = arith.constant 0 : index
    %963 = vector.load %arg5[%c120_567, %c0_568] : memref<160x8xf32, #tpu.memory_space<vmem>>, vector<1x8xf32>
    %c32_569 = arith.constant 32 : index
    %c0_570 = arith.constant 0 : index
    %964 = vector.load %arg12[%c32_569, %c0_570] : memref<176x8xf32, #tpu.memory_space<vmem>>, vector<112x8xf32>
    %965 = vector.broadcast %963 : vector<1x8xf32> to vector<112x8xf32>
    %966 = arith.mulf %964, %965 : vector<112x8xf32>
    %967 = arith.addf %962, %966 : vector<112x8xf32>
    %c121_571 = arith.constant 121 : index
    %c0_572 = arith.constant 0 : index
    %968 = vector.load %arg5[%c121_571, %c0_572] : memref<160x8xf32, #tpu.memory_space<vmem>>, vector<1x8xf32>
    %c33_573 = arith.constant 33 : index
    %c0_574 = arith.constant 0 : index
    %969 = vector.load %arg12[%c33_573, %c0_574] : memref<176x8xf32, #tpu.memory_space<vmem>>, vector<112x8xf32>
    %970 = vector.broadcast %968 : vector<1x8xf32> to vector<112x8xf32>
    %971 = arith.mulf %969, %970 : vector<112x8xf32>
    %972 = arith.addf %967, %971 : vector<112x8xf32>
    %c122_575 = arith.constant 122 : index
    %c0_576 = arith.constant 0 : index
    %973 = vector.load %arg5[%c122_575, %c0_576] : memref<160x8xf32, #tpu.memory_space<vmem>>, vector<1x8xf32>
    %c34_577 = arith.constant 34 : index
    %c0_578 = arith.constant 0 : index
    %974 = vector.load %arg12[%c34_577, %c0_578] : memref<176x8xf32, #tpu.memory_space<vmem>>, vector<112x8xf32>
    %975 = vector.broadcast %973 : vector<1x8xf32> to vector<112x8xf32>
    %976 = arith.mulf %974, %975 : vector<112x8xf32>
    %977 = arith.addf %972, %976 : vector<112x8xf32>
    %c123_579 = arith.constant 123 : index
    %c0_580 = arith.constant 0 : index
    %978 = vector.load %arg5[%c123_579, %c0_580] : memref<160x8xf32, #tpu.memory_space<vmem>>, vector<1x8xf32>
    %c35_581 = arith.constant 35 : index
    %c0_582 = arith.constant 0 : index
    %979 = vector.load %arg12[%c35_581, %c0_582] : memref<176x8xf32, #tpu.memory_space<vmem>>, vector<112x8xf32>
    %980 = vector.broadcast %978 : vector<1x8xf32> to vector<112x8xf32>
    %981 = arith.mulf %979, %980 : vector<112x8xf32>
    %982 = arith.addf %977, %981 : vector<112x8xf32>
    %c124_583 = arith.constant 124 : index
    %c0_584 = arith.constant 0 : index
    %983 = vector.load %arg5[%c124_583, %c0_584] : memref<160x8xf32, #tpu.memory_space<vmem>>, vector<1x8xf32>
    %c37_585 = arith.constant 37 : index
    %c0_586 = arith.constant 0 : index
    %984 = vector.load %arg12[%c37_585, %c0_586] : memref<176x8xf32, #tpu.memory_space<vmem>>, vector<112x8xf32>
    %985 = vector.broadcast %983 : vector<1x8xf32> to vector<112x8xf32>
    %986 = arith.mulf %984, %985 : vector<112x8xf32>
    %987 = arith.addf %982, %986 : vector<112x8xf32>
    %c125_587 = arith.constant 125 : index
    %c0_588 = arith.constant 0 : index
    %988 = vector.load %arg5[%c125_587, %c0_588] : memref<160x8xf32, #tpu.memory_space<vmem>>, vector<1x8xf32>
    %c38_589 = arith.constant 38 : index
    %c0_590 = arith.constant 0 : index
    %989 = vector.load %arg12[%c38_589, %c0_590] : memref<176x8xf32, #tpu.memory_space<vmem>>, vector<112x8xf32>
    %990 = vector.broadcast %988 : vector<1x8xf32> to vector<112x8xf32>
    %991 = arith.mulf %989, %990 : vector<112x8xf32>
    %992 = arith.addf %987, %991 : vector<112x8xf32>
    %c126_591 = arith.constant 126 : index
    %c0_592 = arith.constant 0 : index
    %993 = vector.load %arg5[%c126_591, %c0_592] : memref<160x8xf32, #tpu.memory_space<vmem>>, vector<1x8xf32>
    %c39_593 = arith.constant 39 : index
    %c0_594 = arith.constant 0 : index
    %994 = vector.load %arg12[%c39_593, %c0_594] : memref<176x8xf32, #tpu.memory_space<vmem>>, vector<112x8xf32>
    %995 = vector.broadcast %993 : vector<1x8xf32> to vector<112x8xf32>
    %996 = arith.mulf %994, %995 : vector<112x8xf32>
    %997 = arith.addf %992, %996 : vector<112x8xf32>
    %c127_595 = arith.constant 127 : index
    %c0_596 = arith.constant 0 : index
    %998 = vector.load %arg5[%c127_595, %c0_596] : memref<160x8xf32, #tpu.memory_space<vmem>>, vector<1x8xf32>
    %c40_597 = arith.constant 40 : index
    %c0_598 = arith.constant 0 : index
    %999 = vector.load %arg12[%c40_597, %c0_598] : memref<176x8xf32, #tpu.memory_space<vmem>>, vector<112x8xf32>
    %1000 = vector.broadcast %998 : vector<1x8xf32> to vector<112x8xf32>
    %1001 = arith.mulf %999, %1000 : vector<112x8xf32>
    %1002 = arith.addf %997, %1001 : vector<112x8xf32>
    %c128_599 = arith.constant 128 : index
    %c0_600 = arith.constant 0 : index
    %1003 = vector.load %arg5[%c128_599, %c0_600] : memref<160x8xf32, #tpu.memory_space<vmem>>, vector<1x8xf32>
    %c41_601 = arith.constant 41 : index
    %c0_602 = arith.constant 0 : index
    %1004 = vector.load %arg12[%c41_601, %c0_602] : memref<176x8xf32, #tpu.memory_space<vmem>>, vector<112x8xf32>
    %1005 = vector.broadcast %1003 : vector<1x8xf32> to vector<112x8xf32>
    %1006 = arith.mulf %1004, %1005 : vector<112x8xf32>
    %1007 = arith.addf %1002, %1006 : vector<112x8xf32>
    %c129_603 = arith.constant 129 : index
    %c0_604 = arith.constant 0 : index
    %1008 = vector.load %arg5[%c129_603, %c0_604] : memref<160x8xf32, #tpu.memory_space<vmem>>, vector<1x8xf32>
    %c42_605 = arith.constant 42 : index
    %c0_606 = arith.constant 0 : index
    %1009 = vector.load %arg12[%c42_605, %c0_606] : memref<176x8xf32, #tpu.memory_space<vmem>>, vector<112x8xf32>
    %1010 = vector.broadcast %1008 : vector<1x8xf32> to vector<112x8xf32>
    %1011 = arith.mulf %1009, %1010 : vector<112x8xf32>
    %1012 = arith.addf %1007, %1011 : vector<112x8xf32>
    %c130_607 = arith.constant 130 : index
    %c0_608 = arith.constant 0 : index
    %1013 = vector.load %arg5[%c130_607, %c0_608] : memref<160x8xf32, #tpu.memory_space<vmem>>, vector<1x8xf32>
    %c43_609 = arith.constant 43 : index
    %c0_610 = arith.constant 0 : index
    %1014 = vector.load %arg12[%c43_609, %c0_610] : memref<176x8xf32, #tpu.memory_space<vmem>>, vector<112x8xf32>
    %1015 = vector.broadcast %1013 : vector<1x8xf32> to vector<112x8xf32>
    %1016 = arith.mulf %1014, %1015 : vector<112x8xf32>
    %1017 = arith.addf %1012, %1016 : vector<112x8xf32>
    %c131_611 = arith.constant 131 : index
    %c0_612 = arith.constant 0 : index
    %1018 = vector.load %arg5[%c131_611, %c0_612] : memref<160x8xf32, #tpu.memory_space<vmem>>, vector<1x8xf32>
    %c45_613 = arith.constant 45 : index
    %c0_614 = arith.constant 0 : index
    %1019 = vector.load %arg12[%c45_613, %c0_614] : memref<176x8xf32, #tpu.memory_space<vmem>>, vector<112x8xf32>
    %1020 = vector.broadcast %1018 : vector<1x8xf32> to vector<112x8xf32>
    %1021 = arith.mulf %1019, %1020 : vector<112x8xf32>
    %1022 = arith.addf %1017, %1021 : vector<112x8xf32>
    %c132_615 = arith.constant 132 : index
    %c0_616 = arith.constant 0 : index
    %1023 = vector.load %arg5[%c132_615, %c0_616] : memref<160x8xf32, #tpu.memory_space<vmem>>, vector<1x8xf32>
    %c46_617 = arith.constant 46 : index
    %c0_618 = arith.constant 0 : index
    %1024 = vector.load %arg12[%c46_617, %c0_618] : memref<176x8xf32, #tpu.memory_space<vmem>>, vector<112x8xf32>
    %1025 = vector.broadcast %1023 : vector<1x8xf32> to vector<112x8xf32>
    %1026 = arith.mulf %1024, %1025 : vector<112x8xf32>
    %1027 = arith.addf %1022, %1026 : vector<112x8xf32>
    %c133_619 = arith.constant 133 : index
    %c0_620 = arith.constant 0 : index
    %1028 = vector.load %arg5[%c133_619, %c0_620] : memref<160x8xf32, #tpu.memory_space<vmem>>, vector<1x8xf32>
    %c47_621 = arith.constant 47 : index
    %c0_622 = arith.constant 0 : index
    %1029 = vector.load %arg12[%c47_621, %c0_622] : memref<176x8xf32, #tpu.memory_space<vmem>>, vector<112x8xf32>
    %1030 = vector.broadcast %1028 : vector<1x8xf32> to vector<112x8xf32>
    %1031 = arith.mulf %1029, %1030 : vector<112x8xf32>
    %1032 = arith.addf %1027, %1031 : vector<112x8xf32>
    %c134_623 = arith.constant 134 : index
    %c0_624 = arith.constant 0 : index
    %1033 = vector.load %arg5[%c134_623, %c0_624] : memref<160x8xf32, #tpu.memory_space<vmem>>, vector<1x8xf32>
    %c48_625 = arith.constant 48 : index
    %c0_626 = arith.constant 0 : index
    %1034 = vector.load %arg12[%c48_625, %c0_626] : memref<176x8xf32, #tpu.memory_space<vmem>>, vector<112x8xf32>
    %1035 = vector.broadcast %1033 : vector<1x8xf32> to vector<112x8xf32>
    %1036 = arith.mulf %1034, %1035 : vector<112x8xf32>
    %1037 = arith.addf %1032, %1036 : vector<112x8xf32>
    %c135_627 = arith.constant 135 : index
    %c0_628 = arith.constant 0 : index
    %1038 = vector.load %arg5[%c135_627, %c0_628] : memref<160x8xf32, #tpu.memory_space<vmem>>, vector<1x8xf32>
    %c49_629 = arith.constant 49 : index
    %c0_630 = arith.constant 0 : index
    %1039 = vector.load %arg12[%c49_629, %c0_630] : memref<176x8xf32, #tpu.memory_space<vmem>>, vector<112x8xf32>
    %1040 = vector.broadcast %1038 : vector<1x8xf32> to vector<112x8xf32>
    %1041 = arith.mulf %1039, %1040 : vector<112x8xf32>
    %1042 = arith.addf %1037, %1041 : vector<112x8xf32>
    %c136_631 = arith.constant 136 : index
    %c0_632 = arith.constant 0 : index
    %1043 = vector.load %arg5[%c136_631, %c0_632] : memref<160x8xf32, #tpu.memory_space<vmem>>, vector<1x8xf32>
    %c50_633 = arith.constant 50 : index
    %c0_634 = arith.constant 0 : index
    %1044 = vector.load %arg12[%c50_633, %c0_634] : memref<176x8xf32, #tpu.memory_space<vmem>>, vector<112x8xf32>
    %1045 = vector.broadcast %1043 : vector<1x8xf32> to vector<112x8xf32>
    %1046 = arith.mulf %1044, %1045 : vector<112x8xf32>
    %1047 = arith.addf %1042, %1046 : vector<112x8xf32>
    %c137_635 = arith.constant 137 : index
    %c0_636 = arith.constant 0 : index
    %1048 = vector.load %arg5[%c137_635, %c0_636] : memref<160x8xf32, #tpu.memory_space<vmem>>, vector<1x8xf32>
    %c51_637 = arith.constant 51 : index
    %c0_638 = arith.constant 0 : index
    %1049 = vector.load %arg12[%c51_637, %c0_638] : memref<176x8xf32, #tpu.memory_space<vmem>>, vector<112x8xf32>
    %1050 = vector.broadcast %1048 : vector<1x8xf32> to vector<112x8xf32>
    %1051 = arith.mulf %1049, %1050 : vector<112x8xf32>
    %1052 = arith.addf %1047, %1051 : vector<112x8xf32>
    %c138_639 = arith.constant 138 : index
    %c0_640 = arith.constant 0 : index
    %1053 = vector.load %arg5[%c138_639, %c0_640] : memref<160x8xf32, #tpu.memory_space<vmem>>, vector<1x8xf32>
    %c53_641 = arith.constant 53 : index
    %c0_642 = arith.constant 0 : index
    %1054 = vector.load %arg12[%c53_641, %c0_642] : memref<176x8xf32, #tpu.memory_space<vmem>>, vector<112x8xf32>
    %1055 = vector.broadcast %1053 : vector<1x8xf32> to vector<112x8xf32>
    %1056 = arith.mulf %1054, %1055 : vector<112x8xf32>
    %1057 = arith.addf %1052, %1056 : vector<112x8xf32>
    %c139_643 = arith.constant 139 : index
    %c0_644 = arith.constant 0 : index
    %1058 = vector.load %arg5[%c139_643, %c0_644] : memref<160x8xf32, #tpu.memory_space<vmem>>, vector<1x8xf32>
    %c54_645 = arith.constant 54 : index
    %c0_646 = arith.constant 0 : index
    %1059 = vector.load %arg12[%c54_645, %c0_646] : memref<176x8xf32, #tpu.memory_space<vmem>>, vector<112x8xf32>
    %1060 = vector.broadcast %1058 : vector<1x8xf32> to vector<112x8xf32>
    %1061 = arith.mulf %1059, %1060 : vector<112x8xf32>
    %1062 = arith.addf %1057, %1061 : vector<112x8xf32>
    %c140_647 = arith.constant 140 : index
    %c0_648 = arith.constant 0 : index
    %1063 = vector.load %arg5[%c140_647, %c0_648] : memref<160x8xf32, #tpu.memory_space<vmem>>, vector<1x8xf32>
    %c55_649 = arith.constant 55 : index
    %c0_650 = arith.constant 0 : index
    %1064 = vector.load %arg12[%c55_649, %c0_650] : memref<176x8xf32, #tpu.memory_space<vmem>>, vector<112x8xf32>
    %1065 = vector.broadcast %1063 : vector<1x8xf32> to vector<112x8xf32>
    %1066 = arith.mulf %1064, %1065 : vector<112x8xf32>
    %1067 = arith.addf %1062, %1066 : vector<112x8xf32>
    %c141_651 = arith.constant 141 : index
    %c0_652 = arith.constant 0 : index
    %1068 = vector.load %arg5[%c141_651, %c0_652] : memref<160x8xf32, #tpu.memory_space<vmem>>, vector<1x8xf32>
    %c56_653 = arith.constant 56 : index
    %c0_654 = arith.constant 0 : index
    %1069 = vector.load %arg12[%c56_653, %c0_654] : memref<176x8xf32, #tpu.memory_space<vmem>>, vector<112x8xf32>
    %1070 = vector.broadcast %1068 : vector<1x8xf32> to vector<112x8xf32>
    %1071 = arith.mulf %1069, %1070 : vector<112x8xf32>
    %1072 = arith.addf %1067, %1071 : vector<112x8xf32>
    %c142_655 = arith.constant 142 : index
    %c0_656 = arith.constant 0 : index
    %1073 = vector.load %arg5[%c142_655, %c0_656] : memref<160x8xf32, #tpu.memory_space<vmem>>, vector<1x8xf32>
    %c57_657 = arith.constant 57 : index
    %c0_658 = arith.constant 0 : index
    %1074 = vector.load %arg12[%c57_657, %c0_658] : memref<176x8xf32, #tpu.memory_space<vmem>>, vector<112x8xf32>
    %1075 = vector.broadcast %1073 : vector<1x8xf32> to vector<112x8xf32>
    %1076 = arith.mulf %1074, %1075 : vector<112x8xf32>
    %1077 = arith.addf %1072, %1076 : vector<112x8xf32>
    %c143_659 = arith.constant 143 : index
    %c0_660 = arith.constant 0 : index
    %1078 = vector.load %arg5[%c143_659, %c0_660] : memref<160x8xf32, #tpu.memory_space<vmem>>, vector<1x8xf32>
    %c58_661 = arith.constant 58 : index
    %c0_662 = arith.constant 0 : index
    %1079 = vector.load %arg12[%c58_661, %c0_662] : memref<176x8xf32, #tpu.memory_space<vmem>>, vector<112x8xf32>
    %1080 = vector.broadcast %1078 : vector<1x8xf32> to vector<112x8xf32>
    %1081 = arith.mulf %1079, %1080 : vector<112x8xf32>
    %1082 = arith.addf %1077, %1081 : vector<112x8xf32>
    %c144_663 = arith.constant 144 : index
    %c0_664 = arith.constant 0 : index
    %1083 = vector.load %arg5[%c144_663, %c0_664] : memref<160x8xf32, #tpu.memory_space<vmem>>, vector<1x8xf32>
    %c59_665 = arith.constant 59 : index
    %c0_666 = arith.constant 0 : index
    %1084 = vector.load %arg12[%c59_665, %c0_666] : memref<176x8xf32, #tpu.memory_space<vmem>>, vector<112x8xf32>
    %1085 = vector.broadcast %1083 : vector<1x8xf32> to vector<112x8xf32>
    %1086 = arith.mulf %1084, %1085 : vector<112x8xf32>
    %1087 = arith.addf %1082, %1086 : vector<112x8xf32>
    %1088 = vector.extract_strided_slice %1087 {offsets = [24, 0], sizes = [1, 8], strides = [1, 1]} : vector<112x8xf32> to vector<1x8xf32>
    %1089 = vector.extract_strided_slice %1087 {offsets = [80, 0], sizes = [1, 8], strides = [1, 1]} : vector<112x8xf32> to vector<1x8xf32>
    %1090 = tpu.concatenate %1088, %1089 in 0 : vector<1x8xf32>, vector<1x8xf32> -> vector<2x8xf32>
    %c153_667 = arith.constant 153 : index
    %c0_668 = arith.constant 0 : index
    %1091 = vector.load %arg5[%c153_667, %c0_668] : memref<160x8xf32, #tpu.memory_space<vmem>>, vector<1x8xf32>
    %1092 = vector.broadcast %1091 : vector<1x8xf32> to vector<2x8xf32>
    %1093 = arith.addf %1090, %1092 : vector<2x8xf32>
    %c154_669 = arith.constant 154 : index
    %c0_670 = arith.constant 0 : index
    %1094 = vector.load %arg5[%c154_669, %c0_670] : memref<160x8xf32, #tpu.memory_space<vmem>>, vector<1x8xf32>
    %c155_671 = arith.constant 155 : index
    %c0_672 = arith.constant 0 : index
    %1095 = vector.load %arg5[%c155_671, %c0_672] : memref<160x8xf32, #tpu.memory_space<vmem>>, vector<1x8xf32>
    %cst_673 = arith.constant dense<0.000000e+00> : vector<2xf32>
    %1096 = vector.multi_reduction <add>, %1093, %cst_673 [1] : vector<2x8xf32> to vector<2xf32>
    %1097 = vector.shape_cast %1096 : vector<2xf32> to vector<2x1xf32>
    %cst_674 = arith.constant 8.000000e+00 : f32
    %1098 = vector.broadcast %cst_674 : f32 to vector<2x1xf32>
    %1099 = arith.divf %1097, %1098 : vector<2x1xf32>
    %1100 = vector.broadcast %1099 : vector<2x1xf32> to vector<2x8xf32>
    %1101 = arith.subf %1093, %1100 : vector<2x8xf32>
    %1102 = arith.mulf %1101, %1101 : vector<2x8xf32>
    %cst_675 = arith.constant dense<0.000000e+00> : vector<2xf32>
    %1103 = vector.multi_reduction <add>, %1102, %cst_675 [1] : vector<2x8xf32> to vector<2xf32>
    %1104 = vector.shape_cast %1103 : vector<2xf32> to vector<2x1xf32>
    %cst_676 = arith.constant 8.000000e+00 : f32
    %1105 = vector.broadcast %cst_676 : f32 to vector<2x1xf32>
    %1106 = arith.divf %1104, %1105 : vector<2x1xf32>
    %cst_677 = arith.constant 9.99999997E-7 : f32
    %1107 = vector.broadcast %cst_677 : f32 to vector<2x1xf32>
    %1108 = arith.addf %1106, %1107 : vector<2x1xf32>
    %1109 = math.rsqrt %1108 : vector<2x1xf32>
    %1110 = vector.broadcast %1109 : vector<2x1xf32> to vector<2x8xf32>
    %1111 = arith.mulf %1101, %1110 : vector<2x8xf32>
    %1112 = vector.broadcast %1094 : vector<1x8xf32> to vector<2x8xf32>
    %1113 = arith.mulf %1111, %1112 : vector<2x8xf32>
    %1114 = vector.broadcast %1095 : vector<1x8xf32> to vector<2x8xf32>
    %1115 = arith.addf %1113, %1114 : vector<2x8xf32>
    %c0_678 = arith.constant 0 : index
    %c0_679 = arith.constant 0 : index
    %1116 = vector.load %arg6[%c0_678, %c0_679] : memref<9x32xf32, #tpu.memory_space<vmem>>, vector<8x32xf32>
    %c8_680 = arith.constant 8 : index
    %c0_681 = arith.constant 0 : index
    %1117 = vector.load %arg6[%c8_680, %c0_681] : memref<9x32xf32, #tpu.memory_space<vmem>>, vector<1x32xf32>
    %cst_682 = arith.constant dense<0.000000e+00> : vector<2x32xf32>
    %1118 = tpu.matmul %1115, %1116, %cst_682 {dimension_numbers = #tpu.dot_dimension_numbers<[1], [0], [0], [1], [0, 0, 1, 1], [], []>} : vector<2x8xf32>, vector<8x32xf32>, vector<2x32xf32> -> vector<2x32xf32>
    %1119 = vector.broadcast %1117 : vector<1x32xf32> to vector<2x32xf32>
    %1120 = arith.addf %1118, %1119 : vector<2x32xf32>
    %cst_683 = arith.constant 0.707106769 : f32
    %1121 = vector.broadcast %cst_683 : f32 to vector<2x32xf32>
    %1122 = arith.mulf %1120, %1121 : vector<2x32xf32>
    %1123 = math.absf %1122 : vector<2x32xf32>
    %cst_684 = arith.constant 0.327591091 : f32
    %1124 = vector.broadcast %cst_684 : f32 to vector<2x32xf32>
    %1125 = arith.mulf %1124, %1123 : vector<2x32xf32>
    %cst_685 = arith.constant 1.000000e+00 : f32
    %1126 = vector.broadcast %cst_685 : f32 to vector<2x32xf32>
    %1127 = arith.addf %1126, %1125 : vector<2x32xf32>
    %1128 = tpu.reciprocal %1127 {approx = true} : vector<2x32xf32> -> vector<2x32xf32>
    %1129 = arith.mulf %1127, %1128 : vector<2x32xf32>
    %cst_686 = arith.constant 2.000000e+00 : f32
    %1130 = vector.broadcast %cst_686 : f32 to vector<2x32xf32>
    %1131 = arith.subf %1130, %1129 : vector<2x32xf32>
    %1132 = arith.mulf %1128, %1131 : vector<2x32xf32>
    %cst_687 = arith.constant 1.06140542 : f32
    %1133 = vector.broadcast %cst_687 : f32 to vector<2x32xf32>
    %1134 = arith.mulf %1133, %1132 : vector<2x32xf32>
    %cst_688 = arith.constant 1.45315206 : f32
    %1135 = vector.broadcast %cst_688 : f32 to vector<2x32xf32>
    %1136 = arith.subf %1134, %1135 : vector<2x32xf32>
    %1137 = arith.mulf %1136, %1132 : vector<2x32xf32>
    %cst_689 = arith.constant 1.42141378 : f32
    %1138 = vector.broadcast %cst_689 : f32 to vector<2x32xf32>
    %1139 = arith.addf %1137, %1138 : vector<2x32xf32>
    %1140 = arith.mulf %1139, %1132 : vector<2x32xf32>
    %cst_690 = arith.constant 0.284496725 : f32
    %1141 = vector.broadcast %cst_690 : f32 to vector<2x32xf32>
    %1142 = arith.subf %1140, %1141 : vector<2x32xf32>
    %1143 = arith.mulf %1142, %1132 : vector<2x32xf32>
    %cst_691 = arith.constant 0.254829586 : f32
    %1144 = vector.broadcast %cst_691 : f32 to vector<2x32xf32>
    %1145 = arith.addf %1143, %1144 : vector<2x32xf32>
    %1146 = arith.mulf %1145, %1132 : vector<2x32xf32>
    %cst_692 = arith.constant 0.000000e+00 : f32
    %1147 = vector.broadcast %cst_692 : f32 to vector<2x32xf32>
    %1148 = arith.subf %1147, %1123 : vector<2x32xf32>
    %1149 = arith.mulf %1148, %1123 : vector<2x32xf32>
    %1150 = math.exp %1149 : vector<2x32xf32>
    %1151 = arith.mulf %1146, %1150 : vector<2x32xf32>
    %cst_693 = arith.constant 1.000000e+00 : f32
    %1152 = vector.broadcast %cst_693 : f32 to vector<2x32xf32>
    %1153 = arith.subf %1152, %1151 : vector<2x32xf32>
    %cst_694 = arith.constant 0.000000e+00 : f32
    %1154 = vector.broadcast %cst_694 : f32 to vector<2x32xf32>
    %1155 = arith.cmpf oge, %1122, %1154 : vector<2x32xf32>
    %cst_695 = arith.constant 0.000000e+00 : f32
    %1156 = vector.broadcast %cst_695 : f32 to vector<2x32xf32>
    %1157 = arith.subf %1156, %1153 : vector<2x32xf32>
    %1158 = arith.select %1155, %1153, %1157 : vector<2x32xi1>, vector<2x32xf32>
    %cst_696 = arith.constant 5.000000e-01 : f32
    %1159 = vector.broadcast %cst_696 : f32 to vector<2x32xf32>
    %1160 = arith.mulf %1159, %1120 : vector<2x32xf32>
    %cst_697 = arith.constant 1.000000e+00 : f32
    %1161 = vector.broadcast %cst_697 : f32 to vector<2x32xf32>
    %1162 = arith.addf %1161, %1158 : vector<2x32xf32>
    %1163 = arith.mulf %1160, %1162 : vector<2x32xf32>
    %c64_698 = arith.constant 64 : index
    %c0_699 = arith.constant 0 : index
    %1164 = vector.load %arg5[%c64_698, %c0_699] : memref<160x8xf32, #tpu.memory_space<vmem>>, vector<32x8xf32>
    %cst_700 = arith.constant dense<0.000000e+00> : vector<2x8xf32>
    %1165 = tpu.matmul %1163, %1164, %cst_700 {dimension_numbers = #tpu.dot_dimension_numbers<[1], [0], [0], [1], [0, 0, 1, 1], [], []>} : vector<2x32xf32>, vector<32x8xf32>, vector<2x8xf32> -> vector<2x8xf32>
    %c156_701 = arith.constant 156 : index
    %c0_702 = arith.constant 0 : index
    %1166 = vector.load %arg5[%c156_701, %c0_702] : memref<160x8xf32, #tpu.memory_space<vmem>>, vector<1x8xf32>
    %1167 = vector.broadcast %1166 : vector<1x8xf32> to vector<2x8xf32>
    %1168 = arith.addf %1165, %1167 : vector<2x8xf32>
    %c157_703 = arith.constant 157 : index
    %c0_704 = arith.constant 0 : index
    %1169 = vector.load %arg5[%c157_703, %c0_704] : memref<160x8xf32, #tpu.memory_space<vmem>>, vector<1x8xf32>
    %1170 = vector.broadcast %1169 : vector<1x8xf32> to vector<2x8xf32>
    %1171 = arith.mulf %1170, %1168 : vector<2x8xf32>
    %1172 = arith.addf %833, %1171 : vector<2x8xf32>
    %c0_705 = arith.constant 0 : index
    %c0_706 = arith.constant 0 : index
    %1173 = vector.load %arg7[%c0_705, %c0_706] : memref<65x8xf32, #tpu.memory_space<vmem>>, vector<65x8xf32>
    %1174 = vector.extract_strided_slice %1173 {offsets = [0, 0], sizes = [64, 4], strides = [1, 1]} : vector<65x8xf32> to vector<64x4xf32>
    %1175 = vector.extract_strided_slice %1173 {offsets = [0, 4], sizes = [64, 4], strides = [1, 1]} : vector<65x8xf32> to vector<64x4xf32>
    %1176 = math.sin %1174 : vector<64x4xf32>
    %1177 = math.cos %1174 : vector<64x4xf32>
    %1178 = math.sin %1175 : vector<64x4xf32>
    %1179 = math.cos %1175 : vector<64x4xf32>
    %1180 = tpu.concatenate %1176, %1177, %1178, %1179 in 1 : vector<64x4xf32>, vector<64x4xf32>, vector<64x4xf32>, vector<64x4xf32> -> vector<64x16xf32>
    %c0_707 = arith.constant 0 : index
    %c0_708 = arith.constant 0 : index
    %1181 = vector.load %arg8[%c0_707, %c0_708] : memref<2x1xf32, #tpu.memory_space<vmem>>, vector<2x1xf32>
    %1182 = vector.extract_strided_slice %1173 {offsets = [64, 0], sizes = [1, 4], strides = [1, 1]} : vector<65x8xf32> to vector<1x4xf32>
    %1183 = vector.broadcast %1181 : vector<2x1xf32> to vector<2x4xf32>
    %1184 = vector.broadcast %1182 : vector<1x4xf32> to vector<2x4xf32>
    %1185 = arith.mulf %1183, %1184 : vector<2x4xf32>
    %1186 = math.sin %1185 : vector<2x4xf32>
    %1187 = math.cos %1185 : vector<2x4xf32>
    %1188 = tpu.concatenate %1186, %1187 in 1 : vector<2x4xf32>, vector<2x4xf32> -> vector<2x8xf32>
    %cst_709 = arith.constant 0.000000e+00 : f32
    %1189 = vector.broadcast %cst_709 : f32 to vector<2x8xf32>
    %1190 = tpu.concatenate %1172, %1189 in 1 : vector<2x8xf32>, vector<2x8xf32> -> vector<2x16xf32>
    %cst_710 = arith.constant 0.000000e+00 : f32
    %1191 = vector.broadcast %cst_710 : f32 to vector<2x8xf32>
    %1192 = tpu.concatenate %1188, %1191 in 1 : vector<2x8xf32>, vector<2x8xf32> -> vector<2x16xf32>
    %1193 = tpu.concatenate %1190, %1180, %1192 in 0 : vector<2x16xf32>, vector<64x16xf32>, vector<2x16xf32> -> vector<68x16xf32>
    %c0_711 = arith.constant 0 : index
    %c0_712 = arith.constant 0 : index
    %1194 = vector.load %arg9[%c0_711, %c0_712] : memref<68x16xf32, #tpu.memory_space<vmem>>, vector<68x16xf32>
    tpu.vector_store %arg9[%c0_711, %c0_712], %1193 {strides = array<i32>} : memref<68x16xf32, #tpu.memory_space<vmem>>, vector<68x16xf32>,
    return
  }
}

</mosaic_0001>

<llo_original>
// kernel: pos_encoding_henerv_forward.1
$region0: #{pos_encoding_henerv_forward.1}
  #allocation0 [shape = 'u32[]', space=smem, size = 0x4, offset = 0x4, fixed_abs, tag = 'smem constant byte address 0x4 - core index']
  #allocation1 [shape = 'u32[144,128]{1,0:T(1,128)}', space=vmem, size = 0x12000, scoped, tag = 'internal scratch']
  #allocation2 [shape = 'f32[432,16]{1,0:T(8,128)}', space=vmem, size = 0x36000, scoped, tag = 'scratch operand']
  #allocation3 [shape = 'f32[192,16]{1,0:T(8,128)}', space=vmem, size = 0x18000, scoped, tag = 'scratch operand']
  #allocation4 [shape = 'f32[176,8]{1,0:T(8,128)}', space=vmem, size = 0x16000, scoped, tag = 'scratch operand']
  %s0 = inlined_call_operand.vmem [shape: f32[32,48], index: 0, kind: input, shape index: {}]
  %s1 = inlined_call_operand.vmem [shape: f32[184,16], index: 1, kind: input, shape index: {}]
  %s2 = inlined_call_operand.vmem [shape: f32[17,64], index: 2, kind: input, shape index: {}]
  %s3 = inlined_call_operand.vmem [shape: f32[192,16], index: 3, kind: input, shape index: {}]
  %s4 = inlined_call_operand.vmem [shape: f32[17,64], index: 4, kind: input, shape index: {}]
  %s5 = inlined_call_operand.vmem [shape: f32[160,8], index: 5, kind: input, shape index: {}]
  %s6 = inlined_call_operand.vmem [shape: f32[9,32], index: 6, kind: input, shape index: {}]
  %s7 = inlined_call_operand.vmem [shape: f32[65,8], index: 7, kind: input, shape index: {}]
  %s8 = inlined_call_operand.vmem [shape: f32[2,1], index: 8, kind: input, shape index: {}]
  %s9 = inlined_call_operand.vmem [shape: f32[68,16], index: 9, kind: output, shape index: {}]
  %s10 = sld [smem:[#allocation0]]
  $region46: #{pos_encoding_henerv_forward.1} parent=0
    _
  %s12 = ssub.s32 1, %s10
  %s13 = scalar_select 0, %s12, %s10
  // Predicated region
  $region2: #{pos_encoding_henerv_forward.1} parent=0 // pred_check
    _
  $region3: #{pos_encoding_henerv_forward.1} parent=0 // pred_check_branch
    %15 = sbr.rel (0) target = $region5
  $region4: #{pos_encoding_henerv_forward.1} parent=0 // pred_region
    _
  $region5: #{pos_encoding_henerv_forward.1} parent=0 // pred_fallthru
    _
  // Predicated region
  $region6: #{pos_encoding_henerv_forward.1} parent=0 // pred_check
    _
  $region7: #{pos_encoding_henerv_forward.1} parent=0 // pred_check_branch
    %17 = sbr.rel (0) target = $region9
  $region8: #{pos_encoding_henerv_forward.1} parent=0 // pred_region
    _
  $region9: #{pos_encoding_henerv_forward.1} parent=0 // pred_fallthru
    _
  // Predicated region
  $region10: #{pos_encoding_henerv_forward.1} parent=0 // pred_check
    _
  $region11: #{pos_encoding_henerv_forward.1} parent=0 // pred_check_branch
    %19 = sbr.rel (0) target = $region13
  $region12: #{pos_encoding_henerv_forward.1} parent=0 // pred_region
    _
  $region13: #{pos_encoding_henerv_forward.1} parent=0 // pred_fallthru
    _
  // Predicated region
  $region14: #{pos_encoding_henerv_forward.1} parent=0 // pred_check
    _
  $region15: #{pos_encoding_henerv_forward.1} parent=0 // pred_check_branch
    %21 = sbr.rel (0) target = $region17
  $region16: #{pos_encoding_henerv_forward.1} parent=0 // pred_region
    _
  $region17: #{pos_encoding_henerv_forward.1} parent=0 // pred_fallthru
    _
  // Predicated region
  $region18: #{pos_encoding_henerv_forward.1} parent=0 // pred_check
    _
  $region19: #{pos_encoding_henerv_forward.1} parent=0 // pred_check_branch
    %23 = sbr.rel (0) target = $region21
  $region20: #{pos_encoding_henerv_forward.1} parent=0 // pred_region
    _
  $region21: #{pos_encoding_henerv_forward.1} parent=0 // pred_fallthru
    _
  // Predicated region
  $region22: #{pos_encoding_henerv_forward.1} parent=0 // pred_check
    _
  $region23: #{pos_encoding_henerv_forward.1} parent=0 // pred_check_branch
    %25 = sbr.rel (0) target = $region25
  $region24: #{pos_encoding_henerv_forward.1} parent=0 // pred_region
    _
  $region25: #{pos_encoding_henerv_forward.1} parent=0 // pred_fallthru
    _
  // Predicated region
  $region26: #{pos_encoding_henerv_forward.1} parent=0 // pred_check
    _
  $region27: #{pos_encoding_henerv_forward.1} parent=0 // pred_check_branch
    %27 = sbr.rel (0) target = $region29
  $region28: #{pos_encoding_henerv_forward.1} parent=0 // pred_region
    _
  $region29: #{pos_encoding_henerv_forward.1} parent=0 // pred_fallthru
    _
  // Predicated region
  $region30: #{pos_encoding_henerv_forward.1} parent=0 // pred_check
    _
  $region31: #{pos_encoding_henerv_forward.1} parent=0 // pred_check_branch
    %29 = sbr.rel (0) target = $region33
  $region32: #{pos_encoding_henerv_forward.1} parent=0 // pred_region
    _
  $region33: #{pos_encoding_henerv_forward.1} parent=0 // pred_fallthru
    _
  // Predicated region
  $region34: #{pos_encoding_henerv_forward.1} parent=0 // pred_check
    _
  $region35: #{pos_encoding_henerv_forward.1} parent=0 // pred_check_branch
    %31 = sbr.rel (0) target = $region37
  $region36: #{pos_encoding_henerv_forward.1} parent=0 // pred_region
    _
  $region37: #{pos_encoding_henerv_forward.1} parent=0 // pred_fallthru
    _
  %v32 = vld [vmem:[%s0] sm:$0xff]
  %v33 = vld [vmem:[%s0 + $0x8] sm:$0xff]
  %v34 = vld [vmem:[%s0 + $0x10] sm:$0xff]
  %v35 = vld [vmem:[%s0 + $0x18] sm:$0xff]
  %v36 = vld [vmem:[%s1] sm:$0xff]
  %v37 = vld [vmem:[%s1 + $0x8] sm:$0xff]
  %v38 = vld [vmem:[%s1 + $0x10] sm:$0xff]
  %v39 = vld [vmem:[%s1 + $0x18] sm:$0xff]
  %v40 = vld [vmem:[%s1 + $0x20] sm:$0xff]
  %v41 = vld [vmem:[%s1 + $0x28] sm:$0xff]
  %v42 = vld [vmem:[%s1 + $0xa8] sm:$0x1]
  %v43 = vlaneseq
  %v44 = vshrl.u32 %v43, 7
  %v45 = vsub.s32 0, %v44
  %v46 = vrot.slane %v42, %v45
  %vm47 = vcmask 392192
  %v49 = vsel %vm47, %v32, 0
  %v52 = vsel %vm47, %v33, 0
  %v55 = vsel %vm47, %v34, 0
  %v58 = vsel %vm47, %v35, 0
  %60 = vmatprep.subr.mxu0 0.0
  %61 = vmatpush1.msra.mxu0 %v36
  %62 = vmatprep.subr.mxu0 0.0
  %63 = vmatpush1.msra.mxu0 %v37
  %64 = vmatprep.subr.mxu0 0.0
  %65 = vmatpush1.msra.mxu0 %v38
  %66 = vmatprep.subr.mxu0 0.0
  %67 = vmatpush1.msra.mxu0 %v39
  %68 = vmatprep.subr.mxu0 0.0
  %69 = vmatpush1.msra.mxu0 %v40
  %70 = vmatprep.subr.mxu0 0.0
  %71 = vmatpush1.msra.mxu0 %v41
  %72 = vmatprep.subr.mxu0 0.0
  %73 = vmatpush1.msra.mxu0 0.0
  %74 = vmatprep.subr.mxu0 0.0
  %75 = vmatpush1.msra.mxu0 0.0
  %76 = vmatprep.subr.mxu0 0.0
  %77 = vmatpush1.msra.mxu0 0.0
  %78 = vmatprep.subr.mxu0 0.0
  %79 = vmatpush1.msra.mxu0 0.0
  %80 = vmatprep.subr.mxu0 0.0
  %81 = vmatpush1.msra.mxu0 0.0
  %82 = vmatprep.subr.mxu0 0.0
  %83 = vmatpush1.msra.mxu0 0.0
  %84 = vmatprep.subr.mxu0 0.0
  %85 = vmatpush1.msra.mxu0 0.0
  %86 = vmatprep.subr.mxu0 0.0
  %87 = vmatpush1.msra.mxu0 0.0
  %88 = vmatprep.subr.mxu0 0.0
  %89 = vmatpush1.msra.mxu0 0.0
  %90 = vmatprep.subr.mxu0 0.0
  %91 = vmatpush1.msra.mxu0 0.0
  %92 = vmatprep.subr.mxu0 0.0
  %93 = vmatpush1.msra.mxu0 0.0
  %94 = vmatprep.subr.mxu0 0.0
  %95 = vmatpush1.msra.mxu0 0.0
  %96 = vmatprep.subr.mxu0 0.0
  %97 = vmatpush1.msra.mxu0 0.0
  %98 = vmatprep.subr.mxu0 0.0
  %99 = vmatpush1.msra.mxu0 0.0
  %100 = vmatprep.subr.mxu0 0.0
  %101 = vmatpush1.msra.mxu0 0.0
  %102 = vmatprep.subr.mxu0 0.0
  %103 = vmatpush1.msra.mxu0 0.0
  %104 = vmatprep.subr.mxu0 0.0
  %105 = vmatpush1.msra.mxu0 0.0
  %106 = vmatprep.subr.mxu0 0.0
  %107 = vmatpush1.msra.mxu0 0.0
  %108 = vmatprep.subr.mxu0 0.0
  %109 = vmatpush1.msra.mxu0 0.0
  %110 = vmatprep.subr.mxu0 0.0
  %111 = vmatpush1.msra.mxu0 0.0
  %112 = vmatprep.subr.mxu0 0.0
  %113 = vmatpush1.msra.mxu0 0.0
  %114 = vmatprep.subr.mxu0 0.0
  %115 = vmatpush1.msra.mxu0 0.0
  %116 = vmatprep.subr.mxu0 0.0
  %117 = vmatpush1.msra.mxu0 0.0
  %118 = vmatprep.subr.mxu0 0.0
  %119 = vmatpush1.msra.mxu0 0.0
  %120 = vmatprep.subr.mxu0 0.0
  %121 = vmatpush1.msra.mxu0 0.0
  %122 = vmatprep.subr.mxu0 0.0
  %123 = vmatpush1.msra.mxu0 0.0
  %124 = vmatprep.mubr.f32.mxu0 0.0
  %125 = vmatmul.mubr.f32.gmra.mrb[0].mxu0 %v49
  %v126 = vpop.f32.mrb[0].mxu0
  %v127 = vadd.f32 %v46, %v126
  %v128 = vpop.f32.mrb[0].mxu0
  %129 = vmatprep.mubr.f32.mxu0 0.0
  %130 = vmatmul.mubr.f32.gmra.mrb[0].mxu0 %v52
  %v131 = vpop.f32.mrb[0].mxu0
  %v132 = vadd.f32 %v46, %v131
  %v133 = vpop.f32.mrb[0].mxu0
  %134 = vmatprep.mubr.f32.mxu0 0.0
  %135 = vmatmul.mubr.f32.gmra.mrb[0].mxu0 %v55
  %v136 = vpop.f32.mrb[0].mxu0
  %v137 = vadd.f32 %v46, %v136
  %v138 = vpop.f32.mrb[0].mxu0
  %139 = vmatprep.mubr.f32.mxu0 0.0
  %140 = vmatmul.mubr.f32.gmra.mrb[0].mxu0 %v58
  %v141 = vpop.f32.mrb[0].mxu0
  %v142 = vadd.f32 %v46, %v141
  %v143 = vpop.f32.mrb[0].mxu0
  %144 = vdwg.mxu0
  %v145 = vld [vmem:[%s1 + $0xa9] sm:$0x1]
  %v146 = vld [vmem:[%s1 + $0xaa] sm:$0x1]
  %vm147 = vcmask 130048
  %v148 = vsel %vm147, %v127, 0.0
  %149 = vadd.xlane.f32.xlu0 %v148
  %v150 = vpop.xlane.xlu0 %149
  %v151 = vsel %vm147, %v132, 0.0
  %152 = vadd.xlane.f32.xlu0 %v151
  %v153 = vpop.xlane.xlu0 %152
  %v154 = vsel %vm147, %v137, 0.0
  %155 = vadd.xlane.f32.xlu0 %v154
  %v156 = vpop.xlane.xlu0 %155
  %v157 = vsel %vm147, %v142, 0.0
  %158 = vadd.xlane.f32.xlu0 %v157
  %v159 = vpop.xlane.xlu0 %158
  %v160 = vrcp.pop 16.0
  %v161 = vmul.f32 %v150, %v160
  %v162 = vmul.f32 %v153, %v160
  %v163 = vmul.f32 %v156, %v160
  %v164 = vmul.f32 %v159, %v160
  %v165 = vsub.f32 %v127, %v161
  %v166 = vsub.f32 %v132, %v162
  %v167 = vsub.f32 %v137, %v163
  %v168 = vsub.f32 %v142, %v164
  %v169 = vmul.f32 %v165, %v165
  %v170 = vmul.f32 %v166, %v166
  %v171 = vmul.f32 %v167, %v167
  %v172 = vmul.f32 %v168, %v168
  %v173 = vsel %vm147, %v169, 0.0
  %174 = vadd.xlane.f32.xlu0 %v173
  %v175 = vpop.xlane.xlu0 %174
  %v176 = vsel %vm147, %v170, 0.0
  %177 = vadd.xlane.f32.xlu0 %v176
  %v178 = vpop.xlane.xlu0 %177
  %v179 = vsel %vm147, %v171, 0.0
  %180 = vadd.xlane.f32.xlu0 %v179
  %v181 = vpop.xlane.xlu0 %180
  %v182 = vsel %vm147, %v172, 0.0
  %183 = vadd.xlane.f32.xlu0 %v182
  %v184 = vpop.xlane.xlu0 %183
  %v185 = vmul.f32 %v175, %v160
  %v186 = vmul.f32 %v178, %v160
  %v187 = vmul.f32 %v181, %v160
  %v188 = vmul.f32 %v184, %v160
  %v189 = vadd.f32 %v185, 1e-06
  %v190 = vadd.f32 %v186, 1e-06
  %v191 = vadd.f32 %v187, 1e-06
  %v192 = vadd.f32 %v188, 1e-06
  %v193 = vrsqrt.pop %v189
  %v194 = vrsqrt.pop %v190
  %v195 = vrsqrt.pop %v191
  %v196 = vrsqrt.pop %v192
  %v197 = vmul.f32 %v165, %v193
  %v198 = vmul.f32 %v166, %v194
  %v199 = vmul.f32 %v167, %v195
  %v200 = vmul.f32 %v168, %v196
  %v201 = vlaneseq
  %v202 = vshrl.u32 %v201, 7
  %v203 = vsub.s32 0, %v202
  %v204 = vrot.slane %v145, %v203
  %v205 = vmul.f32 %v197, %v204
  %v206 = vmul.f32 %v198, %v204
  %v207 = vmul.f32 %v199, %v204
  %v208 = vmul.f32 %v200, %v204
  %v209 = vlaneseq
  %v210 = vshrl.u32 %v209, 7
  %v211 = vsub.s32 0, %v210
  %v212 = vrot.slane %v146, %v211
  %v213 = vadd.f32 %v205, %v212
  %v214 = vadd.f32 %v206, %v212
  %v215 = vadd.f32 %v207, %v212
  %v216 = vadd.f32 %v208, %v212
  %217 = vst.msk [vmem:[#allocation2] sm:$0xff] %vm147, 0.0
  %218 = vst.msk [vmem:[#allocation2 + $0x8] sm:$0xff] %vm147, 0.0
  %219 = vst.msk [vmem:[#allocation2 + $0x10] sm:$0xff] %vm147, 0.0
  %220 = vst.msk [vmem:[#allocation2 + $0x18] sm:$0xff] %vm147, 0.0
  %221 = vst.msk [vmem:[#allocation2 + $0x20] sm:$0xff] %vm147, 0.0
  %222 = vst.msk [vmem:[#allocation2 + $0x28] sm:$0xff] %vm147, 0.0
  %223 = vst.msk [vmem:[#allocation2 + $0x30] sm:$0xff] %vm147, 0.0
  %224 = vst.msk [vmem:[#allocation2 + $0x38] sm:$0xff] %vm147, 0.0
  %225 = vst.msk [vmem:[#allocation2 + $0x40] sm:$0xff] %vm147, 0.0
  %226 = vst.msk [vmem:[#allocation2 + $0x48] sm:$0xff] %vm147, 0.0
  %227 = vst.msk [vmem:[#allocation2 + $0x50] sm:$0xff] %vm147, 0.0
  %228 = vst.msk [vmem:[#allocation2 + $0x58] sm:$0xff] %vm147, 0.0
  %229 = vst.msk [vmem:[#allocation2 + $0x60] sm:$0xff] %vm147, 0.0
  %vm230 = vcmask 125952
  %231 = vst.msk [vmem:[#allocation2 + $0x68] sm:$0xf] %vm230, %v213
  %232 = vst.msk [vmem:[#allocation2 + $0x6c] sm:$0xff] %vm147, 0.0
  %233 = vst.msk [vmem:[#allocation2 + $0x74] sm:$0xf] %vm230, 0.0
  %vm234 = vcmask 130052
  %235 = vst.msk [vmem:[#allocation2 + $0x74] sm:$0xf0] %vm234, %v213
  %236 = vst.msk [vmem:[#allocation2 + $0x7c] sm:$0xff] %vm147, 0.0
  %237 = vst.msk [vmem:[#allocation2 + $0x84] sm:$0xf] %vm230, 0.0
  %238 = vst.msk [vmem:[#allocation2 + $0x88] sm:$0xf] %vm230, %v214
  %239 = vst.msk [vmem:[#allocation2 + $0x8c] sm:$0xff] %vm147, 0.0
  %240 = vst.msk [vmem:[#allocation2 + $0x94] sm:$0xf] %vm230, 0.0
  %241 = vst.msk [vmem:[#allocation2 + $0x94] sm:$0xf0] %vm234, %v214
  %242 = vst.msk [vmem:[#allocation2 + $0x9c] sm:$0xff] %vm147, 0.0
  %243 = vst.msk [vmem:[#allocation2 + $0xa4] sm:$0xff] %vm147, 0.0
  %244 = vst.msk [vmem:[#allocation2 + $0xac] sm:$0xff] %vm147, 0.0
  %245 = vst.msk [vmem:[#allocation2 + $0xb4] sm:$0xff] %vm147, 0.0
  %246 = vst.msk [vmem:[#allocation2 + $0xbc] sm:$0xff] %vm147, 0.0
  %247 = vst.msk [vmem:[#allocation2 + $0xc4] sm:$0xff] %vm147, 0.0
  %248 = vst.msk [vmem:[#allocation2 + $0xcc] sm:$0xff] %vm147, 0.0
  %249 = vst.msk [vmem:[#allocation2 + $0xd4] sm:$0xff] %vm147, 0.0
  %250 = vst.msk [vmem:[#allocation2 + $0xdc] sm:$0xff] %vm147, 0.0
  %251 = vst.msk [vmem:[#allocation2 + $0xe4] sm:$0xff] %vm147, 0.0
  %252 = vst.msk [vmem:[#allocation2 + $0xec] sm:$0xff] %vm147, 0.0
  %253 = vst.msk [vmem:[#allocation2 + $0xf4] sm:$0xff] %vm147, 0.0
  %254 = vst.msk [vmem:[#allocation2 + $0xfc] sm:$0xff] %vm147, 0.0
  %255 = vst.msk [vmem:[#allocation2 + $0x104] sm:$0xf] %vm230, 0.0
  %256 = vst.msk [vmem:[#allocation2 + $0x108] sm:$0xf] %vm230, %v215
  %257 = vst.msk [vmem:[#allocation2 + $0x10c] sm:$0xff] %vm147, 0.0
  %258 = vst.msk [vmem:[#allocation2 + $0x114] sm:$0xf] %vm230, 0.0
  %259 = vst.msk [vmem:[#allocation2 + $0x114] sm:$0xf0] %vm234, %v215
  %260 = vst.msk [vmem:[#allocation2 + $0x11c] sm:$0xff] %vm147, 0.0
  %261 = vst.msk [vmem:[#allocation2 + $0x124] sm:$0xf] %vm230, 0.0
  %262 = vst.msk [vmem:[#allocation2 + $0x128] sm:$0xf] %vm230, %v216
  %263 = vst.msk [vmem:[#allocation2 + $0x12c] sm:$0xff] %vm147, 0.0
  %264 = vst.msk [vmem:[#allocation2 + $0x134] sm:$0xf] %vm230, 0.0
  %265 = vst.msk [vmem:[#allocation2 + $0x134] sm:$0xf0] %vm234, %v216
  %266 = vst.msk [vmem:[#allocation2 + $0x13c] sm:$0xff] %vm147, 0.0
  %267 = vst.msk [vmem:[#allocation2 + $0x144] sm:$0xff] %vm147, 0.0
  %268 = vst.msk [vmem:[#allocation2 + $0x14c] sm:$0xff] %vm147, 0.0
  %269 = vst.msk [vmem:[#allocation2 + $0x154] sm:$0xff] %vm147, 0.0
  %270 = vst.msk [vmem:[#allocation2 + $0x15c] sm:$0xff] %vm147, 0.0
  %271 = vst.msk [vmem:[#allocation2 + $0x164] sm:$0xff] %vm147, 0.0
  %272 = vst.msk [vmem:[#allocation2 + $0x16c] sm:$0xff] %vm147, 0.0
  %273 = vst.msk [vmem:[#allocation2 + $0x174] sm:$0xff] %vm147, 0.0
  %274 = vst.msk [vmem:[#allocation2 + $0x17c] sm:$0xff] %vm147, 0.0
  %275 = vst.msk [vmem:[#allocation2 + $0x184] sm:$0xff] %vm147, 0.0
  %276 = vst.msk [vmem:[#allocation2 + $0x18c] sm:$0xff] %vm147, 0.0
  %277 = vst.msk [vmem:[#allocation2 + $0x194] sm:$0xff] %vm147, 0.0
  %278 = vst.msk [vmem:[#allocation2 + $0x19c] sm:$0xff] %vm147, 0.0
  %279 = vst.msk [vmem:[#allocation2 + $0x1a4] sm:$0xff] %vm147, 0.0
  %280 = vst.msk [vmem:[#allocation2 + $0x1ac] sm:$0xf] %vm230, 0.0
  %v281 = vld [vmem:[%s1 + $0x70] sm:$0x1]
  %v282 = vld [vmem:[#allocation2 + $0x35] sm:$0xff]
  %v283 = vld [vmem:[#allocation2 + $0x45] sm:$0xff]
  %v284 = vld [vmem:[#allocation2 + $0x55] sm:$0xff]
  %v285 = vld [vmem:[#allocation2 + $0x65] sm:$0xff]
  %v286 = vld [vmem:[#allocation2 + $0xd5] sm:$0xff]
  %v287 = vld [vmem:[#allocation2 + $0xe5] sm:$0xff]
  %v288 = vld [vmem:[#allocation2 + $0xf5] sm:$0xff]
  %v289 = vld [vmem:[#allocation2 + $0x105] sm:$0xff]
  %v290 = vlaneseq
  %v291 = vshrl.u32 %v290, 7
  %v292 = vsub.s32 0, %v291
  %v293 = vrot.slane %v281, %v292
  %v294 = vmul.f32 %v282, %v293
  %v295 = vmul.f32 %v283, %v293
  %v296 = vmul.f32 %v284, %v293
  %v297 = vmul.f32 %v285, %v293
  %v298 = vmul.f32 %v286, %v293
  %v299 = vmul.f32 %v287, %v293
  %v300 = vmul.f32 %v288, %v293
  %v301 = vmul.f32 %v289, %v293
  %v302 = vld [vmem:[%s1 + $0x71] sm:$0x1]
  %v303 = vld [vmem:[#allocation2 + $0x36] sm:$0xff]
  %v304 = vld [vmem:[#allocation2 + $0x46] sm:$0xff]
  %v305 = vld [vmem:[#allocation2 + $0x56] sm:$0xff]
  %v306 = vld [vmem:[#allocation2 + $0x66] sm:$0xff]
  %v307 = vld [vmem:[#allocation2 + $0xd6] sm:$0xff]
  %v308 = vld [vmem:[#allocation2 + $0xe6] sm:$0xff]
  %v309 = vld [vmem:[#allocation2 + $0xf6] sm:$0xff]
  %v310 = vld [vmem:[#allocation2 + $0x106] sm:$0xff]
  %v311 = vlaneseq
  %v312 = vshrl.u32 %v311, 7
  %v313 = vsub.s32 0, %v312
  %v314 = vrot.slane %v302, %v313
  %v315 = vmul.f32 %v303, %v314
  %v316 = vmul.f32 %v304, %v314
  %v317 = vmul.f32 %v305, %v314
  %v318 = vmul.f32 %v306, %v314
  %v319 = vmul.f32 %v307, %v314
  %v320 = vmul.f32 %v308, %v314
  %v321 = vmul.f32 %v309, %v314
  %v322 = vmul.f32 %v310, %v314
  %v323 = vadd.f32 %v294, %v315
  %v324 = vadd.f32 %v295, %v316
  %v325 = vadd.f32 %v296, %v317
  %v326 = vadd.f32 %v297, %v318
  %v327 = vadd.f32 %v298, %v319
  %v328 = vadd.f32 %v299, %v320
  %v329 = vadd.f32 %v300, %v321
  %v330 = vadd.f32 %v301, %v322
  %v331 = vld [vmem:[%s1 + $0x72] sm:$0x1]
  %v332 = vld [vmem:[#allocation2 + $0x37] sm:$0xff]
  %v333 = vld [vmem:[#allocation2 + $0x47] sm:$0xff]
  %v334 = vld [vmem:[#allocation2 + $0x57] sm:$0xff]
  %v335 = vld [vmem:[#allocation2 + $0x67] sm:$0xff]
  %v336 = vld [vmem:[#allocation2 + $0xd7] sm:$0xff]
  %v337 = vld [vmem:[#allocation2 + $0xe7] sm:$0xff]
  %v338 = vld [vmem:[#allocation2 + $0xf7] sm:$0xff]
  %v339 = vld [vmem:[#allocation2 + $0x107] sm:$0xff]
  %v340 = vlaneseq
  %v341 = vshrl.u32 %v340, 7
  %v342 = vsub.s32 0, %v341
  %v343 = vrot.slane %v331, %v342
  %v344 = vmul.f32 %v332, %v343
  %v345 = vmul.f32 %v333, %v343
  %v346 = vmul.f32 %v334, %v343
  %v347 = vmul.f32 %v335, %v343
  %v348 = vmul.f32 %v336, %v343
  %v349 = vmul.f32 %v337, %v343
  %v350 = vmul.f32 %v338, %v343
  %v351 = vmul.f32 %v339, %v343
  %v352 = vadd.f32 %v323, %v344
  %v353 = vadd.f32 %v324, %v345
  %v354 = vadd.f32 %v325, %v346
  %v355 = vadd.f32 %v326, %v347
  %v356 = vadd.f32 %v327, %v348
  %v357 = vadd.f32 %v328, %v349
  %v358 = vadd.f32 %v329, %v350
  %v359 = vadd.f32 %v330, %v351
  %v360 = vld [vmem:[%s1 + $0x73] sm:$0x1]
  %v361 = vld [vmem:[#allocation2 + $0x38] sm:$0xff]
  %v362 = vld [vmem:[#allocation2 + $0x48] sm:$0xff]
  %v363 = vld [vmem:[#allocation2 + $0x58] sm:$0xff]
  %v364 = vld [vmem:[#allocation2 + $0x68] sm:$0xff]
  %v365 = vld [vmem:[#allocation2 + $0xd8] sm:$0xff]
  %v366 = vld [vmem:[#allocation2 + $0xe8] sm:$0xff]
  %v367 = vld [vmem:[#allocation2 + $0xf8] sm:$0xff]
  %v368 = vld [vmem:[#allocation2 + $0x108] sm:$0xff]
  %v369 = vlaneseq
  %v370 = vshrl.u32 %v369, 7
  %v371 = vsub.s32 0, %v370
  %v372 = vrot.slane %v360, %v371
  %v373 = vmul.f32 %v361, %v372
  %v374 = vmul.f32 %v362, %v372
  %v375 = vmul.f32 %v363, %v372
  %v376 = vmul.f32 %v364, %v372
  %v377 = vmul.f32 %v365, %v372
  %v378 = vmul.f32 %v366, %v372
  %v379 = vmul.f32 %v367, %v372
  %v380 = vmul.f32 %v368, %v372
  %v381 = vadd.f32 %v352, %v373
  %v382 = vadd.f32 %v353, %v374
  %v383 = vadd.f32 %v354, %v375
  %v384 = vadd.f32 %v355, %v376
  %v385 = vadd.f32 %v356, %v377
  %v386 = vadd.f32 %v357, %v378
  %v387 = vadd.f32 %v358, %v379
  %v388 = vadd.f32 %v359, %v380
  %v389 = vld [vmem:[%s1 + $0x74] sm:$0x1]
  %v390 = vld [vmem:[#allocation2 + $0x39] sm:$0xff]
  %v391 = vld [vmem:[#allocation2 + $0x49] sm:$0xff]
  %v392 = vld [vmem:[#allocation2 + $0x59] sm:$0xff]
  %v393 = vld [vmem:[#allocation2 + $0x69] sm:$0xff]
  %v394 = vld [vmem:[#allocation2 + $0xd9] sm:$0xff]
  %v395 = vld [vmem:[#allocation2 + $0xe9] sm:$0xff]
  %v396 = vld [vmem:[#allocation2 + $0xf9] sm:$0xff]
  %v397 = vld [vmem:[#allocation2 + $0x109] sm:$0xff]
  %v398 = vlaneseq
  %v399 = vshrl.u32 %v398, 7
  %v400 = vsub.s32 0, %v399
  %v401 = vrot.slane %v389, %v400
  %v402 = vmul.f32 %v390, %v401
  %v403 = vmul.f32 %v391, %v401
  %v404 = vmul.f32 %v392, %v401
  %v405 = vmul.f32 %v393, %v401
  %v406 = vmul.f32 %v394, %v401
  %v407 = vmul.f32 %v395, %v401
  %v408 = vmul.f32 %v396, %v401
  %v409 = vmul.f32 %v397, %v401
  %v410 = vadd.f32 %v381, %v402
  %v411 = vadd.f32 %v382, %v403
  %v412 = vadd.f32 %v383, %v404
  %v413 = vadd.f32 %v384, %v405
  %v414 = vadd.f32 %v385, %v406
  %v415 = vadd.f32 %v386, %v407
  %v416 = vadd.f32 %v387, %v408
  %v417 = vadd.f32 %v388, %v409
  %v418 = vld [vmem:[%s1 + $0x75] sm:$0x1]
  %v419 = vld [vmem:[#allocation2 + $0x3a] sm:$0xff]
  %v420 = vld [vmem:[#allocation2 + $0x4a] sm:$0xff]
  %v421 = vld [vmem:[#allocation2 + $0x5a] sm:$0xff]
  %v422 = vld [vmem:[#allocation2 + $0x6a] sm:$0xff]
  %v423 = vld [vmem:[#allocation2 + $0xda] sm:$0xff]
  %v424 = vld [vmem:[#allocation2 + $0xea] sm:$0xff]
  %v425 = vld [vmem:[#allocation2 + $0xfa] sm:$0xff]
  %v426 = vld [vmem:[#allocation2 + $0x10a] sm:$0xff]
  %v427 = vlaneseq
  %v428 = vshrl.u32 %v427, 7
  %v429 = vsub.s32 0, %v428
  %v430 = vrot.slane %v418, %v429
  %v431 = vmul.f32 %v419, %v430
  %v432 = vmul.f32 %v420, %v430
  %v433 = vmul.f32 %v421, %v430
  %v434 = vmul.f32 %v422, %v430
  %v435 = vmul.f32 %v423, %v430
  %v436 = vmul.f32 %v424, %v430
  %v437 = vmul.f32 %v425, %v430
  %v438 = vmul.f32 %v426, %v430
  %v439 = vadd.f32 %v410, %v431
  %v440 = vadd.f32 %v411, %v432
  %v441 = vadd.f32 %v412, %v433
  %v442 = vadd.f32 %v413, %v434
  %v443 = vadd.f32 %v414, %v435
  %v444 = vadd.f32 %v415, %v436
  %v445 = vadd.f32 %v416, %v437
  %v446 = vadd.f32 %v417, %v438
  %v447 = vld [vmem:[%s1 + $0x76] sm:$0x1]
  %v448 = vld [vmem:[#allocation2 + $0x3b] sm:$0xff]
  %v449 = vld [vmem:[#allocation2 + $0x4b] sm:$0xff]
  %v450 = vld [vmem:[#allocation2 + $0x5b] sm:$0xff]
  %v451 = vld [vmem:[#allocation2 + $0x6b] sm:$0xff]
  %v452 = vld [vmem:[#allocation2 + $0xdb] sm:$0xff]
  %v453 = vld [vmem:[#allocation2 + $0xeb] sm:$0xff]
  %v454 = vld [vmem:[#allocation2 + $0xfb] sm:$0xff]
  %v455 = vld [vmem:[#allocation2 + $0x10b] sm:$0xff]
  %v456 = vlaneseq
  %v457 = vshrl.u32 %v456, 7
  %v458 = vsub.s32 0, %v457
  %v459 = vrot.slane %v447, %v458
  %v460 = vmul.f32 %v448, %v459
  %v461 = vmul.f32 %v449, %v459
  %v462 = vmul.f32 %v450, %v459
  %v463 = vmul.f32 %v451, %v459
  %v464 = vmul.f32 %v452, %v459
  %v465 = vmul.f32 %v453, %v459
  %v466 = vmul.f32 %v454, %v459
  %v467 = vmul.f32 %v455, %v459
  %v468 = vadd.f32 %v439, %v460
  %v469 = vadd.f32 %v440, %v461
  %v470 = vadd.f32 %v441, %v462
  %v471 = vadd.f32 %v442, %v463
  %v472 = vadd.f32 %v443, %v464
  %v473 = vadd.f32 %v444, %v465
  %v474 = vadd.f32 %v445, %v466
  %v475 = vadd.f32 %v446, %v467
  %v476 = vld [vmem:[%s1 + $0x77] sm:$0x1]
  %v477 = vld [vmem:[#allocation2 + $0x75] sm:$0xff]
  %v478 = vld [vmem:[#allocation2 + $0x115] sm:$0xff]
  %v479 = vlaneseq
  %v480 = vshrl.u32 %v479, 7
  %v481 = vsub.s32 0, %v480
  %v482 = vrot.slane %v476, %v481
  %v483 = vmul.f32 %v283, %v482
  %v484 = vmul.f32 %v284, %v482
  %v485 = vmul.f32 %v285, %v482
  %v486 = vmul.f32 %v477, %v482
  %v487 = vmul.f32 %v287, %v482
  %v488 = vmul.f32 %v288, %v482
  %v489 = vmul.f32 %v289, %v482
  %v490 = vmul.f32 %v478, %v482
  %v491 = vadd.f32 %v468, %v483
  %v492 = vadd.f32 %v469, %v484
  %v493 = vadd.f32 %v470, %v485
  %v494 = vadd.f32 %v471, %v486
  %v495 = vadd.f32 %v472, %v487
  %v496 = vadd.f32 %v473, %v488
  %v497 = vadd.f32 %v474, %v489
  %v498 = vadd.f32 %v475, %v490
  %v499 = vld [vmem:[%s1 + $0x78] sm:$0x1]
  %v500 = vld [vmem:[#allocation2 + $0x76] sm:$0xff]
  %v501 = vld [vmem:[#allocation2 + $0x116] sm:$0xff]
  %v502 = vlaneseq
  %v503 = vshrl.u32 %v502, 7
  %v504 = vsub.s32 0, %v503
  %v505 = vrot.slane %v499, %v504
  %v506 = vmul.f32 %v304, %v505
  %v507 = vmul.f32 %v305, %v505
  %v508 = vmul.f32 %v306, %v505
  %v509 = vmul.f32 %v500, %v505
  %v510 = vmul.f32 %v308, %v505
  %v511 = vmul.f32 %v309, %v505
  %v512 = vmul.f32 %v310, %v505
  %v513 = vmul.f32 %v501, %v505
  %v514 = vadd.f32 %v491, %v506
  %v515 = vadd.f32 %v492, %v507
  %v516 = vadd.f32 %v493, %v508
  %v517 = vadd.f32 %v494, %v509
  %v518 = vadd.f32 %v495, %v510
  %v519 = vadd.f32 %v496, %v511
  %v520 = vadd.f32 %v497, %v512
  %v521 = vadd.f32 %v498, %v513
  %v522 = vld [vmem:[%s1 + $0x79] sm:$0x1]
  %v523 = vld [vmem:[#allocation2 + $0x77] sm:$0xff]
  %v524 = vld [vmem:[#allocation2 + $0x117] sm:$0xff]
  %v525 = vlaneseq
  %v526 = vshrl.u32 %v525, 7
  %v527 = vsub.s32 0, %v526
  %v528 = vrot.slane %v522, %v527
  %v529 = vmul.f32 %v333, %v528
  %v530 = vmul.f32 %v334, %v528
  %v531 = vmul.f32 %v335, %v528
  %v532 = vmul.f32 %v523, %v528
  %v533 = vmul.f32 %v337, %v528
  %v534 = vmul.f32 %v338, %v528
  %v535 = vmul.f32 %v339, %v528
  %v536 = vmul.f32 %v524, %v528
  %v537 = vadd.f32 %v514, %v529
  %v538 = vadd.f32 %v515, %v530
  %v539 = vadd.f32 %v516, %v531
  %v540 = vadd.f32 %v517, %v532
  %v541 = vadd.f32 %v518, %v533
  %v542 = vadd.f32 %v519, %v534
  %v543 = vadd.f32 %v520, %v535
  %v544 = vadd.f32 %v521, %v536
  %v545 = vld [vmem:[%s1 + $0x7a] sm:$0x1]
  %v546 = vld [vmem:[#allocation2 + $0x78] sm:$0xff]
  %v547 = vld [vmem:[#allocation2 + $0x118] sm:$0xff]
  %v548 = vlaneseq
  %v549 = vshrl.u32 %v548, 7
  %v550 = vsub.s32 0, %v549
  %v551 = vrot.slane %v545, %v550
  %v552 = vmul.f32 %v362, %v551
  %v553 = vmul.f32 %v363, %v551
  %v554 = vmul.f32 %v364, %v551
  %v555 = vmul.f32 %v546, %v551
  %v556 = vmul.f32 %v366, %v551
  %v557 = vmul.f32 %v367, %v551
  %v558 = vmul.f32 %v368, %v551
  %v559 = vmul.f32 %v547, %v551
  %v560 = vadd.f32 %v537, %v552
  %v561 = vadd.f32 %v538, %v553
  %v562 = vadd.f32 %v539, %v554
  %v563 = vadd.f32 %v540, %v555
  %v564 = vadd.f32 %v541, %v556
  %v565 = vadd.f32 %v542, %v557
  %v566 = vadd.f32 %v543, %v558
  %v567 = vadd.f32 %v544, %v559
  %v568 = vld [vmem:[%s1 + $0x7b] sm:$0x1]
  %v569 = vld [vmem:[#allocation2 + $0x79] sm:$0xff]
  %v570 = vld [vmem:[#allocation2 + $0x119] sm:$0xff]
  %v571 = vlaneseq
  %v572 = vshrl.u32 %v571, 7
  %v573 = vsub.s32 0, %v572
  %v574 = vrot.slane %v568, %v573
  %v575 = vmul.f32 %v391, %v574
  %v576 = vmul.f32 %v392, %v574
  %v577 = vmul.f32 %v393, %v574
  %v578 = vmul.f32 %v569, %v574
  %v579 = vmul.f32 %v395, %v574
  %v580 = vmul.f32 %v396, %v574
  %v581 = vmul.f32 %v397, %v574
  %v582 = vmul.f32 %v570, %v574
  %v583 = vadd.f32 %v560, %v575
  %v584 = vadd.f32 %v561, %v576
  %v585 = vadd.f32 %v562, %v577
  %v586 = vadd.f32 %v563, %v578
  %v587 = vadd.f32 %v564, %v579
  %v588 = vadd.f32 %v565, %v580
  %v589 = vadd.f32 %v566, %v581
  %v590 = vadd.f32 %v567, %v582
  %v591 = vld [vmem:[%s1 + $0x7c] sm:$0x1]
  %v592 = vld [vmem:[#allocation2 + $0x7a] sm:$0xff]
  %v593 = vld [vmem:[#allocation2 + $0x11a] sm:$0xff]
  %v594 = vlaneseq
  %v595 = vshrl.u32 %v594, 7
  %v596 = vsub.s32 0, %v595
  %v597 = vrot.slane %v591, %v596
  %v598 = vmul.f32 %v420, %v597
  %v599 = vmul.f32 %v421, %v597
  %v600 = vmul.f32 %v422, %v597
  %v601 = vmul.f32 %v592, %v597
  %v602 = vmul.f32 %v424, %v597
  %v603 = vmul.f32 %v425, %v597
  %v604 = vmul.f32 %v426, %v597
  %v605 = vmul.f32 %v593, %v597
  %v606 = vadd.f32 %v583, %v598
  %v607 = vadd.f32 %v584, %v599
  %v608 = vadd.f32 %v585, %v600
  %v609 = vadd.f32 %v586, %v601
  %v610 = vadd.f32 %v587, %v602
  %v611 = vadd.f32 %v588, %v603
  %v612 = vadd.f32 %v589, %v604
  %v613 = vadd.f32 %v590, %v605
  %v614 = vld [vmem:[%s1 + $0x7d] sm:$0x1]
  %v615 = vld [vmem:[#allocation2 + $0x7b] sm:$0xff]
  %v616 = vld [vmem:[#allocation2 + $0x11b] sm:$0xff]
  %v617 = vlaneseq
  %v618 = vshrl.u32 %v617, 7
  %v619 = vsub.s32 0, %v618
  %v620 = vrot.slane %v614, %v619
  %v621 = vmul.f32 %v449, %v620
  %v622 = vmul.f32 %v450, %v620
  %v623 = vmul.f32 %v451, %v620
  %v624 = vmul.f32 %v615, %v620
  %v625 = vmul.f32 %v453, %v620
  %v626 = vmul.f32 %v454, %v620
  %v627 = vmul.f32 %v455, %v620
  %v628 = vmul.f32 %v616, %v620
  %v629 = vadd.f32 %v606, %v621
  %v630 = vadd.f32 %v607, %v622
  %v631 = vadd.f32 %v608, %v623
  %v632 = vadd.f32 %v609, %v624
  %v633 = vadd.f32 %v610, %v625
  %v634 = vadd.f32 %v611, %v626
  %v635 = vadd.f32 %v612, %v627
  %v636 = vadd.f32 %v613, %v628
  %v637 = vld [vmem:[%s1 + $0x7e] sm:$0x1]
  %v638 = vld [vmem:[#allocation2 + $0x85] sm:$0xff]
  %v639 = vld [vmem:[#allocation2 + $0x125] sm:$0xff]
  %v640 = vlaneseq
  %v641 = vshrl.u32 %v640, 7
  %v642 = vsub.s32 0, %v641
  %v643 = vrot.slane %v637, %v642
  %v644 = vmul.f32 %v284, %v643
  %v645 = vmul.f32 %v285, %v643
  %v646 = vmul.f32 %v477, %v643
  %v647 = vmul.f32 %v638, %v643
  %v648 = vmul.f32 %v288, %v643
  %v649 = vmul.f32 %v289, %v643
  %v650 = vmul.f32 %v478, %v643
  %v651 = vmul.f32 %v639, %v643
  %v652 = vadd.f32 %v629, %v644
  %v653 = vadd.f32 %v630, %v645
  %v654 = vadd.f32 %v631, %v646
  %v655 = vadd.f32 %v632, %v647
  %v656 = vadd.f32 %v633, %v648
  %v657 = vadd.f32 %v634, %v649
  %v658 = vadd.f32 %v635, %v650
  %v659 = vadd.f32 %v636, %v651
  %v660 = vld [vmem:[%s1 + $0x7f] sm:$0x1]
  %v661 = vld [vmem:[#allocation2 + $0x86] sm:$0xff]
  %v662 = vld [vmem:[#allocation2 + $0x126] sm:$0xff]
  %v663 = vlaneseq
  %v664 = vshrl.u32 %v663, 7
  %v665 = vsub.s32 0, %v664
  %v666 = vrot.slane %v660, %v665
  %v667 = vmul.f32 %v305, %v666
  %v668 = vmul.f32 %v306, %v666
  %v669 = vmul.f32 %v500, %v666
  %v670 = vmul.f32 %v661, %v666
  %v671 = vmul.f32 %v309, %v666
  %v672 = vmul.f32 %v310, %v666
  %v673 = vmul.f32 %v501, %v666
  %v674 = vmul.f32 %v662, %v666
  %v675 = vadd.f32 %v652, %v667
  %v676 = vadd.f32 %v653, %v668
  %v677 = vadd.f32 %v654, %v669
  %v678 = vadd.f32 %v655, %v670
  %v679 = vadd.f32 %v656, %v671
  %v680 = vadd.f32 %v657, %v672
  %v681 = vadd.f32 %v658, %v673
  %v682 = vadd.f32 %v659, %v674
  %v683 = vld [vmem:[%s1 + $0x80] sm:$0x1]
  %v684 = vld [vmem:[#allocation2 + $0x87] sm:$0xff]
  %v685 = vld [vmem:[#allocation2 + $0x127] sm:$0xff]
  %v686 = vlaneseq
  %v687 = vshrl.u32 %v686, 7
  %v688 = vsub.s32 0, %v687
  %v689 = vrot.slane %v683, %v688
  %v690 = vmul.f32 %v334, %v689
  %v691 = vmul.f32 %v335, %v689
  %v692 = vmul.f32 %v523, %v689
  %v693 = vmul.f32 %v684, %v689
  %v694 = vmul.f32 %v338, %v689
  %v695 = vmul.f32 %v339, %v689
  %v696 = vmul.f32 %v524, %v689
  %v697 = vmul.f32 %v685, %v689
  %v698 = vadd.f32 %v675, %v690
  %v699 = vadd.f32 %v676, %v691
  %v700 = vadd.f32 %v677, %v692
  %v701 = vadd.f32 %v678, %v693
  %v702 = vadd.f32 %v679, %v694
  %v703 = vadd.f32 %v680, %v695
  %v704 = vadd.f32 %v681, %v696
  %v705 = vadd.f32 %v682, %v697
  %v706 = vld [vmem:[%s1 + $0x81] sm:$0x1]
  %v707 = vld [vmem:[#allocation2 + $0x88] sm:$0xff]
  %v708 = vld [vmem:[#allocation2 + $0x128] sm:$0xff]
  %v709 = vlaneseq
  %v710 = vshrl.u32 %v709, 7
  %v711 = vsub.s32 0, %v710
  %v712 = vrot.slane %v706, %v711
  %v713 = vmul.f32 %v363, %v712
  %v714 = vmul.f32 %v364, %v712
  %v715 = vmul.f32 %v546, %v712
  %v716 = vmul.f32 %v707, %v712
  %v717 = vmul.f32 %v367, %v712
  %v718 = vmul.f32 %v368, %v712
  %v719 = vmul.f32 %v547, %v712
  %v720 = vmul.f32 %v708, %v712
  %v721 = vadd.f32 %v698, %v713
  %v722 = vadd.f32 %v699, %v714
  %v723 = vadd.f32 %v700, %v715
  %v724 = vadd.f32 %v701, %v716
  %v725 = vadd.f32 %v702, %v717
  %v726 = vadd.f32 %v703, %v718
  %v727 = vadd.f32 %v704, %v719
  %v728 = vadd.f32 %v705, %v720
  %v729 = vld [vmem:[%s1 + $0x82] sm:$0x1]
  %v730 = vld [vmem:[#allocation2 + $0x89] sm:$0xff]
  %v731 = vld [vmem:[#allocation2 + $0x129] sm:$0xff]
  %v732 = vlaneseq
  %v733 = vshrl.u32 %v732, 7
  %v734 = vsub.s32 0, %v733
  %v735 = vrot.slane %v729, %v734
  %v736 = vmul.f32 %v392, %v735
  %v737 = vmul.f32 %v393, %v735
  %v738 = vmul.f32 %v569, %v735
  %v739 = vmul.f32 %v730, %v735
  %v740 = vmul.f32 %v396, %v735
  %v741 = vmul.f32 %v397, %v735
  %v742 = vmul.f32 %v570, %v735
  %v743 = vmul.f32 %v731, %v735
  %v744 = vadd.f32 %v721, %v736
  %v745 = vadd.f32 %v722, %v737
  %v746 = vadd.f32 %v723, %v738
  %v747 = vadd.f32 %v724, %v739
  %v748 = vadd.f32 %v725, %v740
  %v749 = vadd.f32 %v726, %v741
  %v750 = vadd.f32 %v727, %v742
  %v751 = vadd.f32 %v728, %v743
  %v752 = vld [vmem:[%s1 + $0x83] sm:$0x1]
  %v753 = vld [vmem:[#allocation2 + $0x8a] sm:$0xff]
  %v754 = vld [vmem:[#allocation2 + $0x12a] sm:$0xff]
  %v755 = vlaneseq
  %v756 = vshrl.u32 %v755, 7
  %v757 = vsub.s32 0, %v756
  %v758 = vrot.slane %v752, %v757
  %v759 = vmul.f32 %v421, %v758
  %v760 = vmul.f32 %v422, %v758
  %v761 = vmul.f32 %v592, %v758
  %v762 = vmul.f32 %v753, %v758
  %v763 = vmul.f32 %v425, %v758
  %v764 = vmul.f32 %v426, %v758
  %v765 = vmul.f32 %v593, %v758
  %v766 = vmul.f32 %v754, %v758
  %v767 = vadd.f32 %v744, %v759
  %v768 = vadd.f32 %v745, %v760
  %v769 = vadd.f32 %v746, %v761
  %v770 = vadd.f32 %v747, %v762
  %v771 = vadd.f32 %v748, %v763
  %v772 = vadd.f32 %v749, %v764
  %v773 = vadd.f32 %v750, %v765
  %v774 = vadd.f32 %v751, %v766
  %v775 = vld [vmem:[%s1 + $0x84] sm:$0x1]
  %v776 = vld [vmem:[#allocation2 + $0x8b] sm:$0xff]
  %v777 = vld [vmem:[#allocation2 + $0x12b] sm:$0xff]
  %v778 = vlaneseq
  %v779 = vshrl.u32 %v778, 7
  %v780 = vsub.s32 0, %v779
  %v781 = vrot.slane %v775, %v780
  %v782 = vmul.f32 %v450, %v781
  %v783 = vmul.f32 %v451, %v781
  %v784 = vmul.f32 %v615, %v781
  %v785 = vmul.f32 %v776, %v781
  %v786 = vmul.f32 %v454, %v781
  %v787 = vmul.f32 %v455, %v781
  %v788 = vmul.f32 %v616, %v781
  %v789 = vmul.f32 %v777, %v781
  %v790 = vadd.f32 %v767, %v782
  %v791 = vadd.f32 %v768, %v783
  %v792 = vadd.f32 %v769, %v784
  %v793 = vadd.f32 %v770, %v785
  %v794 = vadd.f32 %v771, %v786
  %v795 = vadd.f32 %v772, %v787
  %v796 = vadd.f32 %v773, %v788
  %v797 = vadd.f32 %v774, %v789
  %v798 = vld [vmem:[%s1 + $0x85] sm:$0x1]
  %v799 = vld [vmem:[#allocation2 + $0x95] sm:$0xff]
  %v800 = vld [vmem:[#allocation2 + $0x135] sm:$0xff]
  %v801 = vlaneseq
  %v802 = vshrl.u32 %v801, 7
  %v803 = vsub.s32 0, %v802
  %v804 = vrot.slane %v798, %v803
  %v805 = vmul.f32 %v285, %v804
  %v806 = vmul.f32 %v477, %v804
  %v807 = vmul.f32 %v638, %v804
  %v808 = vmul.f32 %v799, %v804
  %v809 = vmul.f32 %v289, %v804
  %v810 = vmul.f32 %v478, %v804
  %v811 = vmul.f32 %v639, %v804
  %v812 = vmul.f32 %v800, %v804
  %v813 = vadd.f32 %v790, %v805
  %v814 = vadd.f32 %v791, %v806
  %v815 = vadd.f32 %v792, %v807
  %v816 = vadd.f32 %v793, %v808
  %v817 = vadd.f32 %v794, %v809
  %v818 = vadd.f32 %v795, %v810
  %v819 = vadd.f32 %v796, %v811
  %v820 = vadd.f32 %v797, %v812
  %v821 = vld [vmem:[%s1 + $0x86] sm:$0x1]
  %v822 = vld [vmem:[#allocation2 + $0x96] sm:$0xff]
  %v823 = vld [vmem:[#allocation2 + $0x136] sm:$0xff]
  %v824 = vlaneseq
  %v825 = vshrl.u32 %v824, 7
  %v826 = vsub.s32 0, %v825
  %v827 = vrot.slane %v821, %v826
  %v828 = vmul.f32 %v306, %v827
  %v829 = vmul.f32 %v500, %v827
  %v830 = vmul.f32 %v661, %v827
  %v831 = vmul.f32 %v822, %v827
  %v832 = vmul.f32 %v310, %v827
  %v833 = vmul.f32 %v501, %v827
  %v834 = vmul.f32 %v662, %v827
  %v835 = vmul.f32 %v823, %v827
  %v836 = vadd.f32 %v813, %v828
  %v837 = vadd.f32 %v814, %v829
  %v838 = vadd.f32 %v815, %v830
  %v839 = vadd.f32 %v816, %v831
  %v840 = vadd.f32 %v817, %v832
  %v841 = vadd.f32 %v818, %v833
  %v842 = vadd.f32 %v819, %v834
  %v843 = vadd.f32 %v820, %v835
  %v844 = vld [vmem:[%s1 + $0x87] sm:$0x1]
  %v845 = vld [vmem:[#allocation2 + $0x97] sm:$0xff]
  %v846 = vld [vmem:[#allocation2 + $0x137] sm:$0xff]
  %v847 = vlaneseq
  %v848 = vshrl.u32 %v847, 7
  %v849 = vsub.s32 0, %v848
  %v850 = vrot.slane %v844, %v849
  %v851 = vmul.f32 %v335, %v850
  %v852 = vmul.f32 %v523, %v850
  %v853 = vmul.f32 %v684, %v850
  %v854 = vmul.f32 %v845, %v850
  %v855 = vmul.f32 %v339, %v850
  %v856 = vmul.f32 %v524, %v850
  %v857 = vmul.f32 %v685, %v850
  %v858 = vmul.f32 %v846, %v850
  %v859 = vadd.f32 %v836, %v851
  %v860 = vadd.f32 %v837, %v852
  %v861 = vadd.f32 %v838, %v853
  %v862 = vadd.f32 %v839, %v854
  %v863 = vadd.f32 %v840, %v855
  %v864 = vadd.f32 %v841, %v856
  %v865 = vadd.f32 %v842, %v857
  %v866 = vadd.f32 %v843, %v858
  %v867 = vld [vmem:[%s1 + $0x88] sm:$0x1]
  %v868 = vld [vmem:[#allocation2 + $0x98] sm:$0xff]
  %v869 = vld [vmem:[#allocation2 + $0x138] sm:$0xff]
  %v870 = vlaneseq
  %v871 = vshrl.u32 %v870, 7
  %v872 = vsub.s32 0, %v871
  %v873 = vrot.slane %v867, %v872
  %v874 = vmul.f32 %v364, %v873
  %v875 = vmul.f32 %v546, %v873
  %v876 = vmul.f32 %v707, %v873
  %v877 = vmul.f32 %v868, %v873
  %v878 = vmul.f32 %v368, %v873
  %v879 = vmul.f32 %v547, %v873
  %v880 = vmul.f32 %v708, %v873
  %v881 = vmul.f32 %v869, %v873
  %v882 = vadd.f32 %v859, %v874
  %v883 = vadd.f32 %v860, %v875
  %v884 = vadd.f32 %v861, %v876
  %v885 = vadd.f32 %v862, %v877
  %v886 = vadd.f32 %v863, %v878
  %v887 = vadd.f32 %v864, %v879
  %v888 = vadd.f32 %v865, %v880
  %v889 = vadd.f32 %v866, %v881
  %v890 = vld [vmem:[%s1 + $0x89] sm:$0x1]
  %v891 = vld [vmem:[#allocation2 + $0x99] sm:$0xff]
  %v892 = vld [vmem:[#allocation2 + $0x139] sm:$0xff]
  %v893 = vlaneseq
  %v894 = vshrl.u32 %v893, 7
  %v895 = vsub.s32 0, %v894
  %v896 = vrot.slane %v890, %v895
  %v897 = vmul.f32 %v393, %v896
  %v898 = vmul.f32 %v569, %v896
  %v899 = vmul.f32 %v730, %v896
  %v900 = vmul.f32 %v891, %v896
  %v901 = vmul.f32 %v397, %v896
  %v902 = vmul.f32 %v570, %v896
  %v903 = vmul.f32 %v731, %v896
  %v904 = vmul.f32 %v892, %v896
  %v905 = vadd.f32 %v882, %v897
  %v906 = vadd.f32 %v883, %v898
  %v907 = vadd.f32 %v884, %v899
  %v908 = vadd.f32 %v885, %v900
  %v909 = vadd.f32 %v886, %v901
  %v910 = vadd.f32 %v887, %v902
  %v911 = vadd.f32 %v888, %v903
  %v912 = vadd.f32 %v889, %v904
  %v913 = vld [vmem:[%s1 + $0x8a] sm:$0x1]
  %v914 = vld [vmem:[#allocation2 + $0x9a] sm:$0xff]
  %v915 = vld [vmem:[#allocation2 + $0x13a] sm:$0xff]
  %v916 = vlaneseq
  %v917 = vshrl.u32 %v916, 7
  %v918 = vsub.s32 0, %v917
  %v919 = vrot.slane %v913, %v918
  %v920 = vmul.f32 %v422, %v919
  %v921 = vmul.f32 %v592, %v919
  %v922 = vmul.f32 %v753, %v919
  %v923 = vmul.f32 %v914, %v919
  %v924 = vmul.f32 %v426, %v919
  %v925 = vmul.f32 %v593, %v919
  %v926 = vmul.f32 %v754, %v919
  %v927 = vmul.f32 %v915, %v919
  %v928 = vadd.f32 %v905, %v920
  %v929 = vadd.f32 %v906, %v921
  %v930 = vadd.f32 %v907, %v922
  %v931 = vadd.f32 %v908, %v923
  %v932 = vadd.f32 %v909, %v924
  %v933 = vadd.f32 %v910, %v925
  %v934 = vadd.f32 %v911, %v926
  %v935 = vadd.f32 %v912, %v927
  %v936 = vld [vmem:[%s1 + $0x8b] sm:$0x1]
  %v937 = vld [vmem:[#allocation2 + $0x9b] sm:$0xff]
  %v938 = vld [vmem:[#allocation2 + $0x13b] sm:$0xff]
  %v939 = vlaneseq
  %v940 = vshrl.u32 %v939, 7
  %v941 = vsub.s32 0, %v940
  %v942 = vrot.slane %v936, %v941
  %v943 = vmul.f32 %v451, %v942
  %v944 = vmul.f32 %v615, %v942
  %v945 = vmul.f32 %v776, %v942
  %v946 = vmul.f32 %v937, %v942
  %v947 = vmul.f32 %v455, %v942
  %v948 = vmul.f32 %v616, %v942
  %v949 = vmul.f32 %v777, %v942
  %v950 = vmul.f32 %v938, %v942
  %v951 = vadd.f32 %v928, %v943
  %v952 = vadd.f32 %v929, %v944
  %v953 = vadd.f32 %v930, %v945
  %v954 = vadd.f32 %v931, %v946
  %v955 = vadd.f32 %v932, %v947
  %v956 = vadd.f32 %v933, %v948
  %v957 = vadd.f32 %v934, %v949
  %v958 = vadd.f32 %v935, %v950
  %v959 = vld [vmem:[%s1 + $0x8c] sm:$0x1]
  %v960 = vld [vmem:[#allocation2 + $0xa5] sm:$0xff]
  %v961 = vld [vmem:[#allocation2 + $0x145] sm:$0xff]
  %v962 = vlaneseq
  %v963 = vshrl.u32 %v962, 7
  %v964 = vsub.s32 0, %v963
  %v965 = vrot.slane %v959, %v964
  %v966 = vmul.f32 %v477, %v965
  %v967 = vmul.f32 %v638, %v965
  %v968 = vmul.f32 %v799, %v965
  %v969 = vmul.f32 %v960, %v965
  %v970 = vmul.f32 %v478, %v965
  %v971 = vmul.f32 %v639, %v965
  %v972 = vmul.f32 %v800, %v965
  %v973 = vmul.f32 %v961, %v965
  %v974 = vadd.f32 %v951, %v966
  %v975 = vadd.f32 %v952, %v967
  %v976 = vadd.f32 %v953, %v968
  %v977 = vadd.f32 %v954, %v969
  %v978 = vadd.f32 %v955, %v970
  %v979 = vadd.f32 %v956, %v971
  %v980 = vadd.f32 %v957, %v972
  %v981 = vadd.f32 %v958, %v973
  %v982 = vld [vmem:[%s1 + $0x8d] sm:$0x1]
  %v983 = vld [vmem:[#allocation2 + $0xa6] sm:$0xff]
  %v984 = vld [vmem:[#allocation2 + $0x146] sm:$0xff]
  %v985 = vlaneseq
  %v986 = vshrl.u32 %v985, 7
  %v987 = vsub.s32 0, %v986
  %v988 = vrot.slane %v982, %v987
  %v989 = vmul.f32 %v500, %v988
  %v990 = vmul.f32 %v661, %v988
  %v991 = vmul.f32 %v822, %v988
  %v992 = vmul.f32 %v983, %v988
  %v993 = vmul.f32 %v501, %v988
  %v994 = vmul.f32 %v662, %v988
  %v995 = vmul.f32 %v823, %v988
  %v996 = vmul.f32 %v984, %v988
  %v997 = vadd.f32 %v974, %v989
  %v998 = vadd.f32 %v975, %v990
  %v999 = vadd.f32 %v976, %v991
  %v1000 = vadd.f32 %v977, %v992
  %v1001 = vadd.f32 %v978, %v993
  %v1002 = vadd.f32 %v979, %v994
  %v1003 = vadd.f32 %v980, %v995
  %v1004 = vadd.f32 %v981, %v996
  %v1005 = vld [vmem:[%s1 + $0x8e] sm:$0x1]
  %v1006 = vld [vmem:[#allocation2 + $0xa7] sm:$0xff]
  %v1007 = vld [vmem:[#allocation2 + $0x147] sm:$0xff]
  %v1008 = vlaneseq
  %v1009 = vshrl.u32 %v1008, 7
  %v1010 = vsub.s32 0, %v1009
  %v1011 = vrot.slane %v1005, %v1010
  %v1012 = vmul.f32 %v523, %v1011
  %v1013 = vmul.f32 %v684, %v1011
  %v1014 = vmul.f32 %v845, %v1011
  %v1015 = vmul.f32 %v1006, %v1011
  %v1016 = vmul.f32 %v524, %v1011
  %v1017 = vmul.f32 %v685, %v1011
  %v1018 = vmul.f32 %v846, %v1011
  %v1019 = vmul.f32 %v1007, %v1011
  %v1020 = vadd.f32 %v997, %v1012
  %v1021 = vadd.f32 %v998, %v1013
  %v1022 = vadd.f32 %v999, %v1014
  %v1023 = vadd.f32 %v1000, %v1015
  %v1024 = vadd.f32 %v1001, %v1016
  %v1025 = vadd.f32 %v1002, %v1017
  %v1026 = vadd.f32 %v1003, %v1018
  %v1027 = vadd.f32 %v1004, %v1019
  %v1028 = vld [vmem:[%s1 + $0x8f] sm:$0x1]
  %v1029 = vld [vmem:[#allocation2 + $0xa8] sm:$0xff]
  %v1030 = vld [vmem:[#allocation2 + $0x148] sm:$0xff]
  %v1031 = vlaneseq
  %v1032 = vshrl.u32 %v1031, 7
  %v1033 = vsub.s32 0, %v1032
  %v1034 = vrot.slane %v1028, %v1033
  %v1035 = vmul.f32 %v546, %v1034
  %v1036 = vmul.f32 %v707, %v1034
  %v1037 = vmul.f32 %v868, %v1034
  %v1038 = vmul.f32 %v1029, %v1034
  %v1039 = vmul.f32 %v547, %v1034
  %v1040 = vmul.f32 %v708, %v1034
  %v1041 = vmul.f32 %v869, %v1034
  %v1042 = vmul.f32 %v1030, %v1034
  %v1043 = vadd.f32 %v1020, %v1035
  %v1044 = vadd.f32 %v1021, %v1036
  %v1045 = vadd.f32 %v1022, %v1037
  %v1046 = vadd.f32 %v1023, %v1038
  %v1047 = vadd.f32 %v1024, %v1039
  %v1048 = vadd.f32 %v1025, %v1040
  %v1049 = vadd.f32 %v1026, %v1041
  %v1050 = vadd.f32 %v1027, %v1042
  %v1051 = vld [vmem:[%s1 + $0x90] sm:$0x1]
  %v1052 = vld [vmem:[#allocation2 + $0xa9] sm:$0xff]
  %v1053 = vld [vmem:[#allocation2 + $0x149] sm:$0xff]
  %v1054 = vlaneseq
  %v1055 = vshrl.u32 %v1054, 7
  %v1056 = vsub.s32 0, %v1055
  %v1057 = vrot.slane %v1051, %v1056
  %v1058 = vmul.f32 %v569, %v1057
  %v1059 = vmul.f32 %v730, %v1057
  %v1060 = vmul.f32 %v891, %v1057
  %v1061 = vmul.f32 %v1052, %v1057
  %v1062 = vmul.f32 %v570, %v1057
  %v1063 = vmul.f32 %v731, %v1057
  %v1064 = vmul.f32 %v892, %v1057
  %v1065 = vmul.f32 %v1053, %v1057
  %v1066 = vadd.f32 %v1043, %v1058
  %v1067 = vadd.f32 %v1044, %v1059
  %v1068 = vadd.f32 %v1045, %v1060
  %v1069 = vadd.f32 %v1046, %v1061
  %v1070 = vadd.f32 %v1047, %v1062
  %v1071 = vadd.f32 %v1048, %v1063
  %v1072 = vadd.f32 %v1049, %v1064
  %v1073 = vadd.f32 %v1050, %v1065
  %v1074 = vld [vmem:[%s1 + $0x91] sm:$0x1]
  %v1075 = vld [vmem:[#allocation2 + $0xaa] sm:$0xff]
  %v1076 = vld [vmem:[#allocation2 + $0x14a] sm:$0xff]
  %v1077 = vlaneseq
  %v1078 = vshrl.u32 %v1077, 7
  %v1079 = vsub.s32 0, %v1078
  %v1080 = vrot.slane %v1074, %v1079
  %v1081 = vmul.f32 %v592, %v1080
  %v1082 = vmul.f32 %v753, %v1080
  %v1083 = vmul.f32 %v914, %v1080
  %v1084 = vmul.f32 %v1075, %v1080
  %v1085 = vmul.f32 %v593, %v1080
  %v1086 = vmul.f32 %v754, %v1080
  %v1087 = vmul.f32 %v915, %v1080
  %v1088 = vmul.f32 %v1076, %v1080
  %v1089 = vadd.f32 %v1066, %v1081
  %v1090 = vadd.f32 %v1067, %v1082
  %v1091 = vadd.f32 %v1068, %v1083
  %v1092 = vadd.f32 %v1069, %v1084
  %v1093 = vadd.f32 %v1070, %v1085
  %v1094 = vadd.f32 %v1071, %v1086
  %v1095 = vadd.f32 %v1072, %v1087
  %v1096 = vadd.f32 %v1073, %v1088
  %v1097 = vld [vmem:[%s1 + $0x92] sm:$0x1]
  %v1098 = vld [vmem:[#allocation2 + $0xab] sm:$0xff]
  %v1099 = vld [vmem:[#allocation2 + $0x14b] sm:$0xff]
  %v1100 = vlaneseq
  %v1101 = vshrl.u32 %v1100, 7
  %v1102 = vsub.s32 0, %v1101
  %v1103 = vrot.slane %v1097, %v1102
  %v1104 = vmul.f32 %v615, %v1103
  %v1105 = vmul.f32 %v776, %v1103
  %v1106 = vmul.f32 %v937, %v1103
  %v1107 = vmul.f32 %v1098, %v1103
  %v1108 = vmul.f32 %v616, %v1103
  %v1109 = vmul.f32 %v777, %v1103
  %v1110 = vmul.f32 %v938, %v1103
  %v1111 = vmul.f32 %v1099, %v1103
  %v1112 = vadd.f32 %v1089, %v1104
  %v1113 = vadd.f32 %v1090, %v1105
  %v1114 = vadd.f32 %v1091, %v1106
  %v1115 = vadd.f32 %v1092, %v1107
  %v1116 = vadd.f32 %v1093, %v1108
  %v1117 = vadd.f32 %v1094, %v1109
  %v1118 = vadd.f32 %v1095, %v1110
  %v1119 = vadd.f32 %v1096, %v1111
  %v1120 = vld [vmem:[%s1 + $0x93] sm:$0x1]
  %v1121 = vld [vmem:[#allocation2 + $0xb5] sm:$0xff]
  %v1122 = vld [vmem:[#allocation2 + $0x155] sm:$0xff]
  %v1123 = vlaneseq
  %v1124 = vshrl.u32 %v1123, 7
  %v1125 = vsub.s32 0, %v1124
  %v1126 = vrot.slane %v1120, %v1125
  %v1127 = vmul.f32 %v638, %v1126
  %v1128 = vmul.f32 %v799, %v1126
  %v1129 = vmul.f32 %v960, %v1126
  %v1130 = vmul.f32 %v1121, %v1126
  %v1131 = vmul.f32 %v639, %v1126
  %v1132 = vmul.f32 %v800, %v1126
  %v1133 = vmul.f32 %v961, %v1126
  %v1134 = vmul.f32 %v1122, %v1126
  %v1135 = vadd.f32 %v1112, %v1127
  %v1136 = vadd.f32 %v1113, %v1128
  %v1137 = vadd.f32 %v1114, %v1129
  %v1138 = vadd.f32 %v1115, %v1130
  %v1139 = vadd.f32 %v1116, %v1131
  %v1140 = vadd.f32 %v1117, %v1132
  %v1141 = vadd.f32 %v1118, %v1133
  %v1142 = vadd.f32 %v1119, %v1134
  %v1143 = vld [vmem:[%s1 + $0x94] sm:$0x1]
  %v1144 = vld [vmem:[#allocation2 + $0xb6] sm:$0xff]
  %v1145 = vld [vmem:[#allocation2 + $0x156] sm:$0xff]
  %v1146 = vlaneseq
  %v1147 = vshrl.u32 %v1146, 7
  %v1148 = vsub.s32 0, %v1147
  %v1149 = vrot.slane %v1143, %v1148
  %v1150 = vmul.f32 %v661, %v1149
  %v1151 = vmul.f32 %v822, %v1149
  %v1152 = vmul.f32 %v983, %v1149
  %v1153 = vmul.f32 %v1144, %v1149
  %v1154 = vmul.f32 %v662, %v1149
  %v1155 = vmul.f32 %v823, %v1149
  %v1156 = vmul.f32 %v984, %v1149
  %v1157 = vmul.f32 %v1145, %v1149
  %v1158 = vadd.f32 %v1135, %v1150
  %v1159 = vadd.f32 %v1136, %v1151
  %v1160 = vadd.f32 %v1137, %v1152
  %v1161 = vadd.f32 %v1138, %v1153
  %v1162 = vadd.f32 %v1139, %v1154
  %v1163 = vadd.f32 %v1140, %v1155
  %v1164 = vadd.f32 %v1141, %v1156
  %v1165 = vadd.f32 %v1142, %v1157
  %v1166 = vld [vmem:[%s1 + $0x95] sm:$0x1]
  %v1167 = vld [vmem:[#allocation2 + $0xb7] sm:$0xff]
  %v1168 = vld [vmem:[#allocation2 + $0x157] sm:$0xff]
  %v1169 = vlaneseq
  %v1170 = vshrl.u32 %v1169, 7
  %v1171 = vsub.s32 0, %v1170
  %v1172 = vrot.slane %v1166, %v1171
  %v1173 = vmul.f32 %v684, %v1172
  %v1174 = vmul.f32 %v845, %v1172
  %v1175 = vmul.f32 %v1006, %v1172
  %v1176 = vmul.f32 %v1167, %v1172
  %v1177 = vmul.f32 %v685, %v1172
  %v1178 = vmul.f32 %v846, %v1172
  %v1179 = vmul.f32 %v1007, %v1172
  %v1180 = vmul.f32 %v1168, %v1172
  %v1181 = vadd.f32 %v1158, %v1173
  %v1182 = vadd.f32 %v1159, %v1174
  %v1183 = vadd.f32 %v1160, %v1175
  %v1184 = vadd.f32 %v1161, %v1176
  %v1185 = vadd.f32 %v1162, %v1177
  %v1186 = vadd.f32 %v1163, %v1178
  %v1187 = vadd.f32 %v1164, %v1179
  %v1188 = vadd.f32 %v1165, %v1180
  %v1189 = vld [vmem:[%s1 + $0x96] sm:$0x1]
  %v1190 = vld [vmem:[#allocation2 + $0xb8] sm:$0xff]
  %v1191 = vld [vmem:[#allocation2 + $0x158] sm:$0xff]
  %v1192 = vlaneseq
  %v1193 = vshrl.u32 %v1192, 7
  %v1194 = vsub.s32 0, %v1193
  %v1195 = vrot.slane %v1189, %v1194
  %v1196 = vmul.f32 %v707, %v1195
  %v1197 = vmul.f32 %v868, %v1195
  %v1198 = vmul.f32 %v1029, %v1195
  %v1199 = vmul.f32 %v1190, %v1195
  %v1200 = vmul.f32 %v708, %v1195
  %v1201 = vmul.f32 %v869, %v1195
  %v1202 = vmul.f32 %v1030, %v1195
  %v1203 = vmul.f32 %v1191, %v1195
  %v1204 = vadd.f32 %v1181, %v1196
  %v1205 = vadd.f32 %v1182, %v1197
  %v1206 = vadd.f32 %v1183, %v1198
  %v1207 = vadd.f32 %v1184, %v1199
  %v1208 = vadd.f32 %v1185, %v1200
  %v1209 = vadd.f32 %v1186, %v1201
  %v1210 = vadd.f32 %v1187, %v1202
  %v1211 = vadd.f32 %v1188, %v1203
  %v1212 = vld [vmem:[%s1 + $0x97] sm:$0x1]
  %v1213 = vld [vmem:[#allocation2 + $0xb9] sm:$0xff]
  %v1214 = vld [vmem:[#allocation2 + $0x159] sm:$0xff]
  %v1215 = vlaneseq
  %v1216 = vshrl.u32 %v1215, 7
  %v1217 = vsub.s32 0, %v1216
  %v1218 = vrot.slane %v1212, %v1217
  %v1219 = vmul.f32 %v730, %v1218
  %v1220 = vmul.f32 %v891, %v1218
  %v1221 = vmul.f32 %v1052, %v1218
  %v1222 = vmul.f32 %v1213, %v1218
  %v1223 = vmul.f32 %v731, %v1218
  %v1224 = vmul.f32 %v892, %v1218
  %v1225 = vmul.f32 %v1053, %v1218
  %v1226 = vmul.f32 %v1214, %v1218
  %v1227 = vadd.f32 %v1204, %v1219
  %v1228 = vadd.f32 %v1205, %v1220
  %v1229 = vadd.f32 %v1206, %v1221
  %v1230 = vadd.f32 %v1207, %v1222
  %v1231 = vadd.f32 %v1208, %v1223
  %v1232 = vadd.f32 %v1209, %v1224
  %v1233 = vadd.f32 %v1210, %v1225
  %v1234 = vadd.f32 %v1211, %v1226
  %v1235 = vld [vmem:[%s1 + $0x98] sm:$0x1]
  %v1236 = vld [vmem:[#allocation2 + $0xba] sm:$0xff]
  %v1237 = vld [vmem:[#allocation2 + $0x15a] sm:$0xff]
  %v1238 = vlaneseq
  %v1239 = vshrl.u32 %v1238, 7
  %v1240 = vsub.s32 0, %v1239
  %v1241 = vrot.slane %v1235, %v1240
  %v1242 = vmul.f32 %v753, %v1241
  %v1243 = vmul.f32 %v914, %v1241
  %v1244 = vmul.f32 %v1075, %v1241
  %v1245 = vmul.f32 %v1236, %v1241
  %v1246 = vmul.f32 %v754, %v1241
  %v1247 = vmul.f32 %v915, %v1241
  %v1248 = vmul.f32 %v1076, %v1241
  %v1249 = vmul.f32 %v1237, %v1241
  %v1250 = vadd.f32 %v1227, %v1242
  %v1251 = vadd.f32 %v1228, %v1243
  %v1252 = vadd.f32 %v1229, %v1244
  %v1253 = vadd.f32 %v1230, %v1245
  %v1254 = vadd.f32 %v1231, %v1246
  %v1255 = vadd.f32 %v1232, %v1247
  %v1256 = vadd.f32 %v1233, %v1248
  %v1257 = vadd.f32 %v1234, %v1249
  %v1258 = vld [vmem:[%s1 + $0x99] sm:$0x1]
  %v1259 = vld [vmem:[#allocation2 + $0xbb] sm:$0xff]
  %v1260 = vld [vmem:[#allocation2 + $0x15b] sm:$0xff]
  %v1261 = vlaneseq
  %v1262 = vshrl.u32 %v1261, 7
  %v1263 = vsub.s32 0, %v1262
  %v1264 = vrot.slane %v1258, %v1263
  %v1265 = vmul.f32 %v776, %v1264
  %v1266 = vmul.f32 %v937, %v1264
  %v1267 = vmul.f32 %v1098, %v1264
  %v1268 = vmul.f32 %v1259, %v1264
  %v1269 = vmul.f32 %v777, %v1264
  %v1270 = vmul.f32 %v938, %v1264
  %v1271 = vmul.f32 %v1099, %v1264
  %v1272 = vmul.f32 %v1260, %v1264
  %v1273 = vadd.f32 %v1250, %v1265
  %v1274 = vadd.f32 %v1251, %v1266
  %v1275 = vadd.f32 %v1252, %v1267
  %v1276 = vadd.f32 %v1253, %v1268
  %v1277 = vadd.f32 %v1254, %v1269
  %v1278 = vadd.f32 %v1255, %v1270
  %v1279 = vadd.f32 %v1256, %v1271
  %v1280 = vadd.f32 %v1257, %v1272
  %v1281 = vld [vmem:[%s1 + $0x9a] sm:$0x1]
  %v1282 = vld [vmem:[#allocation2 + $0xc5] sm:$0xff]
  %v1283 = vld [vmem:[#allocation2 + $0x165] sm:$0xff]
  %v1284 = vlaneseq
  %v1285 = vshrl.u32 %v1284, 7
  %v1286 = vsub.s32 0, %v1285
  %v1287 = vrot.slane %v1281, %v1286
  %v1288 = vmul.f32 %v799, %v1287
  %v1289 = vmul.f32 %v960, %v1287
  %v1290 = vmul.f32 %v1121, %v1287
  %v1291 = vmul.f32 %v1282, %v1287
  %v1292 = vmul.f32 %v800, %v1287
  %v1293 = vmul.f32 %v961, %v1287
  %v1294 = vmul.f32 %v1122, %v1287
  %v1295 = vmul.f32 %v1283, %v1287
  %v1296 = vadd.f32 %v1273, %v1288
  %v1297 = vadd.f32 %v1274, %v1289
  %v1298 = vadd.f32 %v1275, %v1290
  %v1299 = vadd.f32 %v1276, %v1291
  %v1300 = vadd.f32 %v1277, %v1292
  %v1301 = vadd.f32 %v1278, %v1293
  %v1302 = vadd.f32 %v1279, %v1294
  %v1303 = vadd.f32 %v1280, %v1295
  %v1304 = vld [vmem:[%s1 + $0x9b] sm:$0x1]
  %v1305 = vld [vmem:[#allocation2 + $0xc6] sm:$0xff]
  %v1306 = vld [vmem:[#allocation2 + $0x166] sm:$0xff]
  %v1307 = vlaneseq
  %v1308 = vshrl.u32 %v1307, 7
  %v1309 = vsub.s32 0, %v1308
  %v1310 = vrot.slane %v1304, %v1309
  %v1311 = vmul.f32 %v822, %v1310
  %v1312 = vmul.f32 %v983, %v1310
  %v1313 = vmul.f32 %v1144, %v1310
  %v1314 = vmul.f32 %v1305, %v1310
  %v1315 = vmul.f32 %v823, %v1310
  %v1316 = vmul.f32 %v984, %v1310
  %v1317 = vmul.f32 %v1145, %v1310
  %v1318 = vmul.f32 %v1306, %v1310
  %v1319 = vadd.f32 %v1296, %v1311
  %v1320 = vadd.f32 %v1297, %v1312
  %v1321 = vadd.f32 %v1298, %v1313
  %v1322 = vadd.f32 %v1299, %v1314
  %v1323 = vadd.f32 %v1300, %v1315
  %v1324 = vadd.f32 %v1301, %v1316
  %v1325 = vadd.f32 %v1302, %v1317
  %v1326 = vadd.f32 %v1303, %v1318
  %v1327 = vld [vmem:[%s1 + $0x9c] sm:$0x1]
  %v1328 = vld [vmem:[#allocation2 + $0xc7] sm:$0xff]
  %v1329 = vld [vmem:[#allocation2 + $0x167] sm:$0xff]
  %v1330 = vlaneseq
  %v1331 = vshrl.u32 %v1330, 7
  %v1332 = vsub.s32 0, %v1331
  %v1333 = vrot.slane %v1327, %v1332
  %v1334 = vmul.f32 %v845, %v1333
  %v1335 = vmul.f32 %v1006, %v1333
  %v1336 = vmul.f32 %v1167, %v1333
  %v1337 = vmul.f32 %v1328, %v1333
  %v1338 = vmul.f32 %v846, %v1333
  %v1339 = vmul.f32 %v1007, %v1333
  %v1340 = vmul.f32 %v1168, %v1333
  %v1341 = vmul.f32 %v1329, %v1333
  %v1342 = vadd.f32 %v1319, %v1334
  %v1343 = vadd.f32 %v1320, %v1335
  %v1344 = vadd.f32 %v1321, %v1336
  %v1345 = vadd.f32 %v1322, %v1337
  %v1346 = vadd.f32 %v1323, %v1338
  %v1347 = vadd.f32 %v1324, %v1339
  %v1348 = vadd.f32 %v1325, %v1340
  %v1349 = vadd.f32 %v1326, %v1341
  %v1350 = vld [vmem:[%s1 + $0x9d] sm:$0x1]
  %v1351 = vld [vmem:[#allocation2 + $0xc8] sm:$0xff]
  %v1352 = vld [vmem:[#allocation2 + $0x168] sm:$0xff]
  %v1353 = vlaneseq
  %v1354 = vshrl.u32 %v1353, 7
  %v1355 = vsub.s32 0, %v1354
  %v1356 = vrot.slane %v1350, %v1355
  %v1357 = vmul.f32 %v868, %v1356
  %v1358 = vmul.f32 %v1029, %v1356
  %v1359 = vmul.f32 %v1190, %v1356
  %v1360 = vmul.f32 %v1351, %v1356
  %v1361 = vmul.f32 %v869, %v1356
  %v1362 = vmul.f32 %v1030, %v1356
  %v1363 = vmul.f32 %v1191, %v1356
  %v1364 = vmul.f32 %v1352, %v1356
  %v1365 = vadd.f32 %v1342, %v1357
  %v1366 = vadd.f32 %v1343, %v1358
  %v1367 = vadd.f32 %v1344, %v1359
  %v1368 = vadd.f32 %v1345, %v1360
  %v1369 = vadd.f32 %v1346, %v1361
  %v1370 = vadd.f32 %v1347, %v1362
  %v1371 = vadd.f32 %v1348, %v1363
  %v1372 = vadd.f32 %v1349, %v1364
  %v1373 = vld [vmem:[%s1 + $0x9e] sm:$0x1]
  %v1374 = vld [vmem:[#allocation2 + $0xc9] sm:$0xff]
  %v1375 = vld [vmem:[#allocation2 + $0x169] sm:$0xff]
  %v1376 = vlaneseq
  %v1377 = vshrl.u32 %v1376, 7
  %v1378 = vsub.s32 0, %v1377
  %v1379 = vrot.slane %v1373, %v1378
  %v1380 = vmul.f32 %v891, %v1379
  %v1381 = vmul.f32 %v1052, %v1379
  %v1382 = vmul.f32 %v1213, %v1379
  %v1383 = vmul.f32 %v1374, %v1379
  %v1384 = vmul.f32 %v892, %v1379
  %v1385 = vmul.f32 %v1053, %v1379
  %v1386 = vmul.f32 %v1214, %v1379
  %v1387 = vmul.f32 %v1375, %v1379
  %v1388 = vadd.f32 %v1365, %v1380
  %v1389 = vadd.f32 %v1366, %v1381
  %v1390 = vadd.f32 %v1367, %v1382
  %v1391 = vadd.f32 %v1368, %v1383
  %v1392 = vadd.f32 %v1369, %v1384
  %v1393 = vadd.f32 %v1370, %v1385
  %v1394 = vadd.f32 %v1371, %v1386
  %v1395 = vadd.f32 %v1372, %v1387
  %v1396 = vld [vmem:[%s1 + $0x9f] sm:$0x1]
  %v1397 = vld [vmem:[#allocation2 + $0xca] sm:$0xff]
  %v1398 = vld [vmem:[#allocation2 + $0x16a] sm:$0xff]
  %v1399 = vlaneseq
  %v1400 = vshrl.u32 %v1399, 7
  %v1401 = vsub.s32 0, %v1400
  %v1402 = vrot.slane %v1396, %v1401
  %v1403 = vmul.f32 %v914, %v1402
  %v1404 = vmul.f32 %v1075, %v1402
  %v1405 = vmul.f32 %v1236, %v1402
  %v1406 = vmul.f32 %v1397, %v1402
  %v1407 = vmul.f32 %v915, %v1402
  %v1408 = vmul.f32 %v1076, %v1402
  %v1409 = vmul.f32 %v1237, %v1402
  %v1410 = vmul.f32 %v1398, %v1402
  %v1411 = vadd.f32 %v1388, %v1403
  %v1412 = vadd.f32 %v1389, %v1404
  %v1413 = vadd.f32 %v1390, %v1405
  %v1414 = vadd.f32 %v1391, %v1406
  %v1415 = vadd.f32 %v1392, %v1407
  %v1416 = vadd.f32 %v1393, %v1408
  %v1417 = vadd.f32 %v1394, %v1409
  %v1418 = vadd.f32 %v1395, %v1410
  %v1419 = vld [vmem:[%s1 + $0xa0] sm:$0x1]
  %v1420 = vld [vmem:[#allocation2 + $0xcb] sm:$0xff]
  %v1421 = vld [vmem:[#allocation2 + $0x16b] sm:$0xff]
  %v1422 = vlaneseq
  %v1423 = vshrl.u32 %v1422, 7
  %v1424 = vsub.s32 0, %v1423
  %v1425 = vrot.slane %v1419, %v1424
  %v1426 = vmul.f32 %v937, %v1425
  %v1427 = vmul.f32 %v1098, %v1425
  %v1428 = vmul.f32 %v1259, %v1425
  %v1429 = vmul.f32 %v1420, %v1425
  %v1430 = vmul.f32 %v938, %v1425
  %v1431 = vmul.f32 %v1099, %v1425
  %v1432 = vmul.f32 %v1260, %v1425
  %v1433 = vmul.f32 %v1421, %v1425
  %v1434 = vadd.f32 %v1411, %v1426
  %v1435 = vadd.f32 %v1412, %v1427
  %v1436 = vadd.f32 %v1413, %v1428
  %v1437 = vadd.f32 %v1414, %v1429
  %v1438 = vadd.f32 %v1415, %v1430
  %v1439 = vadd.f32 %v1416, %v1431
  %v1440 = vadd.f32 %v1417, %v1432
  %v1441 = vadd.f32 %v1418, %v1433
  %v1443 = vrot.slane %v1435, 4
  %v1446 = vrot.slane %v1437, 4
  %v1449 = vrot.slane %v1439, 4
  %v1452 = vrot.slane %v1441, 4
  %vm1454 = vcmask 1043456
  %v1455 = vsel %vm1454, %v1434, %v1443
  %v1456 = vsel %vm1454, %v1436, %v1446
  %v1457 = vsel %vm1454, %v1438, %v1449
  %v1458 = vsel %vm1454, %v1440, %v1452
  %v1459 = vld [vmem:[%s1 + $0xab] sm:$0x1]
  %v1460 = vlaneseq
  %v1461 = vshrl.u32 %v1460, 7
  %v1462 = vsub.s32 0, %v1461
  %v1463 = vrot.slane %v1459, %v1462
  %v1464 = vadd.f32 %v1455, %v1463
  %v1465 = vadd.f32 %v1456, %v1463
  %v1466 = vadd.f32 %v1457, %v1463
  %v1467 = vadd.f32 %v1458, %v1463
  %v1468 = vld [vmem:[%s1 + $0xac] sm:$0x1]
  %v1469 = vld [vmem:[%s1 + $0xad] sm:$0x1]
  %v1470 = vsel %vm147, %v1464, 0.0
  %1471 = vadd.xlane.f32.xlu0 %v1470
  %v1472 = vpop.xlane.xlu0 %1471
  %v1473 = vsel %vm147, %v1465, 0.0
  %1474 = vadd.xlane.f32.xlu0 %v1473
  %v1475 = vpop.xlane.xlu0 %1474
  %v1476 = vsel %vm147, %v1466, 0.0
  %1477 = vadd.xlane.f32.xlu0 %v1476
  %v1478 = vpop.xlane.xlu0 %1477
  %v1479 = vsel %vm147, %v1467, 0.0
  %1480 = vadd.xlane.f32.xlu0 %v1479
  %v1481 = vpop.xlane.xlu0 %1480
  %v1482 = vmul.f32 %v1472, %v160
  %v1483 = vmul.f32 %v1475, %v160
  %v1484 = vmul.f32 %v1478, %v160
  %v1485 = vmul.f32 %v1481, %v160
  %v1486 = vsub.f32 %v1464, %v1482
  %v1487 = vsub.f32 %v1465, %v1483
  %v1488 = vsub.f32 %v1466, %v1484
  %v1489 = vsub.f32 %v1467, %v1485
  %v1490 = vmul.f32 %v1486, %v1486
  %v1491 = vmul.f32 %v1487, %v1487
  %v1492 = vmul.f32 %v1488, %v1488
  %v1493 = vmul.f32 %v1489, %v1489
  %v1494 = vsel %vm147, %v1490, 0.0
  %1495 = vadd.xlane.f32.xlu0 %v1494
  %v1496 = vpop.xlane.xlu0 %1495
  %v1497 = vsel %vm147, %v1491, 0.0
  %1498 = vadd.xlane.f32.xlu0 %v1497
  %v1499 = vpop.xlane.xlu0 %1498
  %v1500 = vsel %vm147, %v1492, 0.0
  %1501 = vadd.xlane.f32.xlu0 %v1500
  %v1502 = vpop.xlane.xlu0 %1501
  %v1503 = vsel %vm147, %v1493, 0.0
  %1504 = vadd.xlane.f32.xlu0 %v1503
  %v1505 = vpop.xlane.xlu0 %1504
  %v1506 = vmul.f32 %v1496, %v160
  %v1507 = vmul.f32 %v1499, %v160
  %v1508 = vmul.f32 %v1502, %v160
  %v1509 = vmul.f32 %v1505, %v160
  %v1510 = vadd.f32 %v1506, 1e-06
  %v1511 = vadd.f32 %v1507, 1e-06
  %v1512 = vadd.f32 %v1508, 1e-06
  %v1513 = vadd.f32 %v1509, 1e-06
  %v1514 = vrsqrt.pop %v1510
  %v1515 = vrsqrt.pop %v1511
  %v1516 = vrsqrt.pop %v1512
  %v1517 = vrsqrt.pop %v1513
  %v1518 = vmul.f32 %v1486, %v1514
  %v1519 = vmul.f32 %v1487, %v1515
  %v1520 = vmul.f32 %v1488, %v1516
  %v1521 = vmul.f32 %v1489, %v1517
  %v1522 = vlaneseq
  %v1523 = vshrl.u32 %v1522, 7
  %v1524 = vsub.s32 0, %v1523
  %v1525 = vrot.slane %v1468, %v1524
  %v1526 = vmul.f32 %v1518, %v1525
  %v1527 = vmul.f32 %v1519, %v1525
  %v1528 = vmul.f32 %v1520, %v1525
  %v1529 = vmul.f32 %v1521, %v1525
  %v1530 = vlaneseq
  %v1531 = vshrl.u32 %v1530, 7
  %v1532 = vsub.s32 0, %v1531
  %v1533 = vrot.slane %v1469, %v1532
  %v1534 = vadd.f32 %v1526, %v1533
  %v1535 = vadd.f32 %v1527, %v1533
  %v1536 = vadd.f32 %v1528, %v1533
  %v1537 = vadd.f32 %v1529, %v1533
  %v1538 = vld [vmem:[%s2] sm:$0xff]
  %v1539 = vld [vmem:[%s2 + $0x8] sm:$0xff]
  %v1540 = vld [vmem:[%s2 + $0x10] sm:$0x1]
  %v1541 = vlaneseq
  %v1542 = vshrl.u32 %v1541, 7
  %v1543 = vsub.s32 0, %v1542
  %v1544 = vrot.slane %v1540, %v1543
  %v1546 = vsel %vm147, %v1534, 0
  %v1549 = vsel %vm147, %v1535, 0
  %v1552 = vsel %vm147, %v1536, 0
  %v1555 = vsel %vm147, %v1537, 0
  %1557 = vmatprep.subr.mxu0 0.0
  %1558 = vmatpush1.msra.mxu0 %v1538
  %1559 = vmatprep.subr.mxu0 0.0
  %1560 = vmatpush1.msra.mxu0 %v1539
  %1561 = vmatprep.subr.mxu0 0.0
  %1562 = vmatpush1.msra.mxu0 0.0
  %1563 = vmatprep.subr.mxu0 0.0
  %1564 = vmatpush1.msra.mxu0 0.0
  %1565 = vmatprep.subr.mxu0 0.0
  %1566 = vmatpush1.msra.mxu0 0.0
  %1567 = vmatprep.subr.mxu0 0.0
  %1568 = vmatpush1.msra.mxu0 0.0
  %1569 = vmatprep.subr.mxu0 0.0
  %1570 = vmatpush1.msra.mxu0 0.0
  %1571 = vmatprep.subr.mxu0 0.0
  %1572 = vmatpush1.msra.mxu0 0.0
  %1573 = vmatprep.subr.mxu0 0.0
  %1574 = vmatpush1.msra.mxu0 0.0
  %1575 = vmatprep.subr.mxu0 0.0
  %1576 = vmatpush1.msra.mxu0 0.0
  %1577 = vmatprep.subr.mxu0 0.0
  %1578 = vmatpush1.msra.mxu0 0.0
  %1579 = vmatprep.subr.mxu0 0.0
  %1580 = vmatpush1.msra.mxu0 0.0
  %1581 = vmatprep.subr.mxu0 0.0
  %1582 = vmatpush1.msra.mxu0 0.0
  %1583 = vmatprep.subr.mxu0 0.0
  %1584 = vmatpush1.msra.mxu0 0.0
  %1585 = vmatprep.subr.mxu0 0.0
  %1586 = vmatpush1.msra.mxu0 0.0
  %1587 = vmatprep.subr.mxu0 0.0
  %1588 = vmatpush1.msra.mxu0 0.0
  %1589 = vmatprep.subr.mxu0 0.0
  %1590 = vmatpush1.msra.mxu0 0.0
  %1591 = vmatprep.subr.mxu0 0.0
  %1592 = vmatpush1.msra.mxu0 0.0
  %1593 = vmatprep.subr.mxu0 0.0
  %1594 = vmatpush1.msra.mxu0 0.0
  %1595 = vmatprep.subr.mxu0 0.0
  %1596 = vmatpush1.msra.mxu0 0.0
  %1597 = vmatprep.subr.mxu0 0.0
  %1598 = vmatpush1.msra.mxu0 0.0
  %1599 = vmatprep.subr.mxu0 0.0
  %1600 = vmatpush1.msra.mxu0 0.0
  %1601 = vmatprep.subr.mxu0 0.0
  %1602 = vmatpush1.msra.mxu0 0.0
  %1603 = vmatprep.subr.mxu0 0.0
  %1604 = vmatpush1.msra.mxu0 0.0
  %1605 = vmatprep.subr.mxu0 0.0
  %1606 = vmatpush1.msra.mxu0 0.0
  %1607 = vmatprep.subr.mxu0 0.0
  %1608 = vmatpush1.msra.mxu0 0.0
  %1609 = vmatprep.subr.mxu0 0.0
  %1610 = vmatpush1.msra.mxu0 0.0
  %1611 = vmatprep.subr.mxu0 0.0
  %1612 = vmatpush1.msra.mxu0 0.0
  %1613 = vmatprep.subr.mxu0 0.0
  %1614 = vmatpush1.msra.mxu0 0.0
  %1615 = vmatprep.subr.mxu0 0.0
  %1616 = vmatpush1.msra.mxu0 0.0
  %1617 = vmatprep.subr.mxu0 0.0
  %1618 = vmatpush1.msra.mxu0 0.0
  %1619 = vmatprep.subr.mxu0 0.0
  %1620 = vmatpush1.msra.mxu0 0.0
  %1621 = vmatprep.mubr.f32.mxu0 0.0
  %1622 = vmatmul.mubr.f32.gmra.mrb[0].mxu0 %v1546
  %v1623 = vpop.f32.mrb[0].mxu0
  %v1624 = vadd.f32 %v1544, %v1623
  %v1625 = vpop.f32.mrb[0].mxu0
  %1626 = vmatprep.mubr.f32.mxu0 0.0
  %1627 = vmatmul.mubr.f32.gmra.mrb[0].mxu0 %v1549
  %v1628 = vpop.f32.mrb[0].mxu0
  %v1629 = vadd.f32 %v1544, %v1628
  %v1630 = vpop.f32.mrb[0].mxu0
  %1631 = vmatprep.mubr.f32.mxu0 0.0
  %1632 = vmatmul.mubr.f32.gmra.mrb[0].mxu0 %v1552
  %v1633 = vpop.f32.mrb[0].mxu0
  %v1634 = vadd.f32 %v1544, %v1633
  %v1635 = vpop.f32.mrb[0].mxu0
  %1636 = vmatprep.mubr.f32.mxu0 0.0
  %1637 = vmatmul.mubr.f32.gmra.mrb[0].mxu0 %v1555
  %v1638 = vpop.f32.mrb[0].mxu0
  %v1639 = vadd.f32 %v1544, %v1638
  %v1640 = vpop.f32.mrb[0].mxu0
  %1641 = vdwg.mxu0
  %v1642 = vmul.f32 %v1624, 0.70710677
  %v1643 = vmul.f32 %v1629, 0.70710677
  %v1644 = vmul.f32 %v1634, 0.70710677
  %v1645 = vmul.f32 %v1639, 0.70710677
  %v1646 = vand.u32 2147483647, %v1642
  %v1647 = vand.u32 2147483647, %v1643
  %v1648 = vand.u32 2147483647, %v1644
  %v1649 = vand.u32 2147483647, %v1645
  %v1650 = vmul.f32 %v1646, 0.3275911
  %v1651 = vmul.f32 %v1647, 0.3275911
  %v1652 = vmul.f32 %v1648, 0.3275911
  %v1653 = vmul.f32 %v1649, 0.3275911
  %v1654 = vadd.f32 %v1650, 1.0
  %v1655 = vadd.f32 %v1651, 1.0
  %v1656 = vadd.f32 %v1652, 1.0
  %v1657 = vadd.f32 %v1653, 1.0
  %v1658 = vrcp.pop %v1654
  %v1659 = vrcp.pop %v1655
  %v1660 = vrcp.pop %v1656
  %v1661 = vrcp.pop %v1657
  %v1662 = vmul.f32 %v1654, %v1658
  %v1663 = vmul.f32 %v1655, %v1659
  %v1664 = vmul.f32 %v1656, %v1660
  %v1665 = vmul.f32 %v1657, %v1661
  %v1666 = vsub.f32 2.0, %v1662
  %v1667 = vsub.f32 2.0, %v1663
  %v1668 = vsub.f32 2.0, %v1664
  %v1669 = vsub.f32 2.0, %v1665
  %v1670 = vmul.f32 %v1658, %v1666
  %v1671 = vmul.f32 %v1659, %v1667
  %v1672 = vmul.f32 %v1660, %v1668
  %v1673 = vmul.f32 %v1661, %v1669
  %v1674 = vmul.f32 %v1670, 1.0614054
  %v1675 = vmul.f32 %v1671, 1.0614054
  %v1676 = vmul.f32 %v1672, 1.0614054
  %v1677 = vmul.f32 %v1673, 1.0614054
  %v1678 = vsub.f32 %v1674, 1.4531521
  %v1679 = vsub.f32 %v1675, 1.4531521
  %v1680 = vsub.f32 %v1676, 1.4531521
  %v1681 = vsub.f32 %v1677, 1.4531521
  %v1682 = vmul.f32 %v1678, %v1670
  %v1683 = vmul.f32 %v1679, %v1671
  %v1684 = vmul.f32 %v1680, %v1672
  %v1685 = vmul.f32 %v1681, %v1673
  %v1686 = vadd.f32 %v1682, 1.4214138
  %v1687 = vadd.f32 %v1683, 1.4214138
  %v1688 = vadd.f32 %v1684, 1.4214138
  %v1689 = vadd.f32 %v1685, 1.4214138
  %v1690 = vmul.f32 %v1686, %v1670
  %v1691 = vmul.f32 %v1687, %v1671
  %v1692 = vmul.f32 %v1688, %v1672
  %v1693 = vmul.f32 %v1689, %v1673
  %v1694 = vsub.f32 %v1690, 0.28449672
  %v1695 = vsub.f32 %v1691, 0.28449672
  %v1696 = vsub.f32 %v1692, 0.28449672
  %v1697 = vsub.f32 %v1693, 0.28449672
  %v1698 = vmul.f32 %v1694, %v1670
  %v1699 = vmul.f32 %v1695, %v1671
  %v1700 = vmul.f32 %v1696, %v1672
  %v1701 = vmul.f32 %v1697, %v1673
  %v1702 = vadd.f32 %v1698, 0.2548296
  %v1703 = vadd.f32 %v1699, 0.2548296
  %v1704 = vadd.f32 %v1700, 0.2548296
  %v1705 = vadd.f32 %v1701, 0.2548296
  %v1706 = vmul.f32 %v1702, %v1670
  %v1707 = vmul.f32 %v1703, %v1671
  %v1708 = vmul.f32 %v1704, %v1672
  %v1709 = vmul.f32 %v1705, %v1673
  %v1710 = vsub.f32 0.0, %v1646
  %v1711 = vsub.f32 0.0, %v1647
  %v1712 = vsub.f32 0.0, %v1648
  %v1713 = vsub.f32 0.0, %v1649
  %v1714 = vmul.f32 %v1710, %v1646
  %v1715 = vmul.f32 %v1711, %v1647
  %v1716 = vmul.f32 %v1712, %v1648
  %v1717 = vmul.f32 %v1713, %v1649
  %v1718 = vmul.f32 %v1714, 1.442695
  %v1719 = vpow.pop %v1718
  %v1720 = vmul.f32 %v1715, 1.442695
  %v1721 = vpow.pop %v1720
  %v1722 = vmul.f32 %v1716, 1.442695
  %v1723 = vpow.pop %v1722
  %v1724 = vmul.f32 %v1717, 1.442695
  %v1725 = vpow.pop %v1724
  %v1726 = vmul.f32 %v1706, %v1719
  %v1727 = vmul.f32 %v1707, %v1721
  %v1728 = vmul.f32 %v1708, %v1723
  %v1729 = vmul.f32 %v1709, %v1725
  %v1730 = vsub.f32 1.0, %v1726
  %v1731 = vsub.f32 1.0, %v1727
  %v1732 = vsub.f32 1.0, %v1728
  %v1733 = vsub.f32 1.0, %v1729
  %vm1734 = vcmp.ge.f32.partialorder %v1642, 0.0
  %vm1735 = vcmp.ge.f32.partialorder %v1643, 0.0
  %vm1736 = vcmp.ge.f32.partialorder %v1644, 0.0
  %vm1737 = vcmp.ge.f32.partialorder %v1645, 0.0
  %v1738 = vsub.f32 0.0, %v1730
  %v1739 = vsub.f32 0.0, %v1731
  %v1740 = vsub.f32 0.0, %v1732
  %v1741 = vsub.f32 0.0, %v1733
  %v1742 = vsel %vm1734, %v1730, %v1738
  %v1743 = vsel %vm1735, %v1731, %v1739
  %v1744 = vsel %vm1736, %v1732, %v1740
  %v1745 = vsel %vm1737, %v1733, %v1741
  %v1746 = vmul.f32 %v1624, 0.5
  %v1747 = vmul.f32 %v1629, 0.5
  %v1748 = vmul.f32 %v1634, 0.5
  %v1749 = vmul.f32 %v1639, 0.5
  %v1750 = vadd.f32 %v1742, 1.0
  %v1751 = vadd.f32 %v1743, 1.0
  %v1752 = vadd.f32 %v1744, 1.0
  %v1753 = vadd.f32 %v1745, 1.0
  %v1754 = vmul.f32 %v1746, %v1750
  %v1755 = vmul.f32 %v1747, %v1751
  %v1756 = vmul.f32 %v1748, %v1752
  %v1757 = vmul.f32 %v1749, %v1753
  %v1758 = vld [vmem:[%s1 + $0x30] sm:$0xff]
  %v1759 = vld [vmem:[%s1 + $0x38] sm:$0xff]
  %v1760 = vld [vmem:[%s1 + $0x40] sm:$0xff]
  %v1761 = vld [vmem:[%s1 + $0x48] sm:$0xff]
  %v1762 = vld [vmem:[%s1 + $0x50] sm:$0xff]
  %v1763 = vld [vmem:[%s1 + $0x58] sm:$0xff]
  %v1764 = vld [vmem:[%s1 + $0x60] sm:$0xff]
  %v1765 = vld [vmem:[%s1 + $0x68] sm:$0xff]
  %v1766 = vld [vmem:[%s1 + $0xae] sm:$0x1]
  %v1767 = vlaneseq
  %v1768 = vshrl.u32 %v1767, 7
  %v1769 = vsub.s32 0, %v1768
  %v1770 = vrot.slane %v1766, %v1769
  %vm1771 = vcmask 523264
  %v1773 = vsel %vm1771, %v1754, 0
  %v1776 = vsel %vm1771, %v1755, 0
  %v1779 = vsel %vm1771, %v1756, 0
  %v1782 = vsel %vm1771, %v1757, 0
  %1784 = vmatprep.subr.mxu0 0.0
  %1785 = vmatpush1.msra.mxu0 %v1758
  %1786 = vmatprep.subr.mxu0 0.0
  %1787 = vmatpush1.msra.mxu0 %v1759
  %1788 = vmatprep.subr.mxu0 0.0
  %1789 = vmatpush1.msra.mxu0 %v1760
  %1790 = vmatprep.subr.mxu0 0.0
  %1791 = vmatpush1.msra.mxu0 %v1761
  %1792 = vmatprep.subr.mxu0 0.0
  %1793 = vmatpush1.msra.mxu0 %v1762
  %1794 = vmatprep.subr.mxu0 0.0
  %1795 = vmatpush1.msra.mxu0 %v1763
  %1796 = vmatprep.subr.mxu0 0.0
  %1797 = vmatpush1.msra.mxu0 %v1764
  %1798 = vmatprep.subr.mxu0 0.0
  %1799 = vmatpush1.msra.mxu0 %v1765
  %1800 = vmatprep.subr.mxu0 0.0
  %1801 = vmatpush1.msra.mxu0 0.0
  %1802 = vmatprep.subr.mxu0 0.0
  %1803 = vmatpush1.msra.mxu0 0.0
  %1804 = vmatprep.subr.mxu0 0.0
  %1805 = vmatpush1.msra.mxu0 0.0
  %1806 = vmatprep.subr.mxu0 0.0
  %1807 = vmatpush1.msra.mxu0 0.0
  %1808 = vmatprep.subr.mxu0 0.0
  %1809 = vmatpush1.msra.mxu0 0.0
  %1810 = vmatprep.subr.mxu0 0.0
  %1811 = vmatpush1.msra.mxu0 0.0
  %1812 = vmatprep.subr.mxu0 0.0
  %1813 = vmatpush1.msra.mxu0 0.0
  %1814 = vmatprep.subr.mxu0 0.0
  %1815 = vmatpush1.msra.mxu0 0.0
  %1816 = vmatprep.subr.mxu0 0.0
  %1817 = vmatpush1.msra.mxu0 0.0
  %1818 = vmatprep.subr.mxu0 0.0
  %1819 = vmatpush1.msra.mxu0 0.0
  %1820 = vmatprep.subr.mxu0 0.0
  %1821 = vmatpush1.msra.mxu0 0.0
  %1822 = vmatprep.subr.mxu0 0.0
  %1823 = vmatpush1.msra.mxu0 0.0
  %1824 = vmatprep.subr.mxu0 0.0
  %1825 = vmatpush1.msra.mxu0 0.0
  %1826 = vmatprep.subr.mxu0 0.0
  %1827 = vmatpush1.msra.mxu0 0.0
  %1828 = vmatprep.subr.mxu0 0.0
  %1829 = vmatpush1.msra.mxu0 0.0
  %1830 = vmatprep.subr.mxu0 0.0
  %1831 = vmatpush1.msra.mxu0 0.0
  %1832 = vmatprep.subr.mxu0 0.0
  %1833 = vmatpush1.msra.mxu0 0.0
  %1834 = vmatprep.subr.mxu0 0.0
  %1835 = vmatpush1.msra.mxu0 0.0
  %1836 = vmatprep.subr.mxu0 0.0
  %1837 = vmatpush1.msra.mxu0 0.0
  %1838 = vmatprep.subr.mxu0 0.0
  %1839 = vmatpush1.msra.mxu0 0.0
  %1840 = vmatprep.subr.mxu0 0.0
  %1841 = vmatpush1.msra.mxu0 0.0
  %1842 = vmatprep.subr.mxu0 0.0
  %1843 = vmatpush1.msra.mxu0 0.0
  %1844 = vmatprep.subr.mxu0 0.0
  %1845 = vmatpush1.msra.mxu0 0.0
  %1846 = vmatprep.subr.mxu0 0.0
  %1847 = vmatpush1.msra.mxu0 0.0
  %1848 = vmatprep.mubr.f32.mxu0 0.0
  %1849 = vmatmul.mubr.f32.gmra.mrb[0].mxu0 %v1773
  %v1850 = vpop.f32.mrb[0].mxu0
  %v1851 = vadd.f32 %v1770, %v1850
  %v1852 = vpop.f32.mrb[0].mxu0
  %1853 = vmatprep.mubr.f32.mxu0 0.0
  %1854 = vmatmul.mubr.f32.gmra.mrb[0].mxu0 %v1776
  %v1855 = vpop.f32.mrb[0].mxu0
  %v1856 = vadd.f32 %v1770, %v1855
  %v1857 = vpop.f32.mrb[0].mxu0
  %1858 = vmatprep.mubr.f32.mxu0 0.0
  %1859 = vmatmul.mubr.f32.gmra.mrb[0].mxu0 %v1779
  %v1860 = vpop.f32.mrb[0].mxu0
  %v1861 = vadd.f32 %v1770, %v1860
  %v1862 = vpop.f32.mrb[0].mxu0
  %1863 = vmatprep.mubr.f32.mxu0 0.0
  %1864 = vmatmul.mubr.f32.gmra.mrb[0].mxu0 %v1782
  %v1865 = vpop.f32.mrb[0].mxu0
  %v1866 = vadd.f32 %v1770, %v1865
  %v1867 = vpop.f32.mrb[0].mxu0
  %1868 = vdwg.mxu0
  %v1869 = vld [vmem:[%s1 + $0xaf] sm:$0x1]
  %v1870 = vlaneseq
  %v1871 = vshrl.u32 %v1870, 7
  %v1872 = vsub.s32 0, %v1871
  %v1873 = vrot.slane %v1869, %v1872
  %v1874 = vmul.f32 %v1873, %v1851
  %v1875 = vmul.f32 %v1873, %v1856
  %v1876 = vmul.f32 %v1873, %v1861
  %v1877 = vmul.f32 %v1873, %v1866
  %v1878 = vadd.f32 %v213, %v1874
  %v1879 = vadd.f32 %v214, %v1875
  %v1880 = vadd.f32 %v215, %v1876
  %v1881 = vadd.f32 %v216, %v1877
  %v1882 = vld [vmem:[%s1 + $0xb0] sm:$0x1]
  %v1883 = vld [vmem:[%s1 + $0xb1] sm:$0x1]
  %v1884 = vsel %vm147, %v1878, 0.0
  %1885 = vadd.xlane.f32.xlu0 %v1884
  %v1886 = vpop.xlane.xlu0 %1885
  %v1887 = vsel %vm147, %v1879, 0.0
  %1888 = vadd.xlane.f32.xlu0 %v1887
  %v1889 = vpop.xlane.xlu0 %1888
  %v1890 = vsel %vm147, %v1880, 0.0
  %1891 = vadd.xlane.f32.xlu0 %v1890
  %v1892 = vpop.xlane.xlu0 %1891
  %v1893 = vsel %vm147, %v1881, 0.0
  %1894 = vadd.xlane.f32.xlu0 %v1893
  %v1895 = vpop.xlane.xlu0 %1894
  %v1896 = vmul.f32 %v1886, %v160
  %v1897 = vmul.f32 %v1889, %v160
  %v1898 = vmul.f32 %v1892, %v160
  %v1899 = vmul.f32 %v1895, %v160
  %v1900 = vsub.f32 %v1878, %v1896
  %v1901 = vsub.f32 %v1879, %v1897
  %v1902 = vsub.f32 %v1880, %v1898
  %v1903 = vsub.f32 %v1881, %v1899
  %v1904 = vmul.f32 %v1900, %v1900
  %v1905 = vmul.f32 %v1901, %v1901
  %v1906 = vmul.f32 %v1902, %v1902
  %v1907 = vmul.f32 %v1903, %v1903
  %v1908 = vsel %vm147, %v1904, 0.0
  %1909 = vadd.xlane.f32.xlu0 %v1908
  %v1910 = vpop.xlane.xlu0 %1909
  %v1911 = vsel %vm147, %v1905, 0.0
  %1912 = vadd.xlane.f32.xlu0 %v1911
  %v1913 = vpop.xlane.xlu0 %1912
  %v1914 = vsel %vm147, %v1906, 0.0
  %1915 = vadd.xlane.f32.xlu0 %v1914
  %v1916 = vpop.xlane.xlu0 %1915
  %v1917 = vsel %vm147, %v1907, 0.0
  %1918 = vadd.xlane.f32.xlu0 %v1917
  %v1919 = vpop.xlane.xlu0 %1918
  %v1920 = vmul.f32 %v1910, %v160
  %v1921 = vmul.f32 %v1913, %v160
  %v1922 = vmul.f32 %v1916, %v160
  %v1923 = vmul.f32 %v1919, %v160
  %v1924 = vadd.f32 %v1920, 1e-06
  %v1925 = vadd.f32 %v1921, 1e-06
  %v1926 = vadd.f32 %v1922, 1e-06
  %v1927 = vadd.f32 %v1923, 1e-06
  %v1928 = vrsqrt.pop %v1924
  %v1929 = vrsqrt.pop %v1925
  %v1930 = vrsqrt.pop %v1926
  %v1931 = vrsqrt.pop %v1927
  %v1932 = vmul.f32 %v1900, %v1928
  %v1933 = vmul.f32 %v1901, %v1929
  %v1934 = vmul.f32 %v1902, %v1930
  %v1935 = vmul.f32 %v1903, %v1931
  %v1936 = vlaneseq
  %v1937 = vshrl.u32 %v1936, 7
  %v1938 = vsub.s32 0, %v1937
  %v1939 = vrot.slane %v1882, %v1938
  %v1940 = vmul.f32 %v1932, %v1939
  %v1941 = vmul.f32 %v1933, %v1939
  %v1942 = vmul.f32 %v1934, %v1939
  %v1943 = vmul.f32 %v1935, %v1939
  %v1944 = vlaneseq
  %v1945 = vshrl.u32 %v1944, 7
  %v1946 = vsub.s32 0, %v1945
  %v1947 = vrot.slane %v1883, %v1946
  %v1948 = vadd.f32 %v1940, %v1947
  %v1949 = vadd.f32 %v1941, %v1947
  %v1950 = vadd.f32 %v1942, %v1947
  %v1951 = vadd.f32 %v1943, %v1947
  %1952 = vst.msk [vmem:[#allocation2] sm:$0xff] %vm147, %v1948
  %1953 = vst.msk [vmem:[#allocation2 + $0x8] sm:$0xff] %vm147, %v1949
  %1954 = vst.msk [vmem:[#allocation2 + $0x10] sm:$0xff] %vm147, %v1950
  %1955 = vst.msk [vmem:[#allocation2 + $0x18] sm:$0xff] %vm147, %v1951
  %v1956 = vld [vmem:[#allocation2] ss:$2 sm:$0x3]
  %s1957 = scalar_lea.vmem [#allocation2], 1
  %v1958 = vld [vmem:[%s1957] ss:$2 sm:$0x3]
  %s1959 = scalar_lea.vmem [#allocation2], 4
  %v1960 = vld [vmem:[%s1959] ss:$2 sm:$0x3]
  %s1961 = scalar_lea.vmem [#allocation2], 5
  %v1962 = vld [vmem:[%s1961] ss:$2 sm:$0x3]
  %1964 = vrot.lane.b32.xlu0 %v1958, 16
  %v1965 = vpop.permute.xlu0 %1964
  %1968 = vrot.lane.b32.xlu0 %v1960, 32
  %v1969 = vpop.permute.xlu0 %1968
  %1972 = vrot.lane.b32.xlu0 %v1962, 48
  %v1973 = vpop.permute.xlu0 %1972
  %v1975 = vsel %vm147, %v1956, %v1965
  %vm1976 = vcmask 261120
  %v1977 = vsel %vm1976, %v1975, %v1969
  %v1978 = vsel %vm47, %v1977, %v1973
  %s1979 = scalar_lea.vmem [#allocation2], 8
  %v1980 = vld [vmem:[%s1979] ss:$2 sm:$0x3]
  %s1981 = scalar_lea.vmem [#allocation2], 9
  %v1982 = vld [vmem:[%s1981] ss:$2 sm:$0x3]
  %s1983 = scalar_lea.vmem [#allocation2], 12
  %v1984 = vld [vmem:[%s1983] ss:$2 sm:$0x3]
  %s1985 = scalar_lea.vmem [#allocation2], 13
  %v1986 = vld [vmem:[%s1985] ss:$2 sm:$0x3]
  %1988 = vrot.lane.b32.xlu0 %v1982, 16
  %v1989 = vpop.permute.xlu0 %1988
  %1992 = vrot.lane.b32.xlu0 %v1984, 32
  %v1993 = vpop.permute.xlu0 %1992
  %1996 = vrot.lane.b32.xlu0 %v1986, 48
  %v1997 = vpop.permute.xlu0 %1996
  %v1999 = vsel %vm147, %v1980, %v1989
  %v2000 = vsel %vm1976, %v1999, %v1993
  %v2001 = vsel %vm47, %v2000, %v1997
  %s2002 = scalar_lea.vmem [#allocation2], 16
  %v2003 = vld [vmem:[%s2002] ss:$2 sm:$0x3]
  %s2004 = scalar_lea.vmem [#allocation2], 17
  %v2005 = vld [vmem:[%s2004] ss:$2 sm:$0x3]
  %s2006 = scalar_lea.vmem [#allocation2], 20
  %v2007 = vld [vmem:[%s2006] ss:$2 sm:$0x3]
  %s2008 = scalar_lea.vmem [#allocation2], 21
  %v2009 = vld [vmem:[%s2008] ss:$2 sm:$0x3]
  %2011 = vrot.lane.b32.xlu0 %v2005, 16
  %v2012 = vpop.permute.xlu0 %2011
  %2015 = vrot.lane.b32.xlu0 %v2007, 32
  %v2016 = vpop.permute.xlu0 %2015
  %2019 = vrot.lane.b32.xlu0 %v2009, 48
  %v2020 = vpop.permute.xlu0 %2019
  %v2022 = vsel %vm147, %v2003, %v2012
  %v2023 = vsel %vm1976, %v2022, %v2016
  %v2024 = vsel %vm47, %v2023, %v2020
  %s2025 = scalar_lea.vmem [#allocation2], 24
  %v2026 = vld [vmem:[%s2025] ss:$2 sm:$0x3]
  %s2027 = scalar_lea.vmem [#allocation2], 25
  %v2028 = vld [vmem:[%s2027] ss:$2 sm:$0x3]
  %s2029 = scalar_lea.vmem [#allocation2], 28
  %v2030 = vld [vmem:[%s2029] ss:$2 sm:$0x3]
  %s2031 = scalar_lea.vmem [#allocation2], 29
  %v2032 = vld [vmem:[%s2031] ss:$2 sm:$0x3]
  %2034 = vrot.lane.b32.xlu0 %v2028, 16
  %v2035 = vpop.permute.xlu0 %2034
  %2038 = vrot.lane.b32.xlu0 %v2030, 32
  %v2039 = vpop.permute.xlu0 %2038
  %2042 = vrot.lane.b32.xlu0 %v2032, 48
  %v2043 = vpop.permute.xlu0 %2042
  %v2045 = vsel %vm147, %v2026, %v2035
  %v2046 = vsel %vm1976, %v2045, %v2039
  %v2047 = vsel %vm47, %v2046, %v2043
  %v2049 = vrot.slane %v2001, 6
  %v2052 = vrot.slane %v2024, 4
  %v2055 = vrot.slane %v2047, 2
  %vm2057 = vcmask 1041408
  %v2058 = vsel %vm2057, %v1978, %v2049
  %v2059 = vsel %vm1454, %v2058, %v2052
  %vm2060 = vcmask 1045504
  %v2061 = vsel %vm2060, %v2059, %v2055
  %v2062 = vld [vmem:[%s3] sm:$0xff]
  %v2063 = vld [vmem:[%s3 + $0x8] sm:$0xff]
  %v2064 = vld [vmem:[%s3 + $0x10] sm:$0xff]
  %v2065 = vld [vmem:[%s3 + $0x18] sm:$0xff]
  %v2066 = vld [vmem:[%s3 + $0x20] sm:$0xff]
  %v2067 = vld [vmem:[%s3 + $0x28] sm:$0xff]
  %v2068 = vld [vmem:[%s3 + $0x30] sm:$0xff]
  %v2069 = vld [vmem:[%s3 + $0x38] sm:$0xff]
  %v2070 = vld [vmem:[%s3 + $0xb8] sm:$0x1]
  %v2071 = vlaneseq
  %v2072 = vshrl.u32 %v2071, 7
  %v2073 = vsub.s32 0, %v2072
  %v2074 = vrot.slane %v2070, %v2073
  %v2076 = vsel %vm1771, %v2061, 0
  %2078 = vmatprep.subr.mxu0 0.0
  %2079 = vmatpush1.msra.mxu0 %v2062
  %2080 = vmatprep.subr.mxu0 0.0
  %2081 = vmatpush1.msra.mxu0 %v2063
  %2082 = vmatprep.subr.mxu0 0.0
  %2083 = vmatpush1.msra.mxu0 %v2064
  %2084 = vmatprep.subr.mxu0 0.0
  %2085 = vmatpush1.msra.mxu0 %v2065
  %2086 = vmatprep.subr.mxu0 0.0
  %2087 = vmatpush1.msra.mxu0 %v2066
  %2088 = vmatprep.subr.mxu0 0.0
  %2089 = vmatpush1.msra.mxu0 %v2067
  %2090 = vmatprep.subr.mxu0 0.0
  %2091 = vmatpush1.msra.mxu0 %v2068
  %2092 = vmatprep.subr.mxu0 0.0
  %2093 = vmatpush1.msra.mxu0 %v2069
  %2094 = vmatprep.subr.mxu0 0.0
  %2095 = vmatpush1.msra.mxu0 0.0
  %2096 = vmatprep.subr.mxu0 0.0
  %2097 = vmatpush1.msra.mxu0 0.0
  %2098 = vmatprep.subr.mxu0 0.0
  %2099 = vmatpush1.msra.mxu0 0.0
  %2100 = vmatprep.subr.mxu0 0.0
  %2101 = vmatpush1.msra.mxu0 0.0
  %2102 = vmatprep.subr.mxu0 0.0
  %2103 = vmatpush1.msra.mxu0 0.0
  %2104 = vmatprep.subr.mxu0 0.0
  %2105 = vmatpush1.msra.mxu0 0.0
  %2106 = vmatprep.subr.mxu0 0.0
  %2107 = vmatpush1.msra.mxu0 0.0
  %2108 = vmatprep.subr.mxu0 0.0
  %2109 = vmatpush1.msra.mxu0 0.0
  %2110 = vmatprep.subr.mxu0 0.0
  %2111 = vmatpush1.msra.mxu0 0.0
  %2112 = vmatprep.subr.mxu0 0.0
  %2113 = vmatpush1.msra.mxu0 0.0
  %2114 = vmatprep.subr.mxu0 0.0
  %2115 = vmatpush1.msra.mxu0 0.0
  %2116 = vmatprep.subr.mxu0 0.0
  %2117 = vmatpush1.msra.mxu0 0.0
  %2118 = vmatprep.subr.mxu0 0.0
  %2119 = vmatpush1.msra.mxu0 0.0
  %2120 = vmatprep.subr.mxu0 0.0
  %2121 = vmatpush1.msra.mxu0 0.0
  %2122 = vmatprep.subr.mxu0 0.0
  %2123 = vmatpush1.msra.mxu0 0.0
  %2124 = vmatprep.subr.mxu0 0.0
  %2125 = vmatpush1.msra.mxu0 0.0
  %2126 = vmatprep.subr.mxu0 0.0
  %2127 = vmatpush1.msra.mxu0 0.0
  %2128 = vmatprep.subr.mxu0 0.0
  %2129 = vmatpush1.msra.mxu0 0.0
  %2130 = vmatprep.subr.mxu0 0.0
  %2131 = vmatpush1.msra.mxu0 0.0
  %2132 = vmatprep.subr.mxu0 0.0
  %2133 = vmatpush1.msra.mxu0 0.0
  %2134 = vmatprep.subr.mxu0 0.0
  %2135 = vmatpush1.msra.mxu0 0.0
  %2136 = vmatprep.subr.mxu0 0.0
  %2137 = vmatpush1.msra.mxu0 0.0
  %2138 = vmatprep.subr.mxu0 0.0
  %2139 = vmatpush1.msra.mxu0 0.0
  %2140 = vmatprep.subr.mxu0 0.0
  %2141 = vmatpush1.msra.mxu0 0.0
  %2142 = vmatprep.mubr.f32.mxu0 0.0
  %2143 = vmatmul.mubr.f32.gmra.mrb[0].mxu0 %v2076
  %v2144 = vpop.f32.mrb[0].mxu0
  %v2145 = vadd.f32 %v2074, %v2144
  %v2146 = vpop.f32.mrb[0].mxu0
  %2147 = vdwg.mxu0
  %2148 = vst.msk [vmem:[#allocation3] sm:$0xff] %vm147, 0.0
  %2149 = vst.msk [vmem:[#allocation3 + $0x8] sm:$0xff] %vm147, 0.0
  %2150 = vst.msk [vmem:[#allocation3 + $0x10] sm:$0xff] %vm147, 0.0
  %2151 = vst.msk [vmem:[#allocation3 + $0x18] sm:$0xff] %vm147, 0.0
  %2152 = vst.msk [vmem:[#allocation3 + $0x20] sm:$0xff] %vm147, 0.0
  %2153 = vst.msk [vmem:[#allocation3 + $0x28] sm:$0xff] %vm147, 0.0
  %2154 = vst.msk [vmem:[#allocation3 + $0x30] sm:$0xff] %vm147, 0.0
  %vm2155 = vcmask 123904
  %2156 = vst.msk [vmem:[#allocation3 + $0x38] sm:$0x3] %vm2155, %v2145
  %vm2157 = vcmask 128000
  %2158 = vst.msk [vmem:[#allocation3 + $0x3a] sm:$0x3f] %vm2157, 0.0
  %vm2159 = vcmask 125954
  %2160 = vst.msk [vmem:[#allocation3 + $0x3e] sm:$0xc] %vm2159, %v2145
  %2161 = vst.msk [vmem:[#allocation3 + $0x42] sm:$0xff] %vm147, 0.0
  %2162 = vst.msk [vmem:[#allocation3 + $0x4a] sm:$0xff] %vm147, 0.0
  %2163 = vst.msk [vmem:[#allocation3 + $0x52] sm:$0xff] %vm147, 0.0
  %2164 = vst.msk [vmem:[#allocation3 + $0x5a] sm:$0xff] %vm147, 0.0
  %2165 = vst.msk [vmem:[#allocation3 + $0x62] sm:$0xff] %vm147, 0.0
  %2166 = vst.msk [vmem:[#allocation3 + $0x6a] sm:$0xff] %vm147, 0.0
  %2167 = vst.msk [vmem:[#allocation3 + $0x72] sm:$0x3f] %vm2157, 0.0
  %vm2168 = vcmask 128004
  %2169 = vst.msk [vmem:[#allocation3 + $0x74] sm:$0x30] %vm2168, %v2145
  %2170 = vst.msk [vmem:[#allocation3 + $0x7a] sm:$0x3f] %vm2157, 0.0
  %vm2171 = vcmask 130054
  %2172 = vst.msk [vmem:[#allocation3 + $0x7a] sm:$0xc0] %vm2171, %v2145
  %2173 = vst.msk [vmem:[#allocation3 + $0x82] sm:$0xff] %vm147, 0.0
  %2174 = vst.msk [vmem:[#allocation3 + $0x8a] sm:$0xff] %vm147, 0.0
  %2175 = vst.msk [vmem:[#allocation3 + $0x92] sm:$0xff] %vm147, 0.0
  %2176 = vst.msk [vmem:[#allocation3 + $0x9a] sm:$0xff] %vm147, 0.0
  %2177 = vst.msk [vmem:[#allocation3 + $0xa2] sm:$0xff] %vm147, 0.0
  %2178 = vst.msk [vmem:[#allocation3 + $0xaa] sm:$0xff] %vm147, 0.0
  %2179 = vst.msk [vmem:[#allocation3 + $0xb2] sm:$0xff] %vm147, 0.0
  %2180 = vst.msk [vmem:[#allocation3 + $0xba] sm:$0x3f] %vm2157, 0.0
  %v2181 = vld [vmem:[%s3 + $0x80] sm:$0x1]
  %v2182 = vld [vmem:[#allocation3 + $0x1d] sm:$0xff]
  %v2183 = vld [vmem:[#allocation3 + $0x25] sm:$0xff]
  %v2184 = vld [vmem:[#allocation3 + $0x5d] sm:$0xff]
  %v2185 = vld [vmem:[#allocation3 + $0x65] sm:$0xff]
  %v2186 = vlaneseq
  %v2187 = vshrl.u32 %v2186, 7
  %v2188 = vsub.s32 0, %v2187
  %v2189 = vrot.slane %v2181, %v2188
  %v2190 = vmul.f32 %v2182, %v2189
  %v2191 = vmul.f32 %v2183, %v2189
  %v2192 = vmul.f32 %v2184, %v2189
  %v2193 = vmul.f32 %v2185, %v2189
  %v2194 = vld [vmem:[%s3 + $0x81] sm:$0x1]
  %v2195 = vld [vmem:[#allocation3 + $0x1e] sm:$0xff]
  %v2196 = vld [vmem:[#allocation3 + $0x26] sm:$0xff]
  %v2197 = vld [vmem:[#allocation3 + $0x5e] sm:$0xff]
  %v2198 = vld [vmem:[#allocation3 + $0x66] sm:$0xff]
  %v2199 = vlaneseq
  %v2200 = vshrl.u32 %v2199, 7
  %v2201 = vsub.s32 0, %v2200
  %v2202 = vrot.slane %v2194, %v2201
  %v2203 = vmul.f32 %v2195, %v2202
  %v2204 = vmul.f32 %v2196, %v2202
  %v2205 = vmul.f32 %v2197, %v2202
  %v2206 = vmul.f32 %v2198, %v2202
  %v2207 = vadd.f32 %v2190, %v2203
  %v2208 = vadd.f32 %v2191, %v2204
  %v2209 = vadd.f32 %v2192, %v2205
  %v2210 = vadd.f32 %v2193, %v2206
  %v2211 = vld [vmem:[%s3 + $0x82] sm:$0x1]
  %v2212 = vld [vmem:[#allocation3 + $0x1f] sm:$0xff]
  %v2213 = vld [vmem:[#allocation3 + $0x27] sm:$0xff]
  %v2214 = vld [vmem:[#allocation3 + $0x5f] sm:$0xff]
  %v2215 = vld [vmem:[#allocation3 + $0x67] sm:$0xff]
  %v2216 = vlaneseq
  %v2217 = vshrl.u32 %v2216, 7
  %v2218 = vsub.s32 0, %v2217
  %v2219 = vrot.slane %v2211, %v2218
  %v2220 = vmul.f32 %v2212, %v2219
  %v2221 = vmul.f32 %v2213, %v2219
  %v2222 = vmul.f32 %v2214, %v2219
  %v2223 = vmul.f32 %v2215, %v2219
  %v2224 = vadd.f32 %v2207, %v2220
  %v2225 = vadd.f32 %v2208, %v2221
  %v2226 = vadd.f32 %v2209, %v2222
  %v2227 = vadd.f32 %v2210, %v2223
  %v2228 = vld [vmem:[%s3 + $0x83] sm:$0x1]
  %v2229 = vld [vmem:[#allocation3 + $0x20] sm:$0xff]
  %v2230 = vld [vmem:[#allocation3 + $0x28] sm:$0xff]
  %v2231 = vld [vmem:[#allocation3 + $0x60] sm:$0xff]
  %v2232 = vld [vmem:[#allocation3 + $0x68] sm:$0xff]
  %v2233 = vlaneseq
  %v2234 = vshrl.u32 %v2233, 7
  %v2235 = vsub.s32 0, %v2234
  %v2236 = vrot.slane %v2228, %v2235
  %v2237 = vmul.f32 %v2229, %v2236
  %v2238 = vmul.f32 %v2230, %v2236
  %v2239 = vmul.f32 %v2231, %v2236
  %v2240 = vmul.f32 %v2232, %v2236
  %v2241 = vadd.f32 %v2224, %v2237
  %v2242 = vadd.f32 %v2225, %v2238
  %v2243 = vadd.f32 %v2226, %v2239
  %v2244 = vadd.f32 %v2227, %v2240
  %v2245 = vld [vmem:[%s3 + $0x84] sm:$0x1]
  %v2246 = vld [vmem:[#allocation3 + $0x21] sm:$0xff]
  %v2247 = vld [vmem:[#allocation3 + $0x29] sm:$0xff]
  %v2248 = vld [vmem:[#allocation3 + $0x61] sm:$0xff]
  %v2249 = vld [vmem:[#allocation3 + $0x69] sm:$0xff]
  %v2250 = vlaneseq
  %v2251 = vshrl.u32 %v2250, 7
  %v2252 = vsub.s32 0, %v2251
  %v2253 = vrot.slane %v2245, %v2252
  %v2254 = vmul.f32 %v2246, %v2253
  %v2255 = vmul.f32 %v2247, %v2253
  %v2256 = vmul.f32 %v2248, %v2253
  %v2257 = vmul.f32 %v2249, %v2253
  %v2258 = vadd.f32 %v2241, %v2254
  %v2259 = vadd.f32 %v2242, %v2255
  %v2260 = vadd.f32 %v2243, %v2256
  %v2261 = vadd.f32 %v2244, %v2257
  %v2262 = vld [vmem:[%s3 + $0x85] sm:$0x1]
  %v2263 = vld [vmem:[#allocation3 + $0x22] sm:$0xff]
  %v2264 = vld [vmem:[#allocation3 + $0x2a] sm:$0xff]
  %v2265 = vld [vmem:[#allocation3 + $0x62] sm:$0xff]
  %v2266 = vld [vmem:[#allocation3 + $0x6a] sm:$0xff]
  %v2267 = vlaneseq
  %v2268 = vshrl.u32 %v2267, 7
  %v2269 = vsub.s32 0, %v2268
  %v2270 = vrot.slane %v2262, %v2269
  %v2271 = vmul.f32 %v2263, %v2270
  %v2272 = vmul.f32 %v2264, %v2270
  %v2273 = vmul.f32 %v2265, %v2270
  %v2274 = vmul.f32 %v2266, %v2270
  %v2275 = vadd.f32 %v2258, %v2271
  %v2276 = vadd.f32 %v2259, %v2272
  %v2277 = vadd.f32 %v2260, %v2273
  %v2278 = vadd.f32 %v2261, %v2274
  %v2279 = vld [vmem:[%s3 + $0x86] sm:$0x1]
  %v2280 = vld [vmem:[#allocation3 + $0x23] sm:$0xff]
  %v2281 = vld [vmem:[#allocation3 + $0x2b] sm:$0xff]
  %v2282 = vld [vmem:[#allocation3 + $0x63] sm:$0xff]
  %v2283 = vld [vmem:[#allocation3 + $0x6b] sm:$0xff]
  %v2284 = vlaneseq
  %v2285 = vshrl.u32 %v2284, 7
  %v2286 = vsub.s32 0, %v2285
  %v2287 = vrot.slane %v2279, %v2286
  %v2288 = vmul.f32 %v2280, %v2287
  %v2289 = vmul.f32 %v2281, %v2287
  %v2290 = vmul.f32 %v2282, %v2287
  %v2291 = vmul.f32 %v2283, %v2287
  %v2292 = vadd.f32 %v2275, %v2288
  %v2293 = vadd.f32 %v2276, %v2289
  %v2294 = vadd.f32 %v2277, %v2290
  %v2295 = vadd.f32 %v2278, %v2291
  %v2296 = vld [vmem:[%s3 + $0x87] sm:$0x1]
  %v2297 = vld [vmem:[#allocation3 + $0x2d] sm:$0xff]
  %v2298 = vld [vmem:[#allocation3 + $0x6d] sm:$0xff]
  %v2299 = vlaneseq
  %v2300 = vshrl.u32 %v2299, 7
  %v2301 = vsub.s32 0, %v2300
  %v2302 = vrot.slane %v2296, %v2301
  %v2303 = vmul.f32 %v2183, %v2302
  %v2304 = vmul.f32 %v2297, %v2302
  %v2305 = vmul.f32 %v2185, %v2302
  %v2306 = vmul.f32 %v2298, %v2302
  %v2307 = vadd.f32 %v2292, %v2303
  %v2308 = vadd.f32 %v2293, %v2304
  %v2309 = vadd.f32 %v2294, %v2305
  %v2310 = vadd.f32 %v2295, %v2306
  %v2311 = vld [vmem:[%s3 + $0x88] sm:$0x1]
  %v2312 = vld [vmem:[#allocation3 + $0x2e] sm:$0xff]
  %v2313 = vld [vmem:[#allocation3 + $0x6e] sm:$0xff]
  %v2314 = vlaneseq
  %v2315 = vshrl.u32 %v2314, 7
  %v2316 = vsub.s32 0, %v2315
  %v2317 = vrot.slane %v2311, %v2316
  %v2318 = vmul.f32 %v2196, %v2317
  %v2319 = vmul.f32 %v2312, %v2317
  %v2320 = vmul.f32 %v2198, %v2317
  %v2321 = vmul.f32 %v2313, %v2317
  %v2322 = vadd.f32 %v2307, %v2318
  %v2323 = vadd.f32 %v2308, %v2319
  %v2324 = vadd.f32 %v2309, %v2320
  %v2325 = vadd.f32 %v2310, %v2321
  %v2326 = vld [vmem:[%s3 + $0x89] sm:$0x1]
  %v2327 = vld [vmem:[#allocation3 + $0x2f] sm:$0xff]
  %v2328 = vld [vmem:[#allocation3 + $0x6f] sm:$0xff]
  %v2329 = vlaneseq
  %v2330 = vshrl.u32 %v2329, 7
  %v2331 = vsub.s32 0, %v2330
  %v2332 = vrot.slane %v2326, %v2331
  %v2333 = vmul.f32 %v2213, %v2332
  %v2334 = vmul.f32 %v2327, %v2332
  %v2335 = vmul.f32 %v2215, %v2332
  %v2336 = vmul.f32 %v2328, %v2332
  %v2337 = vadd.f32 %v2322, %v2333
  %v2338 = vadd.f32 %v2323, %v2334
  %v2339 = vadd.f32 %v2324, %v2335
  %v2340 = vadd.f32 %v2325, %v2336
  %v2341 = vld [vmem:[%s3 + $0x8a] sm:$0x1]
  %v2342 = vld [vmem:[#allocation3 + $0x30] sm:$0xff]
  %v2343 = vld [vmem:[#allocation3 + $0x70] sm:$0xff]
  %v2344 = vlaneseq
  %v2345 = vshrl.u32 %v2344, 7
  %v2346 = vsub.s32 0, %v2345
  %v2347 = vrot.slane %v2341, %v2346
  %v2348 = vmul.f32 %v2230, %v2347
  %v2349 = vmul.f32 %v2342, %v2347
  %v2350 = vmul.f32 %v2232, %v2347
  %v2351 = vmul.f32 %v2343, %v2347
  %v2352 = vadd.f32 %v2337, %v2348
  %v2353 = vadd.f32 %v2338, %v2349
  %v2354 = vadd.f32 %v2339, %v2350
  %v2355 = vadd.f32 %v2340, %v2351
  %v2356 = vld [vmem:[%s3 + $0x8b] sm:$0x1]
  %v2357 = vld [vmem:[#allocation3 + $0x31] sm:$0xff]
  %v2358 = vld [vmem:[#allocation3 + $0x71] sm:$0xff]
  %v2359 = vlaneseq
  %v2360 = vshrl.u32 %v2359, 7
  %v2361 = vsub.s32 0, %v2360
  %v2362 = vrot.slane %v2356, %v2361
  %v2363 = vmul.f32 %v2247, %v2362
  %v2364 = vmul.f32 %v2357, %v2362
  %v2365 = vmul.f32 %v2249, %v2362
  %v2366 = vmul.f32 %v2358, %v2362
  %v2367 = vadd.f32 %v2352, %v2363
  %v2368 = vadd.f32 %v2353, %v2364
  %v2369 = vadd.f32 %v2354, %v2365
  %v2370 = vadd.f32 %v2355, %v2366
  %v2371 = vld [vmem:[%s3 + $0x8c] sm:$0x1]
  %v2372 = vld [vmem:[#allocation3 + $0x32] sm:$0xff]
  %v2373 = vld [vmem:[#allocation3 + $0x72] sm:$0xff]
  %v2374 = vlaneseq
  %v2375 = vshrl.u32 %v2374, 7
  %v2376 = vsub.s32 0, %v2375
  %v2377 = vrot.slane %v2371, %v2376
  %v2378 = vmul.f32 %v2264, %v2377
  %v2379 = vmul.f32 %v2372, %v2377
  %v2380 = vmul.f32 %v2266, %v2377
  %v2381 = vmul.f32 %v2373, %v2377
  %v2382 = vadd.f32 %v2367, %v2378
  %v2383 = vadd.f32 %v2368, %v2379
  %v2384 = vadd.f32 %v2369, %v2380
  %v2385 = vadd.f32 %v2370, %v2381
  %v2386 = vld [vmem:[%s3 + $0x8d] sm:$0x1]
  %v2387 = vld [vmem:[#allocation3 + $0x33] sm:$0xff]
  %v2388 = vld [vmem:[#allocation3 + $0x73] sm:$0xff]
  %v2389 = vlaneseq
  %v2390 = vshrl.u32 %v2389, 7
  %v2391 = vsub.s32 0, %v2390
  %v2392 = vrot.slane %v2386, %v2391
  %v2393 = vmul.f32 %v2281, %v2392
  %v2394 = vmul.f32 %v2387, %v2392
  %v2395 = vmul.f32 %v2283, %v2392
  %v2396 = vmul.f32 %v2388, %v2392
  %v2397 = vadd.f32 %v2382, %v2393
  %v2398 = vadd.f32 %v2383, %v2394
  %v2399 = vadd.f32 %v2384, %v2395
  %v2400 = vadd.f32 %v2385, %v2396
  %v2401 = vld [vmem:[%s3 + $0x8e] sm:$0x1]
  %v2402 = vld [vmem:[#allocation3 + $0x35] sm:$0xff]
  %v2403 = vld [vmem:[#allocation3 + $0x75] sm:$0xff]
  %v2404 = vlaneseq
  %v2405 = vshrl.u32 %v2404, 7
  %v2406 = vsub.s32 0, %v2405
  %v2407 = vrot.slane %v2401, %v2406
  %v2408 = vmul.f32 %v2297, %v2407
  %v2409 = vmul.f32 %v2402, %v2407
  %v2410 = vmul.f32 %v2298, %v2407
  %v2411 = vmul.f32 %v2403, %v2407
  %v2412 = vadd.f32 %v2397, %v2408
  %v2413 = vadd.f32 %v2398, %v2409
  %v2414 = vadd.f32 %v2399, %v2410
  %v2415 = vadd.f32 %v2400, %v2411
  %v2416 = vld [vmem:[%s3 + $0x8f] sm:$0x1]
  %v2417 = vld [vmem:[#allocation3 + $0x36] sm:$0xff]
  %v2418 = vld [vmem:[#allocation3 + $0x76] sm:$0xff]
  %v2419 = vlaneseq
  %v2420 = vshrl.u32 %v2419, 7
  %v2421 = vsub.s32 0, %v2420
  %v2422 = vrot.slane %v2416, %v2421
  %v2423 = vmul.f32 %v2312, %v2422
  %v2424 = vmul.f32 %v2417, %v2422
  %v2425 = vmul.f32 %v2313, %v2422
  %v2426 = vmul.f32 %v2418, %v2422
  %v2427 = vadd.f32 %v2412, %v2423
  %v2428 = vadd.f32 %v2413, %v2424
  %v2429 = vadd.f32 %v2414, %v2425
  %v2430 = vadd.f32 %v2415, %v2426
  %v2431 = vld [vmem:[%s3 + $0x90] sm:$0x1]
  %v2432 = vld [vmem:[#allocation3 + $0x37] sm:$0xff]
  %v2433 = vld [vmem:[#allocation3 + $0x77] sm:$0xff]
  %v2434 = vlaneseq
  %v2435 = vshrl.u32 %v2434, 7
  %v2436 = vsub.s32 0, %v2435
  %v2437 = vrot.slane %v2431, %v2436
  %v2438 = vmul.f32 %v2327, %v2437
  %v2439 = vmul.f32 %v2432, %v2437
  %v2440 = vmul.f32 %v2328, %v2437
  %v2441 = vmul.f32 %v2433, %v2437
  %v2442 = vadd.f32 %v2427, %v2438
  %v2443 = vadd.f32 %v2428, %v2439
  %v2444 = vadd.f32 %v2429, %v2440
  %v2445 = vadd.f32 %v2430, %v2441
  %v2446 = vld [vmem:[%s3 + $0x91] sm:$0x1]
  %v2447 = vld [vmem:[#allocation3 + $0x38] sm:$0xff]
  %v2448 = vld [vmem:[#allocation3 + $0x78] sm:$0xff]
  %v2449 = vlaneseq
  %v2450 = vshrl.u32 %v2449, 7
  %v2451 = vsub.s32 0, %v2450
  %v2452 = vrot.slane %v2446, %v2451
  %v2453 = vmul.f32 %v2342, %v2452
  %v2454 = vmul.f32 %v2447, %v2452
  %v2455 = vmul.f32 %v2343, %v2452
  %v2456 = vmul.f32 %v2448, %v2452
  %v2457 = vadd.f32 %v2442, %v2453
  %v2458 = vadd.f32 %v2443, %v2454
  %v2459 = vadd.f32 %v2444, %v2455
  %v2460 = vadd.f32 %v2445, %v2456
  %v2461 = vld [vmem:[%s3 + $0x92] sm:$0x1]
  %v2462 = vld [vmem:[#allocation3 + $0x39] sm:$0xff]
  %v2463 = vld [vmem:[#allocation3 + $0x79] sm:$0xff]
  %v2464 = vlaneseq
  %v2465 = vshrl.u32 %v2464, 7
  %v2466 = vsub.s32 0, %v2465
  %v2467 = vrot.slane %v2461, %v2466
  %v2468 = vmul.f32 %v2357, %v2467
  %v2469 = vmul.f32 %v2462, %v2467
  %v2470 = vmul.f32 %v2358, %v2467
  %v2471 = vmul.f32 %v2463, %v2467
  %v2472 = vadd.f32 %v2457, %v2468
  %v2473 = vadd.f32 %v2458, %v2469
  %v2474 = vadd.f32 %v2459, %v2470
  %v2475 = vadd.f32 %v2460, %v2471
  %v2476 = vld [vmem:[%s3 + $0x93] sm:$0x1]
  %v2477 = vld [vmem:[#allocation3 + $0x3a] sm:$0xff]
  %v2478 = vld [vmem:[#allocation3 + $0x7a] sm:$0xff]
  %v2479 = vlaneseq
  %v2480 = vshrl.u32 %v2479, 7
  %v2481 = vsub.s32 0, %v2480
  %v2482 = vrot.slane %v2476, %v2481
  %v2483 = vmul.f32 %v2372, %v2482
  %v2484 = vmul.f32 %v2477, %v2482
  %v2485 = vmul.f32 %v2373, %v2482
  %v2486 = vmul.f32 %v2478, %v2482
  %v2487 = vadd.f32 %v2472, %v2483
  %v2488 = vadd.f32 %v2473, %v2484
  %v2489 = vadd.f32 %v2474, %v2485
  %v2490 = vadd.f32 %v2475, %v2486
  %v2491 = vld [vmem:[%s3 + $0x94] sm:$0x1]
  %v2492 = vld [vmem:[#allocation3 + $0x3b] sm:$0xff]
  %v2493 = vld [vmem:[#allocation3 + $0x7b] sm:$0xff]
  %v2494 = vlaneseq
  %v2495 = vshrl.u32 %v2494, 7
  %v2496 = vsub.s32 0, %v2495
  %v2497 = vrot.slane %v2491, %v2496
  %v2498 = vmul.f32 %v2387, %v2497
  %v2499 = vmul.f32 %v2492, %v2497
  %v2500 = vmul.f32 %v2388, %v2497
  %v2501 = vmul.f32 %v2493, %v2497
  %v2502 = vadd.f32 %v2487, %v2498
  %v2503 = vadd.f32 %v2488, %v2499
  %v2504 = vadd.f32 %v2489, %v2500
  %v2505 = vadd.f32 %v2490, %v2501
  %v2506 = vld [vmem:[%s3 + $0x95] sm:$0x1]
  %v2507 = vld [vmem:[#allocation3 + $0x3d] sm:$0xff]
  %v2508 = vld [vmem:[#allocation3 + $0x7d] sm:$0xff]
  %v2509 = vlaneseq
  %v2510 = vshrl.u32 %v2509, 7
  %v2511 = vsub.s32 0, %v2510
  %v2512 = vrot.slane %v2506, %v2511
  %v2513 = vmul.f32 %v2402, %v2512
  %v2514 = vmul.f32 %v2507, %v2512
  %v2515 = vmul.f32 %v2403, %v2512
  %v2516 = vmul.f32 %v2508, %v2512
  %v2517 = vadd.f32 %v2502, %v2513
  %v2518 = vadd.f32 %v2503, %v2514
  %v2519 = vadd.f32 %v2504, %v2515
  %v2520 = vadd.f32 %v2505, %v2516
  %v2521 = vld [vmem:[%s3 + $0x96] sm:$0x1]
  %v2522 = vld [vmem:[#allocation3 + $0x3e] sm:$0xff]
  %v2523 = vld [vmem:[#allocation3 + $0x7e] sm:$0xff]
  %v2524 = vlaneseq
  %v2525 = vshrl.u32 %v2524, 7
  %v2526 = vsub.s32 0, %v2525
  %v2527 = vrot.slane %v2521, %v2526
  %v2528 = vmul.f32 %v2417, %v2527
  %v2529 = vmul.f32 %v2522, %v2527
  %v2530 = vmul.f32 %v2418, %v2527
  %v2531 = vmul.f32 %v2523, %v2527
  %v2532 = vadd.f32 %v2517, %v2528
  %v2533 = vadd.f32 %v2518, %v2529
  %v2534 = vadd.f32 %v2519, %v2530
  %v2535 = vadd.f32 %v2520, %v2531
  %v2536 = vld [vmem:[%s3 + $0x97] sm:$0x1]
  %v2537 = vld [vmem:[#allocation3 + $0x3f] sm:$0xff]
  %v2538 = vld [vmem:[#allocation3 + $0x7f] sm:$0xff]
  %v2539 = vlaneseq
  %v2540 = vshrl.u32 %v2539, 7
  %v2541 = vsub.s32 0, %v2540
  %v2542 = vrot.slane %v2536, %v2541
  %v2543 = vmul.f32 %v2432, %v2542
  %v2544 = vmul.f32 %v2537, %v2542
  %v2545 = vmul.f32 %v2433, %v2542
  %v2546 = vmul.f32 %v2538, %v2542
  %v2547 = vadd.f32 %v2532, %v2543
  %v2548 = vadd.f32 %v2533, %v2544
  %v2549 = vadd.f32 %v2534, %v2545
  %v2550 = vadd.f32 %v2535, %v2546
  %v2551 = vld [vmem:[%s3 + $0x98] sm:$0x1]
  %v2552 = vld [vmem:[#allocation3 + $0x40] sm:$0xff]
  %v2553 = vld [vmem:[#allocation3 + $0x80] sm:$0xff]
  %v2554 = vlaneseq
  %v2555 = vshrl.u32 %v2554, 7
  %v2556 = vsub.s32 0, %v2555
  %v2557 = vrot.slane %v2551, %v2556
  %v2558 = vmul.f32 %v2447, %v2557
  %v2559 = vmul.f32 %v2552, %v2557
  %v2560 = vmul.f32 %v2448, %v2557
  %v2561 = vmul.f32 %v2553, %v2557
  %v2562 = vadd.f32 %v2547, %v2558
  %v2563 = vadd.f32 %v2548, %v2559
  %v2564 = vadd.f32 %v2549, %v2560
  %v2565 = vadd.f32 %v2550, %v2561
  %v2566 = vld [vmem:[%s3 + $0x99] sm:$0x1]
  %v2567 = vld [vmem:[#allocation3 + $0x41] sm:$0xff]
  %v2568 = vld [vmem:[#allocation3 + $0x81] sm:$0xff]
  %v2569 = vlaneseq
  %v2570 = vshrl.u32 %v2569, 7
  %v2571 = vsub.s32 0, %v2570
  %v2572 = vrot.slane %v2566, %v2571
  %v2573 = vmul.f32 %v2462, %v2572
  %v2574 = vmul.f32 %v2567, %v2572
  %v2575 = vmul.f32 %v2463, %v2572
  %v2576 = vmul.f32 %v2568, %v2572
  %v2577 = vadd.f32 %v2562, %v2573
  %v2578 = vadd.f32 %v2563, %v2574
  %v2579 = vadd.f32 %v2564, %v2575
  %v2580 = vadd.f32 %v2565, %v2576
  %v2581 = vld [vmem:[%s3 + $0x9a] sm:$0x1]
  %v2582 = vld [vmem:[#allocation3 + $0x42] sm:$0xff]
  %v2583 = vld [vmem:[#allocation3 + $0x82] sm:$0xff]
  %v2584 = vlaneseq
  %v2585 = vshrl.u32 %v2584, 7
  %v2586 = vsub.s32 0, %v2585
  %v2587 = vrot.slane %v2581, %v2586
  %v2588 = vmul.f32 %v2477, %v2587
  %v2589 = vmul.f32 %v2582, %v2587
  %v2590 = vmul.f32 %v2478, %v2587
  %v2591 = vmul.f32 %v2583, %v2587
  %v2592 = vadd.f32 %v2577, %v2588
  %v2593 = vadd.f32 %v2578, %v2589
  %v2594 = vadd.f32 %v2579, %v2590
  %v2595 = vadd.f32 %v2580, %v2591
  %v2596 = vld [vmem:[%s3 + $0x9b] sm:$0x1]
  %v2597 = vld [vmem:[#allocation3 + $0x43] sm:$0xff]
  %v2598 = vld [vmem:[#allocation3 + $0x83] sm:$0xff]
  %v2599 = vlaneseq
  %v2600 = vshrl.u32 %v2599, 7
  %v2601 = vsub.s32 0, %v2600
  %v2602 = vrot.slane %v2596, %v2601
  %v2603 = vmul.f32 %v2492, %v2602
  %v2604 = vmul.f32 %v2597, %v2602
  %v2605 = vmul.f32 %v2493, %v2602
  %v2606 = vmul.f32 %v2598, %v2602
  %v2607 = vadd.f32 %v2592, %v2603
  %v2608 = vadd.f32 %v2593, %v2604
  %v2609 = vadd.f32 %v2594, %v2605
  %v2610 = vadd.f32 %v2595, %v2606
  %v2611 = vld [vmem:[%s3 + $0x9c] sm:$0x1]
  %v2612 = vld [vmem:[#allocation3 + $0x45] sm:$0xff]
  %v2613 = vld [vmem:[#allocation3 + $0x85] sm:$0xff]
  %v2614 = vlaneseq
  %v2615 = vshrl.u32 %v2614, 7
  %v2616 = vsub.s32 0, %v2615
  %v2617 = vrot.slane %v2611, %v2616
  %v2618 = vmul.f32 %v2507, %v2617
  %v2619 = vmul.f32 %v2612, %v2617
  %v2620 = vmul.f32 %v2508, %v2617
  %v2621 = vmul.f32 %v2613, %v2617
  %v2622 = vadd.f32 %v2607, %v2618
  %v2623 = vadd.f32 %v2608, %v2619
  %v2624 = vadd.f32 %v2609, %v2620
  %v2625 = vadd.f32 %v2610, %v2621
  %v2626 = vld [vmem:[%s3 + $0x9d] sm:$0x1]
  %v2627 = vld [vmem:[#allocation3 + $0x46] sm:$0xff]
  %v2628 = vld [vmem:[#allocation3 + $0x86] sm:$0xff]
  %v2629 = vlaneseq
  %v2630 = vshrl.u32 %v2629, 7
  %v2631 = vsub.s32 0, %v2630
  %v2632 = vrot.slane %v2626, %v2631
  %v2633 = vmul.f32 %v2522, %v2632
  %v2634 = vmul.f32 %v2627, %v2632
  %v2635 = vmul.f32 %v2523, %v2632
  %v2636 = vmul.f32 %v2628, %v2632
  %v2637 = vadd.f32 %v2622, %v2633
  %v2638 = vadd.f32 %v2623, %v2634
  %v2639 = vadd.f32 %v2624, %v2635
  %v2640 = vadd.f32 %v2625, %v2636
  %v2641 = vld [vmem:[%s3 + $0x9e] sm:$0x1]
  %v2642 = vld [vmem:[#allocation3 + $0x47] sm:$0xff]
  %v2643 = vld [vmem:[#allocation3 + $0x87] sm:$0xff]
  %v2644 = vlaneseq
  %v2645 = vshrl.u32 %v2644, 7
  %v2646 = vsub.s32 0, %v2645
  %v2647 = vrot.slane %v2641, %v2646
  %v2648 = vmul.f32 %v2537, %v2647
  %v2649 = vmul.f32 %v2642, %v2647
  %v2650 = vmul.f32 %v2538, %v2647
  %v2651 = vmul.f32 %v2643, %v2647
  %v2652 = vadd.f32 %v2637, %v2648
  %v2653 = vadd.f32 %v2638, %v2649
  %v2654 = vadd.f32 %v2639, %v2650
  %v2655 = vadd.f32 %v2640, %v2651
  %v2656 = vld [vmem:[%s3 + $0x9f] sm:$0x1]
  %v2657 = vld [vmem:[#allocation3 + $0x48] sm:$0xff]
  %v2658 = vld [vmem:[#allocation3 + $0x88] sm:$0xff]
  %v2659 = vlaneseq
  %v2660 = vshrl.u32 %v2659, 7
  %v2661 = vsub.s32 0, %v2660
  %v2662 = vrot.slane %v2656, %v2661
  %v2663 = vmul.f32 %v2552, %v2662
  %v2664 = vmul.f32 %v2657, %v2662
  %v2665 = vmul.f32 %v2553, %v2662
  %v2666 = vmul.f32 %v2658, %v2662
  %v2667 = vadd.f32 %v2652, %v2663
  %v2668 = vadd.f32 %v2653, %v2664
  %v2669 = vadd.f32 %v2654, %v2665
  %v2670 = vadd.f32 %v2655, %v2666
  %v2671 = vld [vmem:[%s3 + $0xa0] sm:$0x1]
  %v2672 = vld [vmem:[#allocation3 + $0x49] sm:$0xff]
  %v2673 = vld [vmem:[#allocation3 + $0x89] sm:$0xff]
  %v2674 = vlaneseq
  %v2675 = vshrl.u32 %v2674, 7
  %v2676 = vsub.s32 0, %v2675
  %v2677 = vrot.slane %v2671, %v2676
  %v2678 = vmul.f32 %v2567, %v2677
  %v2679 = vmul.f32 %v2672, %v2677
  %v2680 = vmul.f32 %v2568, %v2677
  %v2681 = vmul.f32 %v2673, %v2677
  %v2682 = vadd.f32 %v2667, %v2678
  %v2683 = vadd.f32 %v2668, %v2679
  %v2684 = vadd.f32 %v2669, %v2680
  %v2685 = vadd.f32 %v2670, %v2681
  %v2686 = vld [vmem:[%s3 + $0xa1] sm:$0x1]
  %v2687 = vld [vmem:[#allocation3 + $0x4a] sm:$0xff]
  %v2688 = vld [vmem:[#allocation3 + $0x8a] sm:$0xff]
  %v2689 = vlaneseq
  %v2690 = vshrl.u32 %v2689, 7
  %v2691 = vsub.s32 0, %v2690
  %v2692 = vrot.slane %v2686, %v2691
  %v2693 = vmul.f32 %v2582, %v2692
  %v2694 = vmul.f32 %v2687, %v2692
  %v2695 = vmul.f32 %v2583, %v2692
  %v2696 = vmul.f32 %v2688, %v2692
  %v2697 = vadd.f32 %v2682, %v2693
  %v2698 = vadd.f32 %v2683, %v2694
  %v2699 = vadd.f32 %v2684, %v2695
  %v2700 = vadd.f32 %v2685, %v2696
  %v2701 = vld [vmem:[%s3 + $0xa2] sm:$0x1]
  %v2702 = vld [vmem:[#allocation3 + $0x4b] sm:$0xff]
  %v2703 = vld [vmem:[#allocation3 + $0x8b] sm:$0xff]
  %v2704 = vlaneseq
  %v2705 = vshrl.u32 %v2704, 7
  %v2706 = vsub.s32 0, %v2705
  %v2707 = vrot.slane %v2701, %v2706
  %v2708 = vmul.f32 %v2597, %v2707
  %v2709 = vmul.f32 %v2702, %v2707
  %v2710 = vmul.f32 %v2598, %v2707
  %v2711 = vmul.f32 %v2703, %v2707
  %v2712 = vadd.f32 %v2697, %v2708
  %v2713 = vadd.f32 %v2698, %v2709
  %v2714 = vadd.f32 %v2699, %v2710
  %v2715 = vadd.f32 %v2700, %v2711
  %v2716 = vld [vmem:[%s3 + $0xa3] sm:$0x1]
  %v2717 = vld [vmem:[#allocation3 + $0x4d] sm:$0xff]
  %v2718 = vld [vmem:[#allocation3 + $0x8d] sm:$0xff]
  %v2719 = vlaneseq
  %v2720 = vshrl.u32 %v2719, 7
  %v2721 = vsub.s32 0, %v2720
  %v2722 = vrot.slane %v2716, %v2721
  %v2723 = vmul.f32 %v2612, %v2722
  %v2724 = vmul.f32 %v2717, %v2722
  %v2725 = vmul.f32 %v2613, %v2722
  %v2726 = vmul.f32 %v2718, %v2722
  %v2727 = vadd.f32 %v2712, %v2723
  %v2728 = vadd.f32 %v2713, %v2724
  %v2729 = vadd.f32 %v2714, %v2725
  %v2730 = vadd.f32 %v2715, %v2726
  %v2731 = vld [vmem:[%s3 + $0xa4] sm:$0x1]
  %v2732 = vld [vmem:[#allocation3 + $0x4e] sm:$0xff]
  %v2733 = vld [vmem:[#allocation3 + $0x8e] sm:$0xff]
  %v2734 = vlaneseq
  %v2735 = vshrl.u32 %v2734, 7
  %v2736 = vsub.s32 0, %v2735
  %v2737 = vrot.slane %v2731, %v2736
  %v2738 = vmul.f32 %v2627, %v2737
  %v2739 = vmul.f32 %v2732, %v2737
  %v2740 = vmul.f32 %v2628, %v2737
  %v2741 = vmul.f32 %v2733, %v2737
  %v2742 = vadd.f32 %v2727, %v2738
  %v2743 = vadd.f32 %v2728, %v2739
  %v2744 = vadd.f32 %v2729, %v2740
  %v2745 = vadd.f32 %v2730, %v2741
  %v2746 = vld [vmem:[%s3 + $0xa5] sm:$0x1]
  %v2747 = vld [vmem:[#allocation3 + $0x4f] sm:$0xff]
  %v2748 = vld [vmem:[#allocation3 + $0x8f] sm:$0xff]
  %v2749 = vlaneseq
  %v2750 = vshrl.u32 %v2749, 7
  %v2751 = vsub.s32 0, %v2750
  %v2752 = vrot.slane %v2746, %v2751
  %v2753 = vmul.f32 %v2642, %v2752
  %v2754 = vmul.f32 %v2747, %v2752
  %v2755 = vmul.f32 %v2643, %v2752
  %v2756 = vmul.f32 %v2748, %v2752
  %v2757 = vadd.f32 %v2742, %v2753
  %v2758 = vadd.f32 %v2743, %v2754
  %v2759 = vadd.f32 %v2744, %v2755
  %v2760 = vadd.f32 %v2745, %v2756
  %v2761 = vld [vmem:[%s3 + $0xa6] sm:$0x1]
  %v2762 = vld [vmem:[#allocation3 + $0x50] sm:$0xff]
  %v2763 = vld [vmem:[#allocation3 + $0x90] sm:$0xff]
  %v2764 = vlaneseq
  %v2765 = vshrl.u32 %v2764, 7
  %v2766 = vsub.s32 0, %v2765
  %v2767 = vrot.slane %v2761, %v2766
  %v2768 = vmul.f32 %v2657, %v2767
  %v2769 = vmul.f32 %v2762, %v2767
  %v2770 = vmul.f32 %v2658, %v2767
  %v2771 = vmul.f32 %v2763, %v2767
  %v2772 = vadd.f32 %v2757, %v2768
  %v2773 = vadd.f32 %v2758, %v2769
  %v2774 = vadd.f32 %v2759, %v2770
  %v2775 = vadd.f32 %v2760, %v2771
  %v2776 = vld [vmem:[%s3 + $0xa7] sm:$0x1]
  %v2777 = vld [vmem:[#allocation3 + $0x51] sm:$0xff]
  %v2778 = vld [vmem:[#allocation3 + $0x91] sm:$0xff]
  %v2779 = vlaneseq
  %v2780 = vshrl.u32 %v2779, 7
  %v2781 = vsub.s32 0, %v2780
  %v2782 = vrot.slane %v2776, %v2781
  %v2783 = vmul.f32 %v2672, %v2782
  %v2784 = vmul.f32 %v2777, %v2782
  %v2785 = vmul.f32 %v2673, %v2782
  %v2786 = vmul.f32 %v2778, %v2782
  %v2787 = vadd.f32 %v2772, %v2783
  %v2788 = vadd.f32 %v2773, %v2784
  %v2789 = vadd.f32 %v2774, %v2785
  %v2790 = vadd.f32 %v2775, %v2786
  %v2791 = vld [vmem:[%s3 + $0xa8] sm:$0x1]
  %v2792 = vld [vmem:[#allocation3 + $0x52] sm:$0xff]
  %v2793 = vld [vmem:[#allocation3 + $0x92] sm:$0xff]
  %v2794 = vlaneseq
  %v2795 = vshrl.u32 %v2794, 7
  %v2796 = vsub.s32 0, %v2795
  %v2797 = vrot.slane %v2791, %v2796
  %v2798 = vmul.f32 %v2687, %v2797
  %v2799 = vmul.f32 %v2792, %v2797
  %v2800 = vmul.f32 %v2688, %v2797
  %v2801 = vmul.f32 %v2793, %v2797
  %v2802 = vadd.f32 %v2787, %v2798
  %v2803 = vadd.f32 %v2788, %v2799
  %v2804 = vadd.f32 %v2789, %v2800
  %v2805 = vadd.f32 %v2790, %v2801
  %v2806 = vld [vmem:[%s3 + $0xa9] sm:$0x1]
  %v2807 = vld [vmem:[#allocation3 + $0x53] sm:$0xff]
  %v2808 = vld [vmem:[#allocation3 + $0x93] sm:$0xff]
  %v2809 = vlaneseq
  %v2810 = vshrl.u32 %v2809, 7
  %v2811 = vsub.s32 0, %v2810
  %v2812 = vrot.slane %v2806, %v2811
  %v2813 = vmul.f32 %v2702, %v2812
  %v2814 = vmul.f32 %v2807, %v2812
  %v2815 = vmul.f32 %v2703, %v2812
  %v2816 = vmul.f32 %v2808, %v2812
  %v2817 = vadd.f32 %v2802, %v2813
  %v2818 = vadd.f32 %v2803, %v2814
  %v2819 = vadd.f32 %v2804, %v2815
  %v2820 = vadd.f32 %v2805, %v2816
  %v2821 = vld [vmem:[%s3 + $0xaa] sm:$0x1]
  %v2822 = vld [vmem:[#allocation3 + $0x55] sm:$0xff]
  %v2823 = vld [vmem:[#allocation3 + $0x95] sm:$0xff]
  %v2824 = vlaneseq
  %v2825 = vshrl.u32 %v2824, 7
  %v2826 = vsub.s32 0, %v2825
  %v2827 = vrot.slane %v2821, %v2826
  %v2828 = vmul.f32 %v2717, %v2827
  %v2829 = vmul.f32 %v2822, %v2827
  %v2830 = vmul.f32 %v2718, %v2827
  %v2831 = vmul.f32 %v2823, %v2827
  %v2832 = vadd.f32 %v2817, %v2828
  %v2833 = vadd.f32 %v2818, %v2829
  %v2834 = vadd.f32 %v2819, %v2830
  %v2835 = vadd.f32 %v2820, %v2831
  %v2836 = vld [vmem:[%s3 + $0xab] sm:$0x1]
  %v2837 = vld [vmem:[#allocation3 + $0x56] sm:$0xff]
  %v2838 = vld [vmem:[#allocation3 + $0x96] sm:$0xff]
  %v2839 = vlaneseq
  %v2840 = vshrl.u32 %v2839, 7
  %v2841 = vsub.s32 0, %v2840
  %v2842 = vrot.slane %v2836, %v2841
  %v2843 = vmul.f32 %v2732, %v2842
  %v2844 = vmul.f32 %v2837, %v2842
  %v2845 = vmul.f32 %v2733, %v2842
  %v2846 = vmul.f32 %v2838, %v2842
  %v2847 = vadd.f32 %v2832, %v2843
  %v2848 = vadd.f32 %v2833, %v2844
  %v2849 = vadd.f32 %v2834, %v2845
  %v2850 = vadd.f32 %v2835, %v2846
  %v2851 = vld [vmem:[%s3 + $0xac] sm:$0x1]
  %v2852 = vld [vmem:[#allocation3 + $0x57] sm:$0xff]
  %v2853 = vld [vmem:[#allocation3 + $0x97] sm:$0xff]
  %v2854 = vlaneseq
  %v2855 = vshrl.u32 %v2854, 7
  %v2856 = vsub.s32 0, %v2855
  %v2857 = vrot.slane %v2851, %v2856
  %v2858 = vmul.f32 %v2747, %v2857
  %v2859 = vmul.f32 %v2852, %v2857
  %v2860 = vmul.f32 %v2748, %v2857
  %v2861 = vmul.f32 %v2853, %v2857
  %v2862 = vadd.f32 %v2847, %v2858
  %v2863 = vadd.f32 %v2848, %v2859
  %v2864 = vadd.f32 %v2849, %v2860
  %v2865 = vadd.f32 %v2850, %v2861
  %v2866 = vld [vmem:[%s3 + $0xad] sm:$0x1]
  %v2867 = vld [vmem:[#allocation3 + $0x58] sm:$0xff]
  %v2868 = vld [vmem:[#allocation3 + $0x98] sm:$0xff]
  %v2869 = vlaneseq
  %v2870 = vshrl.u32 %v2869, 7
  %v2871 = vsub.s32 0, %v2870
  %v2872 = vrot.slane %v2866, %v2871
  %v2873 = vmul.f32 %v2762, %v2872
  %v2874 = vmul.f32 %v2867, %v2872
  %v2875 = vmul.f32 %v2763, %v2872
  %v2876 = vmul.f32 %v2868, %v2872
  %v2877 = vadd.f32 %v2862, %v2873
  %v2878 = vadd.f32 %v2863, %v2874
  %v2879 = vadd.f32 %v2864, %v2875
  %v2880 = vadd.f32 %v2865, %v2876
  %v2881 = vld [vmem:[%s3 + $0xae] sm:$0x1]
  %v2882 = vld [vmem:[#allocation3 + $0x59] sm:$0xff]
  %v2883 = vld [vmem:[#allocation3 + $0x99] sm:$0xff]
  %v2884 = vlaneseq
  %v2885 = vshrl.u32 %v2884, 7
  %v2886 = vsub.s32 0, %v2885
  %v2887 = vrot.slane %v2881, %v2886
  %v2888 = vmul.f32 %v2777, %v2887
  %v2889 = vmul.f32 %v2882, %v2887
  %v2890 = vmul.f32 %v2778, %v2887
  %v2891 = vmul.f32 %v2883, %v2887
  %v2892 = vadd.f32 %v2877, %v2888
  %v2893 = vadd.f32 %v2878, %v2889
  %v2894 = vadd.f32 %v2879, %v2890
  %v2895 = vadd.f32 %v2880, %v2891
  %v2896 = vld [vmem:[%s3 + $0xaf] sm:$0x1]
  %v2897 = vld [vmem:[#allocation3 + $0x5a] sm:$0xff]
  %v2898 = vld [vmem:[#allocation3 + $0x9a] sm:$0xff]
  %v2899 = vlaneseq
  %v2900 = vshrl.u32 %v2899, 7
  %v2901 = vsub.s32 0, %v2900
  %v2902 = vrot.slane %v2896, %v2901
  %v2903 = vmul.f32 %v2792, %v2902
  %v2904 = vmul.f32 %v2897, %v2902
  %v2905 = vmul.f32 %v2793, %v2902
  %v2906 = vmul.f32 %v2898, %v2902
  %v2907 = vadd.f32 %v2892, %v2903
  %v2908 = vadd.f32 %v2893, %v2904
  %v2909 = vadd.f32 %v2894, %v2905
  %v2910 = vadd.f32 %v2895, %v2906
  %v2911 = vld [vmem:[%s3 + $0xb0] sm:$0x1]
  %v2912 = vld [vmem:[#allocation3 + $0x5b] sm:$0xff]
  %v2913 = vld [vmem:[#allocation3 + $0x9b] sm:$0xff]
  %v2914 = vlaneseq
  %v2915 = vshrl.u32 %v2914, 7
  %v2916 = vsub.s32 0, %v2915
  %v2917 = vrot.slane %v2911, %v2916
  %v2918 = vmul.f32 %v2807, %v2917
  %v2919 = vmul.f32 %v2912, %v2917
  %v2920 = vmul.f32 %v2808, %v2917
  %v2921 = vmul.f32 %v2913, %v2917
  %v2922 = vadd.f32 %v2907, %v2918
  %v2923 = vadd.f32 %v2908, %v2919
  %v2924 = vadd.f32 %v2909, %v2920
  %v2925 = vadd.f32 %v2910, %v2921
  %v2927 = vrot.slane %v2923, 6
  %v2930 = vrot.slane %v2924, 4
  %v2933 = vrot.slane %v2925, 2
  %v2935 = vsel %vm2057, %v2922, %v2927
  %v2936 = vsel %vm1454, %v2935, %v2930
  %v2937 = vsel %vm2060, %v2936, %v2933
  %v2938 = vld [vmem:[%s3 + $0xb9] sm:$0x1]
  %v2939 = vlaneseq
  %v2940 = vshrl.u32 %v2939, 7
  %v2941 = vsub.s32 0, %v2940
  %v2942 = vrot.slane %v2938, %v2941
  %v2943 = vadd.f32 %v2937, %v2942
  %v2944 = vld [vmem:[%s3 + $0xba] sm:$0x1]
  %v2945 = vld [vmem:[%s3 + $0xbb] sm:$0x1]
  %v2946 = vsel %vm147, %v2943, 0.0
  %2947 = vadd.xlane.f32.xlu0 %v2946
  %v2948 = vpop.xlane.xlu0 %2947
  %v2949 = vmul.f32 %v2948, %v160
  %v2950 = vsub.f32 %v2943, %v2949
  %v2951 = vmul.f32 %v2950, %v2950
  %v2952 = vsel %vm147, %v2951, 0.0
  %2953 = vadd.xlane.f32.xlu0 %v2952
  %v2954 = vpop.xlane.xlu0 %2953
  %v2955 = vmul.f32 %v2954, %v160
  %v2956 = vadd.f32 %v2955, 1e-06
  %v2957 = vrsqrt.pop %v2956
  %v2958 = vmul.f32 %v2950, %v2957
  %v2959 = vlaneseq
  %v2960 = vshrl.u32 %v2959, 7
  %v2961 = vsub.s32 0, %v2960
  %v2962 = vrot.slane %v2944, %v2961
  %v2963 = vmul.f32 %v2958, %v2962
  %v2964 = vlaneseq
  %v2965 = vshrl.u32 %v2964, 7
  %v2966 = vsub.s32 0, %v2965
  %v2967 = vrot.slane %v2945, %v2966
  %v2968 = vadd.f32 %v2963, %v2967
  %v2969 = vld [vmem:[%s4] sm:$0xff]
  %v2970 = vld [vmem:[%s4 + $0x8] sm:$0xff]
  %v2971 = vld [vmem:[%s4 + $0x10] sm:$0x1]
  %v2972 = vlaneseq
  %v2973 = vshrl.u32 %v2972, 7
  %v2974 = vsub.s32 0, %v2973
  %v2975 = vrot.slane %v2971, %v2974
  %v2977 = vsel %vm147, %v2968, 0
  %2979 = vmatprep.subr.mxu0 0.0
  %2980 = vmatpush1.msra.mxu0 %v2969
  %2981 = vmatprep.subr.mxu0 0.0
  %2982 = vmatpush1.msra.mxu0 %v2970
  %2983 = vmatprep.subr.mxu0 0.0
  %2984 = vmatpush1.msra.mxu0 0.0
  %2985 = vmatprep.subr.mxu0 0.0
  %2986 = vmatpush1.msra.mxu0 0.0
  %2987 = vmatprep.subr.mxu0 0.0
  %2988 = vmatpush1.msra.mxu0 0.0
  %2989 = vmatprep.subr.mxu0 0.0
  %2990 = vmatpush1.msra.mxu0 0.0
  %2991 = vmatprep.subr.mxu0 0.0
  %2992 = vmatpush1.msra.mxu0 0.0
  %2993 = vmatprep.subr.mxu0 0.0
  %2994 = vmatpush1.msra.mxu0 0.0
  %2995 = vmatprep.subr.mxu0 0.0
  %2996 = vmatpush1.msra.mxu0 0.0
  %2997 = vmatprep.subr.mxu0 0.0
  %2998 = vmatpush1.msra.mxu0 0.0
  %2999 = vmatprep.subr.mxu0 0.0
  %3000 = vmatpush1.msra.mxu0 0.0
  %3001 = vmatprep.subr.mxu0 0.0
  %3002 = vmatpush1.msra.mxu0 0.0
  %3003 = vmatprep.subr.mxu0 0.0
  %3004 = vmatpush1.msra.mxu0 0.0
  %3005 = vmatprep.subr.mxu0 0.0
  %3006 = vmatpush1.msra.mxu0 0.0
  %3007 = vmatprep.subr.mxu0 0.0
  %3008 = vmatpush1.msra.mxu0 0.0
  %3009 = vmatprep.subr.mxu0 0.0
  %3010 = vmatpush1.msra.mxu0 0.0
  %3011 = vmatprep.subr.mxu0 0.0
  %3012 = vmatpush1.msra.mxu0 0.0
  %3013 = vmatprep.subr.mxu0 0.0
  %3014 = vmatpush1.msra.mxu0 0.0
  %3015 = vmatprep.subr.mxu0 0.0
  %3016 = vmatpush1.msra.mxu0 0.0
  %3017 = vmatprep.subr.mxu0 0.0
  %3018 = vmatpush1.msra.mxu0 0.0
  %3019 = vmatprep.subr.mxu0 0.0
  %3020 = vmatpush1.msra.mxu0 0.0
  %3021 = vmatprep.subr.mxu0 0.0
  %3022 = vmatpush1.msra.mxu0 0.0
  %3023 = vmatprep.subr.mxu0 0.0
  %3024 = vmatpush1.msra.mxu0 0.0
  %3025 = vmatprep.subr.mxu0 0.0
  %3026 = vmatpush1.msra.mxu0 0.0
  %3027 = vmatprep.subr.mxu0 0.0
  %3028 = vmatpush1.msra.mxu0 0.0
  %3029 = vmatprep.subr.mxu0 0.0
  %3030 = vmatpush1.msra.mxu0 0.0
  %3031 = vmatprep.subr.mxu0 0.0
  %3032 = vmatpush1.msra.mxu0 0.0
  %3033 = vmatprep.subr.mxu0 0.0
  %3034 = vmatpush1.msra.mxu0 0.0
  %3035 = vmatprep.subr.mxu0 0.0
  %3036 = vmatpush1.msra.mxu0 0.0
  %3037 = vmatprep.subr.mxu0 0.0
  %3038 = vmatpush1.msra.mxu0 0.0
  %3039 = vmatprep.subr.mxu0 0.0
  %3040 = vmatpush1.msra.mxu0 0.0
  %3041 = vmatprep.subr.mxu0 0.0
  %3042 = vmatpush1.msra.mxu0 0.0
  %3043 = vmatprep.mubr.f32.mxu0 0.0
  %3044 = vmatmul.mubr.f32.gmra.mrb[0].mxu0 %v2977
  %v3045 = vpop.f32.mrb[0].mxu0
  %v3046 = vadd.f32 %v2975, %v3045
  %v3047 = vpop.f32.mrb[0].mxu0
  %3048 = vdwg.mxu0
  %v3049 = vmul.f32 %v3046, 0.70710677
  %v3050 = vand.u32 2147483647, %v3049
  %v3051 = vmul.f32 %v3050, 0.3275911
  %v3052 = vadd.f32 %v3051, 1.0
  %v3053 = vrcp.pop %v3052
  %v3054 = vmul.f32 %v3052, %v3053
  %v3055 = vsub.f32 2.0, %v3054
  %v3056 = vmul.f32 %v3053, %v3055
  %v3057 = vmul.f32 %v3056, 1.0614054
  %v3058 = vsub.f32 %v3057, 1.4531521
  %v3059 = vmul.f32 %v3058, %v3056
  %v3060 = vadd.f32 %v3059, 1.4214138
  %v3061 = vmul.f32 %v3060, %v3056
  %v3062 = vsub.f32 %v3061, 0.28449672
  %v3063 = vmul.f32 %v3062, %v3056
  %v3064 = vadd.f32 %v3063, 0.2548296
  %v3065 = vmul.f32 %v3064, %v3056
  %v3066 = vsub.f32 0.0, %v3050
  %v3067 = vmul.f32 %v3066, %v3050
  %v3068 = vmul.f32 %v3067, 1.442695
  %v3069 = vpow.pop %v3068
  %v3070 = vmul.f32 %v3065, %v3069
  %v3071 = vsub.f32 1.0, %v3070
  %vm3072 = vcmp.ge.f32.partialorder %v3049, 0.0
  %v3073 = vsub.f32 0.0, %v3071
  %v3074 = vsel %vm3072, %v3071, %v3073
  %v3075 = vmul.f32 %v3046, 0.5
  %v3076 = vadd.f32 %v3074, 1.0
  %v3077 = vmul.f32 %v3075, %v3076
  %v3078 = vld [vmem:[%s3 + $0x40] sm:$0xff]
  %v3079 = vld [vmem:[%s3 + $0x48] sm:$0xff]
  %v3080 = vld [vmem:[%s3 + $0x50] sm:$0xff]
  %v3081 = vld [vmem:[%s3 + $0x58] sm:$0xff]
  %v3082 = vld [vmem:[%s3 + $0x60] sm:$0xff]
  %v3083 = vld [vmem:[%s3 + $0x68] sm:$0xff]
  %v3084 = vld [vmem:[%s3 + $0x70] sm:$0xff]
  %v3085 = vld [vmem:[%s3 + $0x78] sm:$0xff]
  %v3086 = vld [vmem:[%s3 + $0xbc] sm:$0x1]
  %v3087 = vlaneseq
  %v3088 = vshrl.u32 %v3087, 7
  %v3089 = vsub.s32 0, %v3088
  %v3090 = vrot.slane %v3086, %v3089
  %v3092 = vsel %vm1771, %v3077, 0
  %3094 = vmatprep.subr.mxu0 0.0
  %3095 = vmatpush1.msra.mxu0 %v3078
  %3096 = vmatprep.subr.mxu0 0.0
  %3097 = vmatpush1.msra.mxu0 %v3079
  %3098 = vmatprep.subr.mxu0 0.0
  %3099 = vmatpush1.msra.mxu0 %v3080
  %3100 = vmatprep.subr.mxu0 0.0
  %3101 = vmatpush1.msra.mxu0 %v3081
  %3102 = vmatprep.subr.mxu0 0.0
  %3103 = vmatpush1.msra.mxu0 %v3082
  %3104 = vmatprep.subr.mxu0 0.0
  %3105 = vmatpush1.msra.mxu0 %v3083
  %3106 = vmatprep.subr.mxu0 0.0
  %3107 = vmatpush1.msra.mxu0 %v3084
  %3108 = vmatprep.subr.mxu0 0.0
  %3109 = vmatpush1.msra.mxu0 %v3085
  %3110 = vmatprep.subr.mxu0 0.0
  %3111 = vmatpush1.msra.mxu0 0.0
  %3112 = vmatprep.subr.mxu0 0.0
  %3113 = vmatpush1.msra.mxu0 0.0
  %3114 = vmatprep.subr.mxu0 0.0
  %3115 = vmatpush1.msra.mxu0 0.0
  %3116 = vmatprep.subr.mxu0 0.0
  %3117 = vmatpush1.msra.mxu0 0.0
  %3118 = vmatprep.subr.mxu0 0.0
  %3119 = vmatpush1.msra.mxu0 0.0
  %3120 = vmatprep.subr.mxu0 0.0
  %3121 = vmatpush1.msra.mxu0 0.0
  %3122 = vmatprep.subr.mxu0 0.0
  %3123 = vmatpush1.msra.mxu0 0.0
  %3124 = vmatprep.subr.mxu0 0.0
  %3125 = vmatpush1.msra.mxu0 0.0
  %3126 = vmatprep.subr.mxu0 0.0
  %3127 = vmatpush1.msra.mxu0 0.0
  %3128 = vmatprep.subr.mxu0 0.0
  %3129 = vmatpush1.msra.mxu0 0.0
  %3130 = vmatprep.subr.mxu0 0.0
  %3131 = vmatpush1.msra.mxu0 0.0
  %3132 = vmatprep.subr.mxu0 0.0
  %3133 = vmatpush1.msra.mxu0 0.0
  %3134 = vmatprep.subr.mxu0 0.0
  %3135 = vmatpush1.msra.mxu0 0.0
  %3136 = vmatprep.subr.mxu0 0.0
  %3137 = vmatpush1.msra.mxu0 0.0
  %3138 = vmatprep.subr.mxu0 0.0
  %3139 = vmatpush1.msra.mxu0 0.0
  %3140 = vmatprep.subr.mxu0 0.0
  %3141 = vmatpush1.msra.mxu0 0.0
  %3142 = vmatprep.subr.mxu0 0.0
  %3143 = vmatpush1.msra.mxu0 0.0
  %3144 = vmatprep.subr.mxu0 0.0
  %3145 = vmatpush1.msra.mxu0 0.0
  %3146 = vmatprep.subr.mxu0 0.0
  %3147 = vmatpush1.msra.mxu0 0.0
  %3148 = vmatprep.subr.mxu0 0.0
  %3149 = vmatpush1.msra.mxu0 0.0
  %3150 = vmatprep.subr.mxu0 0.0
  %3151 = vmatpush1.msra.mxu0 0.0
  %3152 = vmatprep.subr.mxu0 0.0
  %3153 = vmatpush1.msra.mxu0 0.0
  %3154 = vmatprep.subr.mxu0 0.0
  %3155 = vmatpush1.msra.mxu0 0.0
  %3156 = vmatprep.subr.mxu0 0.0
  %3157 = vmatpush1.msra.mxu0 0.0
  %3158 = vmatprep.mubr.f32.mxu0 0.0
  %3159 = vmatmul.mubr.f32.gmra.mrb[0].mxu0 %v3092
  %v3160 = vpop.f32.mrb[0].mxu0
  %v3161 = vadd.f32 %v3090, %v3160
  %v3162 = vpop.f32.mrb[0].mxu0
  %3163 = vdwg.mxu0
  %v3164 = vld [vmem:[%s3 + $0xbd] sm:$0x1]
  %v3165 = vlaneseq
  %v3166 = vshrl.u32 %v3165, 7
  %v3167 = vsub.s32 0, %v3166
  %v3168 = vrot.slane %v3164, %v3167
  %v3169 = vmul.f32 %v3168, %v3161
  %v3170 = vadd.f32 %v2145, %v3169
  %v3171 = vld [vmem:[%s3 + $0xbe] sm:$0x1]
  %v3172 = vld [vmem:[%s3 + $0xbf] sm:$0x1]
  %v3173 = vsel %vm147, %v3170, 0.0
  %3174 = vadd.xlane.f32.xlu0 %v3173
  %v3175 = vpop.xlane.xlu0 %3174
  %v3176 = vmul.f32 %v3175, %v160
  %v3177 = vsub.f32 %v3170, %v3176
  %v3178 = vmul.f32 %v3177, %v3177
  %v3179 = vsel %vm147, %v3178, 0.0
  %3180 = vadd.xlane.f32.xlu0 %v3179
  %v3181 = vpop.xlane.xlu0 %3180
  %v3182 = vmul.f32 %v3181, %v160
  %v3183 = vadd.f32 %v3182, 1e-06
  %v3184 = vrsqrt.pop %v3183
  %v3185 = vmul.f32 %v3177, %v3184
  %v3186 = vlaneseq
  %v3187 = vshrl.u32 %v3186, 7
  %v3188 = vsub.s32 0, %v3187
  %v3189 = vrot.slane %v3171, %v3188
  %v3190 = vmul.f32 %v3185, %v3189
  %v3191 = vlaneseq
  %v3192 = vshrl.u32 %v3191, 7
  %v3193 = vsub.s32 0, %v3192
  %v3194 = vrot.slane %v3172, %v3193
  %v3195 = vadd.f32 %v3190, %v3194
  %3196 = vst.msk [vmem:[#allocation3] sm:$0xff] %vm147, %v3195
  %v3197 = vld [vmem:[#allocation3] ss:$2 sm:$0x1]
  %s3198 = scalar_lea.vmem [#allocation3], 1
  %v3199 = vld [vmem:[%s3198] ss:$2 sm:$0x1]
  %s3200 = scalar_lea.vmem [#allocation3], 2
  %v3201 = vld [vmem:[%s3200] ss:$2 sm:$0x1]
  %s3202 = scalar_lea.vmem [#allocation3], 3
  %v3203 = vld [vmem:[%s3202] ss:$2 sm:$0x1]
  %3205 = vrot.lane.b32.xlu0 %v3199, 16
  %v3206 = vpop.permute.xlu0 %3205
  %3209 = vrot.lane.b32.xlu0 %v3201, 32
  %v3210 = vpop.permute.xlu0 %3209
  %3213 = vrot.lane.b32.xlu0 %v3203, 48
  %v3214 = vpop.permute.xlu0 %3213
  %v3216 = vsel %vm147, %v3197, %v3206
  %v3217 = vsel %vm1976, %v3216, %v3210
  %v3218 = vsel %vm47, %v3217, %v3214
  %s3219 = scalar_lea.vmem [#allocation3], 4
  %v3220 = vld [vmem:[%s3219] ss:$2 sm:$0x1]
  %s3221 = scalar_lea.vmem [#allocation3], 5
  %v3222 = vld [vmem:[%s3221] ss:$2 sm:$0x1]
  %s3223 = scalar_lea.vmem [#allocation3], 6
  %v3224 = vld [vmem:[%s3223] ss:$2 sm:$0x1]
  %s3225 = scalar_lea.vmem [#allocation3], 7
  %v3226 = vld [vmem:[%s3225] ss:$2 sm:$0x1]
  %3228 = vrot.lane.b32.xlu0 %v3222, 16
  %v3229 = vpop.permute.xlu0 %3228
  %3232 = vrot.lane.b32.xlu0 %v3224, 32
  %v3233 = vpop.permute.xlu0 %3232
  %3236 = vrot.lane.b32.xlu0 %v3226, 48
  %v3237 = vpop.permute.xlu0 %3236
  %v3239 = vsel %vm147, %v3220, %v3229
  %v3240 = vsel %vm1976, %v3239, %v3233
  %v3241 = vsel %vm47, %v3240, %v3237
  %v3243 = vrot.slane %v3241, 7
  %vm3245 = vcmask 1040384
  %v3246 = vsel %vm3245, %v3218, %v3243
  %v3247 = vld [vmem:[%s5] sm:$0xff]
  %v3248 = vld [vmem:[%s5 + $0x8] sm:$0xff]
  %v3249 = vld [vmem:[%s5 + $0x10] sm:$0xff]
  %v3250 = vld [vmem:[%s5 + $0x18] sm:$0xff]
  %v3251 = vld [vmem:[%s5 + $0x20] sm:$0xff]
  %v3252 = vld [vmem:[%s5 + $0x28] sm:$0xff]
  %v3253 = vld [vmem:[%s5 + $0x30] sm:$0xff]
  %v3254 = vld [vmem:[%s5 + $0x38] sm:$0xff]
  %v3255 = vld [vmem:[%s5 + $0x98] sm:$0x1]
  %v3256 = vlaneseq
  %v3257 = vshrl.u32 %v3256, 7
  %v3258 = vsub.s32 0, %v3257
  %v3259 = vrot.slane %v3255, %v3258
  %v3261 = vsel %vm1771, %v3246, 0
  %3263 = vmatprep.subr.mxu0 0.0
  %3264 = vmatpush1.msra.mxu0 %v3247
  %3265 = vmatprep.subr.mxu0 0.0
  %3266 = vmatpush1.msra.mxu0 %v3248
  %3267 = vmatprep.subr.mxu0 0.0
  %3268 = vmatpush1.msra.mxu0 %v3249
  %3269 = vmatprep.subr.mxu0 0.0
  %3270 = vmatpush1.msra.mxu0 %v3250
  %3271 = vmatprep.subr.mxu0 0.0
  %3272 = vmatpush1.msra.mxu0 %v3251
  %3273 = vmatprep.subr.mxu0 0.0
  %3274 = vmatpush1.msra.mxu0 %v3252
  %3275 = vmatprep.subr.mxu0 0.0
  %3276 = vmatpush1.msra.mxu0 %v3253
  %3277 = vmatprep.subr.mxu0 0.0
  %3278 = vmatpush1.msra.mxu0 %v3254
  %3279 = vmatprep.subr.mxu0 0.0
  %3280 = vmatpush1.msra.mxu0 0.0
  %3281 = vmatprep.subr.mxu0 0.0
  %3282 = vmatpush1.msra.mxu0 0.0
  %3283 = vmatprep.subr.mxu0 0.0
  %3284 = vmatpush1.msra.mxu0 0.0
  %3285 = vmatprep.subr.mxu0 0.0
  %3286 = vmatpush1.msra.mxu0 0.0
  %3287 = vmatprep.subr.mxu0 0.0
  %3288 = vmatpush1.msra.mxu0 0.0
  %3289 = vmatprep.subr.mxu0 0.0
  %3290 = vmatpush1.msra.mxu0 0.0
  %3291 = vmatprep.subr.mxu0 0.0
  %3292 = vmatpush1.msra.mxu0 0.0
  %3293 = vmatprep.subr.mxu0 0.0
  %3294 = vmatpush1.msra.mxu0 0.0
  %3295 = vmatprep.subr.mxu0 0.0
  %3296 = vmatpush1.msra.mxu0 0.0
  %3297 = vmatprep.subr.mxu0 0.0
  %3298 = vmatpush1.msra.mxu0 0.0
  %3299 = vmatprep.subr.mxu0 0.0
  %3300 = vmatpush1.msra.mxu0 0.0
  %3301 = vmatprep.subr.mxu0 0.0
  %3302 = vmatpush1.msra.mxu0 0.0
  %3303 = vmatprep.subr.mxu0 0.0
  %3304 = vmatpush1.msra.mxu0 0.0
  %3305 = vmatprep.subr.mxu0 0.0
  %3306 = vmatpush1.msra.mxu0 0.0
  %3307 = vmatprep.subr.mxu0 0.0
  %3308 = vmatpush1.msra.mxu0 0.0
  %3309 = vmatprep.subr.mxu0 0.0
  %3310 = vmatpush1.msra.mxu0 0.0
  %3311 = vmatprep.subr.mxu0 0.0
  %3312 = vmatpush1.msra.mxu0 0.0
  %3313 = vmatprep.subr.mxu0 0.0
  %3314 = vmatpush1.msra.mxu0 0.0
  %3315 = vmatprep.subr.mxu0 0.0
  %3316 = vmatpush1.msra.mxu0 0.0
  %3317 = vmatprep.subr.mxu0 0.0
  %3318 = vmatpush1.msra.mxu0 0.0
  %3319 = vmatprep.subr.mxu0 0.0
  %3320 = vmatpush1.msra.mxu0 0.0
  %3321 = vmatprep.subr.mxu0 0.0
  %3322 = vmatpush1.msra.mxu0 0.0
  %3323 = vmatprep.subr.mxu0 0.0
  %3324 = vmatpush1.msra.mxu0 0.0
  %3325 = vmatprep.subr.mxu0 0.0
  %3326 = vmatpush1.msra.mxu0 0.0
  %3327 = vmatprep.mubr.f32.mxu0 0.0
  %3328 = vmatmul.mubr.f32.gmra.mrb[0].mxu0 %v3261
  %v3329 = vpop.f32.mrb[0].mxu0
  %v3330 = vadd.f32 %v3259, %v3329
  %v3331 = vpop.f32.mrb[0].mxu0
  %3332 = vdwg.mxu0
  %vm3333 = vcmask 64512
  %3334 = vst.msk [vmem:[#allocation4] sm:$0xff] %vm3333, 0.0
  %3335 = vst.msk [vmem:[#allocation4 + $0x8] sm:$0xff] %vm3333, 0.0
  %3336 = vst.msk [vmem:[#allocation4 + $0x10] sm:$0xff] %vm3333, 0.0
  %3337 = vst.msk [vmem:[#allocation4 + $0x18] sm:$0xff] %vm3333, 0.0
  %3338 = vst.msk [vmem:[#allocation4 + $0x20] sm:$0xff] %vm3333, 0.0
  %3339 = vst.msk [vmem:[#allocation4 + $0x28] sm:$0xff] %vm3333, 0.0
  %3340 = vst.msk [vmem:[#allocation4 + $0x30] sm:$0xff] %vm3333, 0.0
  %vm3341 = vcmask 57344
  %3342 = vst.msk [vmem:[#allocation4 + $0x38] sm:$0x1] %vm3341, %v3330
  %3343 = vst.msk [vmem:[#allocation4 + $0x39] sm:$0xff] %vm3333, 0.0
  %3344 = vst.msk [vmem:[#allocation4 + $0x41] sm:$0xff] %vm3333, 0.0
  %3345 = vst.msk [vmem:[#allocation4 + $0x49] sm:$0xff] %vm3333, 0.0
  %3346 = vst.msk [vmem:[#allocation4 + $0x51] sm:$0xff] %vm3333, 0.0
  %3347 = vst.msk [vmem:[#allocation4 + $0x59] sm:$0xff] %vm3333, 0.0
  %3348 = vst.msk [vmem:[#allocation4 + $0x61] sm:$0xff] %vm3333, 0.0
  %vm3349 = vcmask 63488
  %3350 = vst.msk [vmem:[#allocation4 + $0x69] sm:$0x7f] %vm3349, 0.0
  %vm3351 = vcmask 58369
  %3352 = vst.msk [vmem:[#allocation4 + $0x6f] sm:$0x2] %vm3351, %v3330
  %3353 = vst.msk [vmem:[#allocation4 + $0x71] sm:$0xff] %vm3333, 0.0
  %3354 = vst.msk [vmem:[#allocation4 + $0x79] sm:$0xff] %vm3333, 0.0
  %3355 = vst.msk [vmem:[#allocation4 + $0x81] sm:$0xff] %vm3333, 0.0
  %3356 = vst.msk [vmem:[#allocation4 + $0x89] sm:$0xff] %vm3333, 0.0
  %3357 = vst.msk [vmem:[#allocation4 + $0x91] sm:$0xff] %vm3333, 0.0
  %3358 = vst.msk [vmem:[#allocation4 + $0x99] sm:$0xff] %vm3333, 0.0
  %3359 = vst.msk [vmem:[#allocation4 + $0xa1] sm:$0xff] %vm3333, 0.0
  %3360 = vst.msk [vmem:[#allocation4 + $0xa9] sm:$0x7f] %vm3349, 0.0
  %v3361 = vld [vmem:[%s5 + $0x60] sm:$0x1]
  %v3362 = vld [vmem:[#allocation4 + $0x1d] sm:$0xff]
  %v3363 = vld [vmem:[#allocation4 + $0x55] sm:$0xff]
  %v3364 = vlaneseq
  %v3365 = vshrl.u32 %v3364, 7
  %v3366 = vsub.s32 0, %v3365
  %v3367 = vrot.slane %v3361, %v3366
  %v3368 = vmul.f32 %v3362, %v3367
  %v3369 = vmul.f32 %v3363, %v3367
  %v3370 = vld [vmem:[%s5 + $0x61] sm:$0x1]
  %v3371 = vld [vmem:[#allocation4 + $0x1e] sm:$0xff]
  %v3372 = vld [vmem:[#allocation4 + $0x56] sm:$0xff]
  %v3373 = vlaneseq
  %v3374 = vshrl.u32 %v3373, 7
  %v3375 = vsub.s32 0, %v3374
  %v3376 = vrot.slane %v3370, %v3375
  %v3377 = vmul.f32 %v3371, %v3376
  %v3378 = vmul.f32 %v3372, %v3376
  %v3379 = vadd.f32 %v3368, %v3377
  %v3380 = vadd.f32 %v3369, %v3378
  %v3381 = vld [vmem:[%s5 + $0x62] sm:$0x1]
  %v3382 = vld [vmem:[#allocation4 + $0x1f] sm:$0xff]
  %v3383 = vld [vmem:[#allocation4 + $0x57] sm:$0xff]
  %v3384 = vlaneseq
  %v3385 = vshrl.u32 %v3384, 7
  %v3386 = vsub.s32 0, %v3385
  %v3387 = vrot.slane %v3381, %v3386
  %v3388 = vmul.f32 %v3382, %v3387
  %v3389 = vmul.f32 %v3383, %v3387
  %v3390 = vadd.f32 %v3379, %v3388
  %v3391 = vadd.f32 %v3380, %v3389
  %v3392 = vld [vmem:[%s5 + $0x63] sm:$0x1]
  %v3393 = vld [vmem:[#allocation4 + $0x20] sm:$0xff]
  %v3394 = vld [vmem:[#allocation4 + $0x58] sm:$0xff]
  %v3395 = vlaneseq
  %v3396 = vshrl.u32 %v3395, 7
  %v3397 = vsub.s32 0, %v3396
  %v3398 = vrot.slane %v3392, %v3397
  %v3399 = vmul.f32 %v3393, %v3398
  %v3400 = vmul.f32 %v3394, %v3398
  %v3401 = vadd.f32 %v3390, %v3399
  %v3402 = vadd.f32 %v3391, %v3400
  %v3403 = vld [vmem:[%s5 + $0x64] sm:$0x1]
  %v3404 = vld [vmem:[#allocation4 + $0x21] sm:$0xff]
  %v3405 = vld [vmem:[#allocation4 + $0x59] sm:$0xff]
  %v3406 = vlaneseq
  %v3407 = vshrl.u32 %v3406, 7
  %v3408 = vsub.s32 0, %v3407
  %v3409 = vrot.slane %v3403, %v3408
  %v3410 = vmul.f32 %v3404, %v3409
  %v3411 = vmul.f32 %v3405, %v3409
  %v3412 = vadd.f32 %v3401, %v3410
  %v3413 = vadd.f32 %v3402, %v3411
  %v3414 = vld [vmem:[%s5 + $0x65] sm:$0x1]
  %v3415 = vld [vmem:[#allocation4 + $0x22] sm:$0xff]
  %v3416 = vld [vmem:[#allocation4 + $0x5a] sm:$0xff]
  %v3417 = vlaneseq
  %v3418 = vshrl.u32 %v3417, 7
  %v3419 = vsub.s32 0, %v3418
  %v3420 = vrot.slane %v3414, %v3419
  %v3421 = vmul.f32 %v3415, %v3420
  %v3422 = vmul.f32 %v3416, %v3420
  %v3423 = vadd.f32 %v3412, %v3421
  %v3424 = vadd.f32 %v3413, %v3422
  %v3425 = vld [vmem:[%s5 + $0x66] sm:$0x1]
  %v3426 = vld [vmem:[#allocation4 + $0x23] sm:$0xff]
  %v3427 = vld [vmem:[#allocation4 + $0x5b] sm:$0xff]
  %v3428 = vlaneseq
  %v3429 = vshrl.u32 %v3428, 7
  %v3430 = vsub.s32 0, %v3429
  %v3431 = vrot.slane %v3425, %v3430
  %v3432 = vmul.f32 %v3426, %v3431
  %v3433 = vmul.f32 %v3427, %v3431
  %v3434 = vadd.f32 %v3423, %v3432
  %v3435 = vadd.f32 %v3424, %v3433
  %v3436 = vld [vmem:[%s5 + $0x67] sm:$0x1]
  %v3437 = vld [vmem:[#allocation4 + $0x25] sm:$0xff]
  %v3438 = vld [vmem:[#allocation4 + $0x5d] sm:$0xff]
  %v3439 = vlaneseq
  %v3440 = vshrl.u32 %v3439, 7
  %v3441 = vsub.s32 0, %v3440
  %v3442 = vrot.slane %v3436, %v3441
  %v3443 = vmul.f32 %v3437, %v3442
  %v3444 = vmul.f32 %v3438, %v3442
  %v3445 = vadd.f32 %v3434, %v3443
  %v3446 = vadd.f32 %v3435, %v3444
  %v3447 = vld [vmem:[%s5 + $0x68] sm:$0x1]
  %v3448 = vld [vmem:[#allocation4 + $0x26] sm:$0xff]
  %v3449 = vld [vmem:[#allocation4 + $0x5e] sm:$0xff]
  %v3450 = vlaneseq
  %v3451 = vshrl.u32 %v3450, 7
  %v3452 = vsub.s32 0, %v3451
  %v3453 = vrot.slane %v3447, %v3452
  %v3454 = vmul.f32 %v3448, %v3453
  %v3455 = vmul.f32 %v3449, %v3453
  %v3456 = vadd.f32 %v3445, %v3454
  %v3457 = vadd.f32 %v3446, %v3455
  %v3458 = vld [vmem:[%s5 + $0x69] sm:$0x1]
  %v3459 = vld [vmem:[#allocation4 + $0x27] sm:$0xff]
  %v3460 = vld [vmem:[#allocation4 + $0x5f] sm:$0xff]
  %v3461 = vlaneseq
  %v3462 = vshrl.u32 %v3461, 7
  %v3463 = vsub.s32 0, %v3462
  %v3464 = vrot.slane %v3458, %v3463
  %v3465 = vmul.f32 %v3459, %v3464
  %v3466 = vmul.f32 %v3460, %v3464
  %v3467 = vadd.f32 %v3456, %v3465
  %v3468 = vadd.f32 %v3457, %v3466
  %v3469 = vld [vmem:[%s5 + $0x6a] sm:$0x1]
  %v3470 = vld [vmem:[#allocation4 + $0x28] sm:$0xff]
  %v3471 = vld [vmem:[#allocation4 + $0x60] sm:$0xff]
  %v3472 = vlaneseq
  %v3473 = vshrl.u32 %v3472, 7
  %v3474 = vsub.s32 0, %v3473
  %v3475 = vrot.slane %v3469, %v3474
  %v3476 = vmul.f32 %v3470, %v3475
  %v3477 = vmul.f32 %v3471, %v3475
  %v3478 = vadd.f32 %v3467, %v3476
  %v3479 = vadd.f32 %v3468, %v3477
  %v3480 = vld [vmem:[%s5 + $0x6b] sm:$0x1]
  %v3481 = vld [vmem:[#allocation4 + $0x29] sm:$0xff]
  %v3482 = vld [vmem:[#allocation4 + $0x61] sm:$0xff]
  %v3483 = vlaneseq
  %v3484 = vshrl.u32 %v3483, 7
  %v3485 = vsub.s32 0, %v3484
  %v3486 = vrot.slane %v3480, %v3485
  %v3487 = vmul.f32 %v3481, %v3486
  %v3488 = vmul.f32 %v3482, %v3486
  %v3489 = vadd.f32 %v3478, %v3487
  %v3490 = vadd.f32 %v3479, %v3488
  %v3491 = vld [vmem:[%s5 + $0x6c] sm:$0x1]
  %v3492 = vld [vmem:[#allocation4 + $0x2a] sm:$0xff]
  %v3493 = vld [vmem:[#allocation4 + $0x62] sm:$0xff]
  %v3494 = vlaneseq
  %v3495 = vshrl.u32 %v3494, 7
  %v3496 = vsub.s32 0, %v3495
  %v3497 = vrot.slane %v3491, %v3496
  %v3498 = vmul.f32 %v3492, %v3497
  %v3499 = vmul.f32 %v3493, %v3497
  %v3500 = vadd.f32 %v3489, %v3498
  %v3501 = vadd.f32 %v3490, %v3499
  %v3502 = vld [vmem:[%s5 + $0x6d] sm:$0x1]
  %v3503 = vld [vmem:[#allocation4 + $0x2b] sm:$0xff]
  %v3504 = vld [vmem:[#allocation4 + $0x63] sm:$0xff]
  %v3505 = vlaneseq
  %v3506 = vshrl.u32 %v3505, 7
  %v3507 = vsub.s32 0, %v3506
  %v3508 = vrot.slane %v3502, %v3507
  %v3509 = vmul.f32 %v3503, %v3508
  %v3510 = vmul.f32 %v3504, %v3508
  %v3511 = vadd.f32 %v3500, %v3509
  %v3512 = vadd.f32 %v3501, %v3510
  %v3513 = vld [vmem:[%s5 + $0x6e] sm:$0x1]
  %v3514 = vld [vmem:[#allocation4 + $0x2d] sm:$0xff]
  %v3515 = vld [vmem:[#allocation4 + $0x65] sm:$0xff]
  %v3516 = vlaneseq
  %v3517 = vshrl.u32 %v3516, 7
  %v3518 = vsub.s32 0, %v3517
  %v3519 = vrot.slane %v3513, %v3518
  %v3520 = vmul.f32 %v3514, %v3519
  %v3521 = vmul.f32 %v3515, %v3519
  %v3522 = vadd.f32 %v3511, %v3520
  %v3523 = vadd.f32 %v3512, %v3521
  %v3524 = vld [vmem:[%s5 + $0x6f] sm:$0x1]
  %v3525 = vld [vmem:[#allocation4 + $0x2e] sm:$0xff]
  %v3526 = vld [vmem:[#allocation4 + $0x66] sm:$0xff]
  %v3527 = vlaneseq
  %v3528 = vshrl.u32 %v3527, 7
  %v3529 = vsub.s32 0, %v3528
  %v3530 = vrot.slane %v3524, %v3529
  %v3531 = vmul.f32 %v3525, %v3530
  %v3532 = vmul.f32 %v3526, %v3530
  %v3533 = vadd.f32 %v3522, %v3531
  %v3534 = vadd.f32 %v3523, %v3532
  %v3535 = vld [vmem:[%s5 + $0x70] sm:$0x1]
  %v3536 = vld [vmem:[#allocation4 + $0x2f] sm:$0xff]
  %v3537 = vld [vmem:[#allocation4 + $0x67] sm:$0xff]
  %v3538 = vlaneseq
  %v3539 = vshrl.u32 %v3538, 7
  %v3540 = vsub.s32 0, %v3539
  %v3541 = vrot.slane %v3535, %v3540
  %v3542 = vmul.f32 %v3536, %v3541
  %v3543 = vmul.f32 %v3537, %v3541
  %v3544 = vadd.f32 %v3533, %v3542
  %v3545 = vadd.f32 %v3534, %v3543
  %v3546 = vld [vmem:[%s5 + $0x71] sm:$0x1]
  %v3547 = vld [vmem:[#allocation4 + $0x30] sm:$0xff]
  %v3548 = vld [vmem:[#allocation4 + $0x68] sm:$0xff]
  %v3549 = vlaneseq
  %v3550 = vshrl.u32 %v3549, 7
  %v3551 = vsub.s32 0, %v3550
  %v3552 = vrot.slane %v3546, %v3551
  %v3553 = vmul.f32 %v3547, %v3552
  %v3554 = vmul.f32 %v3548, %v3552
  %v3555 = vadd.f32 %v3544, %v3553
  %v3556 = vadd.f32 %v3545, %v3554
  %v3557 = vld [vmem:[%s5 + $0x72] sm:$0x1]
  %v3558 = vld [vmem:[#allocation4 + $0x31] sm:$0xff]
  %v3559 = vld [vmem:[#allocation4 + $0x69] sm:$0xff]
  %v3560 = vlaneseq
  %v3561 = vshrl.u32 %v3560, 7
  %v3562 = vsub.s32 0, %v3561
  %v3563 = vrot.slane %v3557, %v3562
  %v3564 = vmul.f32 %v3558, %v3563
  %v3565 = vmul.f32 %v3559, %v3563
  %v3566 = vadd.f32 %v3555, %v3564
  %v3567 = vadd.f32 %v3556, %v3565
  %v3568 = vld [vmem:[%s5 + $0x73] sm:$0x1]
  %v3569 = vld [vmem:[#allocation4 + $0x32] sm:$0xff]
  %v3570 = vld [vmem:[#allocation4 + $0x6a] sm:$0xff]
  %v3571 = vlaneseq
  %v3572 = vshrl.u32 %v3571, 7
  %v3573 = vsub.s32 0, %v3572
  %v3574 = vrot.slane %v3568, %v3573
  %v3575 = vmul.f32 %v3569, %v3574
  %v3576 = vmul.f32 %v3570, %v3574
  %v3577 = vadd.f32 %v3566, %v3575
  %v3578 = vadd.f32 %v3567, %v3576
  %v3579 = vld [vmem:[%s5 + $0x74] sm:$0x1]
  %v3580 = vld [vmem:[#allocation4 + $0x33] sm:$0xff]
  %v3581 = vld [vmem:[#allocation4 + $0x6b] sm:$0xff]
  %v3582 = vlaneseq
  %v3583 = vshrl.u32 %v3582, 7
  %v3584 = vsub.s32 0, %v3583
  %v3585 = vrot.slane %v3579, %v3584
  %v3586 = vmul.f32 %v3580, %v3585
  %v3587 = vmul.f32 %v3581, %v3585
  %v3588 = vadd.f32 %v3577, %v3586
  %v3589 = vadd.f32 %v3578, %v3587
  %v3590 = vld [vmem:[%s5 + $0x75] sm:$0x1]
  %v3591 = vld [vmem:[#allocation4 + $0x35] sm:$0xff]
  %v3592 = vld [vmem:[#allocation4 + $0x6d] sm:$0xff]
  %v3593 = vlaneseq
  %v3594 = vshrl.u32 %v3593, 7
  %v3595 = vsub.s32 0, %v3594
  %v3596 = vrot.slane %v3590, %v3595
  %v3597 = vmul.f32 %v3591, %v3596
  %v3598 = vmul.f32 %v3592, %v3596
  %v3599 = vadd.f32 %v3588, %v3597
  %v3600 = vadd.f32 %v3589, %v3598
  %v3601 = vld [vmem:[%s5 + $0x76] sm:$0x1]
  %v3602 = vld [vmem:[#allocation4 + $0x36] sm:$0xff]
  %v3603 = vld [vmem:[#allocation4 + $0x6e] sm:$0xff]
  %v3604 = vlaneseq
  %v3605 = vshrl.u32 %v3604, 7
  %v3606 = vsub.s32 0, %v3605
  %v3607 = vrot.slane %v3601, %v3606
  %v3608 = vmul.f32 %v3602, %v3607
  %v3609 = vmul.f32 %v3603, %v3607
  %v3610 = vadd.f32 %v3599, %v3608
  %v3611 = vadd.f32 %v3600, %v3609
  %v3612 = vld [vmem:[%s5 + $0x77] sm:$0x1]
  %v3613 = vld [vmem:[#allocation4 + $0x37] sm:$0xff]
  %v3614 = vld [vmem:[#allocation4 + $0x6f] sm:$0xff]
  %v3615 = vlaneseq
  %v3616 = vshrl.u32 %v3615, 7
  %v3617 = vsub.s32 0, %v3616
  %v3618 = vrot.slane %v3612, %v3617
  %v3619 = vmul.f32 %v3613, %v3618
  %v3620 = vmul.f32 %v3614, %v3618
  %v3621 = vadd.f32 %v3610, %v3619
  %v3622 = vadd.f32 %v3611, %v3620
  %v3623 = vld [vmem:[%s5 + $0x78] sm:$0x1]
  %v3624 = vld [vmem:[#allocation4 + $0x38] sm:$0xff]
  %v3625 = vld [vmem:[#allocation4 + $0x70] sm:$0xff]
  %v3626 = vlaneseq
  %v3627 = vshrl.u32 %v3626, 7
  %v3628 = vsub.s32 0, %v3627
  %v3629 = vrot.slane %v3623, %v3628
  %v3630 = vmul.f32 %v3624, %v3629
  %v3631 = vmul.f32 %v3625, %v3629
  %v3632 = vadd.f32 %v3621, %v3630
  %v3633 = vadd.f32 %v3622, %v3631
  %v3634 = vld [vmem:[%s5 + $0x79] sm:$0x1]
  %v3635 = vld [vmem:[#allocation4 + $0x39] sm:$0xff]
  %v3636 = vld [vmem:[#allocation4 + $0x71] sm:$0xff]
  %v3637 = vlaneseq
  %v3638 = vshrl.u32 %v3637, 7
  %v3639 = vsub.s32 0, %v3638
  %v3640 = vrot.slane %v3634, %v3639
  %v3641 = vmul.f32 %v3635, %v3640
  %v3642 = vmul.f32 %v3636, %v3640
  %v3643 = vadd.f32 %v3632, %v3641
  %v3644 = vadd.f32 %v3633, %v3642
  %v3645 = vld [vmem:[%s5 + $0x7a] sm:$0x1]
  %v3646 = vld [vmem:[#allocation4 + $0x3a] sm:$0xff]
  %v3647 = vld [vmem:[#allocation4 + $0x72] sm:$0xff]
  %v3648 = vlaneseq
  %v3649 = vshrl.u32 %v3648, 7
  %v3650 = vsub.s32 0, %v3649
  %v3651 = vrot.slane %v3645, %v3650
  %v3652 = vmul.f32 %v3646, %v3651
  %v3653 = vmul.f32 %v3647, %v3651
  %v3654 = vadd.f32 %v3643, %v3652
  %v3655 = vadd.f32 %v3644, %v3653
  %v3656 = vld [vmem:[%s5 + $0x7b] sm:$0x1]
  %v3657 = vld [vmem:[#allocation4 + $0x3b] sm:$0xff]
  %v3658 = vld [vmem:[#allocation4 + $0x73] sm:$0xff]
  %v3659 = vlaneseq
  %v3660 = vshrl.u32 %v3659, 7
  %v3661 = vsub.s32 0, %v3660
  %v3662 = vrot.slane %v3656, %v3661
  %v3663 = vmul.f32 %v3657, %v3662
  %v3664 = vmul.f32 %v3658, %v3662
  %v3665 = vadd.f32 %v3654, %v3663
  %v3666 = vadd.f32 %v3655, %v3664
  %v3667 = vld [vmem:[%s5 + $0x7c] sm:$0x1]
  %v3668 = vld [vmem:[#allocation4 + $0x3d] sm:$0xff]
  %v3669 = vld [vmem:[#allocation4 + $0x75] sm:$0xff]
  %v3670 = vlaneseq
  %v3671 = vshrl.u32 %v3670, 7
  %v3672 = vsub.s32 0, %v3671
  %v3673 = vrot.slane %v3667, %v3672
  %v3674 = vmul.f32 %v3668, %v3673
  %v3675 = vmul.f32 %v3669, %v3673
  %v3676 = vadd.f32 %v3665, %v3674
  %v3677 = vadd.f32 %v3666, %v3675
  %v3678 = vld [vmem:[%s5 + $0x7d] sm:$0x1]
  %v3679 = vld [vmem:[#allocation4 + $0x3e] sm:$0xff]
  %v3680 = vld [vmem:[#allocation4 + $0x76] sm:$0xff]
  %v3681 = vlaneseq
  %v3682 = vshrl.u32 %v3681, 7
  %v3683 = vsub.s32 0, %v3682
  %v3684 = vrot.slane %v3678, %v3683
  %v3685 = vmul.f32 %v3679, %v3684
  %v3686 = vmul.f32 %v3680, %v3684
  %v3687 = vadd.f32 %v3676, %v3685
  %v3688 = vadd.f32 %v3677, %v3686
  %v3689 = vld [vmem:[%s5 + $0x7e] sm:$0x1]
  %v3690 = vld [vmem:[#allocation4 + $0x3f] sm:$0xff]
  %v3691 = vld [vmem:[#allocation4 + $0x77] sm:$0xff]
  %v3692 = vlaneseq
  %v3693 = vshrl.u32 %v3692, 7
  %v3694 = vsub.s32 0, %v3693
  %v3695 = vrot.slane %v3689, %v3694
  %v3696 = vmul.f32 %v3690, %v3695
  %v3697 = vmul.f32 %v3691, %v3695
  %v3698 = vadd.f32 %v3687, %v3696
  %v3699 = vadd.f32 %v3688, %v3697
  %v3700 = vld [vmem:[%s5 + $0x7f] sm:$0x1]
  %v3701 = vld [vmem:[#allocation4 + $0x40] sm:$0xff]
  %v3702 = vld [vmem:[#allocation4 + $0x78] sm:$0xff]
  %v3703 = vlaneseq
  %v3704 = vshrl.u32 %v3703, 7
  %v3705 = vsub.s32 0, %v3704
  %v3706 = vrot.slane %v3700, %v3705
  %v3707 = vmul.f32 %v3701, %v3706
  %v3708 = vmul.f32 %v3702, %v3706
  %v3709 = vadd.f32 %v3698, %v3707
  %v3710 = vadd.f32 %v3699, %v3708
  %v3711 = vld [vmem:[%s5 + $0x80] sm:$0x1]
  %v3712 = vld [vmem:[#allocation4 + $0x41] sm:$0xff]
  %v3713 = vld [vmem:[#allocation4 + $0x79] sm:$0xff]
  %v3714 = vlaneseq
  %v3715 = vshrl.u32 %v3714, 7
  %v3716 = vsub.s32 0, %v3715
  %v3717 = vrot.slane %v3711, %v3716
  %v3718 = vmul.f32 %v3712, %v3717
  %v3719 = vmul.f32 %v3713, %v3717
  %v3720 = vadd.f32 %v3709, %v3718
  %v3721 = vadd.f32 %v3710, %v3719
  %v3722 = vld [vmem:[%s5 + $0x81] sm:$0x1]
  %v3723 = vld [vmem:[#allocation4 + $0x42] sm:$0xff]
  %v3724 = vld [vmem:[#allocation4 + $0x7a] sm:$0xff]
  %v3725 = vlaneseq
  %v3726 = vshrl.u32 %v3725, 7
  %v3727 = vsub.s32 0, %v3726
  %v3728 = vrot.slane %v3722, %v3727
  %v3729 = vmul.f32 %v3723, %v3728
  %v3730 = vmul.f32 %v3724, %v3728
  %v3731 = vadd.f32 %v3720, %v3729
  %v3732 = vadd.f32 %v3721, %v3730
  %v3733 = vld [vmem:[%s5 + $0x82] sm:$0x1]
  %v3734 = vld [vmem:[#allocation4 + $0x43] sm:$0xff]
  %v3735 = vld [vmem:[#allocation4 + $0x7b] sm:$0xff]
  %v3736 = vlaneseq
  %v3737 = vshrl.u32 %v3736, 7
  %v3738 = vsub.s32 0, %v3737
  %v3739 = vrot.slane %v3733, %v3738
  %v3740 = vmul.f32 %v3734, %v3739
  %v3741 = vmul.f32 %v3735, %v3739
  %v3742 = vadd.f32 %v3731, %v3740
  %v3743 = vadd.f32 %v3732, %v3741
  %v3744 = vld [vmem:[%s5 + $0x83] sm:$0x1]
  %v3745 = vld [vmem:[#allocation4 + $0x45] sm:$0xff]
  %v3746 = vld [vmem:[#allocation4 + $0x7d] sm:$0xff]
  %v3747 = vlaneseq
  %v3748 = vshrl.u32 %v3747, 7
  %v3749 = vsub.s32 0, %v3748
  %v3750 = vrot.slane %v3744, %v3749
  %v3751 = vmul.f32 %v3745, %v3750
  %v3752 = vmul.f32 %v3746, %v3750
  %v3753 = vadd.f32 %v3742, %v3751
  %v3754 = vadd.f32 %v3743, %v3752
  %v3755 = vld [vmem:[%s5 + $0x84] sm:$0x1]
  %v3756 = vld [vmem:[#allocation4 + $0x46] sm:$0xff]
  %v3757 = vld [vmem:[#allocation4 + $0x7e] sm:$0xff]
  %v3758 = vlaneseq
  %v3759 = vshrl.u32 %v3758, 7
  %v3760 = vsub.s32 0, %v3759
  %v3761 = vrot.slane %v3755, %v3760
  %v3762 = vmul.f32 %v3756, %v3761
  %v3763 = vmul.f32 %v3757, %v3761
  %v3764 = vadd.f32 %v3753, %v3762
  %v3765 = vadd.f32 %v3754, %v3763
  %v3766 = vld [vmem:[%s5 + $0x85] sm:$0x1]
  %v3767 = vld [vmem:[#allocation4 + $0x47] sm:$0xff]
  %v3768 = vld [vmem:[#allocation4 + $0x7f] sm:$0xff]
  %v3769 = vlaneseq
  %v3770 = vshrl.u32 %v3769, 7
  %v3771 = vsub.s32 0, %v3770
  %v3772 = vrot.slane %v3766, %v3771
  %v3773 = vmul.f32 %v3767, %v3772
  %v3774 = vmul.f32 %v3768, %v3772
  %v3775 = vadd.f32 %v3764, %v3773
  %v3776 = vadd.f32 %v3765, %v3774
  %v3777 = vld [vmem:[%s5 + $0x86] sm:$0x1]
  %v3778 = vld [vmem:[#allocation4 + $0x48] sm:$0xff]
  %v3779 = vld [vmem:[#allocation4 + $0x80] sm:$0xff]
  %v3780 = vlaneseq
  %v3781 = vshrl.u32 %v3780, 7
  %v3782 = vsub.s32 0, %v3781
  %v3783 = vrot.slane %v3777, %v3782
  %v3784 = vmul.f32 %v3778, %v3783
  %v3785 = vmul.f32 %v3779, %v3783
  %v3786 = vadd.f32 %v3775, %v3784
  %v3787 = vadd.f32 %v3776, %v3785
  %v3788 = vld [vmem:[%s5 + $0x87] sm:$0x1]
  %v3789 = vld [vmem:[#allocation4 + $0x49] sm:$0xff]
  %v3790 = vld [vmem:[#allocation4 + $0x81] sm:$0xff]
  %v3791 = vlaneseq
  %v3792 = vshrl.u32 %v3791, 7
  %v3793 = vsub.s32 0, %v3792
  %v3794 = vrot.slane %v3788, %v3793
  %v3795 = vmul.f32 %v3789, %v3794
  %v3796 = vmul.f32 %v3790, %v3794
  %v3797 = vadd.f32 %v3786, %v3795
  %v3798 = vadd.f32 %v3787, %v3796
  %v3799 = vld [vmem:[%s5 + $0x88] sm:$0x1]
  %v3800 = vld [vmem:[#allocation4 + $0x4a] sm:$0xff]
  %v3801 = vld [vmem:[#allocation4 + $0x82] sm:$0xff]
  %v3802 = vlaneseq
  %v3803 = vshrl.u32 %v3802, 7
  %v3804 = vsub.s32 0, %v3803
  %v3805 = vrot.slane %v3799, %v3804
  %v3806 = vmul.f32 %v3800, %v3805
  %v3807 = vmul.f32 %v3801, %v3805
  %v3808 = vadd.f32 %v3797, %v3806
  %v3809 = vadd.f32 %v3798, %v3807
  %v3810 = vld [vmem:[%s5 + $0x89] sm:$0x1]
  %v3811 = vld [vmem:[#allocation4 + $0x4b] sm:$0xff]
  %v3812 = vld [vmem:[#allocation4 + $0x83] sm:$0xff]
  %v3813 = vlaneseq
  %v3814 = vshrl.u32 %v3813, 7
  %v3815 = vsub.s32 0, %v3814
  %v3816 = vrot.slane %v3810, %v3815
  %v3817 = vmul.f32 %v3811, %v3816
  %v3818 = vmul.f32 %v3812, %v3816
  %v3819 = vadd.f32 %v3808, %v3817
  %v3820 = vadd.f32 %v3809, %v3818
  %v3821 = vld [vmem:[%s5 + $0x8a] sm:$0x1]
  %v3822 = vld [vmem:[#allocation4 + $0x4d] sm:$0xff]
  %v3823 = vld [vmem:[#allocation4 + $0x85] sm:$0xff]
  %v3824 = vlaneseq
  %v3825 = vshrl.u32 %v3824, 7
  %v3826 = vsub.s32 0, %v3825
  %v3827 = vrot.slane %v3821, %v3826
  %v3828 = vmul.f32 %v3822, %v3827
  %v3829 = vmul.f32 %v3823, %v3827
  %v3830 = vadd.f32 %v3819, %v3828
  %v3831 = vadd.f32 %v3820, %v3829
  %v3832 = vld [vmem:[%s5 + $0x8b] sm:$0x1]
  %v3833 = vld [vmem:[#allocation4 + $0x4e] sm:$0xff]
  %v3834 = vld [vmem:[#allocation4 + $0x86] sm:$0xff]
  %v3835 = vlaneseq
  %v3836 = vshrl.u32 %v3835, 7
  %v3837 = vsub.s32 0, %v3836
  %v3838 = vrot.slane %v3832, %v3837
  %v3839 = vmul.f32 %v3833, %v3838
  %v3840 = vmul.f32 %v3834, %v3838
  %v3841 = vadd.f32 %v3830, %v3839
  %v3842 = vadd.f32 %v3831, %v3840
  %v3843 = vld [vmem:[%s5 + $0x8c] sm:$0x1]
  %v3844 = vld [vmem:[#allocation4 + $0x4f] sm:$0xff]
  %v3845 = vld [vmem:[#allocation4 + $0x87] sm:$0xff]
  %v3846 = vlaneseq
  %v3847 = vshrl.u32 %v3846, 7
  %v3848 = vsub.s32 0, %v3847
  %v3849 = vrot.slane %v3843, %v3848
  %v3850 = vmul.f32 %v3844, %v3849
  %v3851 = vmul.f32 %v3845, %v3849
  %v3852 = vadd.f32 %v3841, %v3850
  %v3853 = vadd.f32 %v3842, %v3851
  %v3854 = vld [vmem:[%s5 + $0x8d] sm:$0x1]
  %v3855 = vld [vmem:[#allocation4 + $0x50] sm:$0xff]
  %v3856 = vld [vmem:[#allocation4 + $0x88] sm:$0xff]
  %v3857 = vlaneseq
  %v3858 = vshrl.u32 %v3857, 7
  %v3859 = vsub.s32 0, %v3858
  %v3860 = vrot.slane %v3854, %v3859
  %v3861 = vmul.f32 %v3855, %v3860
  %v3862 = vmul.f32 %v3856, %v3860
  %v3863 = vadd.f32 %v3852, %v3861
  %v3864 = vadd.f32 %v3853, %v3862
  %v3865 = vld [vmem:[%s5 + $0x8e] sm:$0x1]
  %v3866 = vld [vmem:[#allocation4 + $0x51] sm:$0xff]
  %v3867 = vld [vmem:[#allocation4 + $0x89] sm:$0xff]
  %v3868 = vlaneseq
  %v3869 = vshrl.u32 %v3868, 7
  %v3870 = vsub.s32 0, %v3869
  %v3871 = vrot.slane %v3865, %v3870
  %v3872 = vmul.f32 %v3866, %v3871
  %v3873 = vmul.f32 %v3867, %v3871
  %v3874 = vadd.f32 %v3863, %v3872
  %v3875 = vadd.f32 %v3864, %v3873
  %v3876 = vld [vmem:[%s5 + $0x8f] sm:$0x1]
  %v3877 = vld [vmem:[#allocation4 + $0x52] sm:$0xff]
  %v3878 = vld [vmem:[#allocation4 + $0x8a] sm:$0xff]
  %v3879 = vlaneseq
  %v3880 = vshrl.u32 %v3879, 7
  %v3881 = vsub.s32 0, %v3880
  %v3882 = vrot.slane %v3876, %v3881
  %v3883 = vmul.f32 %v3877, %v3882
  %v3884 = vmul.f32 %v3878, %v3882
  %v3885 = vadd.f32 %v3874, %v3883
  %v3886 = vadd.f32 %v3875, %v3884
  %v3887 = vld [vmem:[%s5 + $0x90] sm:$0x1]
  %v3888 = vld [vmem:[#allocation4 + $0x53] sm:$0xff]
  %v3889 = vld [vmem:[#allocation4 + $0x8b] sm:$0xff]
  %v3890 = vlaneseq
  %v3891 = vshrl.u32 %v3890, 7
  %v3892 = vsub.s32 0, %v3891
  %v3893 = vrot.slane %v3887, %v3892
  %v3894 = vmul.f32 %v3888, %v3893
  %v3895 = vmul.f32 %v3889, %v3893
  %v3896 = vadd.f32 %v3885, %v3894
  %v3897 = vadd.f32 %v3886, %v3895
  %v3899 = vrot.slane %v3897, 7
  %v3901 = vsel %vm3245, %v3896, %v3899
  %v3902 = vld [vmem:[%s5 + $0x99] sm:$0x1]
  %v3903 = vlaneseq
  %v3904 = vshrl.u32 %v3903, 7
  %v3905 = vsub.s32 0, %v3904
  %v3906 = vrot.slane %v3902, %v3905
  %v3907 = vadd.f32 %v3901, %v3906
  %v3908 = vld [vmem:[%s5 + $0x9a] sm:$0x1]
  %v3909 = vld [vmem:[%s5 + $0x9b] sm:$0x1]
  %vm3910 = vcmask 58368
  %v3911 = vsel %vm3910, %v3907, 0.0
  %3912 = vadd.xlane.f32.xlu0 %v3911
  %v3913 = vpop.xlane.xlu0 %3912
  %v3914 = vrcp.pop 8.0
  %v3915 = vmul.f32 %v3913, %v3914
  %v3916 = vsub.f32 %v3907, %v3915
  %v3917 = vmul.f32 %v3916, %v3916
  %v3918 = vsel %vm3910, %v3917, 0.0
  %3919 = vadd.xlane.f32.xlu0 %v3918
  %v3920 = vpop.xlane.xlu0 %3919
  %v3921 = vmul.f32 %v3920, %v3914
  %v3922 = vadd.f32 %v3921, 1e-06
  %v3923 = vrsqrt.pop %v3922
  %v3924 = vmul.f32 %v3916, %v3923
  %v3925 = vlaneseq
  %v3926 = vshrl.u32 %v3925, 7
  %v3927 = vsub.s32 0, %v3926
  %v3928 = vrot.slane %v3908, %v3927
  %v3929 = vmul.f32 %v3924, %v3928
  %v3930 = vlaneseq
  %v3931 = vshrl.u32 %v3930, 7
  %v3932 = vsub.s32 0, %v3931
  %v3933 = vrot.slane %v3909, %v3932
  %v3934 = vadd.f32 %v3929, %v3933
  %v3935 = vld [vmem:[%s6] sm:$0xff]
  %v3936 = vld [vmem:[%s6 + $0x8] sm:$0x1]
  %v3937 = vlaneseq
  %v3938 = vshrl.u32 %v3937, 7
  %v3939 = vsub.s32 0, %v3938
  %v3940 = vrot.slane %v3936, %v3939
  %v3942 = vsel %vm3333, %v3934, 0
  %3944 = vmatprep.subr.mxu0 0.0
  %3945 = vmatpush1.msra.mxu0 %v3935
  %3946 = vmatprep.subr.mxu0 0.0
  %3947 = vmatpush1.msra.mxu0 0.0
  %3948 = vmatprep.subr.mxu0 0.0
  %3949 = vmatpush1.msra.mxu0 0.0
  %3950 = vmatprep.subr.mxu0 0.0
  %3951 = vmatpush1.msra.mxu0 0.0
  %3952 = vmatprep.subr.mxu0 0.0
  %3953 = vmatpush1.msra.mxu0 0.0
  %3954 = vmatprep.subr.mxu0 0.0
  %3955 = vmatpush1.msra.mxu0 0.0
  %3956 = vmatprep.subr.mxu0 0.0
  %3957 = vmatpush1.msra.mxu0 0.0
  %3958 = vmatprep.subr.mxu0 0.0
  %3959 = vmatpush1.msra.mxu0 0.0
  %3960 = vmatprep.subr.mxu0 0.0
  %3961 = vmatpush1.msra.mxu0 0.0
  %3962 = vmatprep.subr.mxu0 0.0
  %3963 = vmatpush1.msra.mxu0 0.0
  %3964 = vmatprep.subr.mxu0 0.0
  %3965 = vmatpush1.msra.mxu0 0.0
  %3966 = vmatprep.subr.mxu0 0.0
  %3967 = vmatpush1.msra.mxu0 0.0
  %3968 = vmatprep.subr.mxu0 0.0
  %3969 = vmatpush1.msra.mxu0 0.0
  %3970 = vmatprep.subr.mxu0 0.0
  %3971 = vmatpush1.msra.mxu0 0.0
  %3972 = vmatprep.subr.mxu0 0.0
  %3973 = vmatpush1.msra.mxu0 0.0
  %3974 = vmatprep.subr.mxu0 0.0
  %3975 = vmatpush1.msra.mxu0 0.0
  %3976 = vmatprep.subr.mxu0 0.0
  %3977 = vmatpush1.msra.mxu0 0.0
  %3978 = vmatprep.subr.mxu0 0.0
  %3979 = vmatpush1.msra.mxu0 0.0
  %3980 = vmatprep.subr.mxu0 0.0
  %3981 = vmatpush1.msra.mxu0 0.0
  %3982 = vmatprep.subr.mxu0 0.0
  %3983 = vmatpush1.msra.mxu0 0.0
  %3984 = vmatprep.subr.mxu0 0.0
  %3985 = vmatpush1.msra.mxu0 0.0
  %3986 = vmatprep.subr.mxu0 0.0
  %3987 = vmatpush1.msra.mxu0 0.0
  %3988 = vmatprep.subr.mxu0 0.0
  %3989 = vmatpush1.msra.mxu0 0.0
  %3990 = vmatprep.subr.mxu0 0.0
  %3991 = vmatpush1.msra.mxu0 0.0
  %3992 = vmatprep.subr.mxu0 0.0
  %3993 = vmatpush1.msra.mxu0 0.0
  %3994 = vmatprep.subr.mxu0 0.0
  %3995 = vmatpush1.msra.mxu0 0.0
  %3996 = vmatprep.subr.mxu0 0.0
  %3997 = vmatpush1.msra.mxu0 0.0
  %3998 = vmatprep.subr.mxu0 0.0
  %3999 = vmatpush1.msra.mxu0 0.0
  %4000 = vmatprep.subr.mxu0 0.0
  %4001 = vmatpush1.msra.mxu0 0.0
  %4002 = vmatprep.subr.mxu0 0.0
  %4003 = vmatpush1.msra.mxu0 0.0
  %4004 = vmatprep.subr.mxu0 0.0
  %4005 = vmatpush1.msra.mxu0 0.0
  %4006 = vmatprep.subr.mxu0 0.0
  %4007 = vmatpush1.msra.mxu0 0.0
  %4008 = vmatprep.mubr.f32.mxu0 0.0
  %4009 = vmatmul.mubr.f32.gmra.mrb[0].mxu0 %v3942
  %v4010 = vpop.f32.mrb[0].mxu0
  %v4011 = vadd.f32 %v3940, %v4010
  %v4012 = vpop.f32.mrb[0].mxu0
  %4013 = vdwg.mxu0
  %v4014 = vmul.f32 %v4011, 0.70710677
  %v4015 = vand.u32 2147483647, %v4014
  %v4016 = vmul.f32 %v4015, 0.3275911
  %v4017 = vadd.f32 %v4016, 1.0
  %v4018 = vrcp.pop %v4017
  %v4019 = vmul.f32 %v4017, %v4018
  %v4020 = vsub.f32 2.0, %v4019
  %v4021 = vmul.f32 %v4018, %v4020
  %v4022 = vmul.f32 %v4021, 1.0614054
  %v4023 = vsub.f32 %v4022, 1.4531521
  %v4024 = vmul.f32 %v4023, %v4021
  %v4025 = vadd.f32 %v4024, 1.4214138
  %v4026 = vmul.f32 %v4025, %v4021
  %v4027 = vsub.f32 %v4026, 0.28449672
  %v4028 = vmul.f32 %v4027, %v4021
  %v4029 = vadd.f32 %v4028, 0.2548296
  %v4030 = vmul.f32 %v4029, %v4021
  %v4031 = vsub.f32 0.0, %v4015
  %v4032 = vmul.f32 %v4031, %v4015
  %v4033 = vmul.f32 %v4032, 1.442695
  %v4034 = vpow.pop %v4033
  %v4035 = vmul.f32 %v4030, %v4034
  %v4036 = vsub.f32 1.0, %v4035
  %vm4037 = vcmp.ge.f32.partialorder %v4014, 0.0
  %v4038 = vsub.f32 0.0, %v4036
  %v4039 = vsel %vm4037, %v4036, %v4038
  %v4040 = vmul.f32 %v4011, 0.5
  %v4041 = vadd.f32 %v4039, 1.0
  %v4042 = vmul.f32 %v4040, %v4041
  %v4043 = vld [vmem:[%s5 + $0x40] sm:$0xff]
  %v4044 = vld [vmem:[%s5 + $0x48] sm:$0xff]
  %v4045 = vld [vmem:[%s5 + $0x50] sm:$0xff]
  %v4046 = vld [vmem:[%s5 + $0x58] sm:$0xff]
  %v4047 = vld [vmem:[%s5 + $0x9c] sm:$0x1]
  %v4048 = vlaneseq
  %v4049 = vshrl.u32 %v4048, 7
  %v4050 = vsub.s32 0, %v4049
  %v4051 = vrot.slane %v4047, %v4050
  %v4053 = vsel %vm1976, %v4042, 0
  %4055 = vmatprep.subr.mxu0 0.0
  %4056 = vmatpush1.msra.mxu0 %v4043
  %4057 = vmatprep.subr.mxu0 0.0
  %4058 = vmatpush1.msra.mxu0 %v4044
  %4059 = vmatprep.subr.mxu0 0.0
  %4060 = vmatpush1.msra.mxu0 %v4045
  %4061 = vmatprep.subr.mxu0 0.0
  %4062 = vmatpush1.msra.mxu0 %v4046
  %4063 = vmatprep.subr.mxu0 0.0
  %4064 = vmatpush1.msra.mxu0 0.0
  %4065 = vmatprep.subr.mxu0 0.0
  %4066 = vmatpush1.msra.mxu0 0.0
  %4067 = vmatprep.subr.mxu0 0.0
  %4068 = vmatpush1.msra.mxu0 0.0
  %4069 = vmatprep.subr.mxu0 0.0
  %4070 = vmatpush1.msra.mxu0 0.0
  %4071 = vmatprep.subr.mxu0 0.0
  %4072 = vmatpush1.msra.mxu0 0.0
  %4073 = vmatprep.subr.mxu0 0.0
  %4074 = vmatpush1.msra.mxu0 0.0
  %4075 = vmatprep.subr.mxu0 0.0
  %4076 = vmatpush1.msra.mxu0 0.0
  %4077 = vmatprep.subr.mxu0 0.0
  %4078 = vmatpush1.msra.mxu0 0.0
  %4079 = vmatprep.subr.mxu0 0.0
  %4080 = vmatpush1.msra.mxu0 0.0
  %4081 = vmatprep.subr.mxu0 0.0
  %4082 = vmatpush1.msra.mxu0 0.0
  %4083 = vmatprep.subr.mxu0 0.0
  %4084 = vmatpush1.msra.mxu0 0.0
  %4085 = vmatprep.subr.mxu0 0.0
  %4086 = vmatpush1.msra.mxu0 0.0
  %4087 = vmatprep.subr.mxu0 0.0
  %4088 = vmatpush1.msra.mxu0 0.0
  %4089 = vmatprep.subr.mxu0 0.0
  %4090 = vmatpush1.msra.mxu0 0.0
  %4091 = vmatprep.subr.mxu0 0.0
  %4092 = vmatpush1.msra.mxu0 0.0
  %4093 = vmatprep.subr.mxu0 0.0
  %4094 = vmatpush1.msra.mxu0 0.0
  %4095 = vmatprep.subr.mxu0 0.0
  %4096 = vmatpush1.msra.mxu0 0.0
  %4097 = vmatprep.subr.mxu0 0.0
  %4098 = vmatpush1.msra.mxu0 0.0
  %4099 = vmatprep.subr.mxu0 0.0
  %4100 = vmatpush1.msra.mxu0 0.0
  %4101 = vmatprep.subr.mxu0 0.0
  %4102 = vmatpush1.msra.mxu0 0.0
  %4103 = vmatprep.subr.mxu0 0.0
  %4104 = vmatpush1.msra.mxu0 0.0
  %4105 = vmatprep.subr.mxu0 0.0
  %4106 = vmatpush1.msra.mxu0 0.0
  %4107 = vmatprep.subr.mxu0 0.0
  %4108 = vmatpush1.msra.mxu0 0.0
  %4109 = vmatprep.subr.mxu0 0.0
  %4110 = vmatpush1.msra.mxu0 0.0
  %4111 = vmatprep.subr.mxu0 0.0
  %4112 = vmatpush1.msra.mxu0 0.0
  %4113 = vmatprep.subr.mxu0 0.0
  %4114 = vmatpush1.msra.mxu0 0.0
  %4115 = vmatprep.subr.mxu0 0.0
  %4116 = vmatpush1.msra.mxu0 0.0
  %4117 = vmatprep.subr.mxu0 0.0
  %4118 = vmatpush1.msra.mxu0 0.0
  %4119 = vmatprep.mubr.f32.mxu0 0.0
  %4120 = vmatmul.mubr.f32.gmra.mrb[0].mxu0 %v4053
  %v4121 = vpop.f32.mrb[0].mxu0
  %v4122 = vadd.f32 %v4051, %v4121
  %v4123 = vpop.f32.mrb[0].mxu0
  %4124 = vdwg.mxu0
  %v4125 = vld [vmem:[%s5 + $0x9d] sm:$0x1]
  %v4126 = vlaneseq
  %v4127 = vshrl.u32 %v4126, 7
  %v4128 = vsub.s32 0, %v4127
  %v4129 = vrot.slane %v4125, %v4128
  %v4130 = vmul.f32 %v4129, %v4122
  %v4131 = vadd.f32 %v3330, %v4130
  %v4132 = vld [vmem:[%s7] sm:$0xff]
  %v4133 = vld [vmem:[%s7 + $0x8] sm:$0xff]
  %v4134 = vld [vmem:[%s7 + $0x10] sm:$0xff]
  %v4135 = vld [vmem:[%s7 + $0x18] sm:$0xff]
  %v4136 = vld [vmem:[%s7 + $0x20] sm:$0xff]
  %v4137 = vld [vmem:[%s7 + $0x28] sm:$0xff]
  %v4138 = vld [vmem:[%s7 + $0x30] sm:$0xff]
  %v4139 = vld [vmem:[%s7 + $0x38] sm:$0xff]
  %v4140 = vld [vmem:[%s7 + $0x40] sm:$0x1]
  %v4141 = vand.u32 2147483647, %v4132
  %vm4142 = vcmp.le.f32.partialorder %v4141, 0.7853982
  %vm4143 = vcmp.lt.s32.totalorder %v4132, 0
  %v4144 = vand.u32 %v4132, 2139095040
  %v4145 = vshrl.u32 %v4144, 23
  %v4146 = vsub.s32 %v4145, 127
  %v4147 = vand.u32 2147483647, %v4132
  %v4148 = vand.u32 %v4147, 8388607
  %v4149 = vor.u32 %v4148, 8388608
  %v4150 = vsub.s32 0, %v4149
  %v4151 = vadd.s32 %v4146, 1
  %vm4152 = vcmp.gt.s32.totalorder %v4151, 0
  %v4153 = vsel %vm4152, %v4151, 0
  %v4154 = vshrl.u32 %v4153, 5
  %v4155 = vand.u32 %v4153, 31
  %v4156 = vsub.s32 32, %v4155
  %v4157 = vshrl.u32 683565275, %v4156
  %v4158 = vshll.u32 683565275, %v4155
  %v4159 = vshrl.u32 2475754826, %v4156
  %v4160 = vor.u32 %v4158, %v4159
  %v4161 = vshll.u32 2475754826, %v4155
  %v4162 = vshrl.u32 2131351028, %v4156
  %v4163 = vor.u32 %v4161, %v4162
  %v4164 = vshll.u32 2131351028, %v4155
  %v4165 = vshrl.u32 2102212464, %v4156
  %v4166 = vor.u32 %v4164, %v4165
  %v4167 = vshll.u32 2102212464, %v4155
  %v4168 = vshrl.u32 920167782, %v4156
  %v4169 = vor.u32 %v4167, %v4168
  %v4170 = vshll.u32 920167782, %v4155
  %v4171 = vshrl.u32 1326507024, %v4156
  %v4172 = vor.u32 %v4170, %v4171
  %vm4173 = vcmp.lt.s32.totalorder %v4154, 1
  %vm4174 = vcmp.lt.s32.totalorder %v4154, 2
  %vm4175 = vcmp.lt.s32.totalorder %v4154, 3
  %vm4176 = vcmp.lt.s32.totalorder %v4154, 4
  %v4177 = vsel %vm4173, %v4157, %v4160
  %v4178 = vsel %vm4176, %v4166, 2102212464
  %v4179 = vsel %vm4175, %v4163, %v4178
  %v4180 = vsel %vm4174, %v4177, %v4179
  %v4181 = vsel %vm4173, %v4160, %v4163
  %v4182 = vsel %vm4176, %v4169, 920167782
  %v4183 = vsel %vm4175, %v4166, %v4182
  %v4184 = vsel %vm4174, %v4181, %v4183
  %v4185 = vsel %vm4173, %v4163, %v4166
  %v4186 = vsel %vm4176, %v4172, 1326507024
  %v4187 = vsel %vm4175, %v4169, %v4186
  %v4188 = vsel %vm4174, %v4185, %v4187
  %v4189 = vshll.u32 %v4149, 8
  %v4190 = vmul.u32.u64.compose %v4189, %v4188
  %v4191 = vextract.low.u32 %v4190
  %v4192 = vextract.high.u32 %v4190
  %v4193 = vmul.u32.u64.compose %v4189, %v4184
  %v4194 = vextract.low.u32 %v4193
  %v4195 = vextract.high.u32 %v4193
  %v4196 = vmul.u32 %v4189, %v4180
  %v4197 = vadd.s32 %v4192, %v4194
  %vm4198 = vc.u32 %v4192, %v4194
  %v4199 = vadd.s32 %v4195, 1
  %v4200 = vsel %vm4198, %v4199, %v4195
  %v4201 = vadd.s32 %v4196, %v4200
  %v4202 = vadd.s32 %v4201, 536870912
  %v4203 = vshrl.u32 %v4202, 30
  %v4204 = vshll.u32 %v4203, 30
  %v4205 = vsub.s32 %v4201, %v4204
  %vm4206 = vcmp.lt.s32.totalorder %v4205, 0
  %v4207 = vsub.s32 0, %v4205
  %v4208 = vsel %vm4206, %v4207, %v4205
  %v4209 = vclz %v4208
  %v4210 = vsub.s32 %v4209, 2
  %vm4211 = vcmp.gt.s32.totalorder 0, %v4210
  %v4212 = vsel %vm4211, 0, %v4210
  %v4213 = vsub.s32 32, %v4212
  %v4214 = vshll.u32 %v4205, %v4212
  %v4215 = vshrl.u32 %v4197, %v4213
  %v4216 = vor.u32 %v4214, %v4215
  %v4217 = vsub.s32 4294967266, %v4212
  %v4218 = vadd.s32 %v4217, 127
  %v4219 = vshll.u32 %v4218, 23
  %v4220 = vor.u32 4788187, %v4219
  %v4221 = vand.u32 2147483647, %v4220
  %v4223 = vcvt.s32.f32 %v4216
  %v4224 = vmul.f32 %v4223, %v4221
  %v4225 = vxor.u32 %v4224, 2147483648
  %v4226 = vsel %vm4143, %v4225, %v4224
  %v4227 = vsub.s32 4, %v4203
  %v4228 = vsel %vm4143, %v4227, %v4203
  %v4229 = vsel %vm4142, %v4132, %v4226
  %v4230 = vsel %vm4142, 0, %v4228
  %v4231 = vcosq.f32.pop %v4229
  %v4232 = vsinq.f32.pop %v4229
  %vm4233 = vweird.f32 %v4132
  %v4234 = vadd.s32 %v4230, 3
  %v4235 = vand.u32 %v4234, 3
  %vm4236 = vcmp.lt.s32.totalorder %v4235, 2
  %vm4237 = vcmp.eq.s32.totalorder %v4235, 0
  %v4238 = vxor.u32 %v4232, 2147483648
  %v4239 = vsel %vm4237, %v4231, %v4238
  %vm4240 = vcmp.eq.s32.totalorder %v4235, 2
  %v4241 = vxor.u32 %v4231, 2147483648
  %v4242 = vsel %vm4240, %v4241, %v4232
  %v4243 = vsel %vm4236, %v4239, %v4242
  %v4244 = vsel %vm4233, nan, %v4243
  %v4245 = vand.u32 2147483647, %v4133
  %vm4246 = vcmp.le.f32.partialorder %v4245, 0.7853982
  %vm4247 = vcmp.lt.s32.totalorder %v4133, 0
  %v4248 = vand.u32 %v4133, 2139095040
  %v4249 = vshrl.u32 %v4248, 23
  %v4250 = vsub.s32 %v4249, 127
  %v4251 = vand.u32 2147483647, %v4133
  %v4252 = vand.u32 %v4251, 8388607
  %v4253 = vor.u32 %v4252, 8388608
  %v4254 = vsub.s32 0, %v4253
  %v4255 = vadd.s32 %v4250, 1
  %vm4256 = vcmp.gt.s32.totalorder %v4255, 0
  %v4257 = vsel %vm4256, %v4255, 0
  %v4258 = vshrl.u32 %v4257, 5
  %v4259 = vand.u32 %v4257, 31
  %v4260 = vsub.s32 32, %v4259
  %v4261 = vshrl.u32 683565275, %v4260
  %v4262 = vshll.u32 683565275, %v4259
  %v4263 = vshrl.u32 2475754826, %v4260
  %v4264 = vor.u32 %v4262, %v4263
  %v4265 = vshll.u32 2475754826, %v4259
  %v4266 = vshrl.u32 2131351028, %v4260
  %v4267 = vor.u32 %v4265, %v4266
  %v4268 = vshll.u32 2131351028, %v4259
  %v4269 = vshrl.u32 2102212464, %v4260
  %v4270 = vor.u32 %v4268, %v4269
  %v4271 = vshll.u32 2102212464, %v4259
  %v4272 = vshrl.u32 920167782, %v4260
  %v4273 = vor.u32 %v4271, %v4272
  %v4274 = vshll.u32 920167782, %v4259
  %v4275 = vshrl.u32 1326507024, %v4260
  %v4276 = vor.u32 %v4274, %v4275
  %vm4277 = vcmp.lt.s32.totalorder %v4258, 1
  %vm4278 = vcmp.lt.s32.totalorder %v4258, 2
  %vm4279 = vcmp.lt.s32.totalorder %v4258, 3
  %vm4280 = vcmp.lt.s32.totalorder %v4258, 4
  %v4281 = vsel %vm4277, %v4261, %v4264
  %v4282 = vsel %vm4280, %v4270, 2102212464
  %v4283 = vsel %vm4279, %v4267, %v4282
  %v4284 = vsel %vm4278, %v4281, %v4283
  %v4285 = vsel %vm4277, %v4264, %v4267
  %v4286 = vsel %vm4280, %v4273, 920167782
  %v4287 = vsel %vm4279, %v4270, %v4286
  %v4288 = vsel %vm4278, %v4285, %v4287
  %v4289 = vsel %vm4277, %v4267, %v4270
  %v4290 = vsel %vm4280, %v4276, 1326507024
  %v4291 = vsel %vm4279, %v4273, %v4290
  %v4292 = vsel %vm4278, %v4289, %v4291
  %v4293 = vshll.u32 %v4253, 8
  %v4294 = vmul.u32.u64.compose %v4293, %v4292
  %v4295 = vextract.low.u32 %v4294
  %v4296 = vextract.high.u32 %v4294
  %v4297 = vmul.u32.u64.compose %v4293, %v4288
  %v4298 = vextract.low.u32 %v4297
  %v4299 = vextract.high.u32 %v4297
  %v4300 = vmul.u32 %v4293, %v4284
  %v4301 = vadd.s32 %v4296, %v4298
  %vm4302 = vc.u32 %v4296, %v4298
  %v4303 = vadd.s32 %v4299, 1
  %v4304 = vsel %vm4302, %v4303, %v4299
  %v4305 = vadd.s32 %v4300, %v4304
  %v4306 = vadd.s32 %v4305, 536870912
  %v4307 = vshrl.u32 %v4306, 30
  %v4308 = vshll.u32 %v4307, 30
  %v4309 = vsub.s32 %v4305, %v4308
  %vm4310 = vcmp.lt.s32.totalorder %v4309, 0
  %v4311 = vsub.s32 0, %v4309
  %v4312 = vsel %vm4310, %v4311, %v4309
  %v4313 = vclz %v4312
  %v4314 = vsub.s32 %v4313, 2
  %vm4315 = vcmp.gt.s32.totalorder 0, %v4314
  %v4316 = vsel %vm4315, 0, %v4314
  %v4317 = vsub.s32 32, %v4316
  %v4318 = vshll.u32 %v4309, %v4316
  %v4319 = vshrl.u32 %v4301, %v4317
  %v4320 = vor.u32 %v4318, %v4319
  %v4321 = vsub.s32 4294967266, %v4316
  %v4322 = vadd.s32 %v4321, 127
  %v4323 = vshll.u32 %v4322, 23
  %v4324 = vor.u32 4788187, %v4323
  %v4325 = vand.u32 2147483647, %v4324
  %v4327 = vcvt.s32.f32 %v4320
  %v4328 = vmul.f32 %v4327, %v4325
  %v4329 = vxor.u32 %v4328, 2147483648
  %v4330 = vsel %vm4247, %v4329, %v4328
  %v4331 = vsub.s32 4, %v4307
  %v4332 = vsel %vm4247, %v4331, %v4307
  %v4333 = vsel %vm4246, %v4133, %v4330
  %v4334 = vsel %vm4246, 0, %v4332
  %v4335 = vcosq.f32.pop %v4333
  %v4336 = vsinq.f32.pop %v4333
  %vm4337 = vweird.f32 %v4133
  %v4338 = vadd.s32 %v4334, 3
  %v4339 = vand.u32 %v4338, 3
  %vm4340 = vcmp.lt.s32.totalorder %v4339, 2
  %vm4341 = vcmp.eq.s32.totalorder %v4339, 0
  %v4342 = vxor.u32 %v4336, 2147483648
  %v4343 = vsel %vm4341, %v4335, %v4342
  %vm4344 = vcmp.eq.s32.totalorder %v4339, 2
  %v4345 = vxor.u32 %v4335, 2147483648
  %v4346 = vsel %vm4344, %v4345, %v4336
  %v4347 = vsel %vm4340, %v4343, %v4346
  %v4348 = vsel %vm4337, nan, %v4347
  %v4349 = vand.u32 2147483647, %v4134
  %vm4350 = vcmp.le.f32.partialorder %v4349, 0.7853982
  %vm4351 = vcmp.lt.s32.totalorder %v4134, 0
  %v4352 = vand.u32 %v4134, 2139095040
  %v4353 = vshrl.u32 %v4352, 23
  %v4354 = vsub.s32 %v4353, 127
  %v4355 = vand.u32 2147483647, %v4134
  %v4356 = vand.u32 %v4355, 8388607
  %v4357 = vor.u32 %v4356, 8388608
  %v4358 = vsub.s32 0, %v4357
  %v4359 = vadd.s32 %v4354, 1
  %vm4360 = vcmp.gt.s32.totalorder %v4359, 0
  %v4361 = vsel %vm4360, %v4359, 0
  %v4362 = vshrl.u32 %v4361, 5
  %v4363 = vand.u32 %v4361, 31
  %v4364 = vsub.s32 32, %v4363
  %v4365 = vshrl.u32 683565275, %v4364
  %v4366 = vshll.u32 683565275, %v4363
  %v4367 = vshrl.u32 2475754826, %v4364
  %v4368 = vor.u32 %v4366, %v4367
  %v4369 = vshll.u32 2475754826, %v4363
  %v4370 = vshrl.u32 2131351028, %v4364
  %v4371 = vor.u32 %v4369, %v4370
  %v4372 = vshll.u32 2131351028, %v4363
  %v4373 = vshrl.u32 2102212464, %v4364
  %v4374 = vor.u32 %v4372, %v4373
  %v4375 = vshll.u32 2102212464, %v4363
  %v4376 = vshrl.u32 920167782, %v4364
  %v4377 = vor.u32 %v4375, %v4376
  %v4378 = vshll.u32 920167782, %v4363
  %v4379 = vshrl.u32 1326507024, %v4364
  %v4380 = vor.u32 %v4378, %v4379
  %vm4381 = vcmp.lt.s32.totalorder %v4362, 1
  %vm4382 = vcmp.lt.s32.totalorder %v4362, 2
  %vm4383 = vcmp.lt.s32.totalorder %v4362, 3
  %vm4384 = vcmp.lt.s32.totalorder %v4362, 4
  %v4385 = vsel %vm4381, %v4365, %v4368
  %v4386 = vsel %vm4384, %v4374, 2102212464
  %v4387 = vsel %vm4383, %v4371, %v4386
  %v4388 = vsel %vm4382, %v4385, %v4387
  %v4389 = vsel %vm4381, %v4368, %v4371
  %v4390 = vsel %vm4384, %v4377, 920167782
  %v4391 = vsel %vm4383, %v4374, %v4390
  %v4392 = vsel %vm4382, %v4389, %v4391
  %v4393 = vsel %vm4381, %v4371, %v4374
  %v4394 = vsel %vm4384, %v4380, 1326507024
  %v4395 = vsel %vm4383, %v4377, %v4394
  %v4396 = vsel %vm4382, %v4393, %v4395
  %v4397 = vshll.u32 %v4357, 8
  %v4398 = vmul.u32.u64.compose %v4397, %v4396
  %v4399 = vextract.low.u32 %v4398
  %v4400 = vextract.high.u32 %v4398
  %v4401 = vmul.u32.u64.compose %v4397, %v4392
  %v4402 = vextract.low.u32 %v4401
  %v4403 = vextract.high.u32 %v4401
  %v4404 = vmul.u32 %v4397, %v4388
  %v4405 = vadd.s32 %v4400, %v4402
  %vm4406 = vc.u32 %v4400, %v4402
  %v4407 = vadd.s32 %v4403, 1
  %v4408 = vsel %vm4406, %v4407, %v4403
  %v4409 = vadd.s32 %v4404, %v4408
  %v4410 = vadd.s32 %v4409, 536870912
  %v4411 = vshrl.u32 %v4410, 30
  %v4412 = vshll.u32 %v4411, 30
  %v4413 = vsub.s32 %v4409, %v4412
  %vm4414 = vcmp.lt.s32.totalorder %v4413, 0
  %v4415 = vsub.s32 0, %v4413
  %v4416 = vsel %vm4414, %v4415, %v4413
  %v4417 = vclz %v4416
  %v4418 = vsub.s32 %v4417, 2
  %vm4419 = vcmp.gt.s32.totalorder 0, %v4418
  %v4420 = vsel %vm4419, 0, %v4418
  %v4421 = vsub.s32 32, %v4420
  %v4422 = vshll.u32 %v4413, %v4420
  %v4423 = vshrl.u32 %v4405, %v4421
  %v4424 = vor.u32 %v4422, %v4423
  %v4425 = vsub.s32 4294967266, %v4420
  %v4426 = vadd.s32 %v4425, 127
  %v4427 = vshll.u32 %v4426, 23
  %v4428 = vor.u32 4788187, %v4427
  %v4429 = vand.u32 2147483647, %v4428
  %v4431 = vcvt.s32.f32 %v4424
  %v4432 = vmul.f32 %v4431, %v4429
  %v4433 = vxor.u32 %v4432, 2147483648
  %v4434 = vsel %vm4351, %v4433, %v4432
  %v4435 = vsub.s32 4, %v4411
  %v4436 = vsel %vm4351, %v4435, %v4411
  %v4437 = vsel %vm4350, %v4134, %v4434
  %v4438 = vsel %vm4350, 0, %v4436
  %v4439 = vcosq.f32.pop %v4437
  %v4440 = vsinq.f32.pop %v4437
  %vm4441 = vweird.f32 %v4134
  %v4442 = vadd.s32 %v4438, 3
  %v4443 = vand.u32 %v4442, 3
  %vm4444 = vcmp.lt.s32.totalorder %v4443, 2
  %vm4445 = vcmp.eq.s32.totalorder %v4443, 0
  %v4446 = vxor.u32 %v4440, 2147483648
  %v4447 = vsel %vm4445, %v4439, %v4446
  %vm4448 = vcmp.eq.s32.totalorder %v4443, 2
  %v4449 = vxor.u32 %v4439, 2147483648
  %v4450 = vsel %vm4448, %v4449, %v4440
  %v4451 = vsel %vm4444, %v4447, %v4450
  %v4452 = vsel %vm4441, nan, %v4451
  %v4453 = vand.u32 2147483647, %v4135
  %vm4454 = vcmp.le.f32.partialorder %v4453, 0.7853982
  %vm4455 = vcmp.lt.s32.totalorder %v4135, 0
  %v4456 = vand.u32 %v4135, 2139095040
  %v4457 = vshrl.u32 %v4456, 23
  %v4458 = vsub.s32 %v4457, 127
  %v4459 = vand.u32 2147483647, %v4135
  %v4460 = vand.u32 %v4459, 8388607
  %v4461 = vor.u32 %v4460, 8388608
  %v4462 = vsub.s32 0, %v4461
  %v4463 = vadd.s32 %v4458, 1
  %vm4464 = vcmp.gt.s32.totalorder %v4463, 0
  %v4465 = vsel %vm4464, %v4463, 0
  %v4466 = vshrl.u32 %v4465, 5
  %v4467 = vand.u32 %v4465, 31
  %v4468 = vsub.s32 32, %v4467
  %v4469 = vshrl.u32 683565275, %v4468
  %v4470 = vshll.u32 683565275, %v4467
  %v4471 = vshrl.u32 2475754826, %v4468
  %v4472 = vor.u32 %v4470, %v4471
  %v4473 = vshll.u32 2475754826, %v4467
  %v4474 = vshrl.u32 2131351028, %v4468
  %v4475 = vor.u32 %v4473, %v4474
  %v4476 = vshll.u32 2131351028, %v4467
  %v4477 = vshrl.u32 2102212464, %v4468
  %v4478 = vor.u32 %v4476, %v4477
  %v4479 = vshll.u32 2102212464, %v4467
  %v4480 = vshrl.u32 920167782, %v4468
  %v4481 = vor.u32 %v4479, %v4480
  %v4482 = vshll.u32 920167782, %v4467
  %v4483 = vshrl.u32 1326507024, %v4468
  %v4484 = vor.u32 %v4482, %v4483
  %vm4485 = vcmp.lt.s32.totalorder %v4466, 1
  %vm4486 = vcmp.lt.s32.totalorder %v4466, 2
  %vm4487 = vcmp.lt.s32.totalorder %v4466, 3
  %vm4488 = vcmp.lt.s32.totalorder %v4466, 4
  %v4489 = vsel %vm4485, %v4469, %v4472
  %v4490 = vsel %vm4488, %v4478, 2102212464
  %v4491 = vsel %vm4487, %v4475, %v4490
  %v4492 = vsel %vm4486, %v4489, %v4491
  %v4493 = vsel %vm4485, %v4472, %v4475
  %v4494 = vsel %vm4488, %v4481, 920167782
  %v4495 = vsel %vm4487, %v4478, %v4494
  %v4496 = vsel %vm4486, %v4493, %v4495
  %v4497 = vsel %vm4485, %v4475, %v4478
  %v4498 = vsel %vm4488, %v4484, 1326507024
  %v4499 = vsel %vm4487, %v4481, %v4498
  %v4500 = vsel %vm4486, %v4497, %v4499
  %v4501 = vshll.u32 %v4461, 8
  %v4502 = vmul.u32.u64.compose %v4501, %v4500
  %v4503 = vextract.low.u32 %v4502
  %v4504 = vextract.high.u32 %v4502
  %v4505 = vmul.u32.u64.compose %v4501, %v4496
  %v4506 = vextract.low.u32 %v4505
  %v4507 = vextract.high.u32 %v4505
  %v4508 = vmul.u32 %v4501, %v4492
  %v4509 = vadd.s32 %v4504, %v4506
  %vm4510 = vc.u32 %v4504, %v4506
  %v4511 = vadd.s32 %v4507, 1
  %v4512 = vsel %vm4510, %v4511, %v4507
  %v4513 = vadd.s32 %v4508, %v4512
  %v4514 = vadd.s32 %v4513, 536870912
  %v4515 = vshrl.u32 %v4514, 30
  %v4516 = vshll.u32 %v4515, 30
  %v4517 = vsub.s32 %v4513, %v4516
  %vm4518 = vcmp.lt.s32.totalorder %v4517, 0
  %v4519 = vsub.s32 0, %v4517
  %v4520 = vsel %vm4518, %v4519, %v4517
  %v4521 = vclz %v4520
  %v4522 = vsub.s32 %v4521, 2
  %vm4523 = vcmp.gt.s32.totalorder 0, %v4522
  %v4524 = vsel %vm4523, 0, %v4522
  %v4525 = vsub.s32 32, %v4524
  %v4526 = vshll.u32 %v4517, %v4524
  %v4527 = vshrl.u32 %v4509, %v4525
  %v4528 = vor.u32 %v4526, %v4527
  %v4529 = vsub.s32 4294967266, %v4524
  %v4530 = vadd.s32 %v4529, 127
  %v4531 = vshll.u32 %v4530, 23
  %v4532 = vor.u32 4788187, %v4531
  %v4533 = vand.u32 2147483647, %v4532
  %v4535 = vcvt.s32.f32 %v4528
  %v4536 = vmul.f32 %v4535, %v4533
  %v4537 = vxor.u32 %v4536, 2147483648
  %v4538 = vsel %vm4455, %v4537, %v4536
  %v4539 = vsub.s32 4, %v4515
  %v4540 = vsel %vm4455, %v4539, %v4515
  %v4541 = vsel %vm4454, %v4135, %v4538
  %v4542 = vsel %vm4454, 0, %v4540
  %v4543 = vcosq.f32.pop %v4541
  %v4544 = vsinq.f32.pop %v4541
  %vm4545 = vweird.f32 %v4135
  %v4546 = vadd.s32 %v4542, 3
  %v4547 = vand.u32 %v4546, 3
  %vm4548 = vcmp.lt.s32.totalorder %v4547, 2
  %vm4549 = vcmp.eq.s32.totalorder %v4547, 0
  %v4550 = vxor.u32 %v4544, 2147483648
  %v4551 = vsel %vm4549, %v4543, %v4550
  %vm4552 = vcmp.eq.s32.totalorder %v4547, 2
  %v4553 = vxor.u32 %v4543, 2147483648
  %v4554 = vsel %vm4552, %v4553, %v4544
  %v4555 = vsel %vm4548, %v4551, %v4554
  %v4556 = vsel %vm4545, nan, %v4555
  %v4557 = vand.u32 2147483647, %v4136
  %vm4558 = vcmp.le.f32.partialorder %v4557, 0.7853982
  %vm4559 = vcmp.lt.s32.totalorder %v4136, 0
  %v4560 = vand.u32 %v4136, 2139095040
  %v4561 = vshrl.u32 %v4560, 23
  %v4562 = vsub.s32 %v4561, 127
  %v4563 = vand.u32 2147483647, %v4136
  %v4564 = vand.u32 %v4563, 8388607
  %v4565 = vor.u32 %v4564, 8388608
  %v4566 = vsub.s32 0, %v4565
  %v4567 = vadd.s32 %v4562, 1
  %vm4568 = vcmp.gt.s32.totalorder %v4567, 0
  %v4569 = vsel %vm4568, %v4567, 0
  %v4570 = vshrl.u32 %v4569, 5
  %v4571 = vand.u32 %v4569, 31
  %v4572 = vsub.s32 32, %v4571
  %v4573 = vshrl.u32 683565275, %v4572
  %v4574 = vshll.u32 683565275, %v4571
  %v4575 = vshrl.u32 2475754826, %v4572
  %v4576 = vor.u32 %v4574, %v4575
  %v4577 = vshll.u32 2475754826, %v4571
  %v4578 = vshrl.u32 2131351028, %v4572
  %v4579 = vor.u32 %v4577, %v4578
  %v4580 = vshll.u32 2131351028, %v4571
  %v4581 = vshrl.u32 2102212464, %v4572
  %v4582 = vor.u32 %v4580, %v4581
  %v4583 = vshll.u32 2102212464, %v4571
  %v4584 = vshrl.u32 920167782, %v4572
  %v4585 = vor.u32 %v4583, %v4584
  %v4586 = vshll.u32 920167782, %v4571
  %v4587 = vshrl.u32 1326507024, %v4572
  %v4588 = vor.u32 %v4586, %v4587
  %vm4589 = vcmp.lt.s32.totalorder %v4570, 1
  %vm4590 = vcmp.lt.s32.totalorder %v4570, 2
  %vm4591 = vcmp.lt.s32.totalorder %v4570, 3
  %vm4592 = vcmp.lt.s32.totalorder %v4570, 4
  %v4593 = vsel %vm4589, %v4573, %v4576
  %v4594 = vsel %vm4592, %v4582, 2102212464
  %v4595 = vsel %vm4591, %v4579, %v4594
  %v4596 = vsel %vm4590, %v4593, %v4595
  %v4597 = vsel %vm4589, %v4576, %v4579
  %v4598 = vsel %vm4592, %v4585, 920167782
  %v4599 = vsel %vm4591, %v4582, %v4598
  %v4600 = vsel %vm4590, %v4597, %v4599
  %v4601 = vsel %vm4589, %v4579, %v4582
  %v4602 = vsel %vm4592, %v4588, 1326507024
  %v4603 = vsel %vm4591, %v4585, %v4602
  %v4604 = vsel %vm4590, %v4601, %v4603
  %v4605 = vshll.u32 %v4565, 8
  %v4606 = vmul.u32.u64.compose %v4605, %v4604
  %v4607 = vextract.low.u32 %v4606
  %v4608 = vextract.high.u32 %v4606
  %v4609 = vmul.u32.u64.compose %v4605, %v4600
  %v4610 = vextract.low.u32 %v4609
  %v4611 = vextract.high.u32 %v4609
  %v4612 = vmul.u32 %v4605, %v4596
  %v4613 = vadd.s32 %v4608, %v4610
  %vm4614 = vc.u32 %v4608, %v4610
  %v4615 = vadd.s32 %v4611, 1
  %v4616 = vsel %vm4614, %v4615, %v4611
  %v4617 = vadd.s32 %v4612, %v4616
  %v4618 = vadd.s32 %v4617, 536870912
  %v4619 = vshrl.u32 %v4618, 30
  %v4620 = vshll.u32 %v4619, 30
  %v4621 = vsub.s32 %v4617, %v4620
  %vm4622 = vcmp.lt.s32.totalorder %v4621, 0
  %v4623 = vsub.s32 0, %v4621
  %v4624 = vsel %vm4622, %v4623, %v4621
  %v4625 = vclz %v4624
  %v4626 = vsub.s32 %v4625, 2
  %vm4627 = vcmp.gt.s32.totalorder 0, %v4626
  %v4628 = vsel %vm4627, 0, %v4626
  %v4629 = vsub.s32 32, %v4628
  %v4630 = vshll.u32 %v4621, %v4628
  %v4631 = vshrl.u32 %v4613, %v4629
  %v4632 = vor.u32 %v4630, %v4631
  %v4633 = vsub.s32 4294967266, %v4628
  %v4634 = vadd.s32 %v4633, 127
  %v4635 = vshll.u32 %v4634, 23
  %v4636 = vor.u32 4788187, %v4635
  %v4637 = vand.u32 2147483647, %v4636
  %v4639 = vcvt.s32.f32 %v4632
  %v4640 = vmul.f32 %v4639, %v4637
  %v4641 = vxor.u32 %v4640, 2147483648
  %v4642 = vsel %vm4559, %v4641, %v4640
  %v4643 = vsub.s32 4, %v4619
  %v4644 = vsel %vm4559, %v4643, %v4619
  %v4645 = vsel %vm4558, %v4136, %v4642
  %v4646 = vsel %vm4558, 0, %v4644
  %v4647 = vcosq.f32.pop %v4645
  %v4648 = vsinq.f32.pop %v4645
  %vm4649 = vweird.f32 %v4136
  %v4650 = vadd.s32 %v4646, 3
  %v4651 = vand.u32 %v4650, 3
  %vm4652 = vcmp.lt.s32.totalorder %v4651, 2
  %vm4653 = vcmp.eq.s32.totalorder %v4651, 0
  %v4654 = vxor.u32 %v4648, 2147483648
  %v4655 = vsel %vm4653, %v4647, %v4654
  %vm4656 = vcmp.eq.s32.totalorder %v4651, 2
  %v4657 = vxor.u32 %v4647, 2147483648
  %v4658 = vsel %vm4656, %v4657, %v4648
  %v4659 = vsel %vm4652, %v4655, %v4658
  %v4660 = vsel %vm4649, nan, %v4659
  %v4661 = vand.u32 2147483647, %v4137
  %vm4662 = vcmp.le.f32.partialorder %v4661, 0.7853982
  %vm4663 = vcmp.lt.s32.totalorder %v4137, 0
  %v4664 = vand.u32 %v4137, 2139095040
  %v4665 = vshrl.u32 %v4664, 23
  %v4666 = vsub.s32 %v4665, 127
  %v4667 = vand.u32 2147483647, %v4137
  %v4668 = vand.u32 %v4667, 8388607
  %v4669 = vor.u32 %v4668, 8388608
  %v4670 = vsub.s32 0, %v4669
  %v4671 = vadd.s32 %v4666, 1
  %vm4672 = vcmp.gt.s32.totalorder %v4671, 0
  %v4673 = vsel %vm4672, %v4671, 0
  %v4674 = vshrl.u32 %v4673, 5
  %v4675 = vand.u32 %v4673, 31
  %v4676 = vsub.s32 32, %v4675
  %v4677 = vshrl.u32 683565275, %v4676
  %v4678 = vshll.u32 683565275, %v4675
  %v4679 = vshrl.u32 2475754826, %v4676
  %v4680 = vor.u32 %v4678, %v4679
  %v4681 = vshll.u32 2475754826, %v4675
  %v4682 = vshrl.u32 2131351028, %v4676
  %v4683 = vor.u32 %v4681, %v4682
  %v4684 = vshll.u32 2131351028, %v4675
  %v4685 = vshrl.u32 2102212464, %v4676
  %v4686 = vor.u32 %v4684, %v4685
  %v4687 = vshll.u32 2102212464, %v4675
  %v4688 = vshrl.u32 920167782, %v4676
  %v4689 = vor.u32 %v4687, %v4688
  %v4690 = vshll.u32 920167782, %v4675
  %v4691 = vshrl.u32 1326507024, %v4676
  %v4692 = vor.u32 %v4690, %v4691
  %vm4693 = vcmp.lt.s32.totalorder %v4674, 1
  %vm4694 = vcmp.lt.s32.totalorder %v4674, 2
  %vm4695 = vcmp.lt.s32.totalorder %v4674, 3
  %vm4696 = vcmp.lt.s32.totalorder %v4674, 4
  %v4697 = vsel %vm4693, %v4677, %v4680
  %v4698 = vsel %vm4696, %v4686, 2102212464
  %v4699 = vsel %vm4695, %v4683, %v4698
  %v4700 = vsel %vm4694, %v4697, %v4699
  %v4701 = vsel %vm4693, %v4680, %v4683
  %v4702 = vsel %vm4696, %v4689, 920167782
  %v4703 = vsel %vm4695, %v4686, %v4702
  %v4704 = vsel %vm4694, %v4701, %v4703
  %v4705 = vsel %vm4693, %v4683, %v4686
  %v4706 = vsel %vm4696, %v4692, 1326507024
  %v4707 = vsel %vm4695, %v4689, %v4706
  %v4708 = vsel %vm4694, %v4705, %v4707
  %v4709 = vshll.u32 %v4669, 8
  %v4710 = vmul.u32.u64.compose %v4709, %v4708
  %v4711 = vextract.low.u32 %v4710
  %v4712 = vextract.high.u32 %v4710
  %v4713 = vmul.u32.u64.compose %v4709, %v4704
  %v4714 = vextract.low.u32 %v4713
  %v4715 = vextract.high.u32 %v4713
  %v4716 = vmul.u32 %v4709, %v4700
  %v4717 = vadd.s32 %v4712, %v4714
  %vm4718 = vc.u32 %v4712, %v4714
  %v4719 = vadd.s32 %v4715, 1
  %v4720 = vsel %vm4718, %v4719, %v4715
  %v4721 = vadd.s32 %v4716, %v4720
  %v4722 = vadd.s32 %v4721, 536870912
  %v4723 = vshrl.u32 %v4722, 30
  %v4724 = vshll.u32 %v4723, 30
  %v4725 = vsub.s32 %v4721, %v4724
  %vm4726 = vcmp.lt.s32.totalorder %v4725, 0
  %v4727 = vsub.s32 0, %v4725
  %v4728 = vsel %vm4726, %v4727, %v4725
  %v4729 = vclz %v4728
  %v4730 = vsub.s32 %v4729, 2
  %vm4731 = vcmp.gt.s32.totalorder 0, %v4730
  %v4732 = vsel %vm4731, 0, %v4730
  %v4733 = vsub.s32 32, %v4732
  %v4734 = vshll.u32 %v4725, %v4732
  %v4735 = vshrl.u32 %v4717, %v4733
  %v4736 = vor.u32 %v4734, %v4735
  %v4737 = vsub.s32 4294967266, %v4732
  %v4738 = vadd.s32 %v4737, 127
  %v4739 = vshll.u32 %v4738, 23
  %v4740 = vor.u32 4788187, %v4739
  %v4741 = vand.u32 2147483647, %v4740
  %v4743 = vcvt.s32.f32 %v4736
  %v4744 = vmul.f32 %v4743, %v4741
  %v4745 = vxor.u32 %v4744, 2147483648
  %v4746 = vsel %vm4663, %v4745, %v4744
  %v4747 = vsub.s32 4, %v4723
  %v4748 = vsel %vm4663, %v4747, %v4723
  %v4749 = vsel %vm4662, %v4137, %v4746
  %v4750 = vsel %vm4662, 0, %v4748
  %v4751 = vcosq.f32.pop %v4749
  %v4752 = vsinq.f32.pop %v4749
  %vm4753 = vweird.f32 %v4137
  %v4754 = vadd.s32 %v4750, 3
  %v4755 = vand.u32 %v4754, 3
  %vm4756 = vcmp.lt.s32.totalorder %v4755, 2
  %vm4757 = vcmp.eq.s32.totalorder %v4755, 0
  %v4758 = vxor.u32 %v4752, 2147483648
  %v4759 = vsel %vm4757, %v4751, %v4758
  %vm4760 = vcmp.eq.s32.totalorder %v4755, 2
  %v4761 = vxor.u32 %v4751, 2147483648
  %v4762 = vsel %vm4760, %v4761, %v4752
  %v4763 = vsel %vm4756, %v4759, %v4762
  %v4764 = vsel %vm4753, nan, %v4763
  %v4765 = vand.u32 2147483647, %v4138
  %vm4766 = vcmp.le.f32.partialorder %v4765, 0.7853982
  %vm4767 = vcmp.lt.s32.totalorder %v4138, 0
  %v4768 = vand.u32 %v4138, 2139095040
  %v4769 = vshrl.u32 %v4768, 23
  %v4770 = vsub.s32 %v4769, 127
  %v4771 = vand.u32 2147483647, %v4138
  %v4772 = vand.u32 %v4771, 8388607
  %v4773 = vor.u32 %v4772, 8388608
  %v4774 = vsub.s32 0, %v4773
  %v4775 = vadd.s32 %v4770, 1
  %vm4776 = vcmp.gt.s32.totalorder %v4775, 0
  %v4777 = vsel %vm4776, %v4775, 0
  %v4778 = vshrl.u32 %v4777, 5
  %v4779 = vand.u32 %v4777, 31
  %v4780 = vsub.s32 32, %v4779
  %v4781 = vshrl.u32 683565275, %v4780
  %v4782 = vshll.u32 683565275, %v4779
  %v4783 = vshrl.u32 2475754826, %v4780
  %v4784 = vor.u32 %v4782, %v4783
  %v4785 = vshll.u32 2475754826, %v4779
  %v4786 = vshrl.u32 2131351028, %v4780
  %v4787 = vor.u32 %v4785, %v4786
  %v4788 = vshll.u32 2131351028, %v4779
  %v4789 = vshrl.u32 2102212464, %v4780
  %v4790 = vor.u32 %v4788, %v4789
  %v4791 = vshll.u32 2102212464, %v4779
  %v4792 = vshrl.u32 920167782, %v4780
  %v4793 = vor.u32 %v4791, %v4792
  %v4794 = vshll.u32 920167782, %v4779
  %v4795 = vshrl.u32 1326507024, %v4780
  %v4796 = vor.u32 %v4794, %v4795
  %vm4797 = vcmp.lt.s32.totalorder %v4778, 1
  %vm4798 = vcmp.lt.s32.totalorder %v4778, 2
  %vm4799 = vcmp.lt.s32.totalorder %v4778, 3
  %vm4800 = vcmp.lt.s32.totalorder %v4778, 4
  %v4801 = vsel %vm4797, %v4781, %v4784
  %v4802 = vsel %vm4800, %v4790, 2102212464
  %v4803 = vsel %vm4799, %v4787, %v4802
  %v4804 = vsel %vm4798, %v4801, %v4803
  %v4805 = vsel %vm4797, %v4784, %v4787
  %v4806 = vsel %vm4800, %v4793, 920167782
  %v4807 = vsel %vm4799, %v4790, %v4806
  %v4808 = vsel %vm4798, %v4805, %v4807
  %v4809 = vsel %vm4797, %v4787, %v4790
  %v4810 = vsel %vm4800, %v4796, 1326507024
  %v4811 = vsel %vm4799, %v4793, %v4810
  %v4812 = vsel %vm4798, %v4809, %v4811
  %v4813 = vshll.u32 %v4773, 8
  %v4814 = vmul.u32.u64.compose %v4813, %v4812
  %v4815 = vextract.low.u32 %v4814
  %v4816 = vextract.high.u32 %v4814
  %v4817 = vmul.u32.u64.compose %v4813, %v4808
  %v4818 = vextract.low.u32 %v4817
  %v4819 = vextract.high.u32 %v4817
  %v4820 = vmul.u32 %v4813, %v4804
  %v4821 = vadd.s32 %v4816, %v4818
  %vm4822 = vc.u32 %v4816, %v4818
  %v4823 = vadd.s32 %v4819, 1
  %v4824 = vsel %vm4822, %v4823, %v4819
  %v4825 = vadd.s32 %v4820, %v4824
  %v4826 = vadd.s32 %v4825, 536870912
  %v4827 = vshrl.u32 %v4826, 30
  %v4828 = vshll.u32 %v4827, 30
  %v4829 = vsub.s32 %v4825, %v4828
  %vm4830 = vcmp.lt.s32.totalorder %v4829, 0
  %v4831 = vsub.s32 0, %v4829
  %v4832 = vsel %vm4830, %v4831, %v4829
  %v4833 = vclz %v4832
  %v4834 = vsub.s32 %v4833, 2
  %vm4835 = vcmp.gt.s32.totalorder 0, %v4834
  %v4836 = vsel %vm4835, 0, %v4834
  %v4837 = vsub.s32 32, %v4836
  %v4838 = vshll.u32 %v4829, %v4836
  %v4839 = vshrl.u32 %v4821, %v4837
  %v4840 = vor.u32 %v4838, %v4839
  %v4841 = vsub.s32 4294967266, %v4836
  %v4842 = vadd.s32 %v4841, 127
  %v4843 = vshll.u32 %v4842, 23
  %v4844 = vor.u32 4788187, %v4843
  %v4845 = vand.u32 2147483647, %v4844
  %v4847 = vcvt.s32.f32 %v4840
  %v4848 = vmul.f32 %v4847, %v4845
  %v4849 = vxor.u32 %v4848, 2147483648
  %v4850 = vsel %vm4767, %v4849, %v4848
  %v4851 = vsub.s32 4, %v4827
  %v4852 = vsel %vm4767, %v4851, %v4827
  %v4853 = vsel %vm4766, %v4138, %v4850
  %v4854 = vsel %vm4766, 0, %v4852
  %v4855 = vcosq.f32.pop %v4853
  %v4856 = vsinq.f32.pop %v4853
  %vm4857 = vweird.f32 %v4138
  %v4858 = vadd.s32 %v4854, 3
  %v4859 = vand.u32 %v4858, 3
  %vm4860 = vcmp.lt.s32.totalorder %v4859, 2
  %vm4861 = vcmp.eq.s32.totalorder %v4859, 0
  %v4862 = vxor.u32 %v4856, 2147483648
  %v4863 = vsel %vm4861, %v4855, %v4862
  %vm4864 = vcmp.eq.s32.totalorder %v4859, 2
  %v4865 = vxor.u32 %v4855, 2147483648
  %v4866 = vsel %vm4864, %v4865, %v4856
  %v4867 = vsel %vm4860, %v4863, %v4866
  %v4868 = vsel %vm4857, nan, %v4867
  %v4869 = vand.u32 2147483647, %v4139
  %vm4870 = vcmp.le.f32.partialorder %v4869, 0.7853982
  %vm4871 = vcmp.lt.s32.totalorder %v4139, 0
  %v4872 = vand.u32 %v4139, 2139095040
  %v4873 = vshrl.u32 %v4872, 23
  %v4874 = vsub.s32 %v4873, 127
  %v4875 = vand.u32 2147483647, %v4139
  %v4876 = vand.u32 %v4875, 8388607
  %v4877 = vor.u32 %v4876, 8388608
  %v4878 = vsub.s32 0, %v4877
  %v4879 = vadd.s32 %v4874, 1
  %vm4880 = vcmp.gt.s32.totalorder %v4879, 0
  %v4881 = vsel %vm4880, %v4879, 0
  %v4882 = vshrl.u32 %v4881, 5
  %v4883 = vand.u32 %v4881, 31
  %v4884 = vsub.s32 32, %v4883
  %v4885 = vshrl.u32 683565275, %v4884
  %v4886 = vshll.u32 683565275, %v4883
  %v4887 = vshrl.u32 2475754826, %v4884
  %v4888 = vor.u32 %v4886, %v4887
  %v4889 = vshll.u32 2475754826, %v4883
  %v4890 = vshrl.u32 2131351028, %v4884
  %v4891 = vor.u32 %v4889, %v4890
  %v4892 = vshll.u32 2131351028, %v4883
  %v4893 = vshrl.u32 2102212464, %v4884
  %v4894 = vor.u32 %v4892, %v4893
  %v4895 = vshll.u32 2102212464, %v4883
  %v4896 = vshrl.u32 920167782, %v4884
  %v4897 = vor.u32 %v4895, %v4896
  %v4898 = vshll.u32 920167782, %v4883
  %v4899 = vshrl.u32 1326507024, %v4884
  %v4900 = vor.u32 %v4898, %v4899
  %vm4901 = vcmp.lt.s32.totalorder %v4882, 1
  %vm4902 = vcmp.lt.s32.totalorder %v4882, 2
  %vm4903 = vcmp.lt.s32.totalorder %v4882, 3
  %vm4904 = vcmp.lt.s32.totalorder %v4882, 4
  %v4905 = vsel %vm4901, %v4885, %v4888
  %v4906 = vsel %vm4904, %v4894, 2102212464
  %v4907 = vsel %vm4903, %v4891, %v4906
  %v4908 = vsel %vm4902, %v4905, %v4907
  %v4909 = vsel %vm4901, %v4888, %v4891
  %v4910 = vsel %vm4904, %v4897, 920167782
  %v4911 = vsel %vm4903, %v4894, %v4910
  %v4912 = vsel %vm4902, %v4909, %v4911
  %v4913 = vsel %vm4901, %v4891, %v4894
  %v4914 = vsel %vm4904, %v4900, 1326507024
  %v4915 = vsel %vm4903, %v4897, %v4914
  %v4916 = vsel %vm4902, %v4913, %v4915
  %v4917 = vshll.u32 %v4877, 8
  %v4918 = vmul.u32.u64.compose %v4917, %v4916
  %v4919 = vextract.low.u32 %v4918
  %v4920 = vextract.high.u32 %v4918
  %v4921 = vmul.u32.u64.compose %v4917, %v4912
  %v4922 = vextract.low.u32 %v4921
  %v4923 = vextract.high.u32 %v4921
  %v4924 = vmul.u32 %v4917, %v4908
  %v4925 = vadd.s32 %v4920, %v4922
  %vm4926 = vc.u32 %v4920, %v4922
  %v4927 = vadd.s32 %v4923, 1
  %v4928 = vsel %vm4926, %v4927, %v4923
  %v4929 = vadd.s32 %v4924, %v4928
  %v4930 = vadd.s32 %v4929, 536870912
  %v4931 = vshrl.u32 %v4930, 30
  %v4932 = vshll.u32 %v4931, 30
  %v4933 = vsub.s32 %v4929, %v4932
  %vm4934 = vcmp.lt.s32.totalorder %v4933, 0
  %v4935 = vsub.s32 0, %v4933
  %v4936 = vsel %vm4934, %v4935, %v4933
  %v4937 = vclz %v4936
  %v4938 = vsub.s32 %v4937, 2
  %vm4939 = vcmp.gt.s32.totalorder 0, %v4938
  %v4940 = vsel %vm4939, 0, %v4938
  %v4941 = vsub.s32 32, %v4940
  %v4942 = vshll.u32 %v4933, %v4940
  %v4943 = vshrl.u32 %v4925, %v4941
  %v4944 = vor.u32 %v4942, %v4943
  %v4945 = vsub.s32 4294967266, %v4940
  %v4946 = vadd.s32 %v4945, 127
  %v4947 = vshll.u32 %v4946, 23
  %v4948 = vor.u32 4788187, %v4947
  %v4949 = vand.u32 2147483647, %v4948
  %v4951 = vcvt.s32.f32 %v4944
  %v4952 = vmul.f32 %v4951, %v4949
  %v4953 = vxor.u32 %v4952, 2147483648
  %v4954 = vsel %vm4871, %v4953, %v4952
  %v4955 = vsub.s32 4, %v4931
  %v4956 = vsel %vm4871, %v4955, %v4931
  %v4957 = vsel %vm4870, %v4139, %v4954
  %v4958 = vsel %vm4870, 0, %v4956
  %v4959 = vcosq.f32.pop %v4957
  %v4960 = vsinq.f32.pop %v4957
  %vm4961 = vweird.f32 %v4139
  %v4962 = vadd.s32 %v4958, 3
  %v4963 = vand.u32 %v4962, 3
  %vm4964 = vcmp.lt.s32.totalorder %v4963, 2
  %vm4965 = vcmp.eq.s32.totalorder %v4963, 0
  %v4966 = vxor.u32 %v4960, 2147483648
  %v4967 = vsel %vm4965, %v4959, %v4966
  %vm4968 = vcmp.eq.s32.totalorder %v4963, 2
  %v4969 = vxor.u32 %v4959, 2147483648
  %v4970 = vsel %vm4968, %v4969, %v4960
  %v4971 = vsel %vm4964, %v4967, %v4970
  %v4972 = vsel %vm4961, nan, %v4971
  %v4973 = vand.u32 2147483647, %v4132
  %vm4974 = vcmp.le.f32.partialorder %v4973, 0.7853982
  %vm4975 = vcmp.lt.s32.totalorder %v4132, 0
  %v4976 = vand.u32 %v4132, 2139095040
  %v4977 = vshrl.u32 %v4976, 23
  %v4978 = vsub.s32 %v4977, 127
  %v4979 = vand.u32 2147483647, %v4132
  %v4980 = vand.u32 %v4979, 8388607
  %v4981 = vor.u32 %v4980, 8388608
  %v4982 = vsub.s32 0, %v4981
  %v4983 = vadd.s32 %v4978, 1
  %vm4984 = vcmp.gt.s32.totalorder %v4983, 0
  %v4985 = vsel %vm4984, %v4983, 0
  %v4986 = vshrl.u32 %v4985, 5
  %v4987 = vand.u32 %v4985, 31
  %v4988 = vsub.s32 32, %v4987
  %v4989 = vshrl.u32 683565275, %v4988
  %v4990 = vshll.u32 683565275, %v4987
  %v4991 = vshrl.u32 2475754826, %v4988
  %v4992 = vor.u32 %v4990, %v4991
  %v4993 = vshll.u32 2475754826, %v4987
  %v4994 = vshrl.u32 2131351028, %v4988
  %v4995 = vor.u32 %v4993, %v4994
  %v4996 = vshll.u32 2131351028, %v4987
  %v4997 = vshrl.u32 2102212464, %v4988
  %v4998 = vor.u32 %v4996, %v4997
  %v4999 = vshll.u32 2102212464, %v4987
  %v5000 = vshrl.u32 920167782, %v4988
  %v5001 = vor.u32 %v4999, %v5000
  %v5002 = vshll.u32 920167782, %v4987
  %v5003 = vshrl.u32 1326507024, %v4988
  %v5004 = vor.u32 %v5002, %v5003
  %vm5005 = vcmp.lt.s32.totalorder %v4986, 1
  %vm5006 = vcmp.lt.s32.totalorder %v4986, 2
  %vm5007 = vcmp.lt.s32.totalorder %v4986, 3
  %vm5008 = vcmp.lt.s32.totalorder %v4986, 4
  %v5009 = vsel %vm5005, %v4989, %v4992
  %v5010 = vsel %vm5008, %v4998, 2102212464
  %v5011 = vsel %vm5007, %v4995, %v5010
  %v5012 = vsel %vm5006, %v5009, %v5011
  %v5013 = vsel %vm5005, %v4992, %v4995
  %v5014 = vsel %vm5008, %v5001, 920167782
  %v5015 = vsel %vm5007, %v4998, %v5014
  %v5016 = vsel %vm5006, %v5013, %v5015
  %v5017 = vsel %vm5005, %v4995, %v4998
  %v5018 = vsel %vm5008, %v5004, 1326507024
  %v5019 = vsel %vm5007, %v5001, %v5018
  %v5020 = vsel %vm5006, %v5017, %v5019
  %v5021 = vshll.u32 %v4981, 8
  %v5022 = vmul.u32.u64.compose %v5021, %v5020
  %v5023 = vextract.low.u32 %v5022
  %v5024 = vextract.high.u32 %v5022
  %v5025 = vmul.u32.u64.compose %v5021, %v5016
  %v5026 = vextract.low.u32 %v5025
  %v5027 = vextract.high.u32 %v5025
  %v5028 = vmul.u32 %v5021, %v5012
  %v5029 = vadd.s32 %v5024, %v5026
  %vm5030 = vc.u32 %v5024, %v5026
  %v5031 = vadd.s32 %v5027, 1
  %v5032 = vsel %vm5030, %v5031, %v5027
  %v5033 = vadd.s32 %v5028, %v5032
  %v5034 = vadd.s32 %v5033, 536870912
  %v5035 = vshrl.u32 %v5034, 30
  %v5036 = vshll.u32 %v5035, 30
  %v5037 = vsub.s32 %v5033, %v5036
  %vm5038 = vcmp.lt.s32.totalorder %v5037, 0
  %v5039 = vsub.s32 0, %v5037
  %v5040 = vsel %vm5038, %v5039, %v5037
  %v5041 = vclz %v5040
  %v5042 = vsub.s32 %v5041, 2
  %vm5043 = vcmp.gt.s32.totalorder 0, %v5042
  %v5044 = vsel %vm5043, 0, %v5042
  %v5045 = vsub.s32 32, %v5044
  %v5046 = vshll.u32 %v5037, %v5044
  %v5047 = vshrl.u32 %v5029, %v5045
  %v5048 = vor.u32 %v5046, %v5047
  %v5049 = vsub.s32 4294967266, %v5044
  %v5050 = vadd.s32 %v5049, 127
  %v5051 = vshll.u32 %v5050, 23
  %v5052 = vor.u32 4788187, %v5051
  %v5053 = vand.u32 2147483647, %v5052
  %v5055 = vcvt.s32.f32 %v5048
  %v5056 = vmul.f32 %v5055, %v5053
  %v5057 = vxor.u32 %v5056, 2147483648
  %v5058 = vsel %vm4975, %v5057, %v5056
  %v5059 = vsub.s32 4, %v5035
  %v5060 = vsel %vm4975, %v5059, %v5035
  %v5061 = vsel %vm4974, %v4132, %v5058
  %v5062 = vsel %vm4974, 0, %v5060
  %v5063 = vcosq.f32.pop %v5061
  %v5064 = vsinq.f32.pop %v5061
  %vm5065 = vweird.f32 %v4132
  %v5066 = vand.u32 %v5062, 3
  %vm5067 = vcmp.lt.s32.totalorder %v5066, 2
  %vm5068 = vcmp.eq.s32.totalorder %v5066, 0
  %v5069 = vxor.u32 %v5064, 2147483648
  %v5070 = vsel %vm5068, %v5063, %v5069
  %vm5071 = vcmp.eq.s32.totalorder %v5066, 2
  %v5072 = vxor.u32 %v5063, 2147483648
  %v5073 = vsel %vm5071, %v5072, %v5064
  %v5074 = vsel %vm5067, %v5070, %v5073
  %v5075 = vsel %vm5065, nan, %v5074
  %v5076 = vand.u32 2147483647, %v4133
  %vm5077 = vcmp.le.f32.partialorder %v5076, 0.7853982
  %vm5078 = vcmp.lt.s32.totalorder %v4133, 0
  %v5079 = vand.u32 %v4133, 2139095040
  %v5080 = vshrl.u32 %v5079, 23
  %v5081 = vsub.s32 %v5080, 127
  %v5082 = vand.u32 2147483647, %v4133
  %v5083 = vand.u32 %v5082, 8388607
  %v5084 = vor.u32 %v5083, 8388608
  %v5085 = vsub.s32 0, %v5084
  %v5086 = vadd.s32 %v5081, 1
  %vm5087 = vcmp.gt.s32.totalorder %v5086, 0
  %v5088 = vsel %vm5087, %v5086, 0
  %v5089 = vshrl.u32 %v5088, 5
  %v5090 = vand.u32 %v5088, 31
  %v5091 = vsub.s32 32, %v5090
  %v5092 = vshrl.u32 683565275, %v5091
  %v5093 = vshll.u32 683565275, %v5090
  %v5094 = vshrl.u32 2475754826, %v5091
  %v5095 = vor.u32 %v5093, %v5094
  %v5096 = vshll.u32 2475754826, %v5090
  %v5097 = vshrl.u32 2131351028, %v5091
  %v5098 = vor.u32 %v5096, %v5097
  %v5099 = vshll.u32 2131351028, %v5090
  %v5100 = vshrl.u32 2102212464, %v5091
  %v5101 = vor.u32 %v5099, %v5100
  %v5102 = vshll.u32 2102212464, %v5090
  %v5103 = vshrl.u32 920167782, %v5091
  %v5104 = vor.u32 %v5102, %v5103
  %v5105 = vshll.u32 920167782, %v5090
  %v5106 = vshrl.u32 1326507024, %v5091
  %v5107 = vor.u32 %v5105, %v5106
  %vm5108 = vcmp.lt.s32.totalorder %v5089, 1
  %vm5109 = vcmp.lt.s32.totalorder %v5089, 2
  %vm5110 = vcmp.lt.s32.totalorder %v5089, 3
  %vm5111 = vcmp.lt.s32.totalorder %v5089, 4
  %v5112 = vsel %vm5108, %v5092, %v5095
  %v5113 = vsel %vm5111, %v5101, 2102212464
  %v5114 = vsel %vm5110, %v5098, %v5113
  %v5115 = vsel %vm5109, %v5112, %v5114
  %v5116 = vsel %vm5108, %v5095, %v5098
  %v5117 = vsel %vm5111, %v5104, 920167782
  %v5118 = vsel %vm5110, %v5101, %v5117
  %v5119 = vsel %vm5109, %v5116, %v5118
  %v5120 = vsel %vm5108, %v5098, %v5101
  %v5121 = vsel %vm5111, %v5107, 1326507024
  %v5122 = vsel %vm5110, %v5104, %v5121
  %v5123 = vsel %vm5109, %v5120, %v5122
  %v5124 = vshll.u32 %v5084, 8
  %v5125 = vmul.u32.u64.compose %v5124, %v5123
  %v5126 = vextract.low.u32 %v5125
  %v5127 = vextract.high.u32 %v5125
  %v5128 = vmul.u32.u64.compose %v5124, %v5119
  %v5129 = vextract.low.u32 %v5128
  %v5130 = vextract.high.u32 %v5128
  %v5131 = vmul.u32 %v5124, %v5115
  %v5132 = vadd.s32 %v5127, %v5129
  %vm5133 = vc.u32 %v5127, %v5129
  %v5134 = vadd.s32 %v5130, 1
  %v5135 = vsel %vm5133, %v5134, %v5130
  %v5136 = vadd.s32 %v5131, %v5135
  %v5137 = vadd.s32 %v5136, 536870912
  %v5138 = vshrl.u32 %v5137, 30
  %v5139 = vshll.u32 %v5138, 30
  %v5140 = vsub.s32 %v5136, %v5139
  %vm5141 = vcmp.lt.s32.totalorder %v5140, 0
  %v5142 = vsub.s32 0, %v5140
  %v5143 = vsel %vm5141, %v5142, %v5140
  %v5144 = vclz %v5143
  %v5145 = vsub.s32 %v5144, 2
  %vm5146 = vcmp.gt.s32.totalorder 0, %v5145
  %v5147 = vsel %vm5146, 0, %v5145
  %v5148 = vsub.s32 32, %v5147
  %v5149 = vshll.u32 %v5140, %v5147
  %v5150 = vshrl.u32 %v5132, %v5148
  %v5151 = vor.u32 %v5149, %v5150
  %v5152 = vsub.s32 4294967266, %v5147
  %v5153 = vadd.s32 %v5152, 127
  %v5154 = vshll.u32 %v5153, 23
  %v5155 = vor.u32 4788187, %v5154
  %v5156 = vand.u32 2147483647, %v5155
  %v5158 = vcvt.s32.f32 %v5151
  %v5159 = vmul.f32 %v5158, %v5156
  %v5160 = vxor.u32 %v5159, 2147483648
  %v5161 = vsel %vm5078, %v5160, %v5159
  %v5162 = vsub.s32 4, %v5138
  %v5163 = vsel %vm5078, %v5162, %v5138
  %v5164 = vsel %vm5077, %v4133, %v5161
  %v5165 = vsel %vm5077, 0, %v5163
  %v5166 = vcosq.f32.pop %v5164
  %v5167 = vsinq.f32.pop %v5164
  %vm5168 = vweird.f32 %v4133
  %v5169 = vand.u32 %v5165, 3
  %vm5170 = vcmp.lt.s32.totalorder %v5169, 2
  %vm5171 = vcmp.eq.s32.totalorder %v5169, 0
  %v5172 = vxor.u32 %v5167, 2147483648
  %v5173 = vsel %vm5171, %v5166, %v5172
  %vm5174 = vcmp.eq.s32.totalorder %v5169, 2
  %v5175 = vxor.u32 %v5166, 2147483648
  %v5176 = vsel %vm5174, %v5175, %v5167
  %v5177 = vsel %vm5170, %v5173, %v5176
  %v5178 = vsel %vm5168, nan, %v5177
  %v5179 = vand.u32 2147483647, %v4134
  %vm5180 = vcmp.le.f32.partialorder %v5179, 0.7853982
  %vm5181 = vcmp.lt.s32.totalorder %v4134, 0
  %v5182 = vand.u32 %v4134, 2139095040
  %v5183 = vshrl.u32 %v5182, 23
  %v5184 = vsub.s32 %v5183, 127
  %v5185 = vand.u32 2147483647, %v4134
  %v5186 = vand.u32 %v5185, 8388607
  %v5187 = vor.u32 %v5186, 8388608
  %v5188 = vsub.s32 0, %v5187
  %v5189 = vadd.s32 %v5184, 1
  %vm5190 = vcmp.gt.s32.totalorder %v5189, 0
  %v5191 = vsel %vm5190, %v5189, 0
  %v5192 = vshrl.u32 %v5191, 5
  %v5193 = vand.u32 %v5191, 31
  %v5194 = vsub.s32 32, %v5193
  %v5195 = vshrl.u32 683565275, %v5194
  %v5196 = vshll.u32 683565275, %v5193
  %v5197 = vshrl.u32 2475754826, %v5194
  %v5198 = vor.u32 %v5196, %v5197
  %v5199 = vshll.u32 2475754826, %v5193
  %v5200 = vshrl.u32 2131351028, %v5194
  %v5201 = vor.u32 %v5199, %v5200
  %v5202 = vshll.u32 2131351028, %v5193
  %v5203 = vshrl.u32 2102212464, %v5194
  %v5204 = vor.u32 %v5202, %v5203
  %v5205 = vshll.u32 2102212464, %v5193
  %v5206 = vshrl.u32 920167782, %v5194
  %v5207 = vor.u32 %v5205, %v5206
  %v5208 = vshll.u32 920167782, %v5193
  %v5209 = vshrl.u32 1326507024, %v5194
  %v5210 = vor.u32 %v5208, %v5209
  %vm5211 = vcmp.lt.s32.totalorder %v5192, 1
  %vm5212 = vcmp.lt.s32.totalorder %v5192, 2
  %vm5213 = vcmp.lt.s32.totalorder %v5192, 3
  %vm5214 = vcmp.lt.s32.totalorder %v5192, 4
  %v5215 = vsel %vm5211, %v5195, %v5198
  %v5216 = vsel %vm5214, %v5204, 2102212464
  %v5217 = vsel %vm5213, %v5201, %v5216
  %v5218 = vsel %vm5212, %v5215, %v5217
  %v5219 = vsel %vm5211, %v5198, %v5201
  %v5220 = vsel %vm5214, %v5207, 920167782
  %v5221 = vsel %vm5213, %v5204, %v5220
  %v5222 = vsel %vm5212, %v5219, %v5221
  %v5223 = vsel %vm5211, %v5201, %v5204
  %v5224 = vsel %vm5214, %v5210, 1326507024
  %v5225 = vsel %vm5213, %v5207, %v5224
  %v5226 = vsel %vm5212, %v5223, %v5225
  %v5227 = vshll.u32 %v5187, 8
  %v5228 = vmul.u32.u64.compose %v5227, %v5226
  %v5229 = vextract.low.u32 %v5228
  %v5230 = vextract.high.u32 %v5228
  %v5231 = vmul.u32.u64.compose %v5227, %v5222
  %v5232 = vextract.low.u32 %v5231
  %v5233 = vextract.high.u32 %v5231
  %v5234 = vmul.u32 %v5227, %v5218
  %v5235 = vadd.s32 %v5230, %v5232
  %vm5236 = vc.u32 %v5230, %v5232
  %v5237 = vadd.s32 %v5233, 1
  %v5238 = vsel %vm5236, %v5237, %v5233
  %v5239 = vadd.s32 %v5234, %v5238
  %v5240 = vadd.s32 %v5239, 536870912
  %v5241 = vshrl.u32 %v5240, 30
  %v5242 = vshll.u32 %v5241, 30
  %v5243 = vsub.s32 %v5239, %v5242
  %vm5244 = vcmp.lt.s32.totalorder %v5243, 0
  %v5245 = vsub.s32 0, %v5243
  %v5246 = vsel %vm5244, %v5245, %v5243
  %v5247 = vclz %v5246
  %v5248 = vsub.s32 %v5247, 2
  %vm5249 = vcmp.gt.s32.totalorder 0, %v5248
  %v5250 = vsel %vm5249, 0, %v5248
  %v5251 = vsub.s32 32, %v5250
  %v5252 = vshll.u32 %v5243, %v5250
  %v5253 = vshrl.u32 %v5235, %v5251
  %v5254 = vor.u32 %v5252, %v5253
  %v5255 = vsub.s32 4294967266, %v5250
  %v5256 = vadd.s32 %v5255, 127
  %v5257 = vshll.u32 %v5256, 23
  %v5258 = vor.u32 4788187, %v5257
  %v5259 = vand.u32 2147483647, %v5258
  %v5261 = vcvt.s32.f32 %v5254
  %v5262 = vmul.f32 %v5261, %v5259
  %v5263 = vxor.u32 %v5262, 2147483648
  %v5264 = vsel %vm5181, %v5263, %v5262
  %v5265 = vsub.s32 4, %v5241
  %v5266 = vsel %vm5181, %v5265, %v5241
  %v5267 = vsel %vm5180, %v4134, %v5264
  %v5268 = vsel %vm5180, 0, %v5266
  %v5269 = vcosq.f32.pop %v5267
  %v5270 = vsinq.f32.pop %v5267
  %vm5271 = vweird.f32 %v4134
  %v5272 = vand.u32 %v5268, 3
  %vm5273 = vcmp.lt.s32.totalorder %v5272, 2
  %vm5274 = vcmp.eq.s32.totalorder %v5272, 0
  %v5275 = vxor.u32 %v5270, 2147483648
  %v5276 = vsel %vm5274, %v5269, %v5275
  %vm5277 = vcmp.eq.s32.totalorder %v5272, 2
  %v5278 = vxor.u32 %v5269, 2147483648
  %v5279 = vsel %vm5277, %v5278, %v5270
  %v5280 = vsel %vm5273, %v5276, %v5279
  %v5281 = vsel %vm5271, nan, %v5280
  %v5282 = vand.u32 2147483647, %v4135
  %vm5283 = vcmp.le.f32.partialorder %v5282, 0.7853982
  %vm5284 = vcmp.lt.s32.totalorder %v4135, 0
  %v5285 = vand.u32 %v4135, 2139095040
  %v5286 = vshrl.u32 %v5285, 23
  %v5287 = vsub.s32 %v5286, 127
  %v5288 = vand.u32 2147483647, %v4135
  %v5289 = vand.u32 %v5288, 8388607
  %v5290 = vor.u32 %v5289, 8388608
  %v5291 = vsub.s32 0, %v5290
  %v5292 = vadd.s32 %v5287, 1
  %vm5293 = vcmp.gt.s32.totalorder %v5292, 0
  %v5294 = vsel %vm5293, %v5292, 0
  %v5295 = vshrl.u32 %v5294, 5
  %v5296 = vand.u32 %v5294, 31
  %v5297 = vsub.s32 32, %v5296
  %v5298 = vshrl.u32 683565275, %v5297
  %v5299 = vshll.u32 683565275, %v5296
  %v5300 = vshrl.u32 2475754826, %v5297
  %v5301 = vor.u32 %v5299, %v5300
  %v5302 = vshll.u32 2475754826, %v5296
  %v5303 = vshrl.u32 2131351028, %v5297
  %v5304 = vor.u32 %v5302, %v5303
  %v5305 = vshll.u32 2131351028, %v5296
  %v5306 = vshrl.u32 2102212464, %v5297
  %v5307 = vor.u32 %v5305, %v5306
  %v5308 = vshll.u32 2102212464, %v5296
  %v5309 = vshrl.u32 920167782, %v5297
  %v5310 = vor.u32 %v5308, %v5309
  %v5311 = vshll.u32 920167782, %v5296
  %v5312 = vshrl.u32 1326507024, %v5297
  %v5313 = vor.u32 %v5311, %v5312
  %vm5314 = vcmp.lt.s32.totalorder %v5295, 1
  %vm5315 = vcmp.lt.s32.totalorder %v5295, 2
  %vm5316 = vcmp.lt.s32.totalorder %v5295, 3
  %vm5317 = vcmp.lt.s32.totalorder %v5295, 4
  %v5318 = vsel %vm5314, %v5298, %v5301
  %v5319 = vsel %vm5317, %v5307, 2102212464
  %v5320 = vsel %vm5316, %v5304, %v5319
  %v5321 = vsel %vm5315, %v5318, %v5320
  %v5322 = vsel %vm5314, %v5301, %v5304
  %v5323 = vsel %vm5317, %v5310, 920167782
  %v5324 = vsel %vm5316, %v5307, %v5323
  %v5325 = vsel %vm5315, %v5322, %v5324
  %v5326 = vsel %vm5314, %v5304, %v5307
  %v5327 = vsel %vm5317, %v5313, 1326507024
  %v5328 = vsel %vm5316, %v5310, %v5327
  %v5329 = vsel %vm5315, %v5326, %v5328
  %v5330 = vshll.u32 %v5290, 8
  %v5331 = vmul.u32.u64.compose %v5330, %v5329
  %v5332 = vextract.low.u32 %v5331
  %v5333 = vextract.high.u32 %v5331
  %v5334 = vmul.u32.u64.compose %v5330, %v5325
  %v5335 = vextract.low.u32 %v5334
  %v5336 = vextract.high.u32 %v5334
  %v5337 = vmul.u32 %v5330, %v5321
  %v5338 = vadd.s32 %v5333, %v5335
  %vm5339 = vc.u32 %v5333, %v5335
  %v5340 = vadd.s32 %v5336, 1
  %v5341 = vsel %vm5339, %v5340, %v5336
  %v5342 = vadd.s32 %v5337, %v5341
  %v5343 = vadd.s32 %v5342, 536870912
  %v5344 = vshrl.u32 %v5343, 30
  %v5345 = vshll.u32 %v5344, 30
  %v5346 = vsub.s32 %v5342, %v5345
  %vm5347 = vcmp.lt.s32.totalorder %v5346, 0
  %v5348 = vsub.s32 0, %v5346
  %v5349 = vsel %vm5347, %v5348, %v5346
  %v5350 = vclz %v5349
  %v5351 = vsub.s32 %v5350, 2
  %vm5352 = vcmp.gt.s32.totalorder 0, %v5351
  %v5353 = vsel %vm5352, 0, %v5351
  %v5354 = vsub.s32 32, %v5353
  %v5355 = vshll.u32 %v5346, %v5353
  %v5356 = vshrl.u32 %v5338, %v5354
  %v5357 = vor.u32 %v5355, %v5356
  %v5358 = vsub.s32 4294967266, %v5353
  %v5359 = vadd.s32 %v5358, 127
  %v5360 = vshll.u32 %v5359, 23
  %v5361 = vor.u32 4788187, %v5360
  %v5362 = vand.u32 2147483647, %v5361
  %v5364 = vcvt.s32.f32 %v5357
  %v5365 = vmul.f32 %v5364, %v5362
  %v5366 = vxor.u32 %v5365, 2147483648
  %v5367 = vsel %vm5284, %v5366, %v5365
  %v5368 = vsub.s32 4, %v5344
  %v5369 = vsel %vm5284, %v5368, %v5344
  %v5370 = vsel %vm5283, %v4135, %v5367
  %v5371 = vsel %vm5283, 0, %v5369
  %v5372 = vcosq.f32.pop %v5370
  %v5373 = vsinq.f32.pop %v5370
  %vm5374 = vweird.f32 %v4135
  %v5375 = vand.u32 %v5371, 3
  %vm5376 = vcmp.lt.s32.totalorder %v5375, 2
  %vm5377 = vcmp.eq.s32.totalorder %v5375, 0
  %v5378 = vxor.u32 %v5373, 2147483648
  %v5379 = vsel %vm5377, %v5372, %v5378
  %vm5380 = vcmp.eq.s32.totalorder %v5375, 2
  %v5381 = vxor.u32 %v5372, 2147483648
  %v5382 = vsel %vm5380, %v5381, %v5373
  %v5383 = vsel %vm5376, %v5379, %v5382
  %v5384 = vsel %vm5374, nan, %v5383
  %v5385 = vand.u32 2147483647, %v4136
  %vm5386 = vcmp.le.f32.partialorder %v5385, 0.7853982
  %vm5387 = vcmp.lt.s32.totalorder %v4136, 0
  %v5388 = vand.u32 %v4136, 2139095040
  %v5389 = vshrl.u32 %v5388, 23
  %v5390 = vsub.s32 %v5389, 127
  %v5391 = vand.u32 2147483647, %v4136
  %v5392 = vand.u32 %v5391, 8388607
  %v5393 = vor.u32 %v5392, 8388608
  %v5394 = vsub.s32 0, %v5393
  %v5395 = vadd.s32 %v5390, 1
  %vm5396 = vcmp.gt.s32.totalorder %v5395, 0
  %v5397 = vsel %vm5396, %v5395, 0
  %v5398 = vshrl.u32 %v5397, 5
  %v5399 = vand.u32 %v5397, 31
  %v5400 = vsub.s32 32, %v5399
  %v5401 = vshrl.u32 683565275, %v5400
  %v5402 = vshll.u32 683565275, %v5399
  %v5403 = vshrl.u32 2475754826, %v5400
  %v5404 = vor.u32 %v5402, %v5403
  %v5405 = vshll.u32 2475754826, %v5399
  %v5406 = vshrl.u32 2131351028, %v5400
  %v5407 = vor.u32 %v5405, %v5406
  %v5408 = vshll.u32 2131351028, %v5399
  %v5409 = vshrl.u32 2102212464, %v5400
  %v5410 = vor.u32 %v5408, %v5409
  %v5411 = vshll.u32 2102212464, %v5399
  %v5412 = vshrl.u32 920167782, %v5400
  %v5413 = vor.u32 %v5411, %v5412
  %v5414 = vshll.u32 920167782, %v5399
  %v5415 = vshrl.u32 1326507024, %v5400
  %v5416 = vor.u32 %v5414, %v5415
  %vm5417 = vcmp.lt.s32.totalorder %v5398, 1
  %vm5418 = vcmp.lt.s32.totalorder %v5398, 2
  %vm5419 = vcmp.lt.s32.totalorder %v5398, 3
  %vm5420 = vcmp.lt.s32.totalorder %v5398, 4
  %v5421 = vsel %vm5417, %v5401, %v5404
  %v5422 = vsel %vm5420, %v5410, 2102212464
  %v5423 = vsel %vm5419, %v5407, %v5422
  %v5424 = vsel %vm5418, %v5421, %v5423
  %v5425 = vsel %vm5417, %v5404, %v5407
  %v5426 = vsel %vm5420, %v5413, 920167782
  %v5427 = vsel %vm5419, %v5410, %v5426
  %v5428 = vsel %vm5418, %v5425, %v5427
  %v5429 = vsel %vm5417, %v5407, %v5410
  %v5430 = vsel %vm5420, %v5416, 1326507024
  %v5431 = vsel %vm5419, %v5413, %v5430
  %v5432 = vsel %vm5418, %v5429, %v5431
  %v5433 = vshll.u32 %v5393, 8
  %v5434 = vmul.u32.u64.compose %v5433, %v5432
  %v5435 = vextract.low.u32 %v5434
  %v5436 = vextract.high.u32 %v5434
  %v5437 = vmul.u32.u64.compose %v5433, %v5428
  %v5438 = vextract.low.u32 %v5437
  %v5439 = vextract.high.u32 %v5437
  %v5440 = vmul.u32 %v5433, %v5424
  %v5441 = vadd.s32 %v5436, %v5438
  %vm5442 = vc.u32 %v5436, %v5438
  %v5443 = vadd.s32 %v5439, 1
  %v5444 = vsel %vm5442, %v5443, %v5439
  %v5445 = vadd.s32 %v5440, %v5444
  %v5446 = vadd.s32 %v5445, 536870912
  %v5447 = vshrl.u32 %v5446, 30
  %v5448 = vshll.u32 %v5447, 30
  %v5449 = vsub.s32 %v5445, %v5448
  %vm5450 = vcmp.lt.s32.totalorder %v5449, 0
  %v5451 = vsub.s32 0, %v5449
  %v5452 = vsel %vm5450, %v5451, %v5449
  %v5453 = vclz %v5452
  %v5454 = vsub.s32 %v5453, 2
  %vm5455 = vcmp.gt.s32.totalorder 0, %v5454
  %v5456 = vsel %vm5455, 0, %v5454
  %v5457 = vsub.s32 32, %v5456
  %v5458 = vshll.u32 %v5449, %v5456
  %v5459 = vshrl.u32 %v5441, %v5457
  %v5460 = vor.u32 %v5458, %v5459
  %v5461 = vsub.s32 4294967266, %v5456
  %v5462 = vadd.s32 %v5461, 127
  %v5463 = vshll.u32 %v5462, 23
  %v5464 = vor.u32 4788187, %v5463
  %v5465 = vand.u32 2147483647, %v5464
  %v5467 = vcvt.s32.f32 %v5460
  %v5468 = vmul.f32 %v5467, %v5465
  %v5469 = vxor.u32 %v5468, 2147483648
  %v5470 = vsel %vm5387, %v5469, %v5468
  %v5471 = vsub.s32 4, %v5447
  %v5472 = vsel %vm5387, %v5471, %v5447
  %v5473 = vsel %vm5386, %v4136, %v5470
  %v5474 = vsel %vm5386, 0, %v5472
  %v5475 = vcosq.f32.pop %v5473
  %v5476 = vsinq.f32.pop %v5473
  %vm5477 = vweird.f32 %v4136
  %v5478 = vand.u32 %v5474, 3
  %vm5479 = vcmp.lt.s32.totalorder %v5478, 2
  %vm5480 = vcmp.eq.s32.totalorder %v5478, 0
  %v5481 = vxor.u32 %v5476, 2147483648
  %v5482 = vsel %vm5480, %v5475, %v5481
  %vm5483 = vcmp.eq.s32.totalorder %v5478, 2
  %v5484 = vxor.u32 %v5475, 2147483648
  %v5485 = vsel %vm5483, %v5484, %v5476
  %v5486 = vsel %vm5479, %v5482, %v5485
  %v5487 = vsel %vm5477, nan, %v5486
  %v5488 = vand.u32 2147483647, %v4137
  %vm5489 = vcmp.le.f32.partialorder %v5488, 0.7853982
  %vm5490 = vcmp.lt.s32.totalorder %v4137, 0
  %v5491 = vand.u32 %v4137, 2139095040
  %v5492 = vshrl.u32 %v5491, 23
  %v5493 = vsub.s32 %v5492, 127
  %v5494 = vand.u32 2147483647, %v4137
  %v5495 = vand.u32 %v5494, 8388607
  %v5496 = vor.u32 %v5495, 8388608
  %v5497 = vsub.s32 0, %v5496
  %v5498 = vadd.s32 %v5493, 1
  %vm5499 = vcmp.gt.s32.totalorder %v5498, 0
  %v5500 = vsel %vm5499, %v5498, 0
  %v5501 = vshrl.u32 %v5500, 5
  %v5502 = vand.u32 %v5500, 31
  %v5503 = vsub.s32 32, %v5502
  %v5504 = vshrl.u32 683565275, %v5503
  %v5505 = vshll.u32 683565275, %v5502
  %v5506 = vshrl.u32 2475754826, %v5503
  %v5507 = vor.u32 %v5505, %v5506
  %v5508 = vshll.u32 2475754826, %v5502
  %v5509 = vshrl.u32 2131351028, %v5503
  %v5510 = vor.u32 %v5508, %v5509
  %v5511 = vshll.u32 2131351028, %v5502
  %v5512 = vshrl.u32 2102212464, %v5503
  %v5513 = vor.u32 %v5511, %v5512
  %v5514 = vshll.u32 2102212464, %v5502
  %v5515 = vshrl.u32 920167782, %v5503
  %v5516 = vor.u32 %v5514, %v5515
  %v5517 = vshll.u32 920167782, %v5502
  %v5518 = vshrl.u32 1326507024, %v5503
  %v5519 = vor.u32 %v5517, %v5518
  %vm5520 = vcmp.lt.s32.totalorder %v5501, 1
  %vm5521 = vcmp.lt.s32.totalorder %v5501, 2
  %vm5522 = vcmp.lt.s32.totalorder %v5501, 3
  %vm5523 = vcmp.lt.s32.totalorder %v5501, 4
  %v5524 = vsel %vm5520, %v5504, %v5507
  %v5525 = vsel %vm5523, %v5513, 2102212464
  %v5526 = vsel %vm5522, %v5510, %v5525
  %v5527 = vsel %vm5521, %v5524, %v5526
  %v5528 = vsel %vm5520, %v5507, %v5510
  %v5529 = vsel %vm5523, %v5516, 920167782
  %v5530 = vsel %vm5522, %v5513, %v5529
  %v5531 = vsel %vm5521, %v5528, %v5530
  %v5532 = vsel %vm5520, %v5510, %v5513
  %v5533 = vsel %vm5523, %v5519, 1326507024
  %v5534 = vsel %vm5522, %v5516, %v5533
  %v5535 = vsel %vm5521, %v5532, %v5534
  %v5536 = vshll.u32 %v5496, 8
  %v5537 = vmul.u32.u64.compose %v5536, %v5535
  %v5538 = vextract.low.u32 %v5537
  %v5539 = vextract.high.u32 %v5537
  %v5540 = vmul.u32.u64.compose %v5536, %v5531
  %v5541 = vextract.low.u32 %v5540
  %v5542 = vextract.high.u32 %v5540
  %v5543 = vmul.u32 %v5536, %v5527
  %v5544 = vadd.s32 %v5539, %v5541
  %vm5545 = vc.u32 %v5539, %v5541
  %v5546 = vadd.s32 %v5542, 1
  %v5547 = vsel %vm5545, %v5546, %v5542
  %v5548 = vadd.s32 %v5543, %v5547
  %v5549 = vadd.s32 %v5548, 536870912
  %v5550 = vshrl.u32 %v5549, 30
  %v5551 = vshll.u32 %v5550, 30
  %v5552 = vsub.s32 %v5548, %v5551
  %vm5553 = vcmp.lt.s32.totalorder %v5552, 0
  %v5554 = vsub.s32 0, %v5552
  %v5555 = vsel %vm5553, %v5554, %v5552
  %v5556 = vclz %v5555
  %v5557 = vsub.s32 %v5556, 2
  %vm5558 = vcmp.gt.s32.totalorder 0, %v5557
  %v5559 = vsel %vm5558, 0, %v5557
  %v5560 = vsub.s32 32, %v5559
  %v5561 = vshll.u32 %v5552, %v5559
  %v5562 = vshrl.u32 %v5544, %v5560
  %v5563 = vor.u32 %v5561, %v5562
  %v5564 = vsub.s32 4294967266, %v5559
  %v5565 = vadd.s32 %v5564, 127
  %v5566 = vshll.u32 %v5565, 23
  %v5567 = vor.u32 4788187, %v5566
  %v5568 = vand.u32 2147483647, %v5567
  %v5570 = vcvt.s32.f32 %v5563
  %v5571 = vmul.f32 %v5570, %v5568
  %v5572 = vxor.u32 %v5571, 2147483648
  %v5573 = vsel %vm5490, %v5572, %v5571
  %v5574 = vsub.s32 4, %v5550
  %v5575 = vsel %vm5490, %v5574, %v5550
  %v5576 = vsel %vm5489, %v4137, %v5573
  %v5577 = vsel %vm5489, 0, %v5575
  %v5578 = vcosq.f32.pop %v5576
  %v5579 = vsinq.f32.pop %v5576
  %vm5580 = vweird.f32 %v4137
  %v5581 = vand.u32 %v5577, 3
  %vm5582 = vcmp.lt.s32.totalorder %v5581, 2
  %vm5583 = vcmp.eq.s32.totalorder %v5581, 0
  %v5584 = vxor.u32 %v5579, 2147483648
  %v5585 = vsel %vm5583, %v5578, %v5584
  %vm5586 = vcmp.eq.s32.totalorder %v5581, 2
  %v5587 = vxor.u32 %v5578, 2147483648
  %v5588 = vsel %vm5586, %v5587, %v5579
  %v5589 = vsel %vm5582, %v5585, %v5588
  %v5590 = vsel %vm5580, nan, %v5589
  %v5591 = vand.u32 2147483647, %v4138
  %vm5592 = vcmp.le.f32.partialorder %v5591, 0.7853982
  %vm5593 = vcmp.lt.s32.totalorder %v4138, 0
  %v5594 = vand.u32 %v4138, 2139095040
  %v5595 = vshrl.u32 %v5594, 23
  %v5596 = vsub.s32 %v5595, 127
  %v5597 = vand.u32 2147483647, %v4138
  %v5598 = vand.u32 %v5597, 8388607
  %v5599 = vor.u32 %v5598, 8388608
  %v5600 = vsub.s32 0, %v5599
  %v5601 = vadd.s32 %v5596, 1
  %vm5602 = vcmp.gt.s32.totalorder %v5601, 0
  %v5603 = vsel %vm5602, %v5601, 0
  %v5604 = vshrl.u32 %v5603, 5
  %v5605 = vand.u32 %v5603, 31
  %v5606 = vsub.s32 32, %v5605
  %v5607 = vshrl.u32 683565275, %v5606
  %v5608 = vshll.u32 683565275, %v5605
  %v5609 = vshrl.u32 2475754826, %v5606
  %v5610 = vor.u32 %v5608, %v5609
  %v5611 = vshll.u32 2475754826, %v5605
  %v5612 = vshrl.u32 2131351028, %v5606
  %v5613 = vor.u32 %v5611, %v5612
  %v5614 = vshll.u32 2131351028, %v5605
  %v5615 = vshrl.u32 2102212464, %v5606
  %v5616 = vor.u32 %v5614, %v5615
  %v5617 = vshll.u32 2102212464, %v5605
  %v5618 = vshrl.u32 920167782, %v5606
  %v5619 = vor.u32 %v5617, %v5618
  %v5620 = vshll.u32 920167782, %v5605
  %v5621 = vshrl.u32 1326507024, %v5606
  %v5622 = vor.u32 %v5620, %v5621
  %vm5623 = vcmp.lt.s32.totalorder %v5604, 1
  %vm5624 = vcmp.lt.s32.totalorder %v5604, 2
  %vm5625 = vcmp.lt.s32.totalorder %v5604, 3
  %vm5626 = vcmp.lt.s32.totalorder %v5604, 4
  %v5627 = vsel %vm5623, %v5607, %v5610
  %v5628 = vsel %vm5626, %v5616, 2102212464
  %v5629 = vsel %vm5625, %v5613, %v5628
  %v5630 = vsel %vm5624, %v5627, %v5629
  %v5631 = vsel %vm5623, %v5610, %v5613
  %v5632 = vsel %vm5626, %v5619, 920167782
  %v5633 = vsel %vm5625, %v5616, %v5632
  %v5634 = vsel %vm5624, %v5631, %v5633
  %v5635 = vsel %vm5623, %v5613, %v5616
  %v5636 = vsel %vm5626, %v5622, 1326507024
  %v5637 = vsel %vm5625, %v5619, %v5636
  %v5638 = vsel %vm5624, %v5635, %v5637
  %v5639 = vshll.u32 %v5599, 8
  %v5640 = vmul.u32.u64.compose %v5639, %v5638
  %v5641 = vextract.low.u32 %v5640
  %v5642 = vextract.high.u32 %v5640
  %v5643 = vmul.u32.u64.compose %v5639, %v5634
  %v5644 = vextract.low.u32 %v5643
  %v5645 = vextract.high.u32 %v5643
  %v5646 = vmul.u32 %v5639, %v5630
  %v5647 = vadd.s32 %v5642, %v5644
  %vm5648 = vc.u32 %v5642, %v5644
  %v5649 = vadd.s32 %v5645, 1
  %v5650 = vsel %vm5648, %v5649, %v5645
  %v5651 = vadd.s32 %v5646, %v5650
  %v5652 = vadd.s32 %v5651, 536870912
  %v5653 = vshrl.u32 %v5652, 30
  %v5654 = vshll.u32 %v5653, 30
  %v5655 = vsub.s32 %v5651, %v5654
  %vm5656 = vcmp.lt.s32.totalorder %v5655, 0
  %v5657 = vsub.s32 0, %v5655
  %v5658 = vsel %vm5656, %v5657, %v5655
  %v5659 = vclz %v5658
  %v5660 = vsub.s32 %v5659, 2
  %vm5661 = vcmp.gt.s32.totalorder 0, %v5660
  %v5662 = vsel %vm5661, 0, %v5660
  %v5663 = vsub.s32 32, %v5662
  %v5664 = vshll.u32 %v5655, %v5662
  %v5665 = vshrl.u32 %v5647, %v5663
  %v5666 = vor.u32 %v5664, %v5665
  %v5667 = vsub.s32 4294967266, %v5662
  %v5668 = vadd.s32 %v5667, 127
  %v5669 = vshll.u32 %v5668, 23
  %v5670 = vor.u32 4788187, %v5669
  %v5671 = vand.u32 2147483647, %v5670
  %v5673 = vcvt.s32.f32 %v5666
  %v5674 = vmul.f32 %v5673, %v5671
  %v5675 = vxor.u32 %v5674, 2147483648
  %v5676 = vsel %vm5593, %v5675, %v5674
  %v5677 = vsub.s32 4, %v5653
  %v5678 = vsel %vm5593, %v5677, %v5653
  %v5679 = vsel %vm5592, %v4138, %v5676
  %v5680 = vsel %vm5592, 0, %v5678
  %v5681 = vcosq.f32.pop %v5679
  %v5682 = vsinq.f32.pop %v5679
  %vm5683 = vweird.f32 %v4138
  %v5684 = vand.u32 %v5680, 3
  %vm5685 = vcmp.lt.s32.totalorder %v5684, 2
  %vm5686 = vcmp.eq.s32.totalorder %v5684, 0
  %v5687 = vxor.u32 %v5682, 2147483648
  %v5688 = vsel %vm5686, %v5681, %v5687
  %vm5689 = vcmp.eq.s32.totalorder %v5684, 2
  %v5690 = vxor.u32 %v5681, 2147483648
  %v5691 = vsel %vm5689, %v5690, %v5682
  %v5692 = vsel %vm5685, %v5688, %v5691
  %v5693 = vsel %vm5683, nan, %v5692
  %v5694 = vand.u32 2147483647, %v4139
  %vm5695 = vcmp.le.f32.partialorder %v5694, 0.7853982
  %vm5696 = vcmp.lt.s32.totalorder %v4139, 0
  %v5697 = vand.u32 %v4139, 2139095040
  %v5698 = vshrl.u32 %v5697, 23
  %v5699 = vsub.s32 %v5698, 127
  %v5700 = vand.u32 2147483647, %v4139
  %v5701 = vand.u32 %v5700, 8388607
  %v5702 = vor.u32 %v5701, 8388608
  %v5703 = vsub.s32 0, %v5702
  %v5704 = vadd.s32 %v5699, 1
  %vm5705 = vcmp.gt.s32.totalorder %v5704, 0
  %v5706 = vsel %vm5705, %v5704, 0
  %v5707 = vshrl.u32 %v5706, 5
  %v5708 = vand.u32 %v5706, 31
  %v5709 = vsub.s32 32, %v5708
  %v5710 = vshrl.u32 683565275, %v5709
  %v5711 = vshll.u32 683565275, %v5708
  %v5712 = vshrl.u32 2475754826, %v5709
  %v5713 = vor.u32 %v5711, %v5712
  %v5714 = vshll.u32 2475754826, %v5708
  %v5715 = vshrl.u32 2131351028, %v5709
  %v5716 = vor.u32 %v5714, %v5715
  %v5717 = vshll.u32 2131351028, %v5708
  %v5718 = vshrl.u32 2102212464, %v5709
  %v5719 = vor.u32 %v5717, %v5718
  %v5720 = vshll.u32 2102212464, %v5708
  %v5721 = vshrl.u32 920167782, %v5709
  %v5722 = vor.u32 %v5720, %v5721
  %v5723 = vshll.u32 920167782, %v5708
  %v5724 = vshrl.u32 1326507024, %v5709
  %v5725 = vor.u32 %v5723, %v5724
  %vm5726 = vcmp.lt.s32.totalorder %v5707, 1
  %vm5727 = vcmp.lt.s32.totalorder %v5707, 2
  %vm5728 = vcmp.lt.s32.totalorder %v5707, 3
  %vm5729 = vcmp.lt.s32.totalorder %v5707, 4
  %v5730 = vsel %vm5726, %v5710, %v5713
  %v5731 = vsel %vm5729, %v5719, 2102212464
  %v5732 = vsel %vm5728, %v5716, %v5731
  %v5733 = vsel %vm5727, %v5730, %v5732
  %v5734 = vsel %vm5726, %v5713, %v5716
  %v5735 = vsel %vm5729, %v5722, 920167782
  %v5736 = vsel %vm5728, %v5719, %v5735
  %v5737 = vsel %vm5727, %v5734, %v5736
  %v5738 = vsel %vm5726, %v5716, %v5719
  %v5739 = vsel %vm5729, %v5725, 1326507024
  %v5740 = vsel %vm5728, %v5722, %v5739
  %v5741 = vsel %vm5727, %v5738, %v5740
  %v5742 = vshll.u32 %v5702, 8
  %v5743 = vmul.u32.u64.compose %v5742, %v5741
  %v5744 = vextract.low.u32 %v5743
  %v5745 = vextract.high.u32 %v5743
  %v5746 = vmul.u32.u64.compose %v5742, %v5737
  %v5747 = vextract.low.u32 %v5746
  %v5748 = vextract.high.u32 %v5746
  %v5749 = vmul.u32 %v5742, %v5733
  %v5750 = vadd.s32 %v5745, %v5747
  %vm5751 = vc.u32 %v5745, %v5747
  %v5752 = vadd.s32 %v5748, 1
  %v5753 = vsel %vm5751, %v5752, %v5748
  %v5754 = vadd.s32 %v5749, %v5753
  %v5755 = vadd.s32 %v5754, 536870912
  %v5756 = vshrl.u32 %v5755, 30
  %v5757 = vshll.u32 %v5756, 30
  %v5758 = vsub.s32 %v5754, %v5757
  %vm5759 = vcmp.lt.s32.totalorder %v5758, 0
  %v5760 = vsub.s32 0, %v5758
  %v5761 = vsel %vm5759, %v5760, %v5758
  %v5762 = vclz %v5761
  %v5763 = vsub.s32 %v5762, 2
  %vm5764 = vcmp.gt.s32.totalorder 0, %v5763
  %v5765 = vsel %vm5764, 0, %v5763
  %v5766 = vsub.s32 32, %v5765
  %v5767 = vshll.u32 %v5758, %v5765
  %v5768 = vshrl.u32 %v5750, %v5766
  %v5769 = vor.u32 %v5767, %v5768
  %v5770 = vsub.s32 4294967266, %v5765
  %v5771 = vadd.s32 %v5770, 127
  %v5772 = vshll.u32 %v5771, 23
  %v5773 = vor.u32 4788187, %v5772
  %v5774 = vand.u32 2147483647, %v5773
  %v5776 = vcvt.s32.f32 %v5769
  %v5777 = vmul.f32 %v5776, %v5774
  %v5778 = vxor.u32 %v5777, 2147483648
  %v5779 = vsel %vm5696, %v5778, %v5777
  %v5780 = vsub.s32 4, %v5756
  %v5781 = vsel %vm5696, %v5780, %v5756
  %v5782 = vsel %vm5695, %v4139, %v5779
  %v5783 = vsel %vm5695, 0, %v5781
  %v5784 = vcosq.f32.pop %v5782
  %v5785 = vsinq.f32.pop %v5782
  %vm5786 = vweird.f32 %v4139
  %v5787 = vand.u32 %v5783, 3
  %vm5788 = vcmp.lt.s32.totalorder %v5787, 2
  %vm5789 = vcmp.eq.s32.totalorder %v5787, 0
  %v5790 = vxor.u32 %v5785, 2147483648
  %v5791 = vsel %vm5789, %v5784, %v5790
  %vm5792 = vcmp.eq.s32.totalorder %v5787, 2
  %v5793 = vxor.u32 %v5784, 2147483648
  %v5794 = vsel %vm5792, %v5793, %v5785
  %v5795 = vsel %vm5788, %v5791, %v5794
  %v5796 = vsel %vm5786, nan, %v5795
  %5805 = vrot.lane.b32.xlu0 %v5075, 4
  %v5806 = vpop.permute.xlu0 %5805
  %5807 = vrot.lane.b32.xlu0 %v5178, 4
  %v5808 = vpop.permute.xlu0 %5807
  %5809 = vrot.lane.b32.xlu0 %v5281, 4
  %v5810 = vpop.permute.xlu0 %5809
  %5811 = vrot.lane.b32.xlu0 %v5384, 4
  %v5812 = vpop.permute.xlu0 %5811
  %5813 = vrot.lane.b32.xlu0 %v5487, 4
  %v5814 = vpop.permute.xlu0 %5813
  %5815 = vrot.lane.b32.xlu0 %v5590, 4
  %v5816 = vpop.permute.xlu0 %5815
  %5817 = vrot.lane.b32.xlu0 %v5693, 4
  %v5818 = vpop.permute.xlu0 %5817
  %5819 = vrot.lane.b32.xlu0 %v5796, 4
  %v5820 = vpop.permute.xlu0 %5819
  %5837 = vrot.lane.b32.xlu0 %v4244, 4
  %v5838 = vpop.permute.xlu0 %5837
  %5839 = vrot.lane.b32.xlu0 %v4348, 4
  %v5840 = vpop.permute.xlu0 %5839
  %5841 = vrot.lane.b32.xlu0 %v4452, 4
  %v5842 = vpop.permute.xlu0 %5841
  %5843 = vrot.lane.b32.xlu0 %v4556, 4
  %v5844 = vpop.permute.xlu0 %5843
  %5845 = vrot.lane.b32.xlu0 %v4660, 4
  %v5846 = vpop.permute.xlu0 %5845
  %5847 = vrot.lane.b32.xlu0 %v4764, 4
  %v5848 = vpop.permute.xlu0 %5847
  %5849 = vrot.lane.b32.xlu0 %v4868, 4
  %v5850 = vpop.permute.xlu0 %5849
  %5851 = vrot.lane.b32.xlu0 %v4972, 4
  %v5852 = vpop.permute.xlu0 %5851
  %5861 = vrot.lane.b32.xlu0 %v5075, 8
  %v5862 = vpop.permute.xlu0 %5861
  %5863 = vrot.lane.b32.xlu0 %v5178, 8
  %v5864 = vpop.permute.xlu0 %5863
  %5865 = vrot.lane.b32.xlu0 %v5281, 8
  %v5866 = vpop.permute.xlu0 %5865
  %5867 = vrot.lane.b32.xlu0 %v5384, 8
  %v5868 = vpop.permute.xlu0 %5867
  %5869 = vrot.lane.b32.xlu0 %v5487, 8
  %v5870 = vpop.permute.xlu0 %5869
  %5871 = vrot.lane.b32.xlu0 %v5590, 8
  %v5872 = vpop.permute.xlu0 %5871
  %5873 = vrot.lane.b32.xlu0 %v5693, 8
  %v5874 = vpop.permute.xlu0 %5873
  %5875 = vrot.lane.b32.xlu0 %v5796, 8
  %v5876 = vpop.permute.xlu0 %5875
  %vm5885 = vcmask 31744
  %v5886 = vsel %vm5885, %v4244, %v5806
  %v5887 = vsel %vm5885, %v4348, %v5808
  %v5888 = vsel %vm5885, %v4452, %v5810
  %v5889 = vsel %vm5885, %v4556, %v5812
  %v5890 = vsel %vm5885, %v4660, %v5814
  %v5891 = vsel %vm5885, %v4764, %v5816
  %v5892 = vsel %vm5885, %v4868, %v5818
  %v5893 = vsel %vm5885, %v4972, %v5820
  %v5894 = vsel %vm3333, %v5886, %v5838
  %v5895 = vsel %vm3333, %v5887, %v5840
  %v5896 = vsel %vm3333, %v5888, %v5842
  %v5897 = vsel %vm3333, %v5889, %v5844
  %v5898 = vsel %vm3333, %v5890, %v5846
  %v5899 = vsel %vm3333, %v5891, %v5848
  %v5900 = vsel %vm3333, %v5892, %v5850
  %v5901 = vsel %vm3333, %v5893, %v5852
  %vm5902 = vcmask 97280
  %v5903 = vsel %vm5902, %v5894, %v5862
  %v5904 = vsel %vm5902, %v5895, %v5864
  %v5905 = vsel %vm5902, %v5896, %v5866
  %v5906 = vsel %vm5902, %v5897, %v5868
  %v5907 = vsel %vm5902, %v5898, %v5870
  %v5908 = vsel %vm5902, %v5899, %v5872
  %v5909 = vsel %vm5902, %v5900, %v5874
  %v5910 = vsel %vm5902, %v5901, %v5876
  %v5911 = vld [vmem:[%s8] sm:$0x3]
  %5913 = vset.pattern.permute.xlu0 0
  %5914 = vperm.xlu0 %5913, %v5911
  %v5915 = vpop.permute.xlu0 %5914
  %v5917 = vlaneseq
  %v5918 = vshrl.u32 %v5917, 7
  %v5919 = vsub.s32 0, %v5918
  %v5920 = vrot.slane %v4140, %v5919
  %v5921 = vmul.f32 %v5915, %v5920
  %v5922 = vand.u32 2147483647, %v5921
  %vm5923 = vcmp.le.f32.partialorder %v5922, 0.7853982
  %vm5924 = vcmp.lt.s32.totalorder %v5921, 0
  %v5925 = vand.u32 %v5921, 2139095040
  %v5926 = vshrl.u32 %v5925, 23
  %v5927 = vsub.s32 %v5926, 127
  %v5928 = vand.u32 2147483647, %v5921
  %v5929 = vand.u32 %v5928, 8388607
  %v5930 = vor.u32 %v5929, 8388608
  %v5931 = vsub.s32 0, %v5930
  %v5932 = vadd.s32 %v5927, 1
  %vm5933 = vcmp.gt.s32.totalorder %v5932, 0
  %v5934 = vsel %vm5933, %v5932, 0
  %v5935 = vshrl.u32 %v5934, 5
  %v5936 = vand.u32 %v5934, 31
  %v5937 = vsub.s32 32, %v5936
  %v5938 = vshrl.u32 683565275, %v5937
  %v5939 = vshll.u32 683565275, %v5936
  %v5940 = vshrl.u32 2475754826, %v5937
  %v5941 = vor.u32 %v5939, %v5940
  %v5942 = vshll.u32 2475754826, %v5936
  %v5943 = vshrl.u32 2131351028, %v5937
  %v5944 = vor.u32 %v5942, %v5943
  %v5945 = vshll.u32 2131351028, %v5936
  %v5946 = vshrl.u32 2102212464, %v5937
  %v5947 = vor.u32 %v5945, %v5946
  %v5948 = vshll.u32 2102212464, %v5936
  %v5949 = vshrl.u32 920167782, %v5937
  %v5950 = vor.u32 %v5948, %v5949
  %v5951 = vshll.u32 920167782, %v5936
  %v5952 = vshrl.u32 1326507024, %v5937
  %v5953 = vor.u32 %v5951, %v5952
  %vm5954 = vcmp.lt.s32.totalorder %v5935, 1
  %vm5955 = vcmp.lt.s32.totalorder %v5935, 2
  %vm5956 = vcmp.lt.s32.totalorder %v5935, 3
  %vm5957 = vcmp.lt.s32.totalorder %v5935, 4
  %v5958 = vsel %vm5954, %v5938, %v5941
  %v5959 = vsel %vm5957, %v5947, 2102212464
  %v5960 = vsel %vm5956, %v5944, %v5959
  %v5961 = vsel %vm5955, %v5958, %v5960
  %v5962 = vsel %vm5954, %v5941, %v5944
  %v5963 = vsel %vm5957, %v5950, 920167782
  %v5964 = vsel %vm5956, %v5947, %v5963
  %v5965 = vsel %vm5955, %v5962, %v5964
  %v5966 = vsel %vm5954, %v5944, %v5947
  %v5967 = vsel %vm5957, %v5953, 1326507024
  %v5968 = vsel %vm5956, %v5950, %v5967
  %v5969 = vsel %vm5955, %v5966, %v5968
  %v5970 = vshll.u32 %v5930, 8
  %v5971 = vmul.u32.u64.compose %v5970, %v5969
  %v5972 = vextract.low.u32 %v5971
  %v5973 = vextract.high.u32 %v5971
  %v5974 = vmul.u32.u64.compose %v5970, %v5965
  %v5975 = vextract.low.u32 %v5974
  %v5976 = vextract.high.u32 %v5974
  %v5977 = vmul.u32 %v5970, %v5961
  %v5978 = vadd.s32 %v5973, %v5975
  %vm5979 = vc.u32 %v5973, %v5975
  %v5980 = vadd.s32 %v5976, 1
  %v5981 = vsel %vm5979, %v5980, %v5976
  %v5982 = vadd.s32 %v5977, %v5981
  %v5983 = vadd.s32 %v5982, 536870912
  %v5984 = vshrl.u32 %v5983, 30
  %v5985 = vshll.u32 %v5984, 30
  %v5986 = vsub.s32 %v5982, %v5985
  %vm5987 = vcmp.lt.s32.totalorder %v5986, 0
  %v5988 = vsub.s32 0, %v5986
  %v5989 = vsel %vm5987, %v5988, %v5986
  %v5990 = vclz %v5989
  %v5991 = vsub.s32 %v5990, 2
  %vm5992 = vcmp.gt.s32.totalorder 0, %v5991
  %v5993 = vsel %vm5992, 0, %v5991
  %v5994 = vsub.s32 32, %v5993
  %v5995 = vshll.u32 %v5986, %v5993
  %v5996 = vshrl.u32 %v5978, %v5994
  %v5997 = vor.u32 %v5995, %v5996
  %v5998 = vsub.s32 4294967266, %v5993
  %v5999 = vadd.s32 %v5998, 127
  %v6000 = vshll.u32 %v5999, 23
  %v6001 = vor.u32 4788187, %v6000
  %v6002 = vand.u32 2147483647, %v6001
  %v6004 = vcvt.s32.f32 %v5997
  %v6005 = vmul.f32 %v6004, %v6002
  %v6006 = vxor.u32 %v6005, 2147483648
  %v6007 = vsel %vm5924, %v6006, %v6005
  %v6008 = vsub.s32 4, %v5984
  %v6009 = vsel %vm5924, %v6008, %v5984
  %v6010 = vsel %vm5923, %v5921, %v6007
  %v6011 = vsel %vm5923, 0, %v6009
  %v6012 = vcosq.f32.pop %v6010
  %v6013 = vsinq.f32.pop %v6010
  %vm6014 = vweird.f32 %v5921
  %v6015 = vadd.s32 %v6011, 3
  %v6016 = vand.u32 %v6015, 3
  %vm6017 = vcmp.lt.s32.totalorder %v6016, 2
  %vm6018 = vcmp.eq.s32.totalorder %v6016, 0
  %v6019 = vxor.u32 %v6013, 2147483648
  %v6020 = vsel %vm6018, %v6012, %v6019
  %vm6021 = vcmp.eq.s32.totalorder %v6016, 2
  %v6022 = vxor.u32 %v6012, 2147483648
  %v6023 = vsel %vm6021, %v6022, %v6013
  %v6024 = vsel %vm6017, %v6020, %v6023
  %v6025 = vsel %vm6014, nan, %v6024
  %v6026 = vand.u32 2147483647, %v5921
  %vm6027 = vcmp.le.f32.partialorder %v6026, 0.7853982
  %vm6028 = vcmp.lt.s32.totalorder %v5921, 0
  %v6029 = vand.u32 %v5921, 2139095040
  %v6030 = vshrl.u32 %v6029, 23
  %v6031 = vsub.s32 %v6030, 127
  %v6032 = vand.u32 2147483647, %v5921
  %v6033 = vand.u32 %v6032, 8388607
  %v6034 = vor.u32 %v6033, 8388608
  %v6035 = vsub.s32 0, %v6034
  %v6036 = vadd.s32 %v6031, 1
  %vm6037 = vcmp.gt.s32.totalorder %v6036, 0
  %v6038 = vsel %vm6037, %v6036, 0
  %v6039 = vshrl.u32 %v6038, 5
  %v6040 = vand.u32 %v6038, 31
  %v6041 = vsub.s32 32, %v6040
  %v6042 = vshrl.u32 683565275, %v6041
  %v6043 = vshll.u32 683565275, %v6040
  %v6044 = vshrl.u32 2475754826, %v6041
  %v6045 = vor.u32 %v6043, %v6044
  %v6046 = vshll.u32 2475754826, %v6040
  %v6047 = vshrl.u32 2131351028, %v6041
  %v6048 = vor.u32 %v6046, %v6047
  %v6049 = vshll.u32 2131351028, %v6040
  %v6050 = vshrl.u32 2102212464, %v6041
  %v6051 = vor.u32 %v6049, %v6050
  %v6052 = vshll.u32 2102212464, %v6040
  %v6053 = vshrl.u32 920167782, %v6041
  %v6054 = vor.u32 %v6052, %v6053
  %v6055 = vshll.u32 920167782, %v6040
  %v6056 = vshrl.u32 1326507024, %v6041
  %v6057 = vor.u32 %v6055, %v6056
  %vm6058 = vcmp.lt.s32.totalorder %v6039, 1
  %vm6059 = vcmp.lt.s32.totalorder %v6039, 2
  %vm6060 = vcmp.lt.s32.totalorder %v6039, 3
  %vm6061 = vcmp.lt.s32.totalorder %v6039, 4
  %v6062 = vsel %vm6058, %v6042, %v6045
  %v6063 = vsel %vm6061, %v6051, 2102212464
  %v6064 = vsel %vm6060, %v6048, %v6063
  %v6065 = vsel %vm6059, %v6062, %v6064
  %v6066 = vsel %vm6058, %v6045, %v6048
  %v6067 = vsel %vm6061, %v6054, 920167782
  %v6068 = vsel %vm6060, %v6051, %v6067
  %v6069 = vsel %vm6059, %v6066, %v6068
  %v6070 = vsel %vm6058, %v6048, %v6051
  %v6071 = vsel %vm6061, %v6057, 1326507024
  %v6072 = vsel %vm6060, %v6054, %v6071
  %v6073 = vsel %vm6059, %v6070, %v6072
  %v6074 = vshll.u32 %v6034, 8
  %v6075 = vmul.u32.u64.compose %v6074, %v6073
  %v6076 = vextract.low.u32 %v6075
  %v6077 = vextract.high.u32 %v6075
  %v6078 = vmul.u32.u64.compose %v6074, %v6069
  %v6079 = vextract.low.u32 %v6078
  %v6080 = vextract.high.u32 %v6078
  %v6081 = vmul.u32 %v6074, %v6065
  %v6082 = vadd.s32 %v6077, %v6079
  %vm6083 = vc.u32 %v6077, %v6079
  %v6084 = vadd.s32 %v6080, 1
  %v6085 = vsel %vm6083, %v6084, %v6080
  %v6086 = vadd.s32 %v6081, %v6085
  %v6087 = vadd.s32 %v6086, 536870912
  %v6088 = vshrl.u32 %v6087, 30
  %v6089 = vshll.u32 %v6088, 30
  %v6090 = vsub.s32 %v6086, %v6089
  %vm6091 = vcmp.lt.s32.totalorder %v6090, 0
  %v6092 = vsub.s32 0, %v6090
  %v6093 = vsel %vm6091, %v6092, %v6090
  %v6094 = vclz %v6093
  %v6095 = vsub.s32 %v6094, 2
  %vm6096 = vcmp.gt.s32.totalorder 0, %v6095
  %v6097 = vsel %vm6096, 0, %v6095
  %v6098 = vsub.s32 32, %v6097
  %v6099 = vshll.u32 %v6090, %v6097
  %v6100 = vshrl.u32 %v6082, %v6098
  %v6101 = vor.u32 %v6099, %v6100
  %v6102 = vsub.s32 4294967266, %v6097
  %v6103 = vadd.s32 %v6102, 127
  %v6104 = vshll.u32 %v6103, 23
  %v6105 = vor.u32 4788187, %v6104
  %v6106 = vand.u32 2147483647, %v6105
  %v6108 = vcvt.s32.f32 %v6101
  %v6109 = vmul.f32 %v6108, %v6106
  %v6110 = vxor.u32 %v6109, 2147483648
  %v6111 = vsel %vm6028, %v6110, %v6109
  %v6112 = vsub.s32 4, %v6088
  %v6113 = vsel %vm6028, %v6112, %v6088
  %v6114 = vsel %vm6027, %v5921, %v6111
  %v6115 = vsel %vm6027, 0, %v6113
  %v6116 = vcosq.f32.pop %v6114
  %v6117 = vsinq.f32.pop %v6114
  %vm6118 = vweird.f32 %v5921
  %v6119 = vand.u32 %v6115, 3
  %vm6120 = vcmp.lt.s32.totalorder %v6119, 2
  %vm6121 = vcmp.eq.s32.totalorder %v6119, 0
  %v6122 = vxor.u32 %v6117, 2147483648
  %v6123 = vsel %vm6121, %v6116, %v6122
  %vm6124 = vcmp.eq.s32.totalorder %v6119, 2
  %v6125 = vxor.u32 %v6116, 2147483648
  %v6126 = vsel %vm6124, %v6125, %v6117
  %v6127 = vsel %vm6120, %v6123, %v6126
  %v6128 = vsel %vm6118, nan, %v6127
  %6130 = vrot.lane.b32.xlu0 %v6128, 4
  %v6131 = vpop.permute.xlu0 %6130
  %v6133 = vsel %vm5885, %v6025, %v6131
  %v6134 = vsel %vm3333, %v4131, 0.0
  %v6135 = vsel %vm3333, %v6133, 0.0
  %v6144 = vrot.slane %v5903, 6
  %v6145 = vrot.slane %v5904, 6
  %v6146 = vsel %vm2057, %v6144, %v6145
  %v6147 = vrot.slane %v5905, 6
  %v6148 = vsel %vm2057, %v6145, %v6147
  %v6149 = vrot.slane %v5906, 6
  %v6150 = vsel %vm2057, %v6147, %v6149
  %v6151 = vrot.slane %v5907, 6
  %v6152 = vsel %vm2057, %v6149, %v6151
  %v6153 = vrot.slane %v5908, 6
  %v6154 = vsel %vm2057, %v6151, %v6153
  %v6155 = vrot.slane %v5909, 6
  %v6156 = vsel %vm2057, %v6153, %v6155
  %v6157 = vrot.slane %v5910, 6
  %v6158 = vsel %vm2057, %v6155, %v6157
  %v6169 = vrot.slane %v6135, 6
  %v6171 = vsel %vm2057, %v6134, %v6144
  %v6172 = vsel %vm2057, %v6157, %v6169
  %6173 = vst.msk [vmem:[%s9] sm:$0xff] %vm147, %v6171
  %6174 = vst.msk [vmem:[%s9 + $0x8] sm:$0xff] %vm147, %v6146
  %6175 = vst.msk [vmem:[%s9 + $0x10] sm:$0xff] %vm147, %v6148
  %6176 = vst.msk [vmem:[%s9 + $0x18] sm:$0xff] %vm147, %v6150
  %6177 = vst.msk [vmem:[%s9 + $0x20] sm:$0xff] %vm147, %v6152
  %6178 = vst.msk [vmem:[%s9 + $0x28] sm:$0xff] %vm147, %v6154
  %6179 = vst.msk [vmem:[%s9 + $0x30] sm:$0xff] %vm147, %v6156
  %6180 = vst.msk [vmem:[%s9 + $0x38] sm:$0xff] %vm147, %v6158
  %6181 = vst.msk [vmem:[%s9 + $0x40] sm:$0xf] %vm230, %v6172
  // Predicated region
  $region38: #{pos_encoding_henerv_forward.1} parent=0 // pred_check
    _
  $region39: #{pos_encoding_henerv_forward.1} parent=0 // pred_check_branch
    %6183 = sbr.rel (0) target = $region41
  $region40: #{pos_encoding_henerv_forward.1} parent=0 // pred_region
    _
  $region41: #{pos_encoding_henerv_forward.1} parent=0 // pred_fallthru
    _
  // Predicated region
  $region42: #{pos_encoding_henerv_forward.1} parent=0 // pred_check
    _
  $region43: #{pos_encoding_henerv_forward.1} parent=0 // pred_check_branch
    %6185 = sbr.rel (0) target = $region45
  $region44: #{pos_encoding_henerv_forward.1} parent=0 // pred_region
    _
  $region45: #{pos_encoding_henerv_forward.1} parent=0 // pred_fallthru
    _

</llo_original>
